<compile_context>
chip_gen: v6e
topology: v6e:2x2x1
jax: 0.10.0
libtpu: 0.0.40
codegen_flags: <defaults>
</compile_context>

<pallas_src>
import functools

import numpy as np

import jax
import jax.numpy as jnp
from jax import lax
from jax.experimental import pallas as pl
from jax.experimental.pallas import tpu as pltpu


# (out_channels, kernel, stride, padding) for the three conv layers.
CONV_CFG = ((32, 8, 4, 4), (64, 4, 2, 2), (128, 3, 1, 1))
FC_HIDDEN = 512
BN_EPS = 1e-5


def _net_dims(c0, h, w):
    """Static shape bookkeeping for the conv stack."""
    d = {"C0": c0}
    cin, ih, iw = c0, h, w
    for li, (cout, k, s, p) in enumerate(CONV_CFG, start=1):
        oh = (ih + 2 * p - k) // s + 1
        ow = (iw + 2 * p - k) // s + 1
        d[f"C{li}"], d[f"K{li}"], d[f"S{li}"], d[f"P{li}"] = cout, k, s, p
        d[f"IH{li}"], d[f"IW{li}"] = ih, iw
        d[f"OH{li}"], d[f"OW{li}"] = oh, ow
        cin, ih, iw = cout, oh, ow
    d["FC_IN"] = cin * ih * iw
    return d


# ----------------------------------------------------------------------------
# The fused kernel: conv1->relu->bn1 -> conv2->relu->bn2 -> conv3->relu->bn3
#                   -> flatten -> fc1->relu->(dropout eval) -> fc2
# ----------------------------------------------------------------------------
def _dqn_fused_kernel(x_ref, w1_ref, ep1_ref, w2_ref, ep2_ref, w3_ref, ep3_ref,
                      fw1_ref, fb1_ref, fw2_ref, fb2_ref,
                      o_ref, act2_ref, act3_ref, *, n, d):
    """Whole DQN forward in one kernel; everything stays in VMEM / vregs."""
    f32, bf16 = jnp.float32, jnp.bfloat16

    def conv_rows(in_ref, w_ref, ep_ref, li):
        """Conv + bias + ReLU + BN(eval) for layer `li`.

        Yields one (n, OW*Cout) f32 value per output row.  Out-of-range taps
        (H padding) are statically skipped; the stride / W-padding structure is
        baked into the banded weight matrices w_ref[dh]."""
        k, s, p = d[f"K{li}"], d[f"S{li}"], d[f"P{li}"]
        ih, oh = d[f"IH{li}"], d[f"OH{li}"]
        for i in range(oh):
            acc = None
            for dh in range(k):
                hh = i * s + dh - p
                if 0 <= hh < ih:
                    xrow = in_ref[hh * n:(hh + 1) * n, :].astype(bf16)
                    term = jnp.dot(xrow, w_ref[dh], preferred_element_type=f32)
                    acc = term if acc is None else acc + term
            acc = acc + ep_ref[0:1, :]                    # conv bias (tiled per out col)
            acc = jnp.maximum(acc, 0.0)                   # ReLU
            acc = acc * ep_ref[1:2, :] + ep_ref[2:3, :]   # BatchNorm2d affine (eval)
            yield i, acc

    # conv1 -> act2, conv2 -> act3 (VMEM scratch, (H*N, W*C) row layout).
    for i, row in conv_rows(x_ref, w1_ref, ep1_ref, 1):
        act2_ref[i * n:(i + 1) * n, :] = row
    for i, row in conv_rows(act2_ref, w2_ref, ep2_ref, 2):
        act3_ref[i * n:(i + 1) * n, :] = row

    # conv3 output rows are consumed directly by fc1 (never materialized).
    blk = d["OW3"] * d["C3"]
    fc1 = jnp.zeros((n, fb1_ref.shape[-1]), f32)
    for i, row in conv_rows(act3_ref, w3_ref, ep3_ref, 3):
        fc1 = fc1 + jnp.dot(row.astype(bf16), fw1_ref[i * blk:(i + 1) * blk, :],
                            preferred_element_type=f32)
    h = jnp.maximum(fc1 + fb1_ref[...], 0.0)              # Linear -> ReLU
    # TODO(synk): Dropout(p=0.5) is eval-mode identity; stochastic dropout and
    #             training-mode (batch-stat) BatchNorm are not implemented.
    q = jnp.dot(h.astype(bf16), fw2_ref[...], preferred_element_type=f32) + fb2_ref[...]
    o_ref[...] = q.astype(o_ref.dtype)


# ----------------------------------------------------------------------------
# One-time parameter repacking (banded conv matrices, packed epilogue slabs,
# permuted fc1 rows).  Pure host-side numpy; done once, off the hot path.
# ----------------------------------------------------------------------------
def _banded_conv_weights(w, iw, ow, s, p):
    """PyTorch OIHW conv weight -> per-kernel-row banded matmul operands.

    Returns big (k, IW*Cin, OW*Cout) in bf16 such that
        out_row_i = sum_dh  x_row_{i*s+dh-p} @ big[dh]
    implements Conv2d(stride=s, padding=p) on an (N, IW*Cin) activation slab
    whose columns are (w, c)-ordered.
    """
    w = np.asarray(w, np.float32)
    cout, cin, k, _ = w.shape
    big = np.zeros((k, iw * cin, ow * cout), np.float32)
    for dh in range(k):
        for j in range(ow):
            for dw in range(k):
                wc = j * s + dw - p
                if 0 <= wc < iw:
                    big[dh, wc * cin:(wc + 1) * cin,
                        j * cout:(j + 1) * cout] = w[:, :, dh, dw].T
    return jnp.asarray(big, jnp.bfloat16)


def prepare_params(params, input_shape):
    """Repack PyTorch-layout parameters into kernel-ready arrays (one-time)."""
    c0, h, w = input_shape
    d = _net_dims(c0, h, w)
    prep = {}
    for li in (1, 2, 3):
        prep[f"w{li}"] = _banded_conv_weights(
            params[f"w{li}"], d[f"IW{li}"], d[f"OW{li}"], d[f"S{li}"], d[f"P{li}"])
        bn = params[f"bn{li}"]
        scale = (np.asarray(bn["gamma"], np.float32)
                 / np.sqrt(np.asarray(bn["rvar"], np.float32) + BN_EPS))
        shift = (np.asarray(bn["beta"], np.float32)
                 - np.asarray(bn["rmean"], np.float32) * scale)
        bias = np.asarray(params[f"b{li}"], np.float32)
        ow = d[f"OW{li}"]
        # bias / bn-scale / bn-shift packed into one (3, OW*Cout) slab.
        prep[f"ep{li}"] = jnp.asarray(
            np.stack([np.tile(bias, ow), np.tile(scale, ow), np.tile(shift, ow)]),
            jnp.float32)
    # fc1 rows: PyTorch flattens NCHW as (c, h, w); the kernel's conv3 rows are
    # ordered (h; then w*C3+c), so permute the weight rows once here instead of
    # transposing the activation every forward.
    c3, oh3, ow3 = d["C3"], d["OH3"], d["OW3"]
    fw1 = np.asarray(params["fw1"], np.float32).reshape(c3, oh3, ow3, -1)
    fw1 = np.transpose(fw1, (1, 2, 0, 3)).reshape(oh3 * ow3 * c3, -1)
    prep["fw1"] = jnp.asarray(fw1, jnp.bfloat16)
    prep["fb1"] = jnp.asarray(np.asarray(params["fb1"], np.float32).reshape(1, -1))
    prep["fw2"] = jnp.asarray(params["fw2"], jnp.bfloat16)
    prep["fb2"] = jnp.asarray(np.asarray(params["fb2"], np.float32).reshape(1, -1))
    return prep


# ----------------------------------------------------------------------------
# Forward pass: one fused pallas_call
# ----------------------------------------------------------------------------
@jax.jit
def dqn_forward(prep, x):
    n, c0, h, w = x.shape
    d = _net_dims(c0, h, w)
    n_actions = prep["fb2"].shape[-1]

    # NCHW -> (H, N, W, C) -> 2-D (H*N, W*C) activation slab (only layout op).
    x2d = jnp.transpose(x, (2, 0, 3, 1)).reshape(h * n, w * c0)

    vmem = pltpu.MemorySpace.VMEM
    kernel = functools.partial(_dqn_fused_kernel, n=n, d=d)
    return pl.pallas_call(
        kernel,
        out_shape=jax.ShapeDtypeStruct((n, n_actions), jnp.float32),
        in_specs=[pl.BlockSpec(memory_space=vmem)] * 11,
        out_specs=pl.BlockSpec(memory_space=vmem),
        scratch_shapes=[
            pltpu.VMEM((d["OH1"] * n, d["OW1"] * d["C1"]), jnp.float32),  # conv1 out
            pltpu.VMEM((d["OH2"] * n, d["OW2"] * d["C2"]), jnp.float32),  # conv2 out
        ],
    )(x2d, prep["w1"], prep["ep1"], prep["w2"], prep["ep2"],
      prep["w3"], prep["ep3"], prep["fw1"], prep["fb1"], prep["fw2"], prep["fb2"])


# ----------------------------------------------------------------------------
# Deterministic init (PyTorch layouts) and a pure-JAX f32 reference check
# ----------------------------------------------------------------------------
def init_params(key, in_ch, n_actions, fc_input_dim):
    def nrm(k, shape, scale=0.05):
        return (scale * jax.random.normal(k, shape)).astype(jnp.float32)

    ks = jax.random.split(key, 10)
    p = {}
    p["w1"] = nrm(ks[0], (32, in_ch, 8, 8)); p["b1"] = nrm(ks[1], (32,))
    p["w2"] = nrm(ks[2], (64, 32, 4, 4));    p["b2"] = nrm(ks[3], (64,))
    p["w3"] = nrm(ks[4], (128, 64, 3, 3));   p["b3"] = nrm(ks[5], (128,))
    for name, c in (("bn1", 32), ("bn2", 64), ("bn3", 128)):
        p[name] = dict(gamma=jnp.ones((c,), jnp.float32),
                       beta=jnp.zeros((c,), jnp.float32),
                       rmean=jnp.zeros((c,), jnp.float32),
                       rvar=jnp.ones((c,), jnp.float32))
    p["fw1"] = nrm(ks[6], (fc_input_dim, FC_HIDDEN)); p["fb1"] = nrm(ks[7], (FC_HIDDEN,))
    p["fw2"] = nrm(ks[8], (FC_HIDDEN, n_actions));    p["fb2"] = nrm(ks[9], (n_actions,))
    return p


def _ref_forward(params, x, eps=BN_EPS):
    """Pure-JAX f32 reference (same math, no Pallas)."""
    p = params

    def conv_block(h, w, b, bn, s, pad):
        y = lax.conv_general_dilated(h, w, (s, s), ((pad, pad), (pad, pad)),
                                     dimension_numbers=("NCHW", "OIHW", "NCHW"))
        y = y + b[None, :, None, None]
        y = jnp.maximum(y, 0.0)
        scale = bn["gamma"] / jnp.sqrt(bn["rvar"] + eps)
        shift = bn["beta"] - bn["rmean"] * scale
        return y * scale[None, :, None, None] + shift[None, :, None, None]

    h = conv_block(x, p["w1"], p["b1"], p["bn1"], 4, 4)
    h = conv_block(h, p["w2"], p["b2"], p["bn2"], 2, 2)
    h = conv_block(h, p["w3"], p["b3"], p["bn3"], 1, 1)
    h = h.reshape(h.shape[0], -1)
    h = jnp.maximum(h @ p["fw1"] + p["fb1"], 0.0)
    return h @ p["fw2"] + p["fb2"]


if __name__ == "__main__":
    # input_shape = (4, 16, 16) (C, H, W), batch=2, n_actions=6
    batch, in_ch, H, W = 2, 4, 16, 16
    n_actions = 6

    dims = _net_dims(in_ch, H, W)
    fc_input_dim = dims["FC_IN"]            # 128*3*3, mirrors _get_conv_output

    key = jax.random.PRNGKey(0)
    kx, kp = jax.random.split(key)
    x = jax.random.normal(kx, (batch, in_ch, H, W), dtype=jnp.float32)
    params = init_params(kp, in_ch, n_actions, fc_input_dim)
    prep = prepare_params(params, (in_ch, H, W))

    q = jax.block_until_ready(dqn_forward(prep, x))
    assert q.shape == (batch, n_actions), q.shape

    # bf16 matmul operands (f32 accumulation) => compare with relaxed tolerance.
    q_ref = jax.block_until_ready(_ref_forward(params, x))
    assert jnp.allclose(q, q_ref, rtol=2e-2, atol=2e-2), (q, q_ref)

    print("KERNEL_OK")
</pallas_src>

<mosaic_0001>
module attributes {stable_mosaic.version = 11 : i64} {
  func.func @_dqn_fused_kernel(%arg0: memref<32x64xf32, #tpu.memory_space<vmem>>, %arg1: memref<8x64x160xbf16, #tpu.memory_space<vmem>>, %arg2: memref<3x160xf32, #tpu.memory_space<vmem>>, %arg3: memref<4x160x192xbf16, #tpu.memory_space<vmem>>, %arg4: memref<3x192xf32, #tpu.memory_space<vmem>>, %arg5: memref<3x192x384xbf16, #tpu.memory_space<vmem>>, %arg6: memref<3x384xf32, #tpu.memory_space<vmem>>, %arg7: memref<1152x512xbf16, #tpu.memory_space<vmem>>, %arg8: memref<1x512xf32, #tpu.memory_space<vmem>>, %arg9: memref<512x6xbf16, #tpu.memory_space<vmem>>, %arg10: memref<1x6xf32, #tpu.memory_space<vmem>>, %arg11: memref<2x6xf32, #tpu.memory_space<vmem>>, %arg12: memref<10x160xf32, #tpu.memory_space<vmem>>, %arg13: memref<6x192xf32, #tpu.memory_space<vmem>>) attributes {dimension_semantics = [], scalar_prefetch = 0 : i64, scratch_operands = 2 : i64, tpu.core_type = #tpu.core_type<tc>} {
    %c0 = arith.constant 0 : index
    %c0_0 = arith.constant 0 : index
    %0 = vector.load %arg0[%c0, %c0_0] : memref<32x64xf32, #tpu.memory_space<vmem>>, vector<2x64xf32>
    %1 = arith.truncf %0 : vector<2x64xf32> to vector<2x64xbf16>
    %c4 = arith.constant 4 : index
    %c0_1 = arith.constant 0 : index
    %c0_2 = arith.constant 0 : index
    %2 = vector.load %arg1[%c4, %c0_1, %c0_2] : memref<8x64x160xbf16, #tpu.memory_space<vmem>>, vector<1x64x160xbf16>
    %3 = vector.shape_cast %2 : vector<1x64x160xbf16> to vector<64x160xbf16>
    %cst = arith.constant dense<0.000000e+00> : vector<2x160xf32>
    %4 = tpu.matmul %1, %3, %cst {dimension_numbers = #tpu.dot_dimension_numbers<[1], [0], [0], [1], [0, 0, 1, 1], [], []>} : vector<2x64xbf16>, vector<64x160xbf16>, vector<2x160xf32> -> vector<2x160xf32>
    %c2 = arith.constant 2 : index
    %c0_3 = arith.constant 0 : index
    %5 = vector.load %arg0[%c2, %c0_3] : memref<32x64xf32, #tpu.memory_space<vmem>>, vector<2x64xf32>
    %6 = arith.truncf %5 : vector<2x64xf32> to vector<2x64xbf16>
    %c5 = arith.constant 5 : index
    %c0_4 = arith.constant 0 : index
    %c0_5 = arith.constant 0 : index
    %7 = vector.load %arg1[%c5, %c0_4, %c0_5] : memref<8x64x160xbf16, #tpu.memory_space<vmem>>, vector<1x64x160xbf16>
    %8 = vector.shape_cast %7 : vector<1x64x160xbf16> to vector<64x160xbf16>
    %cst_6 = arith.constant dense<0.000000e+00> : vector<2x160xf32>
    %9 = tpu.matmul %6, %8, %cst_6 {dimension_numbers = #tpu.dot_dimension_numbers<[1], [0], [0], [1], [0, 0, 1, 1], [], []>} : vector<2x64xbf16>, vector<64x160xbf16>, vector<2x160xf32> -> vector<2x160xf32>
    %10 = arith.addf %4, %9 : vector<2x160xf32>
    %c4_7 = arith.constant 4 : index
    %c0_8 = arith.constant 0 : index
    %11 = vector.load %arg0[%c4_7, %c0_8] : memref<32x64xf32, #tpu.memory_space<vmem>>, vector<2x64xf32>
    %12 = arith.truncf %11 : vector<2x64xf32> to vector<2x64xbf16>
    %c6 = arith.constant 6 : index
    %c0_9 = arith.constant 0 : index
    %c0_10 = arith.constant 0 : index
    %13 = vector.load %arg1[%c6, %c0_9, %c0_10] : memref<8x64x160xbf16, #tpu.memory_space<vmem>>, vector<1x64x160xbf16>
    %14 = vector.shape_cast %13 : vector<1x64x160xbf16> to vector<64x160xbf16>
    %cst_11 = arith.constant dense<0.000000e+00> : vector<2x160xf32>
    %15 = tpu.matmul %12, %14, %cst_11 {dimension_numbers = #tpu.dot_dimension_numbers<[1], [0], [0], [1], [0, 0, 1, 1], [], []>} : vector<2x64xbf16>, vector<64x160xbf16>, vector<2x160xf32> -> vector<2x160xf32>
    %16 = arith.addf %10, %15 : vector<2x160xf32>
    %c6_12 = arith.constant 6 : index
    %c0_13 = arith.constant 0 : index
    %17 = vector.load %arg0[%c6_12, %c0_13] : memref<32x64xf32, #tpu.memory_space<vmem>>, vector<2x64xf32>
    %18 = arith.truncf %17 : vector<2x64xf32> to vector<2x64xbf16>
    %c7 = arith.constant 7 : index
    %c0_14 = arith.constant 0 : index
    %c0_15 = arith.constant 0 : index
    %19 = vector.load %arg1[%c7, %c0_14, %c0_15] : memref<8x64x160xbf16, #tpu.memory_space<vmem>>, vector<1x64x160xbf16>
    %20 = vector.shape_cast %19 : vector<1x64x160xbf16> to vector<64x160xbf16>
    %cst_16 = arith.constant dense<0.000000e+00> : vector<2x160xf32>
    %21 = tpu.matmul %18, %20, %cst_16 {dimension_numbers = #tpu.dot_dimension_numbers<[1], [0], [0], [1], [0, 0, 1, 1], [], []>} : vector<2x64xbf16>, vector<64x160xbf16>, vector<2x160xf32> -> vector<2x160xf32>
    %22 = arith.addf %16, %21 : vector<2x160xf32>
    %c0_17 = arith.constant 0 : index
    %c0_18 = arith.constant 0 : index
    %23 = vector.load %arg2[%c0_17, %c0_18] : memref<3x160xf32, #tpu.memory_space<vmem>>, vector<1x160xf32>
    %24 = vector.broadcast %23 : vector<1x160xf32> to vector<2x160xf32>
    %25 = arith.addf %22, %24 : vector<2x160xf32>
    %cst_19 = arith.constant 0.000000e+00 : f32
    %26 = vector.broadcast %cst_19 : f32 to vector<2x160xf32>
    %27 = arith.maximumf %25, %26 : vector<2x160xf32>
    %c1 = arith.constant 1 : index
    %c0_20 = arith.constant 0 : index
    %28 = vector.load %arg2[%c1, %c0_20] : memref<3x160xf32, #tpu.memory_space<vmem>>, vector<1x160xf32>
    %29 = vector.broadcast %28 : vector<1x160xf32> to vector<2x160xf32>
    %30 = arith.mulf %27, %29 : vector<2x160xf32>
    %c2_21 = arith.constant 2 : index
    %c0_22 = arith.constant 0 : index
    %31 = vector.load %arg2[%c2_21, %c0_22] : memref<3x160xf32, #tpu.memory_space<vmem>>, vector<1x160xf32>
    %32 = vector.broadcast %31 : vector<1x160xf32> to vector<2x160xf32>
    %33 = arith.addf %30, %32 : vector<2x160xf32>
    %c0_23 = arith.constant 0 : index
    %c0_24 = arith.constant 0 : index
    %34 = vector.load %arg12[%c0_23, %c0_24] : memref<10x160xf32, #tpu.memory_space<vmem>>, vector<2x160xf32>
    tpu.vector_store %arg12[%c0_23, %c0_24], %33 {strides = array<i32>} : memref<10x160xf32, #tpu.memory_space<vmem>>, vector<2x160xf32>,
    %c0_25 = arith.constant 0 : index
    %c0_26 = arith.constant 0 : index
    %35 = vector.load %arg0[%c0_25, %c0_26] : memref<32x64xf32, #tpu.memory_space<vmem>>, vector<2x64xf32>
    %36 = arith.truncf %35 : vector<2x64xf32> to vector<2x64xbf16>
    %c0_27 = arith.constant 0 : index
    %c0_28 = arith.constant 0 : index
    %c0_29 = arith.constant 0 : index
    %37 = vector.load %arg1[%c0_27, %c0_28, %c0_29] : memref<8x64x160xbf16, #tpu.memory_space<vmem>>, vector<1x64x160xbf16>
    %38 = vector.shape_cast %37 : vector<1x64x160xbf16> to vector<64x160xbf16>
    %cst_30 = arith.constant dense<0.000000e+00> : vector<2x160xf32>
    %39 = tpu.matmul %36, %38, %cst_30 {dimension_numbers = #tpu.dot_dimension_numbers<[1], [0], [0], [1], [0, 0, 1, 1], [], []>} : vector<2x64xbf16>, vector<64x160xbf16>, vector<2x160xf32> -> vector<2x160xf32>
    %c2_31 = arith.constant 2 : index
    %c0_32 = arith.constant 0 : index
    %40 = vector.load %arg0[%c2_31, %c0_32] : memref<32x64xf32, #tpu.memory_space<vmem>>, vector<2x64xf32>
    %41 = arith.truncf %40 : vector<2x64xf32> to vector<2x64xbf16>
    %c1_33 = arith.constant 1 : index
    %c0_34 = arith.constant 0 : index
    %c0_35 = arith.constant 0 : index
    %42 = vector.load %arg1[%c1_33, %c0_34, %c0_35] : memref<8x64x160xbf16, #tpu.memory_space<vmem>>, vector<1x64x160xbf16>
    %43 = vector.shape_cast %42 : vector<1x64x160xbf16> to vector<64x160xbf16>
    %cst_36 = arith.constant dense<0.000000e+00> : vector<2x160xf32>
    %44 = tpu.matmul %41, %43, %cst_36 {dimension_numbers = #tpu.dot_dimension_numbers<[1], [0], [0], [1], [0, 0, 1, 1], [], []>} : vector<2x64xbf16>, vector<64x160xbf16>, vector<2x160xf32> -> vector<2x160xf32>
    %45 = arith.addf %39, %44 : vector<2x160xf32>
    %c4_37 = arith.constant 4 : index
    %c0_38 = arith.constant 0 : index
    %46 = vector.load %arg0[%c4_37, %c0_38] : memref<32x64xf32, #tpu.memory_space<vmem>>, vector<2x64xf32>
    %47 = arith.truncf %46 : vector<2x64xf32> to vector<2x64xbf16>
    %c2_39 = arith.constant 2 : index
    %c0_40 = arith.constant 0 : index
    %c0_41 = arith.constant 0 : index
    %48 = vector.load %arg1[%c2_39, %c0_40, %c0_41] : memref<8x64x160xbf16, #tpu.memory_space<vmem>>, vector<1x64x160xbf16>
    %49 = vector.shape_cast %48 : vector<1x64x160xbf16> to vector<64x160xbf16>
    %cst_42 = arith.constant dense<0.000000e+00> : vector<2x160xf32>
    %50 = tpu.matmul %47, %49, %cst_42 {dimension_numbers = #tpu.dot_dimension_numbers<[1], [0], [0], [1], [0, 0, 1, 1], [], []>} : vector<2x64xbf16>, vector<64x160xbf16>, vector<2x160xf32> -> vector<2x160xf32>
    %51 = arith.addf %45, %50 : vector<2x160xf32>
    %c6_43 = arith.constant 6 : index
    %c0_44 = arith.constant 0 : index
    %52 = vector.load %arg0[%c6_43, %c0_44] : memref<32x64xf32, #tpu.memory_space<vmem>>, vector<2x64xf32>
    %53 = arith.truncf %52 : vector<2x64xf32> to vector<2x64xbf16>
    %c3 = arith.constant 3 : index
    %c0_45 = arith.constant 0 : index
    %c0_46 = arith.constant 0 : index
    %54 = vector.load %arg1[%c3, %c0_45, %c0_46] : memref<8x64x160xbf16, #tpu.memory_space<vmem>>, vector<1x64x160xbf16>
    %55 = vector.shape_cast %54 : vector<1x64x160xbf16> to vector<64x160xbf16>
    %cst_47 = arith.constant dense<0.000000e+00> : vector<2x160xf32>
    %56 = tpu.matmul %53, %55, %cst_47 {dimension_numbers = #tpu.dot_dimension_numbers<[1], [0], [0], [1], [0, 0, 1, 1], [], []>} : vector<2x64xbf16>, vector<64x160xbf16>, vector<2x160xf32> -> vector<2x160xf32>
    %57 = arith.addf %51, %56 : vector<2x160xf32>
    %c8 = arith.constant 8 : index
    %c0_48 = arith.constant 0 : index
    %58 = vector.load %arg0[%c8, %c0_48] : memref<32x64xf32, #tpu.memory_space<vmem>>, vector<2x64xf32>
    %59 = arith.truncf %58 : vector<2x64xf32> to vector<2x64xbf16>
    %c4_49 = arith.constant 4 : index
    %c0_50 = arith.constant 0 : index
    %c0_51 = arith.constant 0 : index
    %60 = vector.load %arg1[%c4_49, %c0_50, %c0_51] : memref<8x64x160xbf16, #tpu.memory_space<vmem>>, vector<1x64x160xbf16>
    %61 = vector.shape_cast %60 : vector<1x64x160xbf16> to vector<64x160xbf16>
    %cst_52 = arith.constant dense<0.000000e+00> : vector<2x160xf32>
    %62 = tpu.matmul %59, %61, %cst_52 {dimension_numbers = #tpu.dot_dimension_numbers<[1], [0], [0], [1], [0, 0, 1, 1], [], []>} : vector<2x64xbf16>, vector<64x160xbf16>, vector<2x160xf32> -> vector<2x160xf32>
    %63 = arith.addf %57, %62 : vector<2x160xf32>
    %c10 = arith.constant 10 : index
    %c0_53 = arith.constant 0 : index
    %64 = vector.load %arg0[%c10, %c0_53] : memref<32x64xf32, #tpu.memory_space<vmem>>, vector<2x64xf32>
    %65 = arith.truncf %64 : vector<2x64xf32> to vector<2x64xbf16>
    %c5_54 = arith.constant 5 : index
    %c0_55 = arith.constant 0 : index
    %c0_56 = arith.constant 0 : index
    %66 = vector.load %arg1[%c5_54, %c0_55, %c0_56] : memref<8x64x160xbf16, #tpu.memory_space<vmem>>, vector<1x64x160xbf16>
    %67 = vector.shape_cast %66 : vector<1x64x160xbf16> to vector<64x160xbf16>
    %cst_57 = arith.constant dense<0.000000e+00> : vector<2x160xf32>
    %68 = tpu.matmul %65, %67, %cst_57 {dimension_numbers = #tpu.dot_dimension_numbers<[1], [0], [0], [1], [0, 0, 1, 1], [], []>} : vector<2x64xbf16>, vector<64x160xbf16>, vector<2x160xf32> -> vector<2x160xf32>
    %69 = arith.addf %63, %68 : vector<2x160xf32>
    %c12 = arith.constant 12 : index
    %c0_58 = arith.constant 0 : index
    %70 = vector.load %arg0[%c12, %c0_58] : memref<32x64xf32, #tpu.memory_space<vmem>>, vector<2x64xf32>
    %71 = arith.truncf %70 : vector<2x64xf32> to vector<2x64xbf16>
    %c6_59 = arith.constant 6 : index
    %c0_60 = arith.constant 0 : index
    %c0_61 = arith.constant 0 : index
    %72 = vector.load %arg1[%c6_59, %c0_60, %c0_61] : memref<8x64x160xbf16, #tpu.memory_space<vmem>>, vector<1x64x160xbf16>
    %73 = vector.shape_cast %72 : vector<1x64x160xbf16> to vector<64x160xbf16>
    %cst_62 = arith.constant dense<0.000000e+00> : vector<2x160xf32>
    %74 = tpu.matmul %71, %73, %cst_62 {dimension_numbers = #tpu.dot_dimension_numbers<[1], [0], [0], [1], [0, 0, 1, 1], [], []>} : vector<2x64xbf16>, vector<64x160xbf16>, vector<2x160xf32> -> vector<2x160xf32>
    %75 = arith.addf %69, %74 : vector<2x160xf32>
    %c14 = arith.constant 14 : index
    %c0_63 = arith.constant 0 : index
    %76 = vector.load %arg0[%c14, %c0_63] : memref<32x64xf32, #tpu.memory_space<vmem>>, vector<2x64xf32>
    %77 = arith.truncf %76 : vector<2x64xf32> to vector<2x64xbf16>
    %c7_64 = arith.constant 7 : index
    %c0_65 = arith.constant 0 : index
    %c0_66 = arith.constant 0 : index
    %78 = vector.load %arg1[%c7_64, %c0_65, %c0_66] : memref<8x64x160xbf16, #tpu.memory_space<vmem>>, vector<1x64x160xbf16>
    %79 = vector.shape_cast %78 : vector<1x64x160xbf16> to vector<64x160xbf16>
    %cst_67 = arith.constant dense<0.000000e+00> : vector<2x160xf32>
    %80 = tpu.matmul %77, %79, %cst_67 {dimension_numbers = #tpu.dot_dimension_numbers<[1], [0], [0], [1], [0, 0, 1, 1], [], []>} : vector<2x64xbf16>, vector<64x160xbf16>, vector<2x160xf32> -> vector<2x160xf32>
    %81 = arith.addf %75, %80 : vector<2x160xf32>
    %c0_68 = arith.constant 0 : index
    %c0_69 = arith.constant 0 : index
    %82 = vector.load %arg2[%c0_68, %c0_69] : memref<3x160xf32, #tpu.memory_space<vmem>>, vector<1x160xf32>
    %83 = vector.broadcast %82 : vector<1x160xf32> to vector<2x160xf32>
    %84 = arith.addf %81, %83 : vector<2x160xf32>
    %cst_70 = arith.constant 0.000000e+00 : f32
    %85 = vector.broadcast %cst_70 : f32 to vector<2x160xf32>
    %86 = arith.maximumf %84, %85 : vector<2x160xf32>
    %c1_71 = arith.constant 1 : index
    %c0_72 = arith.constant 0 : index
    %87 = vector.load %arg2[%c1_71, %c0_72] : memref<3x160xf32, #tpu.memory_space<vmem>>, vector<1x160xf32>
    %88 = vector.broadcast %87 : vector<1x160xf32> to vector<2x160xf32>
    %89 = arith.mulf %86, %88 : vector<2x160xf32>
    %c2_73 = arith.constant 2 : index
    %c0_74 = arith.constant 0 : index
    %90 = vector.load %arg2[%c2_73, %c0_74] : memref<3x160xf32, #tpu.memory_space<vmem>>, vector<1x160xf32>
    %91 = vector.broadcast %90 : vector<1x160xf32> to vector<2x160xf32>
    %92 = arith.addf %89, %91 : vector<2x160xf32>
    %c2_75 = arith.constant 2 : index
    %c0_76 = arith.constant 0 : index
    %93 = vector.load %arg12[%c2_75, %c0_76] : memref<10x160xf32, #tpu.memory_space<vmem>>, vector<2x160xf32>
    tpu.vector_store %arg12[%c2_75, %c0_76], %92 {strides = array<i32>} : memref<10x160xf32, #tpu.memory_space<vmem>>, vector<2x160xf32>,
    %c8_77 = arith.constant 8 : index
    %c0_78 = arith.constant 0 : index
    %94 = vector.load %arg0[%c8_77, %c0_78] : memref<32x64xf32, #tpu.memory_space<vmem>>, vector<2x64xf32>
    %95 = arith.truncf %94 : vector<2x64xf32> to vector<2x64xbf16>
    %c0_79 = arith.constant 0 : index
    %c0_80 = arith.constant 0 : index
    %c0_81 = arith.constant 0 : index
    %96 = vector.load %arg1[%c0_79, %c0_80, %c0_81] : memref<8x64x160xbf16, #tpu.memory_space<vmem>>, vector<1x64x160xbf16>
    %97 = vector.shape_cast %96 : vector<1x64x160xbf16> to vector<64x160xbf16>
    %cst_82 = arith.constant dense<0.000000e+00> : vector<2x160xf32>
    %98 = tpu.matmul %95, %97, %cst_82 {dimension_numbers = #tpu.dot_dimension_numbers<[1], [0], [0], [1], [0, 0, 1, 1], [], []>} : vector<2x64xbf16>, vector<64x160xbf16>, vector<2x160xf32> -> vector<2x160xf32>
    %c10_83 = arith.constant 10 : index
    %c0_84 = arith.constant 0 : index
    %99 = vector.load %arg0[%c10_83, %c0_84] : memref<32x64xf32, #tpu.memory_space<vmem>>, vector<2x64xf32>
    %100 = arith.truncf %99 : vector<2x64xf32> to vector<2x64xbf16>
    %c1_85 = arith.constant 1 : index
    %c0_86 = arith.constant 0 : index
    %c0_87 = arith.constant 0 : index
    %101 = vector.load %arg1[%c1_85, %c0_86, %c0_87] : memref<8x64x160xbf16, #tpu.memory_space<vmem>>, vector<1x64x160xbf16>
    %102 = vector.shape_cast %101 : vector<1x64x160xbf16> to vector<64x160xbf16>
    %cst_88 = arith.constant dense<0.000000e+00> : vector<2x160xf32>
    %103 = tpu.matmul %100, %102, %cst_88 {dimension_numbers = #tpu.dot_dimension_numbers<[1], [0], [0], [1], [0, 0, 1, 1], [], []>} : vector<2x64xbf16>, vector<64x160xbf16>, vector<2x160xf32> -> vector<2x160xf32>
    %104 = arith.addf %98, %103 : vector<2x160xf32>
    %c12_89 = arith.constant 12 : index
    %c0_90 = arith.constant 0 : index
    %105 = vector.load %arg0[%c12_89, %c0_90] : memref<32x64xf32, #tpu.memory_space<vmem>>, vector<2x64xf32>
    %106 = arith.truncf %105 : vector<2x64xf32> to vector<2x64xbf16>
    %c2_91 = arith.constant 2 : index
    %c0_92 = arith.constant 0 : index
    %c0_93 = arith.constant 0 : index
    %107 = vector.load %arg1[%c2_91, %c0_92, %c0_93] : memref<8x64x160xbf16, #tpu.memory_space<vmem>>, vector<1x64x160xbf16>
    %108 = vector.shape_cast %107 : vector<1x64x160xbf16> to vector<64x160xbf16>
    %cst_94 = arith.constant dense<0.000000e+00> : vector<2x160xf32>
    %109 = tpu.matmul %106, %108, %cst_94 {dimension_numbers = #tpu.dot_dimension_numbers<[1], [0], [0], [1], [0, 0, 1, 1], [], []>} : vector<2x64xbf16>, vector<64x160xbf16>, vector<2x160xf32> -> vector<2x160xf32>
    %110 = arith.addf %104, %109 : vector<2x160xf32>
    %c14_95 = arith.constant 14 : index
    %c0_96 = arith.constant 0 : index
    %111 = vector.load %arg0[%c14_95, %c0_96] : memref<32x64xf32, #tpu.memory_space<vmem>>, vector<2x64xf32>
    %112 = arith.truncf %111 : vector<2x64xf32> to vector<2x64xbf16>
    %c3_97 = arith.constant 3 : index
    %c0_98 = arith.constant 0 : index
    %c0_99 = arith.constant 0 : index
    %113 = vector.load %arg1[%c3_97, %c0_98, %c0_99] : memref<8x64x160xbf16, #tpu.memory_space<vmem>>, vector<1x64x160xbf16>
    %114 = vector.shape_cast %113 : vector<1x64x160xbf16> to vector<64x160xbf16>
    %cst_100 = arith.constant dense<0.000000e+00> : vector<2x160xf32>
    %115 = tpu.matmul %112, %114, %cst_100 {dimension_numbers = #tpu.dot_dimension_numbers<[1], [0], [0], [1], [0, 0, 1, 1], [], []>} : vector<2x64xbf16>, vector<64x160xbf16>, vector<2x160xf32> -> vector<2x160xf32>
    %116 = arith.addf %110, %115 : vector<2x160xf32>
    %c16 = arith.constant 16 : index
    %c0_101 = arith.constant 0 : index
    %117 = vector.load %arg0[%c16, %c0_101] : memref<32x64xf32, #tpu.memory_space<vmem>>, vector<2x64xf32>
    %118 = arith.truncf %117 : vector<2x64xf32> to vector<2x64xbf16>
    %c4_102 = arith.constant 4 : index
    %c0_103 = arith.constant 0 : index
    %c0_104 = arith.constant 0 : index
    %119 = vector.load %arg1[%c4_102, %c0_103, %c0_104] : memref<8x64x160xbf16, #tpu.memory_space<vmem>>, vector<1x64x160xbf16>
    %120 = vector.shape_cast %119 : vector<1x64x160xbf16> to vector<64x160xbf16>
    %cst_105 = arith.constant dense<0.000000e+00> : vector<2x160xf32>
    %121 = tpu.matmul %118, %120, %cst_105 {dimension_numbers = #tpu.dot_dimension_numbers<[1], [0], [0], [1], [0, 0, 1, 1], [], []>} : vector<2x64xbf16>, vector<64x160xbf16>, vector<2x160xf32> -> vector<2x160xf32>
    %122 = arith.addf %116, %121 : vector<2x160xf32>
    %c18 = arith.constant 18 : index
    %c0_106 = arith.constant 0 : index
    %123 = vector.load %arg0[%c18, %c0_106] : memref<32x64xf32, #tpu.memory_space<vmem>>, vector<2x64xf32>
    %124 = arith.truncf %123 : vector<2x64xf32> to vector<2x64xbf16>
    %c5_107 = arith.constant 5 : index
    %c0_108 = arith.constant 0 : index
    %c0_109 = arith.constant 0 : index
    %125 = vector.load %arg1[%c5_107, %c0_108, %c0_109] : memref<8x64x160xbf16, #tpu.memory_space<vmem>>, vector<1x64x160xbf16>
    %126 = vector.shape_cast %125 : vector<1x64x160xbf16> to vector<64x160xbf16>
    %cst_110 = arith.constant dense<0.000000e+00> : vector<2x160xf32>
    %127 = tpu.matmul %124, %126, %cst_110 {dimension_numbers = #tpu.dot_dimension_numbers<[1], [0], [0], [1], [0, 0, 1, 1], [], []>} : vector<2x64xbf16>, vector<64x160xbf16>, vector<2x160xf32> -> vector<2x160xf32>
    %128 = arith.addf %122, %127 : vector<2x160xf32>
    %c20 = arith.constant 20 : index
    %c0_111 = arith.constant 0 : index
    %129 = vector.load %arg0[%c20, %c0_111] : memref<32x64xf32, #tpu.memory_space<vmem>>, vector<2x64xf32>
    %130 = arith.truncf %129 : vector<2x64xf32> to vector<2x64xbf16>
    %c6_112 = arith.constant 6 : index
    %c0_113 = arith.constant 0 : index
    %c0_114 = arith.constant 0 : index
    %131 = vector.load %arg1[%c6_112, %c0_113, %c0_114] : memref<8x64x160xbf16, #tpu.memory_space<vmem>>, vector<1x64x160xbf16>
    %132 = vector.shape_cast %131 : vector<1x64x160xbf16> to vector<64x160xbf16>
    %cst_115 = arith.constant dense<0.000000e+00> : vector<2x160xf32>
    %133 = tpu.matmul %130, %132, %cst_115 {dimension_numbers = #tpu.dot_dimension_numbers<[1], [0], [0], [1], [0, 0, 1, 1], [], []>} : vector<2x64xbf16>, vector<64x160xbf16>, vector<2x160xf32> -> vector<2x160xf32>
    %134 = arith.addf %128, %133 : vector<2x160xf32>
    %c22 = arith.constant 22 : index
    %c0_116 = arith.constant 0 : index
    %135 = vector.load %arg0[%c22, %c0_116] : memref<32x64xf32, #tpu.memory_space<vmem>>, vector<2x64xf32>
    %136 = arith.truncf %135 : vector<2x64xf32> to vector<2x64xbf16>
    %c7_117 = arith.constant 7 : index
    %c0_118 = arith.constant 0 : index
    %c0_119 = arith.constant 0 : index
    %137 = vector.load %arg1[%c7_117, %c0_118, %c0_119] : memref<8x64x160xbf16, #tpu.memory_space<vmem>>, vector<1x64x160xbf16>
    %138 = vector.shape_cast %137 : vector<1x64x160xbf16> to vector<64x160xbf16>
    %cst_120 = arith.constant dense<0.000000e+00> : vector<2x160xf32>
    %139 = tpu.matmul %136, %138, %cst_120 {dimension_numbers = #tpu.dot_dimension_numbers<[1], [0], [0], [1], [0, 0, 1, 1], [], []>} : vector<2x64xbf16>, vector<64x160xbf16>, vector<2x160xf32> -> vector<2x160xf32>
    %140 = arith.addf %134, %139 : vector<2x160xf32>
    %c0_121 = arith.constant 0 : index
    %c0_122 = arith.constant 0 : index
    %141 = vector.load %arg2[%c0_121, %c0_122] : memref<3x160xf32, #tpu.memory_space<vmem>>, vector<1x160xf32>
    %142 = vector.broadcast %141 : vector<1x160xf32> to vector<2x160xf32>
    %143 = arith.addf %140, %142 : vector<2x160xf32>
    %cst_123 = arith.constant 0.000000e+00 : f32
    %144 = vector.broadcast %cst_123 : f32 to vector<2x160xf32>
    %145 = arith.maximumf %143, %144 : vector<2x160xf32>
    %c1_124 = arith.constant 1 : index
    %c0_125 = arith.constant 0 : index
    %146 = vector.load %arg2[%c1_124, %c0_125] : memref<3x160xf32, #tpu.memory_space<vmem>>, vector<1x160xf32>
    %147 = vector.broadcast %146 : vector<1x160xf32> to vector<2x160xf32>
    %148 = arith.mulf %145, %147 : vector<2x160xf32>
    %c2_126 = arith.constant 2 : index
    %c0_127 = arith.constant 0 : index
    %149 = vector.load %arg2[%c2_126, %c0_127] : memref<3x160xf32, #tpu.memory_space<vmem>>, vector<1x160xf32>
    %150 = vector.broadcast %149 : vector<1x160xf32> to vector<2x160xf32>
    %151 = arith.addf %148, %150 : vector<2x160xf32>
    %c4_128 = arith.constant 4 : index
    %c0_129 = arith.constant 0 : index
    %152 = vector.load %arg12[%c4_128, %c0_129] : memref<10x160xf32, #tpu.memory_space<vmem>>, vector<2x160xf32>
    tpu.vector_store %arg12[%c4_128, %c0_129], %151 {strides = array<i32>} : memref<10x160xf32, #tpu.memory_space<vmem>>, vector<2x160xf32>,
    %c16_130 = arith.constant 16 : index
    %c0_131 = arith.constant 0 : index
    %153 = vector.load %arg0[%c16_130, %c0_131] : memref<32x64xf32, #tpu.memory_space<vmem>>, vector<2x64xf32>
    %154 = arith.truncf %153 : vector<2x64xf32> to vector<2x64xbf16>
    %c0_132 = arith.constant 0 : index
    %c0_133 = arith.constant 0 : index
    %c0_134 = arith.constant 0 : index
    %155 = vector.load %arg1[%c0_132, %c0_133, %c0_134] : memref<8x64x160xbf16, #tpu.memory_space<vmem>>, vector<1x64x160xbf16>
    %156 = vector.shape_cast %155 : vector<1x64x160xbf16> to vector<64x160xbf16>
    %cst_135 = arith.constant dense<0.000000e+00> : vector<2x160xf32>
    %157 = tpu.matmul %154, %156, %cst_135 {dimension_numbers = #tpu.dot_dimension_numbers<[1], [0], [0], [1], [0, 0, 1, 1], [], []>} : vector<2x64xbf16>, vector<64x160xbf16>, vector<2x160xf32> -> vector<2x160xf32>
    %c18_136 = arith.constant 18 : index
    %c0_137 = arith.constant 0 : index
    %158 = vector.load %arg0[%c18_136, %c0_137] : memref<32x64xf32, #tpu.memory_space<vmem>>, vector<2x64xf32>
    %159 = arith.truncf %158 : vector<2x64xf32> to vector<2x64xbf16>
    %c1_138 = arith.constant 1 : index
    %c0_139 = arith.constant 0 : index
    %c0_140 = arith.constant 0 : index
    %160 = vector.load %arg1[%c1_138, %c0_139, %c0_140] : memref<8x64x160xbf16, #tpu.memory_space<vmem>>, vector<1x64x160xbf16>
    %161 = vector.shape_cast %160 : vector<1x64x160xbf16> to vector<64x160xbf16>
    %cst_141 = arith.constant dense<0.000000e+00> : vector<2x160xf32>
    %162 = tpu.matmul %159, %161, %cst_141 {dimension_numbers = #tpu.dot_dimension_numbers<[1], [0], [0], [1], [0, 0, 1, 1], [], []>} : vector<2x64xbf16>, vector<64x160xbf16>, vector<2x160xf32> -> vector<2x160xf32>
    %163 = arith.addf %157, %162 : vector<2x160xf32>
    %c20_142 = arith.constant 20 : index
    %c0_143 = arith.constant 0 : index
    %164 = vector.load %arg0[%c20_142, %c0_143] : memref<32x64xf32, #tpu.memory_space<vmem>>, vector<2x64xf32>
    %165 = arith.truncf %164 : vector<2x64xf32> to vector<2x64xbf16>
    %c2_144 = arith.constant 2 : index
    %c0_145 = arith.constant 0 : index
    %c0_146 = arith.constant 0 : index
    %166 = vector.load %arg1[%c2_144, %c0_145, %c0_146] : memref<8x64x160xbf16, #tpu.memory_space<vmem>>, vector<1x64x160xbf16>
    %167 = vector.shape_cast %166 : vector<1x64x160xbf16> to vector<64x160xbf16>
    %cst_147 = arith.constant dense<0.000000e+00> : vector<2x160xf32>
    %168 = tpu.matmul %165, %167, %cst_147 {dimension_numbers = #tpu.dot_dimension_numbers<[1], [0], [0], [1], [0, 0, 1, 1], [], []>} : vector<2x64xbf16>, vector<64x160xbf16>, vector<2x160xf32> -> vector<2x160xf32>
    %169 = arith.addf %163, %168 : vector<2x160xf32>
    %c22_148 = arith.constant 22 : index
    %c0_149 = arith.constant 0 : index
    %170 = vector.load %arg0[%c22_148, %c0_149] : memref<32x64xf32, #tpu.memory_space<vmem>>, vector<2x64xf32>
    %171 = arith.truncf %170 : vector<2x64xf32> to vector<2x64xbf16>
    %c3_150 = arith.constant 3 : index
    %c0_151 = arith.constant 0 : index
    %c0_152 = arith.constant 0 : index
    %172 = vector.load %arg1[%c3_150, %c0_151, %c0_152] : memref<8x64x160xbf16, #tpu.memory_space<vmem>>, vector<1x64x160xbf16>
    %173 = vector.shape_cast %172 : vector<1x64x160xbf16> to vector<64x160xbf16>
    %cst_153 = arith.constant dense<0.000000e+00> : vector<2x160xf32>
    %174 = tpu.matmul %171, %173, %cst_153 {dimension_numbers = #tpu.dot_dimension_numbers<[1], [0], [0], [1], [0, 0, 1, 1], [], []>} : vector<2x64xbf16>, vector<64x160xbf16>, vector<2x160xf32> -> vector<2x160xf32>
    %175 = arith.addf %169, %174 : vector<2x160xf32>
    %c24 = arith.constant 24 : index
    %c0_154 = arith.constant 0 : index
    %176 = vector.load %arg0[%c24, %c0_154] : memref<32x64xf32, #tpu.memory_space<vmem>>, vector<2x64xf32>
    %177 = arith.truncf %176 : vector<2x64xf32> to vector<2x64xbf16>
    %c4_155 = arith.constant 4 : index
    %c0_156 = arith.constant 0 : index
    %c0_157 = arith.constant 0 : index
    %178 = vector.load %arg1[%c4_155, %c0_156, %c0_157] : memref<8x64x160xbf16, #tpu.memory_space<vmem>>, vector<1x64x160xbf16>
    %179 = vector.shape_cast %178 : vector<1x64x160xbf16> to vector<64x160xbf16>
    %cst_158 = arith.constant dense<0.000000e+00> : vector<2x160xf32>
    %180 = tpu.matmul %177, %179, %cst_158 {dimension_numbers = #tpu.dot_dimension_numbers<[1], [0], [0], [1], [0, 0, 1, 1], [], []>} : vector<2x64xbf16>, vector<64x160xbf16>, vector<2x160xf32> -> vector<2x160xf32>
    %181 = arith.addf %175, %180 : vector<2x160xf32>
    %c26 = arith.constant 26 : index
    %c0_159 = arith.constant 0 : index
    %182 = vector.load %arg0[%c26, %c0_159] : memref<32x64xf32, #tpu.memory_space<vmem>>, vector<2x64xf32>
    %183 = arith.truncf %182 : vector<2x64xf32> to vector<2x64xbf16>
    %c5_160 = arith.constant 5 : index
    %c0_161 = arith.constant 0 : index
    %c0_162 = arith.constant 0 : index
    %184 = vector.load %arg1[%c5_160, %c0_161, %c0_162] : memref<8x64x160xbf16, #tpu.memory_space<vmem>>, vector<1x64x160xbf16>
    %185 = vector.shape_cast %184 : vector<1x64x160xbf16> to vector<64x160xbf16>
    %cst_163 = arith.constant dense<0.000000e+00> : vector<2x160xf32>
    %186 = tpu.matmul %183, %185, %cst_163 {dimension_numbers = #tpu.dot_dimension_numbers<[1], [0], [0], [1], [0, 0, 1, 1], [], []>} : vector<2x64xbf16>, vector<64x160xbf16>, vector<2x160xf32> -> vector<2x160xf32>
    %187 = arith.addf %181, %186 : vector<2x160xf32>
    %c28 = arith.constant 28 : index
    %c0_164 = arith.constant 0 : index
    %188 = vector.load %arg0[%c28, %c0_164] : memref<32x64xf32, #tpu.memory_space<vmem>>, vector<2x64xf32>
    %189 = arith.truncf %188 : vector<2x64xf32> to vector<2x64xbf16>
    %c6_165 = arith.constant 6 : index
    %c0_166 = arith.constant 0 : index
    %c0_167 = arith.constant 0 : index
    %190 = vector.load %arg1[%c6_165, %c0_166, %c0_167] : memref<8x64x160xbf16, #tpu.memory_space<vmem>>, vector<1x64x160xbf16>
    %191 = vector.shape_cast %190 : vector<1x64x160xbf16> to vector<64x160xbf16>
    %cst_168 = arith.constant dense<0.000000e+00> : vector<2x160xf32>
    %192 = tpu.matmul %189, %191, %cst_168 {dimension_numbers = #tpu.dot_dimension_numbers<[1], [0], [0], [1], [0, 0, 1, 1], [], []>} : vector<2x64xbf16>, vector<64x160xbf16>, vector<2x160xf32> -> vector<2x160xf32>
    %193 = arith.addf %187, %192 : vector<2x160xf32>
    %c30 = arith.constant 30 : index
    %c0_169 = arith.constant 0 : index
    %194 = vector.load %arg0[%c30, %c0_169] : memref<32x64xf32, #tpu.memory_space<vmem>>, vector<2x64xf32>
    %195 = arith.truncf %194 : vector<2x64xf32> to vector<2x64xbf16>
    %c7_170 = arith.constant 7 : index
    %c0_171 = arith.constant 0 : index
    %c0_172 = arith.constant 0 : index
    %196 = vector.load %arg1[%c7_170, %c0_171, %c0_172] : memref<8x64x160xbf16, #tpu.memory_space<vmem>>, vector<1x64x160xbf16>
    %197 = vector.shape_cast %196 : vector<1x64x160xbf16> to vector<64x160xbf16>
    %cst_173 = arith.constant dense<0.000000e+00> : vector<2x160xf32>
    %198 = tpu.matmul %195, %197, %cst_173 {dimension_numbers = #tpu.dot_dimension_numbers<[1], [0], [0], [1], [0, 0, 1, 1], [], []>} : vector<2x64xbf16>, vector<64x160xbf16>, vector<2x160xf32> -> vector<2x160xf32>
    %199 = arith.addf %193, %198 : vector<2x160xf32>
    %c0_174 = arith.constant 0 : index
    %c0_175 = arith.constant 0 : index
    %200 = vector.load %arg2[%c0_174, %c0_175] : memref<3x160xf32, #tpu.memory_space<vmem>>, vector<1x160xf32>
    %201 = vector.broadcast %200 : vector<1x160xf32> to vector<2x160xf32>
    %202 = arith.addf %199, %201 : vector<2x160xf32>
    %cst_176 = arith.constant 0.000000e+00 : f32
    %203 = vector.broadcast %cst_176 : f32 to vector<2x160xf32>
    %204 = arith.maximumf %202, %203 : vector<2x160xf32>
    %c1_177 = arith.constant 1 : index
    %c0_178 = arith.constant 0 : index
    %205 = vector.load %arg2[%c1_177, %c0_178] : memref<3x160xf32, #tpu.memory_space<vmem>>, vector<1x160xf32>
    %206 = vector.broadcast %205 : vector<1x160xf32> to vector<2x160xf32>
    %207 = arith.mulf %204, %206 : vector<2x160xf32>
    %c2_179 = arith.constant 2 : index
    %c0_180 = arith.constant 0 : index
    %208 = vector.load %arg2[%c2_179, %c0_180] : memref<3x160xf32, #tpu.memory_space<vmem>>, vector<1x160xf32>
    %209 = vector.broadcast %208 : vector<1x160xf32> to vector<2x160xf32>
    %210 = arith.addf %207, %209 : vector<2x160xf32>
    %c6_181 = arith.constant 6 : index
    %c0_182 = arith.constant 0 : index
    %211 = vector.load %arg12[%c6_181, %c0_182] : memref<10x160xf32, #tpu.memory_space<vmem>>, vector<2x160xf32>
    tpu.vector_store %arg12[%c6_181, %c0_182], %210 {strides = array<i32>} : memref<10x160xf32, #tpu.memory_space<vmem>>, vector<2x160xf32>,
    %c24_183 = arith.constant 24 : index
    %c0_184 = arith.constant 0 : index
    %212 = vector.load %arg0[%c24_183, %c0_184] : memref<32x64xf32, #tpu.memory_space<vmem>>, vector<2x64xf32>
    %213 = arith.truncf %212 : vector<2x64xf32> to vector<2x64xbf16>
    %c0_185 = arith.constant 0 : index
    %c0_186 = arith.constant 0 : index
    %c0_187 = arith.constant 0 : index
    %214 = vector.load %arg1[%c0_185, %c0_186, %c0_187] : memref<8x64x160xbf16, #tpu.memory_space<vmem>>, vector<1x64x160xbf16>
    %215 = vector.shape_cast %214 : vector<1x64x160xbf16> to vector<64x160xbf16>
    %cst_188 = arith.constant dense<0.000000e+00> : vector<2x160xf32>
    %216 = tpu.matmul %213, %215, %cst_188 {dimension_numbers = #tpu.dot_dimension_numbers<[1], [0], [0], [1], [0, 0, 1, 1], [], []>} : vector<2x64xbf16>, vector<64x160xbf16>, vector<2x160xf32> -> vector<2x160xf32>
    %c26_189 = arith.constant 26 : index
    %c0_190 = arith.constant 0 : index
    %217 = vector.load %arg0[%c26_189, %c0_190] : memref<32x64xf32, #tpu.memory_space<vmem>>, vector<2x64xf32>
    %218 = arith.truncf %217 : vector<2x64xf32> to vector<2x64xbf16>
    %c1_191 = arith.constant 1 : index
    %c0_192 = arith.constant 0 : index
    %c0_193 = arith.constant 0 : index
    %219 = vector.load %arg1[%c1_191, %c0_192, %c0_193] : memref<8x64x160xbf16, #tpu.memory_space<vmem>>, vector<1x64x160xbf16>
    %220 = vector.shape_cast %219 : vector<1x64x160xbf16> to vector<64x160xbf16>
    %cst_194 = arith.constant dense<0.000000e+00> : vector<2x160xf32>
    %221 = tpu.matmul %218, %220, %cst_194 {dimension_numbers = #tpu.dot_dimension_numbers<[1], [0], [0], [1], [0, 0, 1, 1], [], []>} : vector<2x64xbf16>, vector<64x160xbf16>, vector<2x160xf32> -> vector<2x160xf32>
    %222 = arith.addf %216, %221 : vector<2x160xf32>
    %c28_195 = arith.constant 28 : index
    %c0_196 = arith.constant 0 : index
    %223 = vector.load %arg0[%c28_195, %c0_196] : memref<32x64xf32, #tpu.memory_space<vmem>>, vector<2x64xf32>
    %224 = arith.truncf %223 : vector<2x64xf32> to vector<2x64xbf16>
    %c2_197 = arith.constant 2 : index
    %c0_198 = arith.constant 0 : index
    %c0_199 = arith.constant 0 : index
    %225 = vector.load %arg1[%c2_197, %c0_198, %c0_199] : memref<8x64x160xbf16, #tpu.memory_space<vmem>>, vector<1x64x160xbf16>
    %226 = vector.shape_cast %225 : vector<1x64x160xbf16> to vector<64x160xbf16>
    %cst_200 = arith.constant dense<0.000000e+00> : vector<2x160xf32>
    %227 = tpu.matmul %224, %226, %cst_200 {dimension_numbers = #tpu.dot_dimension_numbers<[1], [0], [0], [1], [0, 0, 1, 1], [], []>} : vector<2x64xbf16>, vector<64x160xbf16>, vector<2x160xf32> -> vector<2x160xf32>
    %228 = arith.addf %222, %227 : vector<2x160xf32>
    %c30_201 = arith.constant 30 : index
    %c0_202 = arith.constant 0 : index
    %229 = vector.load %arg0[%c30_201, %c0_202] : memref<32x64xf32, #tpu.memory_space<vmem>>, vector<2x64xf32>
    %230 = arith.truncf %229 : vector<2x64xf32> to vector<2x64xbf16>
    %c3_203 = arith.constant 3 : index
    %c0_204 = arith.constant 0 : index
    %c0_205 = arith.constant 0 : index
    %231 = vector.load %arg1[%c3_203, %c0_204, %c0_205] : memref<8x64x160xbf16, #tpu.memory_space<vmem>>, vector<1x64x160xbf16>
    %232 = vector.shape_cast %231 : vector<1x64x160xbf16> to vector<64x160xbf16>
    %cst_206 = arith.constant dense<0.000000e+00> : vector<2x160xf32>
    %233 = tpu.matmul %230, %232, %cst_206 {dimension_numbers = #tpu.dot_dimension_numbers<[1], [0], [0], [1], [0, 0, 1, 1], [], []>} : vector<2x64xbf16>, vector<64x160xbf16>, vector<2x160xf32> -> vector<2x160xf32>
    %234 = arith.addf %228, %233 : vector<2x160xf32>
    %c0_207 = arith.constant 0 : index
    %c0_208 = arith.constant 0 : index
    %235 = vector.load %arg2[%c0_207, %c0_208] : memref<3x160xf32, #tpu.memory_space<vmem>>, vector<1x160xf32>
    %236 = vector.broadcast %235 : vector<1x160xf32> to vector<2x160xf32>
    %237 = arith.addf %234, %236 : vector<2x160xf32>
    %cst_209 = arith.constant 0.000000e+00 : f32
    %238 = vector.broadcast %cst_209 : f32 to vector<2x160xf32>
    %239 = arith.maximumf %237, %238 : vector<2x160xf32>
    %c1_210 = arith.constant 1 : index
    %c0_211 = arith.constant 0 : index
    %240 = vector.load %arg2[%c1_210, %c0_211] : memref<3x160xf32, #tpu.memory_space<vmem>>, vector<1x160xf32>
    %241 = vector.broadcast %240 : vector<1x160xf32> to vector<2x160xf32>
    %242 = arith.mulf %239, %241 : vector<2x160xf32>
    %c2_212 = arith.constant 2 : index
    %c0_213 = arith.constant 0 : index
    %243 = vector.load %arg2[%c2_212, %c0_213] : memref<3x160xf32, #tpu.memory_space<vmem>>, vector<1x160xf32>
    %244 = vector.broadcast %243 : vector<1x160xf32> to vector<2x160xf32>
    %245 = arith.addf %242, %244 : vector<2x160xf32>
    %c8_214 = arith.constant 8 : index
    %c0_215 = arith.constant 0 : index
    %246 = vector.load %arg12[%c8_214, %c0_215] : memref<10x160xf32, #tpu.memory_space<vmem>>, vector<2x160xf32>
    tpu.vector_store %arg12[%c8_214, %c0_215], %245 {strides = array<i32>} : memref<10x160xf32, #tpu.memory_space<vmem>>, vector<2x160xf32>,
    %c0_216 = arith.constant 0 : index
    %c0_217 = arith.constant 0 : index
    %247 = vector.load %arg12[%c0_216, %c0_217] : memref<10x160xf32, #tpu.memory_space<vmem>>, vector<2x160xf32>
    %248 = arith.truncf %247 : vector<2x160xf32> to vector<2x160xbf16>
    %c2_218 = arith.constant 2 : index
    %c0_219 = arith.constant 0 : index
    %c0_220 = arith.constant 0 : index
    %249 = vector.load %arg3[%c2_218, %c0_219, %c0_220] : memref<4x160x192xbf16, #tpu.memory_space<vmem>>, vector<1x160x192xbf16>
    %250 = vector.shape_cast %249 : vector<1x160x192xbf16> to vector<160x192xbf16>
    %cst_221 = arith.constant dense<0.000000e+00> : vector<2x192xf32>
    %251 = tpu.matmul %248, %250, %cst_221 {dimension_numbers = #tpu.dot_dimension_numbers<[1], [0], [0], [1], [0, 0, 1, 1], [], []>} : vector<2x160xbf16>, vector<160x192xbf16>, vector<2x192xf32> -> vector<2x192xf32>
    %c2_222 = arith.constant 2 : index
    %c0_223 = arith.constant 0 : index
    %252 = vector.load %arg12[%c2_222, %c0_223] : memref<10x160xf32, #tpu.memory_space<vmem>>, vector<2x160xf32>
    %253 = arith.truncf %252 : vector<2x160xf32> to vector<2x160xbf16>
    %c3_224 = arith.constant 3 : index
    %c0_225 = arith.constant 0 : index
    %c0_226 = arith.constant 0 : index
    %254 = vector.load %arg3[%c3_224, %c0_225, %c0_226] : memref<4x160x192xbf16, #tpu.memory_space<vmem>>, vector<1x160x192xbf16>
    %255 = vector.shape_cast %254 : vector<1x160x192xbf16> to vector<160x192xbf16>
    %cst_227 = arith.constant dense<0.000000e+00> : vector<2x192xf32>
    %256 = tpu.matmul %253, %255, %cst_227 {dimension_numbers = #tpu.dot_dimension_numbers<[1], [0], [0], [1], [0, 0, 1, 1], [], []>} : vector<2x160xbf16>, vector<160x192xbf16>, vector<2x192xf32> -> vector<2x192xf32>
    %257 = arith.addf %251, %256 : vector<2x192xf32>
    %c0_228 = arith.constant 0 : index
    %c0_229 = arith.constant 0 : index
    %258 = vector.load %arg4[%c0_228, %c0_229] : memref<3x192xf32, #tpu.memory_space<vmem>>, vector<1x192xf32>
    %259 = vector.broadcast %258 : vector<1x192xf32> to vector<2x192xf32>
    %260 = arith.addf %257, %259 : vector<2x192xf32>
    %cst_230 = arith.constant 0.000000e+00 : f32
    %261 = vector.broadcast %cst_230 : f32 to vector<2x192xf32>
    %262 = arith.maximumf %260, %261 : vector<2x192xf32>
    %c1_231 = arith.constant 1 : index
    %c0_232 = arith.constant 0 : index
    %263 = vector.load %arg4[%c1_231, %c0_232] : memref<3x192xf32, #tpu.memory_space<vmem>>, vector<1x192xf32>
    %264 = vector.broadcast %263 : vector<1x192xf32> to vector<2x192xf32>
    %265 = arith.mulf %262, %264 : vector<2x192xf32>
    %c2_233 = arith.constant 2 : index
    %c0_234 = arith.constant 0 : index
    %266 = vector.load %arg4[%c2_233, %c0_234] : memref<3x192xf32, #tpu.memory_space<vmem>>, vector<1x192xf32>
    %267 = vector.broadcast %266 : vector<1x192xf32> to vector<2x192xf32>
    %268 = arith.addf %265, %267 : vector<2x192xf32>
    %c0_235 = arith.constant 0 : index
    %c0_236 = arith.constant 0 : index
    %269 = vector.load %arg13[%c0_235, %c0_236] : memref<6x192xf32, #tpu.memory_space<vmem>>, vector<2x192xf32>
    tpu.vector_store %arg13[%c0_235, %c0_236], %268 {strides = array<i32>} : memref<6x192xf32, #tpu.memory_space<vmem>>, vector<2x192xf32>,
    %c0_237 = arith.constant 0 : index
    %c0_238 = arith.constant 0 : index
    %270 = vector.load %arg12[%c0_237, %c0_238] : memref<10x160xf32, #tpu.memory_space<vmem>>, vector<2x160xf32>
    %271 = arith.truncf %270 : vector<2x160xf32> to vector<2x160xbf16>
    %c0_239 = arith.constant 0 : index
    %c0_240 = arith.constant 0 : index
    %c0_241 = arith.constant 0 : index
    %272 = vector.load %arg3[%c0_239, %c0_240, %c0_241] : memref<4x160x192xbf16, #tpu.memory_space<vmem>>, vector<1x160x192xbf16>
    %273 = vector.shape_cast %272 : vector<1x160x192xbf16> to vector<160x192xbf16>
    %cst_242 = arith.constant dense<0.000000e+00> : vector<2x192xf32>
    %274 = tpu.matmul %271, %273, %cst_242 {dimension_numbers = #tpu.dot_dimension_numbers<[1], [0], [0], [1], [0, 0, 1, 1], [], []>} : vector<2x160xbf16>, vector<160x192xbf16>, vector<2x192xf32> -> vector<2x192xf32>
    %c2_243 = arith.constant 2 : index
    %c0_244 = arith.constant 0 : index
    %275 = vector.load %arg12[%c2_243, %c0_244] : memref<10x160xf32, #tpu.memory_space<vmem>>, vector<2x160xf32>
    %276 = arith.truncf %275 : vector<2x160xf32> to vector<2x160xbf16>
    %c1_245 = arith.constant 1 : index
    %c0_246 = arith.constant 0 : index
    %c0_247 = arith.constant 0 : index
    %277 = vector.load %arg3[%c1_245, %c0_246, %c0_247] : memref<4x160x192xbf16, #tpu.memory_space<vmem>>, vector<1x160x192xbf16>
    %278 = vector.shape_cast %277 : vector<1x160x192xbf16> to vector<160x192xbf16>
    %cst_248 = arith.constant dense<0.000000e+00> : vector<2x192xf32>
    %279 = tpu.matmul %276, %278, %cst_248 {dimension_numbers = #tpu.dot_dimension_numbers<[1], [0], [0], [1], [0, 0, 1, 1], [], []>} : vector<2x160xbf16>, vector<160x192xbf16>, vector<2x192xf32> -> vector<2x192xf32>
    %280 = arith.addf %274, %279 : vector<2x192xf32>
    %c4_249 = arith.constant 4 : index
    %c0_250 = arith.constant 0 : index
    %281 = vector.load %arg12[%c4_249, %c0_250] : memref<10x160xf32, #tpu.memory_space<vmem>>, vector<2x160xf32>
    %282 = arith.truncf %281 : vector<2x160xf32> to vector<2x160xbf16>
    %c2_251 = arith.constant 2 : index
    %c0_252 = arith.constant 0 : index
    %c0_253 = arith.constant 0 : index
    %283 = vector.load %arg3[%c2_251, %c0_252, %c0_253] : memref<4x160x192xbf16, #tpu.memory_space<vmem>>, vector<1x160x192xbf16>
    %284 = vector.shape_cast %283 : vector<1x160x192xbf16> to vector<160x192xbf16>
    %cst_254 = arith.constant dense<0.000000e+00> : vector<2x192xf32>
    %285 = tpu.matmul %282, %284, %cst_254 {dimension_numbers = #tpu.dot_dimension_numbers<[1], [0], [0], [1], [0, 0, 1, 1], [], []>} : vector<2x160xbf16>, vector<160x192xbf16>, vector<2x192xf32> -> vector<2x192xf32>
    %286 = arith.addf %280, %285 : vector<2x192xf32>
    %c6_255 = arith.constant 6 : index
    %c0_256 = arith.constant 0 : index
    %287 = vector.load %arg12[%c6_255, %c0_256] : memref<10x160xf32, #tpu.memory_space<vmem>>, vector<2x160xf32>
    %288 = arith.truncf %287 : vector<2x160xf32> to vector<2x160xbf16>
    %c3_257 = arith.constant 3 : index
    %c0_258 = arith.constant 0 : index
    %c0_259 = arith.constant 0 : index
    %289 = vector.load %arg3[%c3_257, %c0_258, %c0_259] : memref<4x160x192xbf16, #tpu.memory_space<vmem>>, vector<1x160x192xbf16>
    %290 = vector.shape_cast %289 : vector<1x160x192xbf16> to vector<160x192xbf16>
    %cst_260 = arith.constant dense<0.000000e+00> : vector<2x192xf32>
    %291 = tpu.matmul %288, %290, %cst_260 {dimension_numbers = #tpu.dot_dimension_numbers<[1], [0], [0], [1], [0, 0, 1, 1], [], []>} : vector<2x160xbf16>, vector<160x192xbf16>, vector<2x192xf32> -> vector<2x192xf32>
    %292 = arith.addf %286, %291 : vector<2x192xf32>
    %c0_261 = arith.constant 0 : index
    %c0_262 = arith.constant 0 : index
    %293 = vector.load %arg4[%c0_261, %c0_262] : memref<3x192xf32, #tpu.memory_space<vmem>>, vector<1x192xf32>
    %294 = vector.broadcast %293 : vector<1x192xf32> to vector<2x192xf32>
    %295 = arith.addf %292, %294 : vector<2x192xf32>
    %cst_263 = arith.constant 0.000000e+00 : f32
    %296 = vector.broadcast %cst_263 : f32 to vector<2x192xf32>
    %297 = arith.maximumf %295, %296 : vector<2x192xf32>
    %c1_264 = arith.constant 1 : index
    %c0_265 = arith.constant 0 : index
    %298 = vector.load %arg4[%c1_264, %c0_265] : memref<3x192xf32, #tpu.memory_space<vmem>>, vector<1x192xf32>
    %299 = vector.broadcast %298 : vector<1x192xf32> to vector<2x192xf32>
    %300 = arith.mulf %297, %299 : vector<2x192xf32>
    %c2_266 = arith.constant 2 : index
    %c0_267 = arith.constant 0 : index
    %301 = vector.load %arg4[%c2_266, %c0_267] : memref<3x192xf32, #tpu.memory_space<vmem>>, vector<1x192xf32>
    %302 = vector.broadcast %301 : vector<1x192xf32> to vector<2x192xf32>
    %303 = arith.addf %300, %302 : vector<2x192xf32>
    %c2_268 = arith.constant 2 : index
    %c0_269 = arith.constant 0 : index
    %304 = vector.load %arg13[%c2_268, %c0_269] : memref<6x192xf32, #tpu.memory_space<vmem>>, vector<2x192xf32>
    tpu.vector_store %arg13[%c2_268, %c0_269], %303 {strides = array<i32>} : memref<6x192xf32, #tpu.memory_space<vmem>>, vector<2x192xf32>,
    %c4_270 = arith.constant 4 : index
    %c0_271 = arith.constant 0 : index
    %305 = vector.load %arg12[%c4_270, %c0_271] : memref<10x160xf32, #tpu.memory_space<vmem>>, vector<2x160xf32>
    %306 = arith.truncf %305 : vector<2x160xf32> to vector<2x160xbf16>
    %c0_272 = arith.constant 0 : index
    %c0_273 = arith.constant 0 : index
    %c0_274 = arith.constant 0 : index
    %307 = vector.load %arg3[%c0_272, %c0_273, %c0_274] : memref<4x160x192xbf16, #tpu.memory_space<vmem>>, vector<1x160x192xbf16>
    %308 = vector.shape_cast %307 : vector<1x160x192xbf16> to vector<160x192xbf16>
    %cst_275 = arith.constant dense<0.000000e+00> : vector<2x192xf32>
    %309 = tpu.matmul %306, %308, %cst_275 {dimension_numbers = #tpu.dot_dimension_numbers<[1], [0], [0], [1], [0, 0, 1, 1], [], []>} : vector<2x160xbf16>, vector<160x192xbf16>, vector<2x192xf32> -> vector<2x192xf32>
    %c6_276 = arith.constant 6 : index
    %c0_277 = arith.constant 0 : index
    %310 = vector.load %arg12[%c6_276, %c0_277] : memref<10x160xf32, #tpu.memory_space<vmem>>, vector<2x160xf32>
    %311 = arith.truncf %310 : vector<2x160xf32> to vector<2x160xbf16>
    %c1_278 = arith.constant 1 : index
    %c0_279 = arith.constant 0 : index
    %c0_280 = arith.constant 0 : index
    %312 = vector.load %arg3[%c1_278, %c0_279, %c0_280] : memref<4x160x192xbf16, #tpu.memory_space<vmem>>, vector<1x160x192xbf16>
    %313 = vector.shape_cast %312 : vector<1x160x192xbf16> to vector<160x192xbf16>
    %cst_281 = arith.constant dense<0.000000e+00> : vector<2x192xf32>
    %314 = tpu.matmul %311, %313, %cst_281 {dimension_numbers = #tpu.dot_dimension_numbers<[1], [0], [0], [1], [0, 0, 1, 1], [], []>} : vector<2x160xbf16>, vector<160x192xbf16>, vector<2x192xf32> -> vector<2x192xf32>
    %315 = arith.addf %309, %314 : vector<2x192xf32>
    %c8_282 = arith.constant 8 : index
    %c0_283 = arith.constant 0 : index
    %316 = vector.load %arg12[%c8_282, %c0_283] : memref<10x160xf32, #tpu.memory_space<vmem>>, vector<2x160xf32>
    %317 = arith.truncf %316 : vector<2x160xf32> to vector<2x160xbf16>
    %c2_284 = arith.constant 2 : index
    %c0_285 = arith.constant 0 : index
    %c0_286 = arith.constant 0 : index
    %318 = vector.load %arg3[%c2_284, %c0_285, %c0_286] : memref<4x160x192xbf16, #tpu.memory_space<vmem>>, vector<1x160x192xbf16>
    %319 = vector.shape_cast %318 : vector<1x160x192xbf16> to vector<160x192xbf16>
    %cst_287 = arith.constant dense<0.000000e+00> : vector<2x192xf32>
    %320 = tpu.matmul %317, %319, %cst_287 {dimension_numbers = #tpu.dot_dimension_numbers<[1], [0], [0], [1], [0, 0, 1, 1], [], []>} : vector<2x160xbf16>, vector<160x192xbf16>, vector<2x192xf32> -> vector<2x192xf32>
    %321 = arith.addf %315, %320 : vector<2x192xf32>
    %c0_288 = arith.constant 0 : index
    %c0_289 = arith.constant 0 : index
    %322 = vector.load %arg4[%c0_288, %c0_289] : memref<3x192xf32, #tpu.memory_space<vmem>>, vector<1x192xf32>
    %323 = vector.broadcast %322 : vector<1x192xf32> to vector<2x192xf32>
    %324 = arith.addf %321, %323 : vector<2x192xf32>
    %cst_290 = arith.constant 0.000000e+00 : f32
    %325 = vector.broadcast %cst_290 : f32 to vector<2x192xf32>
    %326 = arith.maximumf %324, %325 : vector<2x192xf32>
    %c1_291 = arith.constant 1 : index
    %c0_292 = arith.constant 0 : index
    %327 = vector.load %arg4[%c1_291, %c0_292] : memref<3x192xf32, #tpu.memory_space<vmem>>, vector<1x192xf32>
    %328 = vector.broadcast %327 : vector<1x192xf32> to vector<2x192xf32>
    %329 = arith.mulf %326, %328 : vector<2x192xf32>
    %c2_293 = arith.constant 2 : index
    %c0_294 = arith.constant 0 : index
    %330 = vector.load %arg4[%c2_293, %c0_294] : memref<3x192xf32, #tpu.memory_space<vmem>>, vector<1x192xf32>
    %331 = vector.broadcast %330 : vector<1x192xf32> to vector<2x192xf32>
    %332 = arith.addf %329, %331 : vector<2x192xf32>
    %c4_295 = arith.constant 4 : index
    %c0_296 = arith.constant 0 : index
    %333 = vector.load %arg13[%c4_295, %c0_296] : memref<6x192xf32, #tpu.memory_space<vmem>>, vector<2x192xf32>
    tpu.vector_store %arg13[%c4_295, %c0_296], %332 {strides = array<i32>} : memref<6x192xf32, #tpu.memory_space<vmem>>, vector<2x192xf32>,
    %cst_297 = arith.constant 0.000000e+00 : f32
    %334 = vector.broadcast %cst_297 : f32 to vector<2x512xf32>
    %c0_298 = arith.constant 0 : index
    %c0_299 = arith.constant 0 : index
    %335 = vector.load %arg13[%c0_298, %c0_299] : memref<6x192xf32, #tpu.memory_space<vmem>>, vector<2x192xf32>
    %336 = arith.truncf %335 : vector<2x192xf32> to vector<2x192xbf16>
    %c1_300 = arith.constant 1 : index
    %c0_301 = arith.constant 0 : index
    %c0_302 = arith.constant 0 : index
    %337 = vector.load %arg5[%c1_300, %c0_301, %c0_302] : memref<3x192x384xbf16, #tpu.memory_space<vmem>>, vector<1x192x384xbf16>
    %338 = vector.shape_cast %337 : vector<1x192x384xbf16> to vector<192x384xbf16>
    %cst_303 = arith.constant dense<0.000000e+00> : vector<2x384xf32>
    %339 = tpu.matmul %336, %338, %cst_303 {dimension_numbers = #tpu.dot_dimension_numbers<[1], [0], [0], [1], [0, 0, 1, 1], [], []>} : vector<2x192xbf16>, vector<192x384xbf16>, vector<2x384xf32> -> vector<2x384xf32>
    %c2_304 = arith.constant 2 : index
    %c0_305 = arith.constant 0 : index
    %340 = vector.load %arg13[%c2_304, %c0_305] : memref<6x192xf32, #tpu.memory_space<vmem>>, vector<2x192xf32>
    %341 = arith.truncf %340 : vector<2x192xf32> to vector<2x192xbf16>
    %c2_306 = arith.constant 2 : index
    %c0_307 = arith.constant 0 : index
    %c0_308 = arith.constant 0 : index
    %342 = vector.load %arg5[%c2_306, %c0_307, %c0_308] : memref<3x192x384xbf16, #tpu.memory_space<vmem>>, vector<1x192x384xbf16>
    %343 = vector.shape_cast %342 : vector<1x192x384xbf16> to vector<192x384xbf16>
    %cst_309 = arith.constant dense<0.000000e+00> : vector<2x384xf32>
    %344 = tpu.matmul %341, %343, %cst_309 {dimension_numbers = #tpu.dot_dimension_numbers<[1], [0], [0], [1], [0, 0, 1, 1], [], []>} : vector<2x192xbf16>, vector<192x384xbf16>, vector<2x384xf32> -> vector<2x384xf32>
    %345 = arith.addf %339, %344 : vector<2x384xf32>
    %c0_310 = arith.constant 0 : index
    %c0_311 = arith.constant 0 : index
    %346 = vector.load %arg6[%c0_310, %c0_311] : memref<3x384xf32, #tpu.memory_space<vmem>>, vector<1x384xf32>
    %347 = vector.broadcast %346 : vector<1x384xf32> to vector<2x384xf32>
    %348 = arith.addf %345, %347 : vector<2x384xf32>
    %cst_312 = arith.constant 0.000000e+00 : f32
    %349 = vector.broadcast %cst_312 : f32 to vector<2x384xf32>
    %350 = arith.maximumf %348, %349 : vector<2x384xf32>
    %c1_313 = arith.constant 1 : index
    %c0_314 = arith.constant 0 : index
    %351 = vector.load %arg6[%c1_313, %c0_314] : memref<3x384xf32, #tpu.memory_space<vmem>>, vector<1x384xf32>
    %352 = vector.broadcast %351 : vector<1x384xf32> to vector<2x384xf32>
    %353 = arith.mulf %350, %352 : vector<2x384xf32>
    %c2_315 = arith.constant 2 : index
    %c0_316 = arith.constant 0 : index
    %354 = vector.load %arg6[%c2_315, %c0_316] : memref<3x384xf32, #tpu.memory_space<vmem>>, vector<1x384xf32>
    %355 = vector.broadcast %354 : vector<1x384xf32> to vector<2x384xf32>
    %356 = arith.addf %353, %355 : vector<2x384xf32>
    %357 = arith.truncf %356 : vector<2x384xf32> to vector<2x384xbf16>
    %c0_317 = arith.constant 0 : index
    %c0_318 = arith.constant 0 : index
    %358 = vector.load %arg7[%c0_317, %c0_318] : memref<1152x512xbf16, #tpu.memory_space<vmem>>, vector<384x512xbf16>
    %cst_319 = arith.constant dense<0.000000e+00> : vector<2x512xf32>
    %359 = tpu.matmul %357, %358, %cst_319 {dimension_numbers = #tpu.dot_dimension_numbers<[1], [0], [0], [1], [0, 0, 1, 1], [], []>} : vector<2x384xbf16>, vector<384x512xbf16>, vector<2x512xf32> -> vector<2x512xf32>
    %360 = arith.addf %334, %359 : vector<2x512xf32>
    %c0_320 = arith.constant 0 : index
    %c0_321 = arith.constant 0 : index
    %361 = vector.load %arg13[%c0_320, %c0_321] : memref<6x192xf32, #tpu.memory_space<vmem>>, vector<2x192xf32>
    %362 = arith.truncf %361 : vector<2x192xf32> to vector<2x192xbf16>
    %c0_322 = arith.constant 0 : index
    %c0_323 = arith.constant 0 : index
    %c0_324 = arith.constant 0 : index
    %363 = vector.load %arg5[%c0_322, %c0_323, %c0_324] : memref<3x192x384xbf16, #tpu.memory_space<vmem>>, vector<1x192x384xbf16>
    %364 = vector.shape_cast %363 : vector<1x192x384xbf16> to vector<192x384xbf16>
    %cst_325 = arith.constant dense<0.000000e+00> : vector<2x384xf32>
    %365 = tpu.matmul %362, %364, %cst_325 {dimension_numbers = #tpu.dot_dimension_numbers<[1], [0], [0], [1], [0, 0, 1, 1], [], []>} : vector<2x192xbf16>, vector<192x384xbf16>, vector<2x384xf32> -> vector<2x384xf32>
    %c2_326 = arith.constant 2 : index
    %c0_327 = arith.constant 0 : index
    %366 = vector.load %arg13[%c2_326, %c0_327] : memref<6x192xf32, #tpu.memory_space<vmem>>, vector<2x192xf32>
    %367 = arith.truncf %366 : vector<2x192xf32> to vector<2x192xbf16>
    %c1_328 = arith.constant 1 : index
    %c0_329 = arith.constant 0 : index
    %c0_330 = arith.constant 0 : index
    %368 = vector.load %arg5[%c1_328, %c0_329, %c0_330] : memref<3x192x384xbf16, #tpu.memory_space<vmem>>, vector<1x192x384xbf16>
    %369 = vector.shape_cast %368 : vector<1x192x384xbf16> to vector<192x384xbf16>
    %cst_331 = arith.constant dense<0.000000e+00> : vector<2x384xf32>
    %370 = tpu.matmul %367, %369, %cst_331 {dimension_numbers = #tpu.dot_dimension_numbers<[1], [0], [0], [1], [0, 0, 1, 1], [], []>} : vector<2x192xbf16>, vector<192x384xbf16>, vector<2x384xf32> -> vector<2x384xf32>
    %371 = arith.addf %365, %370 : vector<2x384xf32>
    %c4_332 = arith.constant 4 : index
    %c0_333 = arith.constant 0 : index
    %372 = vector.load %arg13[%c4_332, %c0_333] : memref<6x192xf32, #tpu.memory_space<vmem>>, vector<2x192xf32>
    %373 = arith.truncf %372 : vector<2x192xf32> to vector<2x192xbf16>
    %c2_334 = arith.constant 2 : index
    %c0_335 = arith.constant 0 : index
    %c0_336 = arith.constant 0 : index
    %374 = vector.load %arg5[%c2_334, %c0_335, %c0_336] : memref<3x192x384xbf16, #tpu.memory_space<vmem>>, vector<1x192x384xbf16>
    %375 = vector.shape_cast %374 : vector<1x192x384xbf16> to vector<192x384xbf16>
    %cst_337 = arith.constant dense<0.000000e+00> : vector<2x384xf32>
    %376 = tpu.matmul %373, %375, %cst_337 {dimension_numbers = #tpu.dot_dimension_numbers<[1], [0], [0], [1], [0, 0, 1, 1], [], []>} : vector<2x192xbf16>, vector<192x384xbf16>, vector<2x384xf32> -> vector<2x384xf32>
    %377 = arith.addf %371, %376 : vector<2x384xf32>
    %c0_338 = arith.constant 0 : index
    %c0_339 = arith.constant 0 : index
    %378 = vector.load %arg6[%c0_338, %c0_339] : memref<3x384xf32, #tpu.memory_space<vmem>>, vector<1x384xf32>
    %379 = vector.broadcast %378 : vector<1x384xf32> to vector<2x384xf32>
    %380 = arith.addf %377, %379 : vector<2x384xf32>
    %cst_340 = arith.constant 0.000000e+00 : f32
    %381 = vector.broadcast %cst_340 : f32 to vector<2x384xf32>
    %382 = arith.maximumf %380, %381 : vector<2x384xf32>
    %c1_341 = arith.constant 1 : index
    %c0_342 = arith.constant 0 : index
    %383 = vector.load %arg6[%c1_341, %c0_342] : memref<3x384xf32, #tpu.memory_space<vmem>>, vector<1x384xf32>
    %384 = vector.broadcast %383 : vector<1x384xf32> to vector<2x384xf32>
    %385 = arith.mulf %382, %384 : vector<2x384xf32>
    %c2_343 = arith.constant 2 : index
    %c0_344 = arith.constant 0 : index
    %386 = vector.load %arg6[%c2_343, %c0_344] : memref<3x384xf32, #tpu.memory_space<vmem>>, vector<1x384xf32>
    %387 = vector.broadcast %386 : vector<1x384xf32> to vector<2x384xf32>
    %388 = arith.addf %385, %387 : vector<2x384xf32>
    %389 = arith.truncf %388 : vector<2x384xf32> to vector<2x384xbf16>
    %c384 = arith.constant 384 : index
    %c0_345 = arith.constant 0 : index
    %390 = vector.load %arg7[%c384, %c0_345] : memref<1152x512xbf16, #tpu.memory_space<vmem>>, vector<384x512xbf16>
    %cst_346 = arith.constant dense<0.000000e+00> : vector<2x512xf32>
    %391 = tpu.matmul %389, %390, %cst_346 {dimension_numbers = #tpu.dot_dimension_numbers<[1], [0], [0], [1], [0, 0, 1, 1], [], []>} : vector<2x384xbf16>, vector<384x512xbf16>, vector<2x512xf32> -> vector<2x512xf32>
    %392 = arith.addf %360, %391 : vector<2x512xf32>
    %c2_347 = arith.constant 2 : index
    %c0_348 = arith.constant 0 : index
    %393 = vector.load %arg13[%c2_347, %c0_348] : memref<6x192xf32, #tpu.memory_space<vmem>>, vector<2x192xf32>
    %394 = arith.truncf %393 : vector<2x192xf32> to vector<2x192xbf16>
    %c0_349 = arith.constant 0 : index
    %c0_350 = arith.constant 0 : index
    %c0_351 = arith.constant 0 : index
    %395 = vector.load %arg5[%c0_349, %c0_350, %c0_351] : memref<3x192x384xbf16, #tpu.memory_space<vmem>>, vector<1x192x384xbf16>
    %396 = vector.shape_cast %395 : vector<1x192x384xbf16> to vector<192x384xbf16>
    %cst_352 = arith.constant dense<0.000000e+00> : vector<2x384xf32>
    %397 = tpu.matmul %394, %396, %cst_352 {dimension_numbers = #tpu.dot_dimension_numbers<[1], [0], [0], [1], [0, 0, 1, 1], [], []>} : vector<2x192xbf16>, vector<192x384xbf16>, vector<2x384xf32> -> vector<2x384xf32>
    %c4_353 = arith.constant 4 : index
    %c0_354 = arith.constant 0 : index
    %398 = vector.load %arg13[%c4_353, %c0_354] : memref<6x192xf32, #tpu.memory_space<vmem>>, vector<2x192xf32>
    %399 = arith.truncf %398 : vector<2x192xf32> to vector<2x192xbf16>
    %c1_355 = arith.constant 1 : index
    %c0_356 = arith.constant 0 : index
    %c0_357 = arith.constant 0 : index
    %400 = vector.load %arg5[%c1_355, %c0_356, %c0_357] : memref<3x192x384xbf16, #tpu.memory_space<vmem>>, vector<1x192x384xbf16>
    %401 = vector.shape_cast %400 : vector<1x192x384xbf16> to vector<192x384xbf16>
    %cst_358 = arith.constant dense<0.000000e+00> : vector<2x384xf32>
    %402 = tpu.matmul %399, %401, %cst_358 {dimension_numbers = #tpu.dot_dimension_numbers<[1], [0], [0], [1], [0, 0, 1, 1], [], []>} : vector<2x192xbf16>, vector<192x384xbf16>, vector<2x384xf32> -> vector<2x384xf32>
    %403 = arith.addf %397, %402 : vector<2x384xf32>
    %c0_359 = arith.constant 0 : index
    %c0_360 = arith.constant 0 : index
    %404 = vector.load %arg6[%c0_359, %c0_360] : memref<3x384xf32, #tpu.memory_space<vmem>>, vector<1x384xf32>
    %405 = vector.broadcast %404 : vector<1x384xf32> to vector<2x384xf32>
    %406 = arith.addf %403, %405 : vector<2x384xf32>
    %cst_361 = arith.constant 0.000000e+00 : f32
    %407 = vector.broadcast %cst_361 : f32 to vector<2x384xf32>
    %408 = arith.maximumf %406, %407 : vector<2x384xf32>
    %c1_362 = arith.constant 1 : index
    %c0_363 = arith.constant 0 : index
    %409 = vector.load %arg6[%c1_362, %c0_363] : memref<3x384xf32, #tpu.memory_space<vmem>>, vector<1x384xf32>
    %410 = vector.broadcast %409 : vector<1x384xf32> to vector<2x384xf32>
    %411 = arith.mulf %408, %410 : vector<2x384xf32>
    %c2_364 = arith.constant 2 : index
    %c0_365 = arith.constant 0 : index
    %412 = vector.load %arg6[%c2_364, %c0_365] : memref<3x384xf32, #tpu.memory_space<vmem>>, vector<1x384xf32>
    %413 = vector.broadcast %412 : vector<1x384xf32> to vector<2x384xf32>
    %414 = arith.addf %411, %413 : vector<2x384xf32>
    %415 = arith.truncf %414 : vector<2x384xf32> to vector<2x384xbf16>
    %c768 = arith.constant 768 : index
    %c0_366 = arith.constant 0 : index
    %416 = vector.load %arg7[%c768, %c0_366] : memref<1152x512xbf16, #tpu.memory_space<vmem>>, vector<384x512xbf16>
    %cst_367 = arith.constant dense<0.000000e+00> : vector<2x512xf32>
    %417 = tpu.matmul %415, %416, %cst_367 {dimension_numbers = #tpu.dot_dimension_numbers<[1], [0], [0], [1], [0, 0, 1, 1], [], []>} : vector<2x384xbf16>, vector<384x512xbf16>, vector<2x512xf32> -> vector<2x512xf32>
    %418 = arith.addf %392, %417 : vector<2x512xf32>
    %c0_368 = arith.constant 0 : index
    %c0_369 = arith.constant 0 : index
    %419 = vector.load %arg8[%c0_368, %c0_369] : memref<1x512xf32, #tpu.memory_space<vmem>>, vector<1x512xf32>
    %420 = vector.broadcast %419 : vector<1x512xf32> to vector<2x512xf32>
    %421 = arith.addf %418, %420 : vector<2x512xf32>
    %cst_370 = arith.constant 0.000000e+00 : f32
    %422 = vector.broadcast %cst_370 : f32 to vector<2x512xf32>
    %423 = arith.maximumf %421, %422 : vector<2x512xf32>
    %424 = arith.truncf %423 : vector<2x512xf32> to vector<2x512xbf16>
    %c0_371 = arith.constant 0 : index
    %c0_372 = arith.constant 0 : index
    %425 = vector.load %arg9[%c0_371, %c0_372] : memref<512x6xbf16, #tpu.memory_space<vmem>>, vector<512x6xbf16>
    %cst_373 = arith.constant dense<0.000000e+00> : vector<2x6xf32>
    %426 = tpu.matmul %424, %425, %cst_373 {dimension_numbers = #tpu.dot_dimension_numbers<[1], [0], [0], [1], [0, 0, 1, 1], [], []>} : vector<2x512xbf16>, vector<512x6xbf16>, vector<2x6xf32> -> vector<2x6xf32>
    %c0_374 = arith.constant 0 : index
    %c0_375 = arith.constant 0 : index
    %427 = vector.load %arg10[%c0_374, %c0_375] : memref<1x6xf32, #tpu.memory_space<vmem>>, vector<1x6xf32>
    %428 = vector.broadcast %427 : vector<1x6xf32> to vector<2x6xf32>
    %429 = arith.addf %426, %428 : vector<2x6xf32>
    %c0_376 = arith.constant 0 : index
    %c0_377 = arith.constant 0 : index
    %430 = vector.load %arg11[%c0_376, %c0_377] : memref<2x6xf32, #tpu.memory_space<vmem>>, vector<2x6xf32>
    tpu.vector_store %arg11[%c0_376, %c0_377], %429 {strides = array<i32>} : memref<2x6xf32, #tpu.memory_space<vmem>>, vector<2x6xf32>,
    return
  }
}

</mosaic_0001>

<llo_original>
// kernel: dqn_forward.1
$region0: #{dqn_forward.1}
  #allocation0 [shape = 'u32[]', space=smem, size = 0x4, offset = 0x4, fixed_abs, tag = 'smem constant byte address 0x4 - core index']
  #allocation1 [shape = 'u32[144,128]{1,0:T(1,128)}', space=vmem, size = 0x12000, scoped, tag = 'internal scratch']
  #allocation2 [shape = 'f32[10,160]{1,0:T(8,128)}', space=vmem, size = 0x4000, scoped, tag = 'scratch operand']
  #allocation3 [shape = 'f32[6,192]{1,0:T(8,128)}', space=vmem, size = 0x2000, scoped, tag = 'scratch operand']
  %s0 = inlined_call_operand.vmem [shape: f32[32,64], index: 0, kind: input, shape index: {}]
  %s1 = inlined_call_operand.hbm [shape: bf16[8,64,160], index: 1, kind: input, shape index: {}]
  %s2 = inlined_call_operand.hbm [shape: f32[3,160], index: 2, kind: input, shape index: {}]
  %s3 = inlined_call_operand.hbm [shape: bf16[4,160,192], index: 3, kind: input, shape index: {}]
  %s4 = inlined_call_operand.hbm [shape: f32[3,192], index: 4, kind: input, shape index: {}]
  %s5 = inlined_call_operand.hbm [shape: bf16[3,192,384], index: 5, kind: input, shape index: {}]
  %s6 = inlined_call_operand.hbm [shape: f32[3,384], index: 6, kind: input, shape index: {}]
  %s7 = inlined_call_operand.hbm [shape: bf16[1152,512], index: 7, kind: input, shape index: {}]
  %s8 = inlined_call_operand.hbm [shape: f32[1,512], index: 8, kind: input, shape index: {}]
  %s9 = inlined_call_operand.vmem [shape: bf16[512,6], index: 9, kind: input, shape index: {}]
  %s10 = inlined_call_operand.hbm [shape: f32[1,6], index: 10, kind: input, shape index: {}]
  %s11 = inlined_call_operand.hbm [shape: f32[2,6], index: 11, kind: output, shape index: {}]
  %s12 = sld [smem:[#allocation0]]
  $region90: #{dqn_forward.1} parent=0
    _
  %s14 = ssub.s32 1, %s12
  %s15 = scalar_select 0, %s14, %s12
  $region1: #{dqn_forward.1} parent=0
    #allocation4 [shape = 'u8[262144]{0}', space=vmem, size = 0x40000, scoped, tag = 'input window, operand 1, single buffered']
    #allocation5 [shape = 's32[1]{0}', space=sflag, size = 0x4, scoped, tag = 'scoped memory for dqn_forward.1']
    #allocation6 [shape = 's32[1]{0}', space=sflag, size = 0x4, scoped, tag = 'scoped memory for dqn_forward.1']
    #allocation7 [shape = 'u8[4096]{0}', space=vmem, size = 0x1000, scoped, tag = 'input window, operand 2, single buffered']
    #allocation8 [shape = 's32[1]{0}', space=sflag, size = 0x4, scoped, tag = 'scoped memory for dqn_forward.1']
    #allocation9 [shape = 'u8[327680]{0}', space=vmem, size = 0x50000, scoped, tag = 'input window, operand 3, single buffered']
    #allocation10 [shape = 'u8[4096]{0}', space=vmem, size = 0x1000, scoped, tag = 'input window, operand 4, single buffered']
    #allocation11 [shape = 's32[1]{0}', space=sflag, size = 0x4, scoped, tag = 'scoped memory for dqn_forward.1']
    #allocation12 [shape = 'u8[442368]{0}', space=vmem, size = 0x6c000, scoped, tag = 'input window, operand 5, single buffered']
    #allocation13 [shape = 'u8[6144]{0}', space=vmem, size = 0x1800, scoped, tag = 'input window, operand 6, single buffered']
    #allocation14 [shape = 's32[1]{0}', space=sflag, size = 0x4, scoped, tag = 'scoped memory for dqn_forward.1']
    #allocation15 [shape = 'u8[1179648]{0}', space=vmem, size = 0x120000, scoped, tag = 'input window, operand 7, single buffered']
    #allocation16 [shape = 'u8[2048]{0}', space=vmem, size = 0x800, scoped, tag = 'input window, operand 8, single buffered']
    #allocation17 [shape = 's32[1]{0}', space=sflag, size = 0x4, scoped, tag = 'scoped memory for dqn_forward.1']
    #allocation18 [shape = 'u8[512]{0}', space=vmem, size = 0x400, scoped, tag = 'input window, operand 10, single buffered']
    #allocation19 [shape = 'u8[1024]{0}', space=vmem, size = 0x400, scoped, tag = 'output window, operand 0, single buffered']
    %16 = vsyncpa [#allocation5], 0
    %17 = vsyncpa [#allocation8], 0
    %18 = vsyncpa [#allocation11], 0
    %19 = vsyncpa [#allocation14], 0
    %20 = vsyncpa [#allocation17], 0
    %21 = vsyncpa [#allocation6], 0
    // Predicated region
    $region2: #{dqn_forward.1} parent=1 // pred_check
      _
    $region3: #{dqn_forward.1} parent=1 // pred_check_branch
      %23 = sbr.rel (0) target = $region5
    $region4: #{dqn_forward.1} parent=1 // pred_region
      _
    $region5: #{dqn_forward.1} parent=1 // pred_fallthru
      _
    // Predicated region
    $region6: #{dqn_forward.1} parent=1 // pred_check
      _
    $region7: #{dqn_forward.1} parent=1 // pred_check_branch
      %25 = sbr.rel (0) target = $region9
    $region8: #{dqn_forward.1} parent=1 // pred_region
      %s27 = ssub.s32 8192, 8192
      %28 = vsyncadd [#allocation5], %s27
      %s29 = sshll.u32 [#allocation4], 4
      %s30 = int_to_ptr.vmem [resolvable:$true] %s29
      %35 = dma.hbm_to_vmem [thread:$0]  %s1, 8192, %s30, [#allocation5], 128, 128, 8
    $region9: #{dqn_forward.1} parent=1 // pred_fallthru
      _
    // Predicated region
    $region10: #{dqn_forward.1} parent=1 // pred_check
      _
    $region11: #{dqn_forward.1} parent=1 // pred_check_branch
      %37 = sbr.rel (0) target = $region13
    $region12: #{dqn_forward.1} parent=1 // pred_region
      %s39 = ssub.s32 128, 128
      %40 = vsyncadd [#allocation8], %s39
      %s42 = sshll.u32 [#allocation7], 4
      %s43 = int_to_ptr.vmem [resolvable:$true] %s42
      %45 = dma.hbm_to_vmem [thread:$0]  %s2, 128, %s43, [#allocation8]
    $region13: #{dqn_forward.1} parent=1 // pred_fallthru
      _
    // Predicated region
    $region14: #{dqn_forward.1} parent=1 // pred_check
      _
    $region15: #{dqn_forward.1} parent=1 // pred_check_branch
      %47 = sbr.rel (0) target = $region17
    $region16: #{dqn_forward.1} parent=1 // pred_region
      %s49 = ssub.s32 10240, 10240
      %50 = vsyncadd [#allocation8], %s49
      %s51 = sshll.u32 [#allocation9], 4
      %s52 = int_to_ptr.vmem [resolvable:$true] %s51
      %57 = dma.hbm_to_vmem [thread:$0]  %s3, 10240, %s52, [#allocation8], 128, 128, 8
    $region17: #{dqn_forward.1} parent=1 // pred_fallthru
      _
    // Predicated region
    $region18: #{dqn_forward.1} parent=1 // pred_check
      _
    $region19: #{dqn_forward.1} parent=1 // pred_check_branch
      %59 = sbr.rel (0) target = $region21
    $region20: #{dqn_forward.1} parent=1 // pred_region
      %s61 = ssub.s32 128, 128
      %62 = vsyncadd [#allocation11], %s61
      %s64 = sshll.u32 [#allocation10], 4
      %s65 = int_to_ptr.vmem [resolvable:$true] %s64
      %67 = dma.hbm_to_vmem [thread:$0]  %s4, 128, %s65, [#allocation11]
    $region21: #{dqn_forward.1} parent=1 // pred_fallthru
      _
    // Predicated region
    $region22: #{dqn_forward.1} parent=1 // pred_check
      _
    $region23: #{dqn_forward.1} parent=1 // pred_check_branch
      %69 = sbr.rel (0) target = $region25
    $region24: #{dqn_forward.1} parent=1 // pred_region
      %s71 = ssub.s32 13824, 13824
      %72 = vsyncadd [#allocation11], %s71
      %s73 = sshll.u32 [#allocation12], 4
      %s74 = int_to_ptr.vmem [resolvable:$true] %s73
      %79 = dma.hbm_to_vmem [thread:$0]  %s5, 13824, %s74, [#allocation11], 192, 192, 12
    $region25: #{dqn_forward.1} parent=1 // pred_fallthru
      _
    // Predicated region
    $region26: #{dqn_forward.1} parent=1 // pred_check
      _
    $region27: #{dqn_forward.1} parent=1 // pred_check_branch
      %81 = sbr.rel (0) target = $region29
    $region28: #{dqn_forward.1} parent=1 // pred_region
      %s83 = ssub.s32 192, 192
      %84 = vsyncadd [#allocation14], %s83
      %s86 = sshll.u32 [#allocation13], 4
      %s87 = int_to_ptr.vmem [resolvable:$true] %s86
      %89 = dma.hbm_to_vmem [thread:$0]  %s6, 192, %s87, [#allocation14]
    $region29: #{dqn_forward.1} parent=1 // pred_fallthru
      _
    // Predicated region
    $region30: #{dqn_forward.1} parent=1 // pred_check
      _
    $region31: #{dqn_forward.1} parent=1 // pred_check_branch
      %91 = sbr.rel (0) target = $region33
    $region32: #{dqn_forward.1} parent=1 // pred_region
      %s93 = ssub.s32 36864, 36864
      %94 = vsyncadd [#allocation14], %s93
      %s95 = sshll.u32 [#allocation15], 4
      %s96 = int_to_ptr.vmem [resolvable:$true] %s95
      %101 = dma.hbm_to_vmem [thread:$0]  %s7, 36864, %s96, [#allocation14], 256, 256, 16
    $region33: #{dqn_forward.1} parent=1 // pred_fallthru
      _
    // Predicated region
    $region34: #{dqn_forward.1} parent=1 // pred_check
      _
    $region35: #{dqn_forward.1} parent=1 // pred_check_branch
      %103 = sbr.rel (0) target = $region37
    $region36: #{dqn_forward.1} parent=1 // pred_region
      %s105 = ssub.s32 64, 64
      %106 = vsyncadd [#allocation17], %s105
      %s108 = sshll.u32 [#allocation16], 4
      %s109 = int_to_ptr.vmem [resolvable:$true] %s108
      %111 = dma.hbm_to_vmem [thread:$0]  %s8, 64, %s109, [#allocation17]
    $region37: #{dqn_forward.1} parent=1 // pred_fallthru
      _
    // Predicated region
    $region38: #{dqn_forward.1} parent=1 // pred_check
      _
    $region39: #{dqn_forward.1} parent=1 // pred_check_branch
      %113 = sbr.rel (0) target = $region41
    $region40: #{dqn_forward.1} parent=1 // pred_region
      _
    $region41: #{dqn_forward.1} parent=1 // pred_fallthru
      _
    // Predicated region
    $region42: #{dqn_forward.1} parent=1 // pred_check
      _
    $region43: #{dqn_forward.1} parent=1 // pred_check_branch
      %115 = sbr.rel (0) target = $region45
    $region44: #{dqn_forward.1} parent=1 // pred_region
      %s117 = ssub.s32 16, 16
      %118 = vsyncadd [#allocation17], %s117
      %s120 = sshll.u32 [#allocation18], 4
      %s121 = int_to_ptr.vmem [resolvable:$true] %s120
      %123 = dma.hbm_to_vmem [thread:$0]  %s10, 16, %s121, [#allocation17]
    $region45: #{dqn_forward.1} parent=1 // pred_fallthru
      _
    // Predicated region
    $region46: #{dqn_forward.1} parent=1 // pred_check
      _
    $region47: #{dqn_forward.1} parent=1 // pred_check_branch
      %125 = sbr.rel (0) target = $region49
    $region48: #{dqn_forward.1} parent=1 // pred_region
      %126 = dma.done [#allocation5], 8192
    $region49: #{dqn_forward.1} parent=1 // pred_fallthru
      _
    // Predicated region
    $region50: #{dqn_forward.1} parent=1 // pred_check
      _
    $region51: #{dqn_forward.1} parent=1 // pred_check_branch
      %128 = sbr.rel (0) target = $region53
    $region52: #{dqn_forward.1} parent=1 // pred_region
      %129 = dma.done [#allocation8], 128
    $region53: #{dqn_forward.1} parent=1 // pred_fallthru
      _
    // Predicated region
    $region54: #{dqn_forward.1} parent=1 // pred_check
      _
    $region55: #{dqn_forward.1} parent=1 // pred_check_branch
      %131 = sbr.rel (0) target = $region57
    $region56: #{dqn_forward.1} parent=1 // pred_region
      %132 = dma.done [#allocation8], 10240
    $region57: #{dqn_forward.1} parent=1 // pred_fallthru
      _
    // Predicated region
    $region58: #{dqn_forward.1} parent=1 // pred_check
      _
    $region59: #{dqn_forward.1} parent=1 // pred_check_branch
      %134 = sbr.rel (0) target = $region61
    $region60: #{dqn_forward.1} parent=1 // pred_region
      %135 = dma.done [#allocation11], 128
    $region61: #{dqn_forward.1} parent=1 // pred_fallthru
      _
    // Predicated region
    $region62: #{dqn_forward.1} parent=1 // pred_check
      _
    $region63: #{dqn_forward.1} parent=1 // pred_check_branch
      %137 = sbr.rel (0) target = $region65
    $region64: #{dqn_forward.1} parent=1 // pred_region
      %138 = dma.done [#allocation11], 13824
    $region65: #{dqn_forward.1} parent=1 // pred_fallthru
      _
    // Predicated region
    $region66: #{dqn_forward.1} parent=1 // pred_check
      _
    $region67: #{dqn_forward.1} parent=1 // pred_check_branch
      %140 = sbr.rel (0) target = $region69
    $region68: #{dqn_forward.1} parent=1 // pred_region
      %141 = dma.done [#allocation14], 192
    $region69: #{dqn_forward.1} parent=1 // pred_fallthru
      _
    // Predicated region
    $region70: #{dqn_forward.1} parent=1 // pred_check
      _
    $region71: #{dqn_forward.1} parent=1 // pred_check_branch
      %143 = sbr.rel (0) target = $region73
    $region72: #{dqn_forward.1} parent=1 // pred_region
      %144 = dma.done [#allocation14], 36864
    $region73: #{dqn_forward.1} parent=1 // pred_fallthru
      _
    // Predicated region
    $region74: #{dqn_forward.1} parent=1 // pred_check
      _
    $region75: #{dqn_forward.1} parent=1 // pred_check_branch
      %146 = sbr.rel (0) target = $region77
    $region76: #{dqn_forward.1} parent=1 // pred_region
      %147 = dma.done [#allocation17], 64
    $region77: #{dqn_forward.1} parent=1 // pred_fallthru
      _
    // Predicated region
    $region78: #{dqn_forward.1} parent=1 // pred_check
      _
    $region79: #{dqn_forward.1} parent=1 // pred_check_branch
      %149 = sbr.rel (0) target = $region81
    $region80: #{dqn_forward.1} parent=1 // pred_region
      %150 = dma.done [#allocation17], 16
    $region81: #{dqn_forward.1} parent=1 // pred_fallthru
      _
    %v152 = vld [vmem:[%s0] sm:$0x3]
    %v153 = vpack.c.bf16 %v152, %v152
    %s154 = scalar_lea.vmem [#allocation4], 256
    %v155 = vld [vmem:[%s154] sm:$0xff]
    %v156 = vld [vmem:[%s154 + $0x8] sm:$0xff]
    %v157 = vld [vmem:[%s154 + $0x10] sm:$0xff]
    %v158 = vld [vmem:[%s154 + $0x18] sm:$0xff]
    %v159 = vld [vmem:[%s154 + $0x20] sm:$0xff]
    %v160 = vld [vmem:[%s154 + $0x28] sm:$0xff]
    %v161 = vld [vmem:[%s154 + $0x30] sm:$0xff]
    %v162 = vld [vmem:[%s154 + $0x38] sm:$0xff]
    %v163 = vld [vmem:[%s0 + $0x2] sm:$0x3]
    %v164 = vpack.c.bf16 %v163, %v163
    %s165 = scalar_lea.vmem [#allocation4], 320
    %v166 = vld [vmem:[%s165] sm:$0xff]
    %v167 = vld [vmem:[%s165 + $0x8] sm:$0xff]
    %v168 = vld [vmem:[%s165 + $0x10] sm:$0xff]
    %v169 = vld [vmem:[%s165 + $0x18] sm:$0xff]
    %v170 = vld [vmem:[%s165 + $0x20] sm:$0xff]
    %v171 = vld [vmem:[%s165 + $0x28] sm:$0xff]
    %v172 = vld [vmem:[%s165 + $0x30] sm:$0xff]
    %v173 = vld [vmem:[%s165 + $0x38] sm:$0xff]
    %v182 = vunpack.c.l.b16 %v166
    %v183 = vunpack.c.h.b16 %v166
    %v184 = vunpack.c.l.b16 %v167
    %v185 = vunpack.c.h.b16 %v167
    %v186 = vunpack.c.l.b16 %v168
    %v187 = vunpack.c.h.b16 %v168
    %v188 = vunpack.c.l.b16 %v169
    %v189 = vunpack.c.h.b16 %v169
    %v190 = vunpack.c.l.b16 %v170
    %v191 = vunpack.c.h.b16 %v170
    %v192 = vunpack.c.l.b16 %v171
    %v193 = vunpack.c.h.b16 %v171
    %v194 = vunpack.c.l.b16 %v172
    %v195 = vunpack.c.h.b16 %v172
    %v196 = vunpack.c.l.b16 %v173
    %v197 = vunpack.c.h.b16 %v173
    %v198 = vpack.c.b16 %v184, %v182
    %v199 = vpack.c.b16 %v185, %v183
    %v200 = vpack.c.b16 %v188, %v186
    %v201 = vpack.c.b16 %v189, %v187
    %v202 = vpack.c.b16 %v192, %v190
    %v203 = vpack.c.b16 %v193, %v191
    %v204 = vpack.c.b16 %v196, %v194
    %v205 = vpack.c.b16 %v197, %v195
    %vm214 = vcmask 523264
    %v216 = vsel %vm214, %v164, 0
    %218 = vmatprep.subr.bf16.mxu0 0
    %219 = vmatpush1.bf16.msra.mxu0 0
    %220 = vmatprep.subr.bf16.mxu0 0
    %221 = vmatpush1.bf16.msra.mxu0 0
    %222 = vmatprep.subr.bf16.mxu0 0
    %223 = vmatpush1.bf16.msra.mxu0 0
    %224 = vmatprep.subr.bf16.mxu0 0
    %225 = vmatpush1.bf16.msra.mxu0 0
    %226 = vmatprep.subr.bf16.mxu0 %v205
    %227 = vmatpush1.bf16.msra.mxu0 %v204
    %228 = vmatprep.subr.bf16.mxu0 %v203
    %229 = vmatpush1.bf16.msra.mxu0 %v202
    %230 = vmatprep.subr.bf16.mxu0 %v201
    %231 = vmatpush1.bf16.msra.mxu0 %v200
    %232 = vmatprep.subr.bf16.mxu0 %v199
    %233 = vmatpush1.bf16.msra.mxu0 %v198
    %234 = vmatprep.subr.bf16.mxu0 0
    %235 = vmatpush2.bf16.msra.mxu0 0
    %236 = vmatprep.subr.bf16.mxu0 0
    %237 = vmatpush2.bf16.msra.mxu0 0
    %238 = vmatprep.subr.bf16.mxu0 0
    %239 = vmatpush2.bf16.msra.mxu0 0
    %240 = vmatprep.subr.bf16.mxu0 0
    %241 = vmatpush2.bf16.msra.mxu0 0
    %242 = vmatprep.subr.bf16.mxu0 0
    %243 = vmatpush2.bf16.msra.mxu0 0
    %244 = vmatprep.subr.bf16.mxu0 0
    %245 = vmatpush2.bf16.msra.mxu0 0
    %246 = vmatprep.subr.bf16.mxu0 0
    %247 = vmatpush2.bf16.msra.mxu0 0
    %248 = vmatprep.subr.bf16.mxu0 0
    %249 = vmatpush2.bf16.msra.mxu0 0
    %250 = vmatprep.mubr.bf16.mxu0 0
    %251 = vmatmul.mubr.bf16.gmra.mxu0 %v216
    %v252 = vpop.f32.mrf.mxu0
    %v253 = vadd.f32 0.0, %v252
    %v254 = vpop.f32.mrf.mxu0
    %v255 = vadd.f32 0.0, %v254
    %v256 = vpop.f32.mrf.mxu0
    %v257 = vpop.f32.mrf.mxu0
    %258 = vdwg.mxu0
    %v267 = vunpack.c.l.b16 %v155
    %v268 = vunpack.c.h.b16 %v155
    %v269 = vunpack.c.l.b16 %v156
    %v270 = vunpack.c.h.b16 %v156
    %v271 = vunpack.c.l.b16 %v157
    %v272 = vunpack.c.h.b16 %v157
    %v273 = vunpack.c.l.b16 %v158
    %v274 = vunpack.c.h.b16 %v158
    %v275 = vunpack.c.l.b16 %v159
    %v276 = vunpack.c.h.b16 %v159
    %v277 = vunpack.c.l.b16 %v160
    %v278 = vunpack.c.h.b16 %v160
    %v279 = vunpack.c.l.b16 %v161
    %v280 = vunpack.c.h.b16 %v161
    %v281 = vunpack.c.l.b16 %v162
    %v282 = vunpack.c.h.b16 %v162
    %v283 = vpack.c.b16 %v269, %v267
    %v284 = vpack.c.b16 %v270, %v268
    %v285 = vpack.c.b16 %v273, %v271
    %v286 = vpack.c.b16 %v274, %v272
    %v287 = vpack.c.b16 %v277, %v275
    %v288 = vpack.c.b16 %v278, %v276
    %v289 = vpack.c.b16 %v281, %v279
    %v290 = vpack.c.b16 %v282, %v280
    %v300 = vsel %vm214, %v153, 0
    %302 = vmatprep.subr.bf16.mxu0 0
    %303 = vmatpush1.bf16.msra.mxu0 0
    %304 = vmatprep.subr.bf16.mxu0 0
    %305 = vmatpush1.bf16.msra.mxu0 0
    %306 = vmatprep.subr.bf16.mxu0 0
    %307 = vmatpush1.bf16.msra.mxu0 0
    %308 = vmatprep.subr.bf16.mxu0 0
    %309 = vmatpush1.bf16.msra.mxu0 0
    %310 = vmatprep.subr.bf16.mxu0 %v290
    %311 = vmatpush1.bf16.msra.mxu0 %v289
    %312 = vmatprep.subr.bf16.mxu0 %v288
    %313 = vmatpush1.bf16.msra.mxu0 %v287
    %314 = vmatprep.subr.bf16.mxu0 %v286
    %315 = vmatpush1.bf16.msra.mxu0 %v285
    %316 = vmatprep.subr.bf16.mxu0 %v284
    %317 = vmatpush1.bf16.msra.mxu0 %v283
    %318 = vmatprep.subr.bf16.mxu0 0
    %319 = vmatpush2.bf16.msra.mxu0 0
    %320 = vmatprep.subr.bf16.mxu0 0
    %321 = vmatpush2.bf16.msra.mxu0 0
    %322 = vmatprep.subr.bf16.mxu0 0
    %323 = vmatpush2.bf16.msra.mxu0 0
    %324 = vmatprep.subr.bf16.mxu0 0
    %325 = vmatpush2.bf16.msra.mxu0 0
    %326 = vmatprep.subr.bf16.mxu0 0
    %327 = vmatpush2.bf16.msra.mxu0 0
    %328 = vmatprep.subr.bf16.mxu0 0
    %329 = vmatpush2.bf16.msra.mxu0 0
    %330 = vmatprep.subr.bf16.mxu0 0
    %331 = vmatpush2.bf16.msra.mxu0 0
    %332 = vmatprep.subr.bf16.mxu0 0
    %333 = vmatpush2.bf16.msra.mxu0 0
    %334 = vmatprep.mubr.bf16.mxu0 0
    %335 = vmatmul.mubr.bf16.gmra.mxu0 %v300
    %v336 = vpop.f32.mrf.mxu0
    %v337 = vadd.f32 %v253, %v336
    %v338 = vpop.f32.mrf.mxu0
    %v339 = vadd.f32 %v255, %v338
    %v340 = vpop.f32.mrf.mxu0
    %v341 = vpop.f32.mrf.mxu0
    %342 = vdwg.mxu0
    %v343 = vld [vmem:[%s0 + $0x4] sm:$0x3]
    %v344 = vpack.c.bf16 %v343, %v343
    %s345 = scalar_lea.vmem [#allocation4], 384
    %v346 = vld [vmem:[%s345] sm:$0xff]
    %v347 = vld [vmem:[%s345 + $0x8] sm:$0xff]
    %v348 = vld [vmem:[%s345 + $0x10] sm:$0xff]
    %v349 = vld [vmem:[%s345 + $0x18] sm:$0xff]
    %v350 = vld [vmem:[%s345 + $0x20] sm:$0xff]
    %v351 = vld [vmem:[%s345 + $0x28] sm:$0xff]
    %v352 = vld [vmem:[%s345 + $0x30] sm:$0xff]
    %v353 = vld [vmem:[%s345 + $0x38] sm:$0xff]
    %v362 = vunpack.c.l.b16 %v346
    %v363 = vunpack.c.h.b16 %v346
    %v364 = vunpack.c.l.b16 %v347
    %v365 = vunpack.c.h.b16 %v347
    %v366 = vunpack.c.l.b16 %v348
    %v367 = vunpack.c.h.b16 %v348
    %v368 = vunpack.c.l.b16 %v349
    %v369 = vunpack.c.h.b16 %v349
    %v370 = vunpack.c.l.b16 %v350
    %v371 = vunpack.c.h.b16 %v350
    %v372 = vunpack.c.l.b16 %v351
    %v373 = vunpack.c.h.b16 %v351
    %v374 = vunpack.c.l.b16 %v352
    %v375 = vunpack.c.h.b16 %v352
    %v376 = vunpack.c.l.b16 %v353
    %v377 = vunpack.c.h.b16 %v353
    %v378 = vpack.c.b16 %v364, %v362
    %v379 = vpack.c.b16 %v365, %v363
    %v380 = vpack.c.b16 %v368, %v366
    %v381 = vpack.c.b16 %v369, %v367
    %v382 = vpack.c.b16 %v372, %v370
    %v383 = vpack.c.b16 %v373, %v371
    %v384 = vpack.c.b16 %v376, %v374
    %v385 = vpack.c.b16 %v377, %v375
    %v395 = vsel %vm214, %v344, 0
    %397 = vmatprep.subr.bf16.mxu0 0
    %398 = vmatpush1.bf16.msra.mxu0 0
    %399 = vmatprep.subr.bf16.mxu0 0
    %400 = vmatpush1.bf16.msra.mxu0 0
    %401 = vmatprep.subr.bf16.mxu0 0
    %402 = vmatpush1.bf16.msra.mxu0 0
    %403 = vmatprep.subr.bf16.mxu0 0
    %404 = vmatpush1.bf16.msra.mxu0 0
    %405 = vmatprep.subr.bf16.mxu0 %v385
    %406 = vmatpush1.bf16.msra.mxu0 %v384
    %407 = vmatprep.subr.bf16.mxu0 %v383
    %408 = vmatpush1.bf16.msra.mxu0 %v382
    %409 = vmatprep.subr.bf16.mxu0 %v381
    %410 = vmatpush1.bf16.msra.mxu0 %v380
    %411 = vmatprep.subr.bf16.mxu0 %v379
    %412 = vmatpush1.bf16.msra.mxu0 %v378
    %413 = vmatprep.subr.bf16.mxu0 0
    %414 = vmatpush2.bf16.msra.mxu0 0
    %415 = vmatprep.subr.bf16.mxu0 0
    %416 = vmatpush2.bf16.msra.mxu0 0
    %417 = vmatprep.subr.bf16.mxu0 0
    %418 = vmatpush2.bf16.msra.mxu0 0
    %419 = vmatprep.subr.bf16.mxu0 0
    %420 = vmatpush2.bf16.msra.mxu0 0
    %421 = vmatprep.subr.bf16.mxu0 0
    %422 = vmatpush2.bf16.msra.mxu0 0
    %423 = vmatprep.subr.bf16.mxu0 0
    %424 = vmatpush2.bf16.msra.mxu0 0
    %425 = vmatprep.subr.bf16.mxu0 0
    %426 = vmatpush2.bf16.msra.mxu0 0
    %427 = vmatprep.subr.bf16.mxu0 0
    %428 = vmatpush2.bf16.msra.mxu0 0
    %429 = vmatprep.mubr.bf16.mxu0 0
    %430 = vmatmul.mubr.bf16.gmra.mxu0 %v395
    %v431 = vpop.f32.mrf.mxu0
    %v432 = vadd.f32 0.0, %v431
    %v433 = vpop.f32.mrf.mxu0
    %v434 = vadd.f32 0.0, %v433
    %v435 = vpop.f32.mrf.mxu0
    %v436 = vpop.f32.mrf.mxu0
    %437 = vdwg.mxu0
    %v438 = vadd.f32 %v337, %v432
    %v439 = vadd.f32 %v339, %v434
    %v440 = vld [vmem:[%s0 + $0x6] sm:$0x3]
    %v441 = vpack.c.bf16 %v440, %v440
    %s442 = scalar_lea.vmem [#allocation4], 448
    %v443 = vld [vmem:[%s442] sm:$0xff]
    %v444 = vld [vmem:[%s442 + $0x8] sm:$0xff]
    %v445 = vld [vmem:[%s442 + $0x10] sm:$0xff]
    %v446 = vld [vmem:[%s442 + $0x18] sm:$0xff]
    %v447 = vld [vmem:[%s442 + $0x20] sm:$0xff]
    %v448 = vld [vmem:[%s442 + $0x28] sm:$0xff]
    %v449 = vld [vmem:[%s442 + $0x30] sm:$0xff]
    %v450 = vld [vmem:[%s442 + $0x38] sm:$0xff]
    %v459 = vunpack.c.l.b16 %v443
    %v460 = vunpack.c.h.b16 %v443
    %v461 = vunpack.c.l.b16 %v444
    %v462 = vunpack.c.h.b16 %v444
    %v463 = vunpack.c.l.b16 %v445
    %v464 = vunpack.c.h.b16 %v445
    %v465 = vunpack.c.l.b16 %v446
    %v466 = vunpack.c.h.b16 %v446
    %v467 = vunpack.c.l.b16 %v447
    %v468 = vunpack.c.h.b16 %v447
    %v469 = vunpack.c.l.b16 %v448
    %v470 = vunpack.c.h.b16 %v448
    %v471 = vunpack.c.l.b16 %v449
    %v472 = vunpack.c.h.b16 %v449
    %v473 = vunpack.c.l.b16 %v450
    %v474 = vunpack.c.h.b16 %v450
    %v475 = vpack.c.b16 %v461, %v459
    %v476 = vpack.c.b16 %v462, %v460
    %v477 = vpack.c.b16 %v465, %v463
    %v478 = vpack.c.b16 %v466, %v464
    %v479 = vpack.c.b16 %v469, %v467
    %v480 = vpack.c.b16 %v470, %v468
    %v481 = vpack.c.b16 %v473, %v471
    %v482 = vpack.c.b16 %v474, %v472
    %v492 = vsel %vm214, %v441, 0
    %494 = vmatprep.subr.bf16.mxu0 0
    %495 = vmatpush1.bf16.msra.mxu0 0
    %496 = vmatprep.subr.bf16.mxu0 0
    %497 = vmatpush1.bf16.msra.mxu0 0
    %498 = vmatprep.subr.bf16.mxu0 0
    %499 = vmatpush1.bf16.msra.mxu0 0
    %500 = vmatprep.subr.bf16.mxu0 0
    %501 = vmatpush1.bf16.msra.mxu0 0
    %502 = vmatprep.subr.bf16.mxu0 %v482
    %503 = vmatpush1.bf16.msra.mxu0 %v481
    %504 = vmatprep.subr.bf16.mxu0 %v480
    %505 = vmatpush1.bf16.msra.mxu0 %v479
    %506 = vmatprep.subr.bf16.mxu0 %v478
    %507 = vmatpush1.bf16.msra.mxu0 %v477
    %508 = vmatprep.subr.bf16.mxu0 %v476
    %509 = vmatpush1.bf16.msra.mxu0 %v475
    %510 = vmatprep.subr.bf16.mxu0 0
    %511 = vmatpush2.bf16.msra.mxu0 0
    %512 = vmatprep.subr.bf16.mxu0 0
    %513 = vmatpush2.bf16.msra.mxu0 0
    %514 = vmatprep.subr.bf16.mxu0 0
    %515 = vmatpush2.bf16.msra.mxu0 0
    %516 = vmatprep.subr.bf16.mxu0 0
    %517 = vmatpush2.bf16.msra.mxu0 0
    %518 = vmatprep.subr.bf16.mxu0 0
    %519 = vmatpush2.bf16.msra.mxu0 0
    %520 = vmatprep.subr.bf16.mxu0 0
    %521 = vmatpush2.bf16.msra.mxu0 0
    %522 = vmatprep.subr.bf16.mxu0 0
    %523 = vmatpush2.bf16.msra.mxu0 0
    %524 = vmatprep.subr.bf16.mxu0 0
    %525 = vmatpush2.bf16.msra.mxu0 0
    %526 = vmatprep.mubr.bf16.mxu0 0
    %527 = vmatmul.mubr.bf16.gmra.mxu0 %v492
    %v528 = vpop.f32.mrf.mxu0
    %v529 = vadd.f32 0.0, %v528
    %v530 = vpop.f32.mrf.mxu0
    %v531 = vadd.f32 0.0, %v530
    %v532 = vpop.f32.mrf.mxu0
    %v533 = vpop.f32.mrf.mxu0
    %534 = vdwg.mxu0
    %v535 = vadd.f32 %v438, %v529
    %v536 = vadd.f32 %v439, %v531
    %v537 = vld [vmem:[#allocation7] ss:$4 sm:$0x3]
    %v539 = vlaneseq
    %v540 = vshrl.u32 %v539, 7
    %v541 = vsub.s32 0, %v540
    %v542 = vrot.slane %v537, %v541
    %v543 = vlaneseq
    %v544 = vshrl.u32 %v543, 7
    %v545 = vsub.s32 1, %v544
    %v546 = vrot.slane %v537, %v545
    %v549 = vadd.f32 %v535, %v542
    %v550 = vadd.f32 %v536, %v546
    %v551 = vmax.f32 %v549, 0.0
    %v552 = vmax.f32 %v550, 0.0
    %s553 = scalar_lea.vmem [#allocation7], 1
    %v554 = vld [vmem:[%s553] ss:$4 sm:$0x3]
    %v556 = vlaneseq
    %v557 = vshrl.u32 %v556, 7
    %v558 = vsub.s32 0, %v557
    %v559 = vrot.slane %v554, %v558
    %v560 = vlaneseq
    %v561 = vshrl.u32 %v560, 7
    %v562 = vsub.s32 1, %v561
    %v563 = vrot.slane %v554, %v562
    %v566 = vmul.f32 %v551, %v559
    %v567 = vmul.f32 %v552, %v563
    %s568 = scalar_lea.vmem [#allocation7], 2
    %v569 = vld [vmem:[%s568] ss:$4 sm:$0x3]
    %v571 = vlaneseq
    %v572 = vshrl.u32 %v571, 7
    %v573 = vsub.s32 0, %v572
    %v574 = vrot.slane %v569, %v573
    %v575 = vlaneseq
    %v576 = vshrl.u32 %v575, 7
    %v577 = vsub.s32 1, %v576
    %v578 = vrot.slane %v569, %v577
    %v581 = vadd.f32 %v566, %v574
    %v582 = vadd.f32 %v567, %v578
    %583 = vst [vmem:[#allocation2] sm:$0x3] %v581
    %vm584 = vcmask 254976
    %585 = vst.msk [vmem:[#allocation2 + $0x8] sm:$0x3] %vm584, %v582
    %v586 = vld [vmem:[%s0] sm:$0x3]
    %v587 = vpack.c.bf16 %v586, %v586
    %v588 = vld [vmem:[#allocation4] sm:$0xff]
    %v589 = vld [vmem:[#allocation4 + $0x8] sm:$0xff]
    %v590 = vld [vmem:[#allocation4 + $0x10] sm:$0xff]
    %v591 = vld [vmem:[#allocation4 + $0x18] sm:$0xff]
    %v592 = vld [vmem:[#allocation4 + $0x20] sm:$0xff]
    %v593 = vld [vmem:[#allocation4 + $0x28] sm:$0xff]
    %v594 = vld [vmem:[#allocation4 + $0x30] sm:$0xff]
    %v595 = vld [vmem:[#allocation4 + $0x38] sm:$0xff]
    %v596 = vld [vmem:[%s0 + $0x2] sm:$0x3]
    %v597 = vpack.c.bf16 %v596, %v596
    %s598 = scalar_lea.vmem [#allocation4], 64
    %v599 = vld [vmem:[%s598] sm:$0xff]
    %v600 = vld [vmem:[%s598 + $0x8] sm:$0xff]
    %v601 = vld [vmem:[%s598 + $0x10] sm:$0xff]
    %v602 = vld [vmem:[%s598 + $0x18] sm:$0xff]
    %v603 = vld [vmem:[%s598 + $0x20] sm:$0xff]
    %v604 = vld [vmem:[%s598 + $0x28] sm:$0xff]
    %v605 = vld [vmem:[%s598 + $0x30] sm:$0xff]
    %v606 = vld [vmem:[%s598 + $0x38] sm:$0xff]
    %v615 = vunpack.c.l.b16 %v599
    %v616 = vunpack.c.h.b16 %v599
    %v617 = vunpack.c.l.b16 %v600
    %v618 = vunpack.c.h.b16 %v600
    %v619 = vunpack.c.l.b16 %v601
    %v620 = vunpack.c.h.b16 %v601
    %v621 = vunpack.c.l.b16 %v602
    %v622 = vunpack.c.h.b16 %v602
    %v623 = vunpack.c.l.b16 %v603
    %v624 = vunpack.c.h.b16 %v603
    %v625 = vunpack.c.l.b16 %v604
    %v626 = vunpack.c.h.b16 %v604
    %v627 = vunpack.c.l.b16 %v605
    %v628 = vunpack.c.h.b16 %v605
    %v629 = vunpack.c.l.b16 %v606
    %v630 = vunpack.c.h.b16 %v606
    %v631 = vpack.c.b16 %v617, %v615
    %v632 = vpack.c.b16 %v618, %v616
    %v633 = vpack.c.b16 %v621, %v619
    %v634 = vpack.c.b16 %v622, %v620
    %v635 = vpack.c.b16 %v625, %v623
    %v636 = vpack.c.b16 %v626, %v624
    %v637 = vpack.c.b16 %v629, %v627
    %v638 = vpack.c.b16 %v630, %v628
    %v648 = vsel %vm214, %v597, 0
    %650 = vmatprep.subr.bf16.mxu0 0
    %651 = vmatpush1.bf16.msra.mxu0 0
    %652 = vmatprep.subr.bf16.mxu0 0
    %653 = vmatpush1.bf16.msra.mxu0 0
    %654 = vmatprep.subr.bf16.mxu0 0
    %655 = vmatpush1.bf16.msra.mxu0 0
    %656 = vmatprep.subr.bf16.mxu0 0
    %657 = vmatpush1.bf16.msra.mxu0 0
    %658 = vmatprep.subr.bf16.mxu0 %v638
    %659 = vmatpush1.bf16.msra.mxu0 %v637
    %660 = vmatprep.subr.bf16.mxu0 %v636
    %661 = vmatpush1.bf16.msra.mxu0 %v635
    %662 = vmatprep.subr.bf16.mxu0 %v634
    %663 = vmatpush1.bf16.msra.mxu0 %v633
    %664 = vmatprep.subr.bf16.mxu0 %v632
    %665 = vmatpush1.bf16.msra.mxu0 %v631
    %666 = vmatprep.subr.bf16.mxu0 0
    %667 = vmatpush2.bf16.msra.mxu0 0
    %668 = vmatprep.subr.bf16.mxu0 0
    %669 = vmatpush2.bf16.msra.mxu0 0
    %670 = vmatprep.subr.bf16.mxu0 0
    %671 = vmatpush2.bf16.msra.mxu0 0
    %672 = vmatprep.subr.bf16.mxu0 0
    %673 = vmatpush2.bf16.msra.mxu0 0
    %674 = vmatprep.subr.bf16.mxu0 0
    %675 = vmatpush2.bf16.msra.mxu0 0
    %676 = vmatprep.subr.bf16.mxu0 0
    %677 = vmatpush2.bf16.msra.mxu0 0
    %678 = vmatprep.subr.bf16.mxu0 0
    %679 = vmatpush2.bf16.msra.mxu0 0
    %680 = vmatprep.subr.bf16.mxu0 0
    %681 = vmatpush2.bf16.msra.mxu0 0
    %682 = vmatprep.mubr.bf16.mxu0 0
    %683 = vmatmul.mubr.bf16.gmra.mxu0 %v648
    %v684 = vpop.f32.mrf.mxu0
    %v685 = vadd.f32 0.0, %v684
    %v686 = vpop.f32.mrf.mxu0
    %v687 = vadd.f32 0.0, %v686
    %v688 = vpop.f32.mrf.mxu0
    %v689 = vpop.f32.mrf.mxu0
    %690 = vdwg.mxu0
    %v699 = vunpack.c.l.b16 %v588
    %v700 = vunpack.c.h.b16 %v588
    %v701 = vunpack.c.l.b16 %v589
    %v702 = vunpack.c.h.b16 %v589
    %v703 = vunpack.c.l.b16 %v590
    %v704 = vunpack.c.h.b16 %v590
    %v705 = vunpack.c.l.b16 %v591
    %v706 = vunpack.c.h.b16 %v591
    %v707 = vunpack.c.l.b16 %v592
    %v708 = vunpack.c.h.b16 %v592
    %v709 = vunpack.c.l.b16 %v593
    %v710 = vunpack.c.h.b16 %v593
    %v711 = vunpack.c.l.b16 %v594
    %v712 = vunpack.c.h.b16 %v594
    %v713 = vunpack.c.l.b16 %v595
    %v714 = vunpack.c.h.b16 %v595
    %v715 = vpack.c.b16 %v701, %v699
    %v716 = vpack.c.b16 %v702, %v700
    %v717 = vpack.c.b16 %v705, %v703
    %v718 = vpack.c.b16 %v706, %v704
    %v719 = vpack.c.b16 %v709, %v707
    %v720 = vpack.c.b16 %v710, %v708
    %v721 = vpack.c.b16 %v713, %v711
    %v722 = vpack.c.b16 %v714, %v712
    %v732 = vsel %vm214, %v587, 0
    %734 = vmatprep.subr.bf16.mxu0 0
    %735 = vmatpush1.bf16.msra.mxu0 0
    %736 = vmatprep.subr.bf16.mxu0 0
    %737 = vmatpush1.bf16.msra.mxu0 0
    %738 = vmatprep.subr.bf16.mxu0 0
    %739 = vmatpush1.bf16.msra.mxu0 0
    %740 = vmatprep.subr.bf16.mxu0 0
    %741 = vmatpush1.bf16.msra.mxu0 0
    %742 = vmatprep.subr.bf16.mxu0 %v722
    %743 = vmatpush1.bf16.msra.mxu0 %v721
    %744 = vmatprep.subr.bf16.mxu0 %v720
    %745 = vmatpush1.bf16.msra.mxu0 %v719
    %746 = vmatprep.subr.bf16.mxu0 %v718
    %747 = vmatpush1.bf16.msra.mxu0 %v717
    %748 = vmatprep.subr.bf16.mxu0 %v716
    %749 = vmatpush1.bf16.msra.mxu0 %v715
    %750 = vmatprep.subr.bf16.mxu0 0
    %751 = vmatpush2.bf16.msra.mxu0 0
    %752 = vmatprep.subr.bf16.mxu0 0
    %753 = vmatpush2.bf16.msra.mxu0 0
    %754 = vmatprep.subr.bf16.mxu0 0
    %755 = vmatpush2.bf16.msra.mxu0 0
    %756 = vmatprep.subr.bf16.mxu0 0
    %757 = vmatpush2.bf16.msra.mxu0 0
    %758 = vmatprep.subr.bf16.mxu0 0
    %759 = vmatpush2.bf16.msra.mxu0 0
    %760 = vmatprep.subr.bf16.mxu0 0
    %761 = vmatpush2.bf16.msra.mxu0 0
    %762 = vmatprep.subr.bf16.mxu0 0
    %763 = vmatpush2.bf16.msra.mxu0 0
    %764 = vmatprep.subr.bf16.mxu0 0
    %765 = vmatpush2.bf16.msra.mxu0 0
    %766 = vmatprep.mubr.bf16.mxu0 0
    %767 = vmatmul.mubr.bf16.gmra.mxu0 %v732
    %v768 = vpop.f32.mrf.mxu0
    %v769 = vadd.f32 %v685, %v768
    %v770 = vpop.f32.mrf.mxu0
    %v771 = vadd.f32 %v687, %v770
    %v772 = vpop.f32.mrf.mxu0
    %v773 = vpop.f32.mrf.mxu0
    %774 = vdwg.mxu0
    %v775 = vld [vmem:[%s0 + $0x4] sm:$0x3]
    %v776 = vpack.c.bf16 %v775, %v775
    %s777 = scalar_lea.vmem [#allocation4], 128
    %v778 = vld [vmem:[%s777] sm:$0xff]
    %v779 = vld [vmem:[%s777 + $0x8] sm:$0xff]
    %v780 = vld [vmem:[%s777 + $0x10] sm:$0xff]
    %v781 = vld [vmem:[%s777 + $0x18] sm:$0xff]
    %v782 = vld [vmem:[%s777 + $0x20] sm:$0xff]
    %v783 = vld [vmem:[%s777 + $0x28] sm:$0xff]
    %v784 = vld [vmem:[%s777 + $0x30] sm:$0xff]
    %v785 = vld [vmem:[%s777 + $0x38] sm:$0xff]
    %v794 = vunpack.c.l.b16 %v778
    %v795 = vunpack.c.h.b16 %v778
    %v796 = vunpack.c.l.b16 %v779
    %v797 = vunpack.c.h.b16 %v779
    %v798 = vunpack.c.l.b16 %v780
    %v799 = vunpack.c.h.b16 %v780
    %v800 = vunpack.c.l.b16 %v781
    %v801 = vunpack.c.h.b16 %v781
    %v802 = vunpack.c.l.b16 %v782
    %v803 = vunpack.c.h.b16 %v782
    %v804 = vunpack.c.l.b16 %v783
    %v805 = vunpack.c.h.b16 %v783
    %v806 = vunpack.c.l.b16 %v784
    %v807 = vunpack.c.h.b16 %v784
    %v808 = vunpack.c.l.b16 %v785
    %v809 = vunpack.c.h.b16 %v785
    %v810 = vpack.c.b16 %v796, %v794
    %v811 = vpack.c.b16 %v797, %v795
    %v812 = vpack.c.b16 %v800, %v798
    %v813 = vpack.c.b16 %v801, %v799
    %v814 = vpack.c.b16 %v804, %v802
    %v815 = vpack.c.b16 %v805, %v803
    %v816 = vpack.c.b16 %v808, %v806
    %v817 = vpack.c.b16 %v809, %v807
    %v827 = vsel %vm214, %v776, 0
    %829 = vmatprep.subr.bf16.mxu0 0
    %830 = vmatpush1.bf16.msra.mxu0 0
    %831 = vmatprep.subr.bf16.mxu0 0
    %832 = vmatpush1.bf16.msra.mxu0 0
    %833 = vmatprep.subr.bf16.mxu0 0
    %834 = vmatpush1.bf16.msra.mxu0 0
    %835 = vmatprep.subr.bf16.mxu0 0
    %836 = vmatpush1.bf16.msra.mxu0 0
    %837 = vmatprep.subr.bf16.mxu0 %v817
    %838 = vmatpush1.bf16.msra.mxu0 %v816
    %839 = vmatprep.subr.bf16.mxu0 %v815
    %840 = vmatpush1.bf16.msra.mxu0 %v814
    %841 = vmatprep.subr.bf16.mxu0 %v813
    %842 = vmatpush1.bf16.msra.mxu0 %v812
    %843 = vmatprep.subr.bf16.mxu0 %v811
    %844 = vmatpush1.bf16.msra.mxu0 %v810
    %845 = vmatprep.subr.bf16.mxu0 0
    %846 = vmatpush2.bf16.msra.mxu0 0
    %847 = vmatprep.subr.bf16.mxu0 0
    %848 = vmatpush2.bf16.msra.mxu0 0
    %849 = vmatprep.subr.bf16.mxu0 0
    %850 = vmatpush2.bf16.msra.mxu0 0
    %851 = vmatprep.subr.bf16.mxu0 0
    %852 = vmatpush2.bf16.msra.mxu0 0
    %853 = vmatprep.subr.bf16.mxu0 0
    %854 = vmatpush2.bf16.msra.mxu0 0
    %855 = vmatprep.subr.bf16.mxu0 0
    %856 = vmatpush2.bf16.msra.mxu0 0
    %857 = vmatprep.subr.bf16.mxu0 0
    %858 = vmatpush2.bf16.msra.mxu0 0
    %859 = vmatprep.subr.bf16.mxu0 0
    %860 = vmatpush2.bf16.msra.mxu0 0
    %861 = vmatprep.mubr.bf16.mxu0 0
    %862 = vmatmul.mubr.bf16.gmra.mxu0 %v827
    %v863 = vpop.f32.mrf.mxu0
    %v864 = vadd.f32 0.0, %v863
    %v865 = vpop.f32.mrf.mxu0
    %v866 = vadd.f32 0.0, %v865
    %v867 = vpop.f32.mrf.mxu0
    %v868 = vpop.f32.mrf.mxu0
    %869 = vdwg.mxu0
    %v870 = vadd.f32 %v769, %v864
    %v871 = vadd.f32 %v771, %v866
    %v872 = vld [vmem:[%s0 + $0x6] sm:$0x3]
    %v873 = vpack.c.bf16 %v872, %v872
    %s874 = scalar_lea.vmem [#allocation4], 192
    %v875 = vld [vmem:[%s874] sm:$0xff]
    %v876 = vld [vmem:[%s874 + $0x8] sm:$0xff]
    %v877 = vld [vmem:[%s874 + $0x10] sm:$0xff]
    %v878 = vld [vmem:[%s874 + $0x18] sm:$0xff]
    %v879 = vld [vmem:[%s874 + $0x20] sm:$0xff]
    %v880 = vld [vmem:[%s874 + $0x28] sm:$0xff]
    %v881 = vld [vmem:[%s874 + $0x30] sm:$0xff]
    %v882 = vld [vmem:[%s874 + $0x38] sm:$0xff]
    %v891 = vunpack.c.l.b16 %v875
    %v892 = vunpack.c.h.b16 %v875
    %v893 = vunpack.c.l.b16 %v876
    %v894 = vunpack.c.h.b16 %v876
    %v895 = vunpack.c.l.b16 %v877
    %v896 = vunpack.c.h.b16 %v877
    %v897 = vunpack.c.l.b16 %v878
    %v898 = vunpack.c.h.b16 %v878
    %v899 = vunpack.c.l.b16 %v879
    %v900 = vunpack.c.h.b16 %v879
    %v901 = vunpack.c.l.b16 %v880
    %v902 = vunpack.c.h.b16 %v880
    %v903 = vunpack.c.l.b16 %v881
    %v904 = vunpack.c.h.b16 %v881
    %v905 = vunpack.c.l.b16 %v882
    %v906 = vunpack.c.h.b16 %v882
    %v907 = vpack.c.b16 %v893, %v891
    %v908 = vpack.c.b16 %v894, %v892
    %v909 = vpack.c.b16 %v897, %v895
    %v910 = vpack.c.b16 %v898, %v896
    %v911 = vpack.c.b16 %v901, %v899
    %v912 = vpack.c.b16 %v902, %v900
    %v913 = vpack.c.b16 %v905, %v903
    %v914 = vpack.c.b16 %v906, %v904
    %v924 = vsel %vm214, %v873, 0
    %926 = vmatprep.subr.bf16.mxu0 0
    %927 = vmatpush1.bf16.msra.mxu0 0
    %928 = vmatprep.subr.bf16.mxu0 0
    %929 = vmatpush1.bf16.msra.mxu0 0
    %930 = vmatprep.subr.bf16.mxu0 0
    %931 = vmatpush1.bf16.msra.mxu0 0
    %932 = vmatprep.subr.bf16.mxu0 0
    %933 = vmatpush1.bf16.msra.mxu0 0
    %934 = vmatprep.subr.bf16.mxu0 %v914
    %935 = vmatpush1.bf16.msra.mxu0 %v913
    %936 = vmatprep.subr.bf16.mxu0 %v912
    %937 = vmatpush1.bf16.msra.mxu0 %v911
    %938 = vmatprep.subr.bf16.mxu0 %v910
    %939 = vmatpush1.bf16.msra.mxu0 %v909
    %940 = vmatprep.subr.bf16.mxu0 %v908
    %941 = vmatpush1.bf16.msra.mxu0 %v907
    %942 = vmatprep.subr.bf16.mxu0 0
    %943 = vmatpush2.bf16.msra.mxu0 0
    %944 = vmatprep.subr.bf16.mxu0 0
    %945 = vmatpush2.bf16.msra.mxu0 0
    %946 = vmatprep.subr.bf16.mxu0 0
    %947 = vmatpush2.bf16.msra.mxu0 0
    %948 = vmatprep.subr.bf16.mxu0 0
    %949 = vmatpush2.bf16.msra.mxu0 0
    %950 = vmatprep.subr.bf16.mxu0 0
    %951 = vmatpush2.bf16.msra.mxu0 0
    %952 = vmatprep.subr.bf16.mxu0 0
    %953 = vmatpush2.bf16.msra.mxu0 0
    %954 = vmatprep.subr.bf16.mxu0 0
    %955 = vmatpush2.bf16.msra.mxu0 0
    %956 = vmatprep.subr.bf16.mxu0 0
    %957 = vmatpush2.bf16.msra.mxu0 0
    %958 = vmatprep.mubr.bf16.mxu0 0
    %959 = vmatmul.mubr.bf16.gmra.mxu0 %v924
    %v960 = vpop.f32.mrf.mxu0
    %v961 = vadd.f32 0.0, %v960
    %v962 = vpop.f32.mrf.mxu0
    %v963 = vadd.f32 0.0, %v962
    %v964 = vpop.f32.mrf.mxu0
    %v965 = vpop.f32.mrf.mxu0
    %966 = vdwg.mxu0
    %v967 = vadd.f32 %v870, %v961
    %v968 = vadd.f32 %v871, %v963
    %v969 = vld [vmem:[%s0 + $0x8] sm:$0x3]
    %v970 = vpack.c.bf16 %v969, %v969
    %v971 = vld [vmem:[%s154] sm:$0xff]
    %v972 = vld [vmem:[%s154 + $0x8] sm:$0xff]
    %v973 = vld [vmem:[%s154 + $0x10] sm:$0xff]
    %v974 = vld [vmem:[%s154 + $0x18] sm:$0xff]
    %v975 = vld [vmem:[%s154 + $0x20] sm:$0xff]
    %v976 = vld [vmem:[%s154 + $0x28] sm:$0xff]
    %v977 = vld [vmem:[%s154 + $0x30] sm:$0xff]
    %v978 = vld [vmem:[%s154 + $0x38] sm:$0xff]
    %v987 = vunpack.c.l.b16 %v971
    %v988 = vunpack.c.h.b16 %v971
    %v989 = vunpack.c.l.b16 %v972
    %v990 = vunpack.c.h.b16 %v972
    %v991 = vunpack.c.l.b16 %v973
    %v992 = vunpack.c.h.b16 %v973
    %v993 = vunpack.c.l.b16 %v974
    %v994 = vunpack.c.h.b16 %v974
    %v995 = vunpack.c.l.b16 %v975
    %v996 = vunpack.c.h.b16 %v975
    %v997 = vunpack.c.l.b16 %v976
    %v998 = vunpack.c.h.b16 %v976
    %v999 = vunpack.c.l.b16 %v977
    %v1000 = vunpack.c.h.b16 %v977
    %v1001 = vunpack.c.l.b16 %v978
    %v1002 = vunpack.c.h.b16 %v978
    %v1003 = vpack.c.b16 %v989, %v987
    %v1004 = vpack.c.b16 %v990, %v988
    %v1005 = vpack.c.b16 %v993, %v991
    %v1006 = vpack.c.b16 %v994, %v992
    %v1007 = vpack.c.b16 %v997, %v995
    %v1008 = vpack.c.b16 %v998, %v996
    %v1009 = vpack.c.b16 %v1001, %v999
    %v1010 = vpack.c.b16 %v1002, %v1000
    %v1020 = vsel %vm214, %v970, 0
    %1022 = vmatprep.subr.bf16.mxu0 0
    %1023 = vmatpush1.bf16.msra.mxu0 0
    %1024 = vmatprep.subr.bf16.mxu0 0
    %1025 = vmatpush1.bf16.msra.mxu0 0
    %1026 = vmatprep.subr.bf16.mxu0 0
    %1027 = vmatpush1.bf16.msra.mxu0 0
    %1028 = vmatprep.subr.bf16.mxu0 0
    %1029 = vmatpush1.bf16.msra.mxu0 0
    %1030 = vmatprep.subr.bf16.mxu0 %v1010
    %1031 = vmatpush1.bf16.msra.mxu0 %v1009
    %1032 = vmatprep.subr.bf16.mxu0 %v1008
    %1033 = vmatpush1.bf16.msra.mxu0 %v1007
    %1034 = vmatprep.subr.bf16.mxu0 %v1006
    %1035 = vmatpush1.bf16.msra.mxu0 %v1005
    %1036 = vmatprep.subr.bf16.mxu0 %v1004
    %1037 = vmatpush1.bf16.msra.mxu0 %v1003
    %1038 = vmatprep.subr.bf16.mxu0 0
    %1039 = vmatpush2.bf16.msra.mxu0 0
    %1040 = vmatprep.subr.bf16.mxu0 0
    %1041 = vmatpush2.bf16.msra.mxu0 0
    %1042 = vmatprep.subr.bf16.mxu0 0
    %1043 = vmatpush2.bf16.msra.mxu0 0
    %1044 = vmatprep.subr.bf16.mxu0 0
    %1045 = vmatpush2.bf16.msra.mxu0 0
    %1046 = vmatprep.subr.bf16.mxu0 0
    %1047 = vmatpush2.bf16.msra.mxu0 0
    %1048 = vmatprep.subr.bf16.mxu0 0
    %1049 = vmatpush2.bf16.msra.mxu0 0
    %1050 = vmatprep.subr.bf16.mxu0 0
    %1051 = vmatpush2.bf16.msra.mxu0 0
    %1052 = vmatprep.subr.bf16.mxu0 0
    %1053 = vmatpush2.bf16.msra.mxu0 0
    %1054 = vmatprep.mubr.bf16.mxu0 0
    %1055 = vmatmul.mubr.bf16.gmra.mxu0 %v1020
    %v1056 = vpop.f32.mrf.mxu0
    %v1057 = vadd.f32 0.0, %v1056
    %v1058 = vpop.f32.mrf.mxu0
    %v1059 = vadd.f32 0.0, %v1058
    %v1060 = vpop.f32.mrf.mxu0
    %v1061 = vpop.f32.mrf.mxu0
    %1062 = vdwg.mxu0
    %v1063 = vadd.f32 %v967, %v1057
    %v1064 = vadd.f32 %v968, %v1059
    %v1065 = vld [vmem:[%s0 + $0xa] sm:$0x3]
    %v1066 = vpack.c.bf16 %v1065, %v1065
    %v1067 = vld [vmem:[%s165] sm:$0xff]
    %v1068 = vld [vmem:[%s165 + $0x8] sm:$0xff]
    %v1069 = vld [vmem:[%s165 + $0x10] sm:$0xff]
    %v1070 = vld [vmem:[%s165 + $0x18] sm:$0xff]
    %v1071 = vld [vmem:[%s165 + $0x20] sm:$0xff]
    %v1072 = vld [vmem:[%s165 + $0x28] sm:$0xff]
    %v1073 = vld [vmem:[%s165 + $0x30] sm:$0xff]
    %v1074 = vld [vmem:[%s165 + $0x38] sm:$0xff]
    %v1083 = vunpack.c.l.b16 %v1067
    %v1084 = vunpack.c.h.b16 %v1067
    %v1085 = vunpack.c.l.b16 %v1068
    %v1086 = vunpack.c.h.b16 %v1068
    %v1087 = vunpack.c.l.b16 %v1069
    %v1088 = vunpack.c.h.b16 %v1069
    %v1089 = vunpack.c.l.b16 %v1070
    %v1090 = vunpack.c.h.b16 %v1070
    %v1091 = vunpack.c.l.b16 %v1071
    %v1092 = vunpack.c.h.b16 %v1071
    %v1093 = vunpack.c.l.b16 %v1072
    %v1094 = vunpack.c.h.b16 %v1072
    %v1095 = vunpack.c.l.b16 %v1073
    %v1096 = vunpack.c.h.b16 %v1073
    %v1097 = vunpack.c.l.b16 %v1074
    %v1098 = vunpack.c.h.b16 %v1074
    %v1099 = vpack.c.b16 %v1085, %v1083
    %v1100 = vpack.c.b16 %v1086, %v1084
    %v1101 = vpack.c.b16 %v1089, %v1087
    %v1102 = vpack.c.b16 %v1090, %v1088
    %v1103 = vpack.c.b16 %v1093, %v1091
    %v1104 = vpack.c.b16 %v1094, %v1092
    %v1105 = vpack.c.b16 %v1097, %v1095
    %v1106 = vpack.c.b16 %v1098, %v1096
    %v1116 = vsel %vm214, %v1066, 0
    %1118 = vmatprep.subr.bf16.mxu0 0
    %1119 = vmatpush1.bf16.msra.mxu0 0
    %1120 = vmatprep.subr.bf16.mxu0 0
    %1121 = vmatpush1.bf16.msra.mxu0 0
    %1122 = vmatprep.subr.bf16.mxu0 0
    %1123 = vmatpush1.bf16.msra.mxu0 0
    %1124 = vmatprep.subr.bf16.mxu0 0
    %1125 = vmatpush1.bf16.msra.mxu0 0
    %1126 = vmatprep.subr.bf16.mxu0 %v1106
    %1127 = vmatpush1.bf16.msra.mxu0 %v1105
    %1128 = vmatprep.subr.bf16.mxu0 %v1104
    %1129 = vmatpush1.bf16.msra.mxu0 %v1103
    %1130 = vmatprep.subr.bf16.mxu0 %v1102
    %1131 = vmatpush1.bf16.msra.mxu0 %v1101
    %1132 = vmatprep.subr.bf16.mxu0 %v1100
    %1133 = vmatpush1.bf16.msra.mxu0 %v1099
    %1134 = vmatprep.subr.bf16.mxu0 0
    %1135 = vmatpush2.bf16.msra.mxu0 0
    %1136 = vmatprep.subr.bf16.mxu0 0
    %1137 = vmatpush2.bf16.msra.mxu0 0
    %1138 = vmatprep.subr.bf16.mxu0 0
    %1139 = vmatpush2.bf16.msra.mxu0 0
    %1140 = vmatprep.subr.bf16.mxu0 0
    %1141 = vmatpush2.bf16.msra.mxu0 0
    %1142 = vmatprep.subr.bf16.mxu0 0
    %1143 = vmatpush2.bf16.msra.mxu0 0
    %1144 = vmatprep.subr.bf16.mxu0 0
    %1145 = vmatpush2.bf16.msra.mxu0 0
    %1146 = vmatprep.subr.bf16.mxu0 0
    %1147 = vmatpush2.bf16.msra.mxu0 0
    %1148 = vmatprep.subr.bf16.mxu0 0
    %1149 = vmatpush2.bf16.msra.mxu0 0
    %1150 = vmatprep.mubr.bf16.mxu0 0
    %1151 = vmatmul.mubr.bf16.gmra.mxu0 %v1116
    %v1152 = vpop.f32.mrf.mxu0
    %v1153 = vadd.f32 0.0, %v1152
    %v1154 = vpop.f32.mrf.mxu0
    %v1155 = vadd.f32 0.0, %v1154
    %v1156 = vpop.f32.mrf.mxu0
    %v1157 = vpop.f32.mrf.mxu0
    %1158 = vdwg.mxu0
    %v1159 = vadd.f32 %v1063, %v1153
    %v1160 = vadd.f32 %v1064, %v1155
    %v1161 = vld [vmem:[%s0 + $0xc] sm:$0x3]
    %v1162 = vpack.c.bf16 %v1161, %v1161
    %v1163 = vld [vmem:[%s345] sm:$0xff]
    %v1164 = vld [vmem:[%s345 + $0x8] sm:$0xff]
    %v1165 = vld [vmem:[%s345 + $0x10] sm:$0xff]
    %v1166 = vld [vmem:[%s345 + $0x18] sm:$0xff]
    %v1167 = vld [vmem:[%s345 + $0x20] sm:$0xff]
    %v1168 = vld [vmem:[%s345 + $0x28] sm:$0xff]
    %v1169 = vld [vmem:[%s345 + $0x30] sm:$0xff]
    %v1170 = vld [vmem:[%s345 + $0x38] sm:$0xff]
    %v1179 = vunpack.c.l.b16 %v1163
    %v1180 = vunpack.c.h.b16 %v1163
    %v1181 = vunpack.c.l.b16 %v1164
    %v1182 = vunpack.c.h.b16 %v1164
    %v1183 = vunpack.c.l.b16 %v1165
    %v1184 = vunpack.c.h.b16 %v1165
    %v1185 = vunpack.c.l.b16 %v1166
    %v1186 = vunpack.c.h.b16 %v1166
    %v1187 = vunpack.c.l.b16 %v1167
    %v1188 = vunpack.c.h.b16 %v1167
    %v1189 = vunpack.c.l.b16 %v1168
    %v1190 = vunpack.c.h.b16 %v1168
    %v1191 = vunpack.c.l.b16 %v1169
    %v1192 = vunpack.c.h.b16 %v1169
    %v1193 = vunpack.c.l.b16 %v1170
    %v1194 = vunpack.c.h.b16 %v1170
    %v1195 = vpack.c.b16 %v1181, %v1179
    %v1196 = vpack.c.b16 %v1182, %v1180
    %v1197 = vpack.c.b16 %v1185, %v1183
    %v1198 = vpack.c.b16 %v1186, %v1184
    %v1199 = vpack.c.b16 %v1189, %v1187
    %v1200 = vpack.c.b16 %v1190, %v1188
    %v1201 = vpack.c.b16 %v1193, %v1191
    %v1202 = vpack.c.b16 %v1194, %v1192
    %v1212 = vsel %vm214, %v1162, 0
    %1214 = vmatprep.subr.bf16.mxu0 0
    %1215 = vmatpush1.bf16.msra.mxu0 0
    %1216 = vmatprep.subr.bf16.mxu0 0
    %1217 = vmatpush1.bf16.msra.mxu0 0
    %1218 = vmatprep.subr.bf16.mxu0 0
    %1219 = vmatpush1.bf16.msra.mxu0 0
    %1220 = vmatprep.subr.bf16.mxu0 0
    %1221 = vmatpush1.bf16.msra.mxu0 0
    %1222 = vmatprep.subr.bf16.mxu0 %v1202
    %1223 = vmatpush1.bf16.msra.mxu0 %v1201
    %1224 = vmatprep.subr.bf16.mxu0 %v1200
    %1225 = vmatpush1.bf16.msra.mxu0 %v1199
    %1226 = vmatprep.subr.bf16.mxu0 %v1198
    %1227 = vmatpush1.bf16.msra.mxu0 %v1197
    %1228 = vmatprep.subr.bf16.mxu0 %v1196
    %1229 = vmatpush1.bf16.msra.mxu0 %v1195
    %1230 = vmatprep.subr.bf16.mxu0 0
    %1231 = vmatpush2.bf16.msra.mxu0 0
    %1232 = vmatprep.subr.bf16.mxu0 0
    %1233 = vmatpush2.bf16.msra.mxu0 0
    %1234 = vmatprep.subr.bf16.mxu0 0
    %1235 = vmatpush2.bf16.msra.mxu0 0
    %1236 = vmatprep.subr.bf16.mxu0 0
    %1237 = vmatpush2.bf16.msra.mxu0 0
    %1238 = vmatprep.subr.bf16.mxu0 0
    %1239 = vmatpush2.bf16.msra.mxu0 0
    %1240 = vmatprep.subr.bf16.mxu0 0
    %1241 = vmatpush2.bf16.msra.mxu0 0
    %1242 = vmatprep.subr.bf16.mxu0 0
    %1243 = vmatpush2.bf16.msra.mxu0 0
    %1244 = vmatprep.subr.bf16.mxu0 0
    %1245 = vmatpush2.bf16.msra.mxu0 0
    %1246 = vmatprep.mubr.bf16.mxu0 0
    %1247 = vmatmul.mubr.bf16.gmra.mxu0 %v1212
    %v1248 = vpop.f32.mrf.mxu0
    %v1249 = vadd.f32 0.0, %v1248
    %v1250 = vpop.f32.mrf.mxu0
    %v1251 = vadd.f32 0.0, %v1250
    %v1252 = vpop.f32.mrf.mxu0
    %v1253 = vpop.f32.mrf.mxu0
    %1254 = vdwg.mxu0
    %v1255 = vadd.f32 %v1159, %v1249
    %v1256 = vadd.f32 %v1160, %v1251
    %v1257 = vld [vmem:[%s0 + $0xe] sm:$0x3]
    %v1258 = vpack.c.bf16 %v1257, %v1257
    %v1259 = vld [vmem:[%s442] sm:$0xff]
    %v1260 = vld [vmem:[%s442 + $0x8] sm:$0xff]
    %v1261 = vld [vmem:[%s442 + $0x10] sm:$0xff]
    %v1262 = vld [vmem:[%s442 + $0x18] sm:$0xff]
    %v1263 = vld [vmem:[%s442 + $0x20] sm:$0xff]
    %v1264 = vld [vmem:[%s442 + $0x28] sm:$0xff]
    %v1265 = vld [vmem:[%s442 + $0x30] sm:$0xff]
    %v1266 = vld [vmem:[%s442 + $0x38] sm:$0xff]
    %v1275 = vunpack.c.l.b16 %v1259
    %v1276 = vunpack.c.h.b16 %v1259
    %v1277 = vunpack.c.l.b16 %v1260
    %v1278 = vunpack.c.h.b16 %v1260
    %v1279 = vunpack.c.l.b16 %v1261
    %v1280 = vunpack.c.h.b16 %v1261
    %v1281 = vunpack.c.l.b16 %v1262
    %v1282 = vunpack.c.h.b16 %v1262
    %v1283 = vunpack.c.l.b16 %v1263
    %v1284 = vunpack.c.h.b16 %v1263
    %v1285 = vunpack.c.l.b16 %v1264
    %v1286 = vunpack.c.h.b16 %v1264
    %v1287 = vunpack.c.l.b16 %v1265
    %v1288 = vunpack.c.h.b16 %v1265
    %v1289 = vunpack.c.l.b16 %v1266
    %v1290 = vunpack.c.h.b16 %v1266
    %v1291 = vpack.c.b16 %v1277, %v1275
    %v1292 = vpack.c.b16 %v1278, %v1276
    %v1293 = vpack.c.b16 %v1281, %v1279
    %v1294 = vpack.c.b16 %v1282, %v1280
    %v1295 = vpack.c.b16 %v1285, %v1283
    %v1296 = vpack.c.b16 %v1286, %v1284
    %v1297 = vpack.c.b16 %v1289, %v1287
    %v1298 = vpack.c.b16 %v1290, %v1288
    %v1308 = vsel %vm214, %v1258, 0
    %1310 = vmatprep.subr.bf16.mxu0 0
    %1311 = vmatpush1.bf16.msra.mxu0 0
    %1312 = vmatprep.subr.bf16.mxu0 0
    %1313 = vmatpush1.bf16.msra.mxu0 0
    %1314 = vmatprep.subr.bf16.mxu0 0
    %1315 = vmatpush1.bf16.msra.mxu0 0
    %1316 = vmatprep.subr.bf16.mxu0 0
    %1317 = vmatpush1.bf16.msra.mxu0 0
    %1318 = vmatprep.subr.bf16.mxu0 %v1298
    %1319 = vmatpush1.bf16.msra.mxu0 %v1297
    %1320 = vmatprep.subr.bf16.mxu0 %v1296
    %1321 = vmatpush1.bf16.msra.mxu0 %v1295
    %1322 = vmatprep.subr.bf16.mxu0 %v1294
    %1323 = vmatpush1.bf16.msra.mxu0 %v1293
    %1324 = vmatprep.subr.bf16.mxu0 %v1292
    %1325 = vmatpush1.bf16.msra.mxu0 %v1291
    %1326 = vmatprep.subr.bf16.mxu0 0
    %1327 = vmatpush2.bf16.msra.mxu0 0
    %1328 = vmatprep.subr.bf16.mxu0 0
    %1329 = vmatpush2.bf16.msra.mxu0 0
    %1330 = vmatprep.subr.bf16.mxu0 0
    %1331 = vmatpush2.bf16.msra.mxu0 0
    %1332 = vmatprep.subr.bf16.mxu0 0
    %1333 = vmatpush2.bf16.msra.mxu0 0
    %1334 = vmatprep.subr.bf16.mxu0 0
    %1335 = vmatpush2.bf16.msra.mxu0 0
    %1336 = vmatprep.subr.bf16.mxu0 0
    %1337 = vmatpush2.bf16.msra.mxu0 0
    %1338 = vmatprep.subr.bf16.mxu0 0
    %1339 = vmatpush2.bf16.msra.mxu0 0
    %1340 = vmatprep.subr.bf16.mxu0 0
    %1341 = vmatpush2.bf16.msra.mxu0 0
    %1342 = vmatprep.mubr.bf16.mxu0 0
    %1343 = vmatmul.mubr.bf16.gmra.mxu0 %v1308
    %v1344 = vpop.f32.mrf.mxu0
    %v1345 = vadd.f32 0.0, %v1344
    %v1346 = vpop.f32.mrf.mxu0
    %v1347 = vadd.f32 0.0, %v1346
    %v1348 = vpop.f32.mrf.mxu0
    %v1349 = vpop.f32.mrf.mxu0
    %1350 = vdwg.mxu0
    %v1351 = vadd.f32 %v1255, %v1345
    %v1352 = vadd.f32 %v1256, %v1347
    %v1353 = vld [vmem:[#allocation7] ss:$4 sm:$0x3]
    %v1355 = vlaneseq
    %v1356 = vshrl.u32 %v1355, 7
    %v1357 = vsub.s32 0, %v1356
    %v1358 = vrot.slane %v1353, %v1357
    %v1359 = vlaneseq
    %v1360 = vshrl.u32 %v1359, 7
    %v1361 = vsub.s32 1, %v1360
    %v1362 = vrot.slane %v1353, %v1361
    %v1365 = vadd.f32 %v1351, %v1358
    %v1366 = vadd.f32 %v1352, %v1362
    %v1367 = vmax.f32 %v1365, 0.0
    %v1368 = vmax.f32 %v1366, 0.0
    %v1369 = vld [vmem:[%s553] ss:$4 sm:$0x3]
    %v1371 = vlaneseq
    %v1372 = vshrl.u32 %v1371, 7
    %v1373 = vsub.s32 0, %v1372
    %v1374 = vrot.slane %v1369, %v1373
    %v1375 = vlaneseq
    %v1376 = vshrl.u32 %v1375, 7
    %v1377 = vsub.s32 1, %v1376
    %v1378 = vrot.slane %v1369, %v1377
    %v1381 = vmul.f32 %v1367, %v1374
    %v1382 = vmul.f32 %v1368, %v1378
    %v1383 = vld [vmem:[%s568] ss:$4 sm:$0x3]
    %v1385 = vlaneseq
    %v1386 = vshrl.u32 %v1385, 7
    %v1387 = vsub.s32 0, %v1386
    %v1388 = vrot.slane %v1383, %v1387
    %v1389 = vlaneseq
    %v1390 = vshrl.u32 %v1389, 7
    %v1391 = vsub.s32 1, %v1390
    %v1392 = vrot.slane %v1383, %v1391
    %v1395 = vadd.f32 %v1381, %v1388
    %v1396 = vadd.f32 %v1382, %v1392
    %v1399 = vrot.slane %v1395, 6
    %v1400 = vrot.slane %v1396, 6
    %1403 = vst [vmem:[#allocation2] sm:$0xc] %v1399
    %vm1404 = vcmask 257026
    %1405 = vst.msk [vmem:[#allocation2 + $0x8] sm:$0xc] %vm1404, %v1400
    %v1406 = vld [vmem:[%s0 + $0x8] sm:$0x3]
    %v1407 = vpack.c.bf16 %v1406, %v1406
    %v1408 = vld [vmem:[#allocation4] sm:$0xff]
    %v1409 = vld [vmem:[#allocation4 + $0x8] sm:$0xff]
    %v1410 = vld [vmem:[#allocation4 + $0x10] sm:$0xff]
    %v1411 = vld [vmem:[#allocation4 + $0x18] sm:$0xff]
    %v1412 = vld [vmem:[#allocation4 + $0x20] sm:$0xff]
    %v1413 = vld [vmem:[#allocation4 + $0x28] sm:$0xff]
    %v1414 = vld [vmem:[#allocation4 + $0x30] sm:$0xff]
    %v1415 = vld [vmem:[#allocation4 + $0x38] sm:$0xff]
    %v1416 = vld [vmem:[%s0 + $0xa] sm:$0x3]
    %v1417 = vpack.c.bf16 %v1416, %v1416
    %v1418 = vld [vmem:[%s598] sm:$0xff]
    %v1419 = vld [vmem:[%s598 + $0x8] sm:$0xff]
    %v1420 = vld [vmem:[%s598 + $0x10] sm:$0xff]
    %v1421 = vld [vmem:[%s598 + $0x18] sm:$0xff]
    %v1422 = vld [vmem:[%s598 + $0x20] sm:$0xff]
    %v1423 = vld [vmem:[%s598 + $0x28] sm:$0xff]
    %v1424 = vld [vmem:[%s598 + $0x30] sm:$0xff]
    %v1425 = vld [vmem:[%s598 + $0x38] sm:$0xff]
    %v1434 = vunpack.c.l.b16 %v1418
    %v1435 = vunpack.c.h.b16 %v1418
    %v1436 = vunpack.c.l.b16 %v1419
    %v1437 = vunpack.c.h.b16 %v1419
    %v1438 = vunpack.c.l.b16 %v1420
    %v1439 = vunpack.c.h.b16 %v1420
    %v1440 = vunpack.c.l.b16 %v1421
    %v1441 = vunpack.c.h.b16 %v1421
    %v1442 = vunpack.c.l.b16 %v1422
    %v1443 = vunpack.c.h.b16 %v1422
    %v1444 = vunpack.c.l.b16 %v1423
    %v1445 = vunpack.c.h.b16 %v1423
    %v1446 = vunpack.c.l.b16 %v1424
    %v1447 = vunpack.c.h.b16 %v1424
    %v1448 = vunpack.c.l.b16 %v1425
    %v1449 = vunpack.c.h.b16 %v1425
    %v1450 = vpack.c.b16 %v1436, %v1434
    %v1451 = vpack.c.b16 %v1437, %v1435
    %v1452 = vpack.c.b16 %v1440, %v1438
    %v1453 = vpack.c.b16 %v1441, %v1439
    %v1454 = vpack.c.b16 %v1444, %v1442
    %v1455 = vpack.c.b16 %v1445, %v1443
    %v1456 = vpack.c.b16 %v1448, %v1446
    %v1457 = vpack.c.b16 %v1449, %v1447
    %v1467 = vsel %vm214, %v1417, 0
    %1469 = vmatprep.subr.bf16.mxu0 0
    %1470 = vmatpush1.bf16.msra.mxu0 0
    %1471 = vmatprep.subr.bf16.mxu0 0
    %1472 = vmatpush1.bf16.msra.mxu0 0
    %1473 = vmatprep.subr.bf16.mxu0 0
    %1474 = vmatpush1.bf16.msra.mxu0 0
    %1475 = vmatprep.subr.bf16.mxu0 0
    %1476 = vmatpush1.bf16.msra.mxu0 0
    %1477 = vmatprep.subr.bf16.mxu0 %v1457
    %1478 = vmatpush1.bf16.msra.mxu0 %v1456
    %1479 = vmatprep.subr.bf16.mxu0 %v1455
    %1480 = vmatpush1.bf16.msra.mxu0 %v1454
    %1481 = vmatprep.subr.bf16.mxu0 %v1453
    %1482 = vmatpush1.bf16.msra.mxu0 %v1452
    %1483 = vmatprep.subr.bf16.mxu0 %v1451
    %1484 = vmatpush1.bf16.msra.mxu0 %v1450
    %1485 = vmatprep.subr.bf16.mxu0 0
    %1486 = vmatpush2.bf16.msra.mxu0 0
    %1487 = vmatprep.subr.bf16.mxu0 0
    %1488 = vmatpush2.bf16.msra.mxu0 0
    %1489 = vmatprep.subr.bf16.mxu0 0
    %1490 = vmatpush2.bf16.msra.mxu0 0
    %1491 = vmatprep.subr.bf16.mxu0 0
    %1492 = vmatpush2.bf16.msra.mxu0 0
    %1493 = vmatprep.subr.bf16.mxu0 0
    %1494 = vmatpush2.bf16.msra.mxu0 0
    %1495 = vmatprep.subr.bf16.mxu0 0
    %1496 = vmatpush2.bf16.msra.mxu0 0
    %1497 = vmatprep.subr.bf16.mxu0 0
    %1498 = vmatpush2.bf16.msra.mxu0 0
    %1499 = vmatprep.subr.bf16.mxu0 0
    %1500 = vmatpush2.bf16.msra.mxu0 0
    %1501 = vmatprep.mubr.bf16.mxu0 0
    %1502 = vmatmul.mubr.bf16.gmra.mxu0 %v1467
    %v1503 = vpop.f32.mrf.mxu0
    %v1504 = vadd.f32 0.0, %v1503
    %v1505 = vpop.f32.mrf.mxu0
    %v1506 = vadd.f32 0.0, %v1505
    %v1507 = vpop.f32.mrf.mxu0
    %v1508 = vpop.f32.mrf.mxu0
    %1509 = vdwg.mxu0
    %v1518 = vunpack.c.l.b16 %v1408
    %v1519 = vunpack.c.h.b16 %v1408
    %v1520 = vunpack.c.l.b16 %v1409
    %v1521 = vunpack.c.h.b16 %v1409
    %v1522 = vunpack.c.l.b16 %v1410
    %v1523 = vunpack.c.h.b16 %v1410
    %v1524 = vunpack.c.l.b16 %v1411
    %v1525 = vunpack.c.h.b16 %v1411
    %v1526 = vunpack.c.l.b16 %v1412
    %v1527 = vunpack.c.h.b16 %v1412
    %v1528 = vunpack.c.l.b16 %v1413
    %v1529 = vunpack.c.h.b16 %v1413
    %v1530 = vunpack.c.l.b16 %v1414
    %v1531 = vunpack.c.h.b16 %v1414
    %v1532 = vunpack.c.l.b16 %v1415
    %v1533 = vunpack.c.h.b16 %v1415
    %v1534 = vpack.c.b16 %v1520, %v1518
    %v1535 = vpack.c.b16 %v1521, %v1519
    %v1536 = vpack.c.b16 %v1524, %v1522
    %v1537 = vpack.c.b16 %v1525, %v1523
    %v1538 = vpack.c.b16 %v1528, %v1526
    %v1539 = vpack.c.b16 %v1529, %v1527
    %v1540 = vpack.c.b16 %v1532, %v1530
    %v1541 = vpack.c.b16 %v1533, %v1531
    %v1551 = vsel %vm214, %v1407, 0
    %1553 = vmatprep.subr.bf16.mxu0 0
    %1554 = vmatpush1.bf16.msra.mxu0 0
    %1555 = vmatprep.subr.bf16.mxu0 0
    %1556 = vmatpush1.bf16.msra.mxu0 0
    %1557 = vmatprep.subr.bf16.mxu0 0
    %1558 = vmatpush1.bf16.msra.mxu0 0
    %1559 = vmatprep.subr.bf16.mxu0 0
    %1560 = vmatpush1.bf16.msra.mxu0 0
    %1561 = vmatprep.subr.bf16.mxu0 %v1541
    %1562 = vmatpush1.bf16.msra.mxu0 %v1540
    %1563 = vmatprep.subr.bf16.mxu0 %v1539
    %1564 = vmatpush1.bf16.msra.mxu0 %v1538
    %1565 = vmatprep.subr.bf16.mxu0 %v1537
    %1566 = vmatpush1.bf16.msra.mxu0 %v1536
    %1567 = vmatprep.subr.bf16.mxu0 %v1535
    %1568 = vmatpush1.bf16.msra.mxu0 %v1534
    %1569 = vmatprep.subr.bf16.mxu0 0
    %1570 = vmatpush2.bf16.msra.mxu0 0
    %1571 = vmatprep.subr.bf16.mxu0 0
    %1572 = vmatpush2.bf16.msra.mxu0 0
    %1573 = vmatprep.subr.bf16.mxu0 0
    %1574 = vmatpush2.bf16.msra.mxu0 0
    %1575 = vmatprep.subr.bf16.mxu0 0
    %1576 = vmatpush2.bf16.msra.mxu0 0
    %1577 = vmatprep.subr.bf16.mxu0 0
    %1578 = vmatpush2.bf16.msra.mxu0 0
    %1579 = vmatprep.subr.bf16.mxu0 0
    %1580 = vmatpush2.bf16.msra.mxu0 0
    %1581 = vmatprep.subr.bf16.mxu0 0
    %1582 = vmatpush2.bf16.msra.mxu0 0
    %1583 = vmatprep.subr.bf16.mxu0 0
    %1584 = vmatpush2.bf16.msra.mxu0 0
    %1585 = vmatprep.mubr.bf16.mxu0 0
    %1586 = vmatmul.mubr.bf16.gmra.mxu0 %v1551
    %v1587 = vpop.f32.mrf.mxu0
    %v1588 = vadd.f32 %v1504, %v1587
    %v1589 = vpop.f32.mrf.mxu0
    %v1590 = vadd.f32 %v1506, %v1589
    %v1591 = vpop.f32.mrf.mxu0
    %v1592 = vpop.f32.mrf.mxu0
    %1593 = vdwg.mxu0
    %v1594 = vld [vmem:[%s0 + $0xc] sm:$0x3]
    %v1595 = vpack.c.bf16 %v1594, %v1594
    %v1596 = vld [vmem:[%s777] sm:$0xff]
    %v1597 = vld [vmem:[%s777 + $0x8] sm:$0xff]
    %v1598 = vld [vmem:[%s777 + $0x10] sm:$0xff]
    %v1599 = vld [vmem:[%s777 + $0x18] sm:$0xff]
    %v1600 = vld [vmem:[%s777 + $0x20] sm:$0xff]
    %v1601 = vld [vmem:[%s777 + $0x28] sm:$0xff]
    %v1602 = vld [vmem:[%s777 + $0x30] sm:$0xff]
    %v1603 = vld [vmem:[%s777 + $0x38] sm:$0xff]
    %v1612 = vunpack.c.l.b16 %v1596
    %v1613 = vunpack.c.h.b16 %v1596
    %v1614 = vunpack.c.l.b16 %v1597
    %v1615 = vunpack.c.h.b16 %v1597
    %v1616 = vunpack.c.l.b16 %v1598
    %v1617 = vunpack.c.h.b16 %v1598
    %v1618 = vunpack.c.l.b16 %v1599
    %v1619 = vunpack.c.h.b16 %v1599
    %v1620 = vunpack.c.l.b16 %v1600
    %v1621 = vunpack.c.h.b16 %v1600
    %v1622 = vunpack.c.l.b16 %v1601
    %v1623 = vunpack.c.h.b16 %v1601
    %v1624 = vunpack.c.l.b16 %v1602
    %v1625 = vunpack.c.h.b16 %v1602
    %v1626 = vunpack.c.l.b16 %v1603
    %v1627 = vunpack.c.h.b16 %v1603
    %v1628 = vpack.c.b16 %v1614, %v1612
    %v1629 = vpack.c.b16 %v1615, %v1613
    %v1630 = vpack.c.b16 %v1618, %v1616
    %v1631 = vpack.c.b16 %v1619, %v1617
    %v1632 = vpack.c.b16 %v1622, %v1620
    %v1633 = vpack.c.b16 %v1623, %v1621
    %v1634 = vpack.c.b16 %v1626, %v1624
    %v1635 = vpack.c.b16 %v1627, %v1625
    %v1645 = vsel %vm214, %v1595, 0
    %1647 = vmatprep.subr.bf16.mxu0 0
    %1648 = vmatpush1.bf16.msra.mxu0 0
    %1649 = vmatprep.subr.bf16.mxu0 0
    %1650 = vmatpush1.bf16.msra.mxu0 0
    %1651 = vmatprep.subr.bf16.mxu0 0
    %1652 = vmatpush1.bf16.msra.mxu0 0
    %1653 = vmatprep.subr.bf16.mxu0 0
    %1654 = vmatpush1.bf16.msra.mxu0 0
    %1655 = vmatprep.subr.bf16.mxu0 %v1635
    %1656 = vmatpush1.bf16.msra.mxu0 %v1634
    %1657 = vmatprep.subr.bf16.mxu0 %v1633
    %1658 = vmatpush1.bf16.msra.mxu0 %v1632
    %1659 = vmatprep.subr.bf16.mxu0 %v1631
    %1660 = vmatpush1.bf16.msra.mxu0 %v1630
    %1661 = vmatprep.subr.bf16.mxu0 %v1629
    %1662 = vmatpush1.bf16.msra.mxu0 %v1628
    %1663 = vmatprep.subr.bf16.mxu0 0
    %1664 = vmatpush2.bf16.msra.mxu0 0
    %1665 = vmatprep.subr.bf16.mxu0 0
    %1666 = vmatpush2.bf16.msra.mxu0 0
    %1667 = vmatprep.subr.bf16.mxu0 0
    %1668 = vmatpush2.bf16.msra.mxu0 0
    %1669 = vmatprep.subr.bf16.mxu0 0
    %1670 = vmatpush2.bf16.msra.mxu0 0
    %1671 = vmatprep.subr.bf16.mxu0 0
    %1672 = vmatpush2.bf16.msra.mxu0 0
    %1673 = vmatprep.subr.bf16.mxu0 0
    %1674 = vmatpush2.bf16.msra.mxu0 0
    %1675 = vmatprep.subr.bf16.mxu0 0
    %1676 = vmatpush2.bf16.msra.mxu0 0
    %1677 = vmatprep.subr.bf16.mxu0 0
    %1678 = vmatpush2.bf16.msra.mxu0 0
    %1679 = vmatprep.mubr.bf16.mxu0 0
    %1680 = vmatmul.mubr.bf16.gmra.mxu0 %v1645
    %v1681 = vpop.f32.mrf.mxu0
    %v1682 = vadd.f32 0.0, %v1681
    %v1683 = vpop.f32.mrf.mxu0
    %v1684 = vadd.f32 0.0, %v1683
    %v1685 = vpop.f32.mrf.mxu0
    %v1686 = vpop.f32.mrf.mxu0
    %1687 = vdwg.mxu0
    %v1688 = vadd.f32 %v1588, %v1682
    %v1689 = vadd.f32 %v1590, %v1684
    %v1690 = vld [vmem:[%s0 + $0xe] sm:$0x3]
    %v1691 = vpack.c.bf16 %v1690, %v1690
    %v1692 = vld [vmem:[%s874] sm:$0xff]
    %v1693 = vld [vmem:[%s874 + $0x8] sm:$0xff]
    %v1694 = vld [vmem:[%s874 + $0x10] sm:$0xff]
    %v1695 = vld [vmem:[%s874 + $0x18] sm:$0xff]
    %v1696 = vld [vmem:[%s874 + $0x20] sm:$0xff]
    %v1697 = vld [vmem:[%s874 + $0x28] sm:$0xff]
    %v1698 = vld [vmem:[%s874 + $0x30] sm:$0xff]
    %v1699 = vld [vmem:[%s874 + $0x38] sm:$0xff]
    %v1708 = vunpack.c.l.b16 %v1692
    %v1709 = vunpack.c.h.b16 %v1692
    %v1710 = vunpack.c.l.b16 %v1693
    %v1711 = vunpack.c.h.b16 %v1693
    %v1712 = vunpack.c.l.b16 %v1694
    %v1713 = vunpack.c.h.b16 %v1694
    %v1714 = vunpack.c.l.b16 %v1695
    %v1715 = vunpack.c.h.b16 %v1695
    %v1716 = vunpack.c.l.b16 %v1696
    %v1717 = vunpack.c.h.b16 %v1696
    %v1718 = vunpack.c.l.b16 %v1697
    %v1719 = vunpack.c.h.b16 %v1697
    %v1720 = vunpack.c.l.b16 %v1698
    %v1721 = vunpack.c.h.b16 %v1698
    %v1722 = vunpack.c.l.b16 %v1699
    %v1723 = vunpack.c.h.b16 %v1699
    %v1724 = vpack.c.b16 %v1710, %v1708
    %v1725 = vpack.c.b16 %v1711, %v1709
    %v1726 = vpack.c.b16 %v1714, %v1712
    %v1727 = vpack.c.b16 %v1715, %v1713
    %v1728 = vpack.c.b16 %v1718, %v1716
    %v1729 = vpack.c.b16 %v1719, %v1717
    %v1730 = vpack.c.b16 %v1722, %v1720
    %v1731 = vpack.c.b16 %v1723, %v1721
    %v1741 = vsel %vm214, %v1691, 0
    %1743 = vmatprep.subr.bf16.mxu0 0
    %1744 = vmatpush1.bf16.msra.mxu0 0
    %1745 = vmatprep.subr.bf16.mxu0 0
    %1746 = vmatpush1.bf16.msra.mxu0 0
    %1747 = vmatprep.subr.bf16.mxu0 0
    %1748 = vmatpush1.bf16.msra.mxu0 0
    %1749 = vmatprep.subr.bf16.mxu0 0
    %1750 = vmatpush1.bf16.msra.mxu0 0
    %1751 = vmatprep.subr.bf16.mxu0 %v1731
    %1752 = vmatpush1.bf16.msra.mxu0 %v1730
    %1753 = vmatprep.subr.bf16.mxu0 %v1729
    %1754 = vmatpush1.bf16.msra.mxu0 %v1728
    %1755 = vmatprep.subr.bf16.mxu0 %v1727
    %1756 = vmatpush1.bf16.msra.mxu0 %v1726
    %1757 = vmatprep.subr.bf16.mxu0 %v1725
    %1758 = vmatpush1.bf16.msra.mxu0 %v1724
    %1759 = vmatprep.subr.bf16.mxu0 0
    %1760 = vmatpush2.bf16.msra.mxu0 0
    %1761 = vmatprep.subr.bf16.mxu0 0
    %1762 = vmatpush2.bf16.msra.mxu0 0
    %1763 = vmatprep.subr.bf16.mxu0 0
    %1764 = vmatpush2.bf16.msra.mxu0 0
    %1765 = vmatprep.subr.bf16.mxu0 0
    %1766 = vmatpush2.bf16.msra.mxu0 0
    %1767 = vmatprep.subr.bf16.mxu0 0
    %1768 = vmatpush2.bf16.msra.mxu0 0
    %1769 = vmatprep.subr.bf16.mxu0 0
    %1770 = vmatpush2.bf16.msra.mxu0 0
    %1771 = vmatprep.subr.bf16.mxu0 0
    %1772 = vmatpush2.bf16.msra.mxu0 0
    %1773 = vmatprep.subr.bf16.mxu0 0
    %1774 = vmatpush2.bf16.msra.mxu0 0
    %1775 = vmatprep.mubr.bf16.mxu0 0
    %1776 = vmatmul.mubr.bf16.gmra.mxu0 %v1741
    %v1777 = vpop.f32.mrf.mxu0
    %v1778 = vadd.f32 0.0, %v1777
    %v1779 = vpop.f32.mrf.mxu0
    %v1780 = vadd.f32 0.0, %v1779
    %v1781 = vpop.f32.mrf.mxu0
    %v1782 = vpop.f32.mrf.mxu0
    %1783 = vdwg.mxu0
    %v1784 = vadd.f32 %v1688, %v1778
    %v1785 = vadd.f32 %v1689, %v1780
    %v1786 = vld [vmem:[%s0 + $0x10] sm:$0x3]
    %v1787 = vpack.c.bf16 %v1786, %v1786
    %v1788 = vld [vmem:[%s154] sm:$0xff]
    %v1789 = vld [vmem:[%s154 + $0x8] sm:$0xff]
    %v1790 = vld [vmem:[%s154 + $0x10] sm:$0xff]
    %v1791 = vld [vmem:[%s154 + $0x18] sm:$0xff]
    %v1792 = vld [vmem:[%s154 + $0x20] sm:$0xff]
    %v1793 = vld [vmem:[%s154 + $0x28] sm:$0xff]
    %v1794 = vld [vmem:[%s154 + $0x30] sm:$0xff]
    %v1795 = vld [vmem:[%s154 + $0x38] sm:$0xff]
    %v1804 = vunpack.c.l.b16 %v1788
    %v1805 = vunpack.c.h.b16 %v1788
    %v1806 = vunpack.c.l.b16 %v1789
    %v1807 = vunpack.c.h.b16 %v1789
    %v1808 = vunpack.c.l.b16 %v1790
    %v1809 = vunpack.c.h.b16 %v1790
    %v1810 = vunpack.c.l.b16 %v1791
    %v1811 = vunpack.c.h.b16 %v1791
    %v1812 = vunpack.c.l.b16 %v1792
    %v1813 = vunpack.c.h.b16 %v1792
    %v1814 = vunpack.c.l.b16 %v1793
    %v1815 = vunpack.c.h.b16 %v1793
    %v1816 = vunpack.c.l.b16 %v1794
    %v1817 = vunpack.c.h.b16 %v1794
    %v1818 = vunpack.c.l.b16 %v1795
    %v1819 = vunpack.c.h.b16 %v1795
    %v1820 = vpack.c.b16 %v1806, %v1804
    %v1821 = vpack.c.b16 %v1807, %v1805
    %v1822 = vpack.c.b16 %v1810, %v1808
    %v1823 = vpack.c.b16 %v1811, %v1809
    %v1824 = vpack.c.b16 %v1814, %v1812
    %v1825 = vpack.c.b16 %v1815, %v1813
    %v1826 = vpack.c.b16 %v1818, %v1816
    %v1827 = vpack.c.b16 %v1819, %v1817
    %v1837 = vsel %vm214, %v1787, 0
    %1839 = vmatprep.subr.bf16.mxu0 0
    %1840 = vmatpush1.bf16.msra.mxu0 0
    %1841 = vmatprep.subr.bf16.mxu0 0
    %1842 = vmatpush1.bf16.msra.mxu0 0
    %1843 = vmatprep.subr.bf16.mxu0 0
    %1844 = vmatpush1.bf16.msra.mxu0 0
    %1845 = vmatprep.subr.bf16.mxu0 0
    %1846 = vmatpush1.bf16.msra.mxu0 0
    %1847 = vmatprep.subr.bf16.mxu0 %v1827
    %1848 = vmatpush1.bf16.msra.mxu0 %v1826
    %1849 = vmatprep.subr.bf16.mxu0 %v1825
    %1850 = vmatpush1.bf16.msra.mxu0 %v1824
    %1851 = vmatprep.subr.bf16.mxu0 %v1823
    %1852 = vmatpush1.bf16.msra.mxu0 %v1822
    %1853 = vmatprep.subr.bf16.mxu0 %v1821
    %1854 = vmatpush1.bf16.msra.mxu0 %v1820
    %1855 = vmatprep.subr.bf16.mxu0 0
    %1856 = vmatpush2.bf16.msra.mxu0 0
    %1857 = vmatprep.subr.bf16.mxu0 0
    %1858 = vmatpush2.bf16.msra.mxu0 0
    %1859 = vmatprep.subr.bf16.mxu0 0
    %1860 = vmatpush2.bf16.msra.mxu0 0
    %1861 = vmatprep.subr.bf16.mxu0 0
    %1862 = vmatpush2.bf16.msra.mxu0 0
    %1863 = vmatprep.subr.bf16.mxu0 0
    %1864 = vmatpush2.bf16.msra.mxu0 0
    %1865 = vmatprep.subr.bf16.mxu0 0
    %1866 = vmatpush2.bf16.msra.mxu0 0
    %1867 = vmatprep.subr.bf16.mxu0 0
    %1868 = vmatpush2.bf16.msra.mxu0 0
    %1869 = vmatprep.subr.bf16.mxu0 0
    %1870 = vmatpush2.bf16.msra.mxu0 0
    %1871 = vmatprep.mubr.bf16.mxu0 0
    %1872 = vmatmul.mubr.bf16.gmra.mxu0 %v1837
    %v1873 = vpop.f32.mrf.mxu0
    %v1874 = vadd.f32 0.0, %v1873
    %v1875 = vpop.f32.mrf.mxu0
    %v1876 = vadd.f32 0.0, %v1875
    %v1877 = vpop.f32.mrf.mxu0
    %v1878 = vpop.f32.mrf.mxu0
    %1879 = vdwg.mxu0
    %v1880 = vadd.f32 %v1784, %v1874
    %v1881 = vadd.f32 %v1785, %v1876
    %v1882 = vld [vmem:[%s0 + $0x12] sm:$0x3]
    %v1883 = vpack.c.bf16 %v1882, %v1882
    %v1884 = vld [vmem:[%s165] sm:$0xff]
    %v1885 = vld [vmem:[%s165 + $0x8] sm:$0xff]
    %v1886 = vld [vmem:[%s165 + $0x10] sm:$0xff]
    %v1887 = vld [vmem:[%s165 + $0x18] sm:$0xff]
    %v1888 = vld [vmem:[%s165 + $0x20] sm:$0xff]
    %v1889 = vld [vmem:[%s165 + $0x28] sm:$0xff]
    %v1890 = vld [vmem:[%s165 + $0x30] sm:$0xff]
    %v1891 = vld [vmem:[%s165 + $0x38] sm:$0xff]
    %v1900 = vunpack.c.l.b16 %v1884
    %v1901 = vunpack.c.h.b16 %v1884
    %v1902 = vunpack.c.l.b16 %v1885
    %v1903 = vunpack.c.h.b16 %v1885
    %v1904 = vunpack.c.l.b16 %v1886
    %v1905 = vunpack.c.h.b16 %v1886
    %v1906 = vunpack.c.l.b16 %v1887
    %v1907 = vunpack.c.h.b16 %v1887
    %v1908 = vunpack.c.l.b16 %v1888
    %v1909 = vunpack.c.h.b16 %v1888
    %v1910 = vunpack.c.l.b16 %v1889
    %v1911 = vunpack.c.h.b16 %v1889
    %v1912 = vunpack.c.l.b16 %v1890
    %v1913 = vunpack.c.h.b16 %v1890
    %v1914 = vunpack.c.l.b16 %v1891
    %v1915 = vunpack.c.h.b16 %v1891
    %v1916 = vpack.c.b16 %v1902, %v1900
    %v1917 = vpack.c.b16 %v1903, %v1901
    %v1918 = vpack.c.b16 %v1906, %v1904
    %v1919 = vpack.c.b16 %v1907, %v1905
    %v1920 = vpack.c.b16 %v1910, %v1908
    %v1921 = vpack.c.b16 %v1911, %v1909
    %v1922 = vpack.c.b16 %v1914, %v1912
    %v1923 = vpack.c.b16 %v1915, %v1913
    %v1933 = vsel %vm214, %v1883, 0
    %1935 = vmatprep.subr.bf16.mxu0 0
    %1936 = vmatpush1.bf16.msra.mxu0 0
    %1937 = vmatprep.subr.bf16.mxu0 0
    %1938 = vmatpush1.bf16.msra.mxu0 0
    %1939 = vmatprep.subr.bf16.mxu0 0
    %1940 = vmatpush1.bf16.msra.mxu0 0
    %1941 = vmatprep.subr.bf16.mxu0 0
    %1942 = vmatpush1.bf16.msra.mxu0 0
    %1943 = vmatprep.subr.bf16.mxu0 %v1923
    %1944 = vmatpush1.bf16.msra.mxu0 %v1922
    %1945 = vmatprep.subr.bf16.mxu0 %v1921
    %1946 = vmatpush1.bf16.msra.mxu0 %v1920
    %1947 = vmatprep.subr.bf16.mxu0 %v1919
    %1948 = vmatpush1.bf16.msra.mxu0 %v1918
    %1949 = vmatprep.subr.bf16.mxu0 %v1917
    %1950 = vmatpush1.bf16.msra.mxu0 %v1916
    %1951 = vmatprep.subr.bf16.mxu0 0
    %1952 = vmatpush2.bf16.msra.mxu0 0
    %1953 = vmatprep.subr.bf16.mxu0 0
    %1954 = vmatpush2.bf16.msra.mxu0 0
    %1955 = vmatprep.subr.bf16.mxu0 0
    %1956 = vmatpush2.bf16.msra.mxu0 0
    %1957 = vmatprep.subr.bf16.mxu0 0
    %1958 = vmatpush2.bf16.msra.mxu0 0
    %1959 = vmatprep.subr.bf16.mxu0 0
    %1960 = vmatpush2.bf16.msra.mxu0 0
    %1961 = vmatprep.subr.bf16.mxu0 0
    %1962 = vmatpush2.bf16.msra.mxu0 0
    %1963 = vmatprep.subr.bf16.mxu0 0
    %1964 = vmatpush2.bf16.msra.mxu0 0
    %1965 = vmatprep.subr.bf16.mxu0 0
    %1966 = vmatpush2.bf16.msra.mxu0 0
    %1967 = vmatprep.mubr.bf16.mxu0 0
    %1968 = vmatmul.mubr.bf16.gmra.mxu0 %v1933
    %v1969 = vpop.f32.mrf.mxu0
    %v1970 = vadd.f32 0.0, %v1969
    %v1971 = vpop.f32.mrf.mxu0
    %v1972 = vadd.f32 0.0, %v1971
    %v1973 = vpop.f32.mrf.mxu0
    %v1974 = vpop.f32.mrf.mxu0
    %1975 = vdwg.mxu0
    %v1976 = vadd.f32 %v1880, %v1970
    %v1977 = vadd.f32 %v1881, %v1972
    %v1978 = vld [vmem:[%s0 + $0x14] sm:$0x3]
    %v1979 = vpack.c.bf16 %v1978, %v1978
    %v1980 = vld [vmem:[%s345] sm:$0xff]
    %v1981 = vld [vmem:[%s345 + $0x8] sm:$0xff]
    %v1982 = vld [vmem:[%s345 + $0x10] sm:$0xff]
    %v1983 = vld [vmem:[%s345 + $0x18] sm:$0xff]
    %v1984 = vld [vmem:[%s345 + $0x20] sm:$0xff]
    %v1985 = vld [vmem:[%s345 + $0x28] sm:$0xff]
    %v1986 = vld [vmem:[%s345 + $0x30] sm:$0xff]
    %v1987 = vld [vmem:[%s345 + $0x38] sm:$0xff]
    %v1996 = vunpack.c.l.b16 %v1980
    %v1997 = vunpack.c.h.b16 %v1980
    %v1998 = vunpack.c.l.b16 %v1981
    %v1999 = vunpack.c.h.b16 %v1981
    %v2000 = vunpack.c.l.b16 %v1982
    %v2001 = vunpack.c.h.b16 %v1982
    %v2002 = vunpack.c.l.b16 %v1983
    %v2003 = vunpack.c.h.b16 %v1983
    %v2004 = vunpack.c.l.b16 %v1984
    %v2005 = vunpack.c.h.b16 %v1984
    %v2006 = vunpack.c.l.b16 %v1985
    %v2007 = vunpack.c.h.b16 %v1985
    %v2008 = vunpack.c.l.b16 %v1986
    %v2009 = vunpack.c.h.b16 %v1986
    %v2010 = vunpack.c.l.b16 %v1987
    %v2011 = vunpack.c.h.b16 %v1987
    %v2012 = vpack.c.b16 %v1998, %v1996
    %v2013 = vpack.c.b16 %v1999, %v1997
    %v2014 = vpack.c.b16 %v2002, %v2000
    %v2015 = vpack.c.b16 %v2003, %v2001
    %v2016 = vpack.c.b16 %v2006, %v2004
    %v2017 = vpack.c.b16 %v2007, %v2005
    %v2018 = vpack.c.b16 %v2010, %v2008
    %v2019 = vpack.c.b16 %v2011, %v2009
    %v2029 = vsel %vm214, %v1979, 0
    %2031 = vmatprep.subr.bf16.mxu0 0
    %2032 = vmatpush1.bf16.msra.mxu0 0
    %2033 = vmatprep.subr.bf16.mxu0 0
    %2034 = vmatpush1.bf16.msra.mxu0 0
    %2035 = vmatprep.subr.bf16.mxu0 0
    %2036 = vmatpush1.bf16.msra.mxu0 0
    %2037 = vmatprep.subr.bf16.mxu0 0
    %2038 = vmatpush1.bf16.msra.mxu0 0
    %2039 = vmatprep.subr.bf16.mxu0 %v2019
    %2040 = vmatpush1.bf16.msra.mxu0 %v2018
    %2041 = vmatprep.subr.bf16.mxu0 %v2017
    %2042 = vmatpush1.bf16.msra.mxu0 %v2016
    %2043 = vmatprep.subr.bf16.mxu0 %v2015
    %2044 = vmatpush1.bf16.msra.mxu0 %v2014
    %2045 = vmatprep.subr.bf16.mxu0 %v2013
    %2046 = vmatpush1.bf16.msra.mxu0 %v2012
    %2047 = vmatprep.subr.bf16.mxu0 0
    %2048 = vmatpush2.bf16.msra.mxu0 0
    %2049 = vmatprep.subr.bf16.mxu0 0
    %2050 = vmatpush2.bf16.msra.mxu0 0
    %2051 = vmatprep.subr.bf16.mxu0 0
    %2052 = vmatpush2.bf16.msra.mxu0 0
    %2053 = vmatprep.subr.bf16.mxu0 0
    %2054 = vmatpush2.bf16.msra.mxu0 0
    %2055 = vmatprep.subr.bf16.mxu0 0
    %2056 = vmatpush2.bf16.msra.mxu0 0
    %2057 = vmatprep.subr.bf16.mxu0 0
    %2058 = vmatpush2.bf16.msra.mxu0 0
    %2059 = vmatprep.subr.bf16.mxu0 0
    %2060 = vmatpush2.bf16.msra.mxu0 0
    %2061 = vmatprep.subr.bf16.mxu0 0
    %2062 = vmatpush2.bf16.msra.mxu0 0
    %2063 = vmatprep.mubr.bf16.mxu0 0
    %2064 = vmatmul.mubr.bf16.gmra.mxu0 %v2029
    %v2065 = vpop.f32.mrf.mxu0
    %v2066 = vadd.f32 0.0, %v2065
    %v2067 = vpop.f32.mrf.mxu0
    %v2068 = vadd.f32 0.0, %v2067
    %v2069 = vpop.f32.mrf.mxu0
    %v2070 = vpop.f32.mrf.mxu0
    %2071 = vdwg.mxu0
    %v2072 = vadd.f32 %v1976, %v2066
    %v2073 = vadd.f32 %v1977, %v2068
    %v2074 = vld [vmem:[%s0 + $0x16] sm:$0x3]
    %v2075 = vpack.c.bf16 %v2074, %v2074
    %v2076 = vld [vmem:[%s442] sm:$0xff]
    %v2077 = vld [vmem:[%s442 + $0x8] sm:$0xff]
    %v2078 = vld [vmem:[%s442 + $0x10] sm:$0xff]
    %v2079 = vld [vmem:[%s442 + $0x18] sm:$0xff]
    %v2080 = vld [vmem:[%s442 + $0x20] sm:$0xff]
    %v2081 = vld [vmem:[%s442 + $0x28] sm:$0xff]
    %v2082 = vld [vmem:[%s442 + $0x30] sm:$0xff]
    %v2083 = vld [vmem:[%s442 + $0x38] sm:$0xff]
    %v2092 = vunpack.c.l.b16 %v2076
    %v2093 = vunpack.c.h.b16 %v2076
    %v2094 = vunpack.c.l.b16 %v2077
    %v2095 = vunpack.c.h.b16 %v2077
    %v2096 = vunpack.c.l.b16 %v2078
    %v2097 = vunpack.c.h.b16 %v2078
    %v2098 = vunpack.c.l.b16 %v2079
    %v2099 = vunpack.c.h.b16 %v2079
    %v2100 = vunpack.c.l.b16 %v2080
    %v2101 = vunpack.c.h.b16 %v2080
    %v2102 = vunpack.c.l.b16 %v2081
    %v2103 = vunpack.c.h.b16 %v2081
    %v2104 = vunpack.c.l.b16 %v2082
    %v2105 = vunpack.c.h.b16 %v2082
    %v2106 = vunpack.c.l.b16 %v2083
    %v2107 = vunpack.c.h.b16 %v2083
    %v2108 = vpack.c.b16 %v2094, %v2092
    %v2109 = vpack.c.b16 %v2095, %v2093
    %v2110 = vpack.c.b16 %v2098, %v2096
    %v2111 = vpack.c.b16 %v2099, %v2097
    %v2112 = vpack.c.b16 %v2102, %v2100
    %v2113 = vpack.c.b16 %v2103, %v2101
    %v2114 = vpack.c.b16 %v2106, %v2104
    %v2115 = vpack.c.b16 %v2107, %v2105
    %v2125 = vsel %vm214, %v2075, 0
    %2127 = vmatprep.subr.bf16.mxu0 0
    %2128 = vmatpush1.bf16.msra.mxu0 0
    %2129 = vmatprep.subr.bf16.mxu0 0
    %2130 = vmatpush1.bf16.msra.mxu0 0
    %2131 = vmatprep.subr.bf16.mxu0 0
    %2132 = vmatpush1.bf16.msra.mxu0 0
    %2133 = vmatprep.subr.bf16.mxu0 0
    %2134 = vmatpush1.bf16.msra.mxu0 0
    %2135 = vmatprep.subr.bf16.mxu0 %v2115
    %2136 = vmatpush1.bf16.msra.mxu0 %v2114
    %2137 = vmatprep.subr.bf16.mxu0 %v2113
    %2138 = vmatpush1.bf16.msra.mxu0 %v2112
    %2139 = vmatprep.subr.bf16.mxu0 %v2111
    %2140 = vmatpush1.bf16.msra.mxu0 %v2110
    %2141 = vmatprep.subr.bf16.mxu0 %v2109
    %2142 = vmatpush1.bf16.msra.mxu0 %v2108
    %2143 = vmatprep.subr.bf16.mxu0 0
    %2144 = vmatpush2.bf16.msra.mxu0 0
    %2145 = vmatprep.subr.bf16.mxu0 0
    %2146 = vmatpush2.bf16.msra.mxu0 0
    %2147 = vmatprep.subr.bf16.mxu0 0
    %2148 = vmatpush2.bf16.msra.mxu0 0
    %2149 = vmatprep.subr.bf16.mxu0 0
    %2150 = vmatpush2.bf16.msra.mxu0 0
    %2151 = vmatprep.subr.bf16.mxu0 0
    %2152 = vmatpush2.bf16.msra.mxu0 0
    %2153 = vmatprep.subr.bf16.mxu0 0
    %2154 = vmatpush2.bf16.msra.mxu0 0
    %2155 = vmatprep.subr.bf16.mxu0 0
    %2156 = vmatpush2.bf16.msra.mxu0 0
    %2157 = vmatprep.subr.bf16.mxu0 0
    %2158 = vmatpush2.bf16.msra.mxu0 0
    %2159 = vmatprep.mubr.bf16.mxu0 0
    %2160 = vmatmul.mubr.bf16.gmra.mxu0 %v2125
    %v2161 = vpop.f32.mrf.mxu0
    %v2162 = vadd.f32 0.0, %v2161
    %v2163 = vpop.f32.mrf.mxu0
    %v2164 = vadd.f32 0.0, %v2163
    %v2165 = vpop.f32.mrf.mxu0
    %v2166 = vpop.f32.mrf.mxu0
    %2167 = vdwg.mxu0
    %v2168 = vadd.f32 %v2072, %v2162
    %v2169 = vadd.f32 %v2073, %v2164
    %v2170 = vld [vmem:[#allocation7] ss:$4 sm:$0x3]
    %v2172 = vlaneseq
    %v2173 = vshrl.u32 %v2172, 7
    %v2174 = vsub.s32 0, %v2173
    %v2175 = vrot.slane %v2170, %v2174
    %v2176 = vlaneseq
    %v2177 = vshrl.u32 %v2176, 7
    %v2178 = vsub.s32 1, %v2177
    %v2179 = vrot.slane %v2170, %v2178
    %v2182 = vadd.f32 %v2168, %v2175
    %v2183 = vadd.f32 %v2169, %v2179
    %v2184 = vmax.f32 %v2182, 0.0
    %v2185 = vmax.f32 %v2183, 0.0
    %v2186 = vld [vmem:[%s553] ss:$4 sm:$0x3]
    %v2188 = vlaneseq
    %v2189 = vshrl.u32 %v2188, 7
    %v2190 = vsub.s32 0, %v2189
    %v2191 = vrot.slane %v2186, %v2190
    %v2192 = vlaneseq
    %v2193 = vshrl.u32 %v2192, 7
    %v2194 = vsub.s32 1, %v2193
    %v2195 = vrot.slane %v2186, %v2194
    %v2198 = vmul.f32 %v2184, %v2191
    %v2199 = vmul.f32 %v2185, %v2195
    %v2200 = vld [vmem:[%s568] ss:$4 sm:$0x3]
    %v2202 = vlaneseq
    %v2203 = vshrl.u32 %v2202, 7
    %v2204 = vsub.s32 0, %v2203
    %v2205 = vrot.slane %v2200, %v2204
    %v2206 = vlaneseq
    %v2207 = vshrl.u32 %v2206, 7
    %v2208 = vsub.s32 1, %v2207
    %v2209 = vrot.slane %v2200, %v2208
    %v2212 = vadd.f32 %v2198, %v2205
    %v2213 = vadd.f32 %v2199, %v2209
    %v2216 = vrot.slane %v2212, 4
    %v2217 = vrot.slane %v2213, 4
    %2220 = vst [vmem:[#allocation2] sm:$0x30] %v2216
    %vm2221 = vcmask 259076
    %2222 = vst.msk [vmem:[#allocation2 + $0x8] sm:$0x30] %vm2221, %v2217
    %v2223 = vld [vmem:[%s0 + $0x10] sm:$0x3]
    %v2224 = vpack.c.bf16 %v2223, %v2223
    %v2225 = vld [vmem:[#allocation4] sm:$0xff]
    %v2226 = vld [vmem:[#allocation4 + $0x8] sm:$0xff]
    %v2227 = vld [vmem:[#allocation4 + $0x10] sm:$0xff]
    %v2228 = vld [vmem:[#allocation4 + $0x18] sm:$0xff]
    %v2229 = vld [vmem:[#allocation4 + $0x20] sm:$0xff]
    %v2230 = vld [vmem:[#allocation4 + $0x28] sm:$0xff]
    %v2231 = vld [vmem:[#allocation4 + $0x30] sm:$0xff]
    %v2232 = vld [vmem:[#allocation4 + $0x38] sm:$0xff]
    %v2233 = vld [vmem:[%s0 + $0x12] sm:$0x3]
    %v2234 = vpack.c.bf16 %v2233, %v2233
    %v2235 = vld [vmem:[%s598] sm:$0xff]
    %v2236 = vld [vmem:[%s598 + $0x8] sm:$0xff]
    %v2237 = vld [vmem:[%s598 + $0x10] sm:$0xff]
    %v2238 = vld [vmem:[%s598 + $0x18] sm:$0xff]
    %v2239 = vld [vmem:[%s598 + $0x20] sm:$0xff]
    %v2240 = vld [vmem:[%s598 + $0x28] sm:$0xff]
    %v2241 = vld [vmem:[%s598 + $0x30] sm:$0xff]
    %v2242 = vld [vmem:[%s598 + $0x38] sm:$0xff]
    %v2251 = vunpack.c.l.b16 %v2235
    %v2252 = vunpack.c.h.b16 %v2235
    %v2253 = vunpack.c.l.b16 %v2236
    %v2254 = vunpack.c.h.b16 %v2236
    %v2255 = vunpack.c.l.b16 %v2237
    %v2256 = vunpack.c.h.b16 %v2237
    %v2257 = vunpack.c.l.b16 %v2238
    %v2258 = vunpack.c.h.b16 %v2238
    %v2259 = vunpack.c.l.b16 %v2239
    %v2260 = vunpack.c.h.b16 %v2239
    %v2261 = vunpack.c.l.b16 %v2240
    %v2262 = vunpack.c.h.b16 %v2240
    %v2263 = vunpack.c.l.b16 %v2241
    %v2264 = vunpack.c.h.b16 %v2241
    %v2265 = vunpack.c.l.b16 %v2242
    %v2266 = vunpack.c.h.b16 %v2242
    %v2267 = vpack.c.b16 %v2253, %v2251
    %v2268 = vpack.c.b16 %v2254, %v2252
    %v2269 = vpack.c.b16 %v2257, %v2255
    %v2270 = vpack.c.b16 %v2258, %v2256
    %v2271 = vpack.c.b16 %v2261, %v2259
    %v2272 = vpack.c.b16 %v2262, %v2260
    %v2273 = vpack.c.b16 %v2265, %v2263
    %v2274 = vpack.c.b16 %v2266, %v2264
    %v2284 = vsel %vm214, %v2234, 0
    %2286 = vmatprep.subr.bf16.mxu0 0
    %2287 = vmatpush1.bf16.msra.mxu0 0
    %2288 = vmatprep.subr.bf16.mxu0 0
    %2289 = vmatpush1.bf16.msra.mxu0 0
    %2290 = vmatprep.subr.bf16.mxu0 0
    %2291 = vmatpush1.bf16.msra.mxu0 0
    %2292 = vmatprep.subr.bf16.mxu0 0
    %2293 = vmatpush1.bf16.msra.mxu0 0
    %2294 = vmatprep.subr.bf16.mxu0 %v2274
    %2295 = vmatpush1.bf16.msra.mxu0 %v2273
    %2296 = vmatprep.subr.bf16.mxu0 %v2272
    %2297 = vmatpush1.bf16.msra.mxu0 %v2271
    %2298 = vmatprep.subr.bf16.mxu0 %v2270
    %2299 = vmatpush1.bf16.msra.mxu0 %v2269
    %2300 = vmatprep.subr.bf16.mxu0 %v2268
    %2301 = vmatpush1.bf16.msra.mxu0 %v2267
    %2302 = vmatprep.subr.bf16.mxu0 0
    %2303 = vmatpush2.bf16.msra.mxu0 0
    %2304 = vmatprep.subr.bf16.mxu0 0
    %2305 = vmatpush2.bf16.msra.mxu0 0
    %2306 = vmatprep.subr.bf16.mxu0 0
    %2307 = vmatpush2.bf16.msra.mxu0 0
    %2308 = vmatprep.subr.bf16.mxu0 0
    %2309 = vmatpush2.bf16.msra.mxu0 0
    %2310 = vmatprep.subr.bf16.mxu0 0
    %2311 = vmatpush2.bf16.msra.mxu0 0
    %2312 = vmatprep.subr.bf16.mxu0 0
    %2313 = vmatpush2.bf16.msra.mxu0 0
    %2314 = vmatprep.subr.bf16.mxu0 0
    %2315 = vmatpush2.bf16.msra.mxu0 0
    %2316 = vmatprep.subr.bf16.mxu0 0
    %2317 = vmatpush2.bf16.msra.mxu0 0
    %2318 = vmatprep.mubr.bf16.mxu0 0
    %2319 = vmatmul.mubr.bf16.gmra.mxu0 %v2284
    %v2320 = vpop.f32.mrf.mxu0
    %v2321 = vadd.f32 0.0, %v2320
    %v2322 = vpop.f32.mrf.mxu0
    %v2323 = vadd.f32 0.0, %v2322
    %v2324 = vpop.f32.mrf.mxu0
    %v2325 = vpop.f32.mrf.mxu0
    %2326 = vdwg.mxu0
    %v2335 = vunpack.c.l.b16 %v2225
    %v2336 = vunpack.c.h.b16 %v2225
    %v2337 = vunpack.c.l.b16 %v2226
    %v2338 = vunpack.c.h.b16 %v2226
    %v2339 = vunpack.c.l.b16 %v2227
    %v2340 = vunpack.c.h.b16 %v2227
    %v2341 = vunpack.c.l.b16 %v2228
    %v2342 = vunpack.c.h.b16 %v2228
    %v2343 = vunpack.c.l.b16 %v2229
    %v2344 = vunpack.c.h.b16 %v2229
    %v2345 = vunpack.c.l.b16 %v2230
    %v2346 = vunpack.c.h.b16 %v2230
    %v2347 = vunpack.c.l.b16 %v2231
    %v2348 = vunpack.c.h.b16 %v2231
    %v2349 = vunpack.c.l.b16 %v2232
    %v2350 = vunpack.c.h.b16 %v2232
    %v2351 = vpack.c.b16 %v2337, %v2335
    %v2352 = vpack.c.b16 %v2338, %v2336
    %v2353 = vpack.c.b16 %v2341, %v2339
    %v2354 = vpack.c.b16 %v2342, %v2340
    %v2355 = vpack.c.b16 %v2345, %v2343
    %v2356 = vpack.c.b16 %v2346, %v2344
    %v2357 = vpack.c.b16 %v2349, %v2347
    %v2358 = vpack.c.b16 %v2350, %v2348
    %v2368 = vsel %vm214, %v2224, 0
    %2370 = vmatprep.subr.bf16.mxu0 0
    %2371 = vmatpush1.bf16.msra.mxu0 0
    %2372 = vmatprep.subr.bf16.mxu0 0
    %2373 = vmatpush1.bf16.msra.mxu0 0
    %2374 = vmatprep.subr.bf16.mxu0 0
    %2375 = vmatpush1.bf16.msra.mxu0 0
    %2376 = vmatprep.subr.bf16.mxu0 0
    %2377 = vmatpush1.bf16.msra.mxu0 0
    %2378 = vmatprep.subr.bf16.mxu0 %v2358
    %2379 = vmatpush1.bf16.msra.mxu0 %v2357
    %2380 = vmatprep.subr.bf16.mxu0 %v2356
    %2381 = vmatpush1.bf16.msra.mxu0 %v2355
    %2382 = vmatprep.subr.bf16.mxu0 %v2354
    %2383 = vmatpush1.bf16.msra.mxu0 %v2353
    %2384 = vmatprep.subr.bf16.mxu0 %v2352
    %2385 = vmatpush1.bf16.msra.mxu0 %v2351
    %2386 = vmatprep.subr.bf16.mxu0 0
    %2387 = vmatpush2.bf16.msra.mxu0 0
    %2388 = vmatprep.subr.bf16.mxu0 0
    %2389 = vmatpush2.bf16.msra.mxu0 0
    %2390 = vmatprep.subr.bf16.mxu0 0
    %2391 = vmatpush2.bf16.msra.mxu0 0
    %2392 = vmatprep.subr.bf16.mxu0 0
    %2393 = vmatpush2.bf16.msra.mxu0 0
    %2394 = vmatprep.subr.bf16.mxu0 0
    %2395 = vmatpush2.bf16.msra.mxu0 0
    %2396 = vmatprep.subr.bf16.mxu0 0
    %2397 = vmatpush2.bf16.msra.mxu0 0
    %2398 = vmatprep.subr.bf16.mxu0 0
    %2399 = vmatpush2.bf16.msra.mxu0 0
    %2400 = vmatprep.subr.bf16.mxu0 0
    %2401 = vmatpush2.bf16.msra.mxu0 0
    %2402 = vmatprep.mubr.bf16.mxu0 0
    %2403 = vmatmul.mubr.bf16.gmra.mxu0 %v2368
    %v2404 = vpop.f32.mrf.mxu0
    %v2405 = vadd.f32 %v2321, %v2404
    %v2406 = vpop.f32.mrf.mxu0
    %v2407 = vadd.f32 %v2323, %v2406
    %v2408 = vpop.f32.mrf.mxu0
    %v2409 = vpop.f32.mrf.mxu0
    %2410 = vdwg.mxu0
    %v2411 = vld [vmem:[%s0 + $0x14] sm:$0x3]
    %v2412 = vpack.c.bf16 %v2411, %v2411
    %v2413 = vld [vmem:[%s777] sm:$0xff]
    %v2414 = vld [vmem:[%s777 + $0x8] sm:$0xff]
    %v2415 = vld [vmem:[%s777 + $0x10] sm:$0xff]
    %v2416 = vld [vmem:[%s777 + $0x18] sm:$0xff]
    %v2417 = vld [vmem:[%s777 + $0x20] sm:$0xff]
    %v2418 = vld [vmem:[%s777 + $0x28] sm:$0xff]
    %v2419 = vld [vmem:[%s777 + $0x30] sm:$0xff]
    %v2420 = vld [vmem:[%s777 + $0x38] sm:$0xff]
    %v2429 = vunpack.c.l.b16 %v2413
    %v2430 = vunpack.c.h.b16 %v2413
    %v2431 = vunpack.c.l.b16 %v2414
    %v2432 = vunpack.c.h.b16 %v2414
    %v2433 = vunpack.c.l.b16 %v2415
    %v2434 = vunpack.c.h.b16 %v2415
    %v2435 = vunpack.c.l.b16 %v2416
    %v2436 = vunpack.c.h.b16 %v2416
    %v2437 = vunpack.c.l.b16 %v2417
    %v2438 = vunpack.c.h.b16 %v2417
    %v2439 = vunpack.c.l.b16 %v2418
    %v2440 = vunpack.c.h.b16 %v2418
    %v2441 = vunpack.c.l.b16 %v2419
    %v2442 = vunpack.c.h.b16 %v2419
    %v2443 = vunpack.c.l.b16 %v2420
    %v2444 = vunpack.c.h.b16 %v2420
    %v2445 = vpack.c.b16 %v2431, %v2429
    %v2446 = vpack.c.b16 %v2432, %v2430
    %v2447 = vpack.c.b16 %v2435, %v2433
    %v2448 = vpack.c.b16 %v2436, %v2434
    %v2449 = vpack.c.b16 %v2439, %v2437
    %v2450 = vpack.c.b16 %v2440, %v2438
    %v2451 = vpack.c.b16 %v2443, %v2441
    %v2452 = vpack.c.b16 %v2444, %v2442
    %v2462 = vsel %vm214, %v2412, 0
    %2464 = vmatprep.subr.bf16.mxu0 0
    %2465 = vmatpush1.bf16.msra.mxu0 0
    %2466 = vmatprep.subr.bf16.mxu0 0
    %2467 = vmatpush1.bf16.msra.mxu0 0
    %2468 = vmatprep.subr.bf16.mxu0 0
    %2469 = vmatpush1.bf16.msra.mxu0 0
    %2470 = vmatprep.subr.bf16.mxu0 0
    %2471 = vmatpush1.bf16.msra.mxu0 0
    %2472 = vmatprep.subr.bf16.mxu0 %v2452
    %2473 = vmatpush1.bf16.msra.mxu0 %v2451
    %2474 = vmatprep.subr.bf16.mxu0 %v2450
    %2475 = vmatpush1.bf16.msra.mxu0 %v2449
    %2476 = vmatprep.subr.bf16.mxu0 %v2448
    %2477 = vmatpush1.bf16.msra.mxu0 %v2447
    %2478 = vmatprep.subr.bf16.mxu0 %v2446
    %2479 = vmatpush1.bf16.msra.mxu0 %v2445
    %2480 = vmatprep.subr.bf16.mxu0 0
    %2481 = vmatpush2.bf16.msra.mxu0 0
    %2482 = vmatprep.subr.bf16.mxu0 0
    %2483 = vmatpush2.bf16.msra.mxu0 0
    %2484 = vmatprep.subr.bf16.mxu0 0
    %2485 = vmatpush2.bf16.msra.mxu0 0
    %2486 = vmatprep.subr.bf16.mxu0 0
    %2487 = vmatpush2.bf16.msra.mxu0 0
    %2488 = vmatprep.subr.bf16.mxu0 0
    %2489 = vmatpush2.bf16.msra.mxu0 0
    %2490 = vmatprep.subr.bf16.mxu0 0
    %2491 = vmatpush2.bf16.msra.mxu0 0
    %2492 = vmatprep.subr.bf16.mxu0 0
    %2493 = vmatpush2.bf16.msra.mxu0 0
    %2494 = vmatprep.subr.bf16.mxu0 0
    %2495 = vmatpush2.bf16.msra.mxu0 0
    %2496 = vmatprep.mubr.bf16.mxu0 0
    %2497 = vmatmul.mubr.bf16.gmra.mxu0 %v2462
    %v2498 = vpop.f32.mrf.mxu0
    %v2499 = vadd.f32 0.0, %v2498
    %v2500 = vpop.f32.mrf.mxu0
    %v2501 = vadd.f32 0.0, %v2500
    %v2502 = vpop.f32.mrf.mxu0
    %v2503 = vpop.f32.mrf.mxu0
    %2504 = vdwg.mxu0
    %v2505 = vadd.f32 %v2405, %v2499
    %v2506 = vadd.f32 %v2407, %v2501
    %v2507 = vld [vmem:[%s0 + $0x16] sm:$0x3]
    %v2508 = vpack.c.bf16 %v2507, %v2507
    %v2509 = vld [vmem:[%s874] sm:$0xff]
    %v2510 = vld [vmem:[%s874 + $0x8] sm:$0xff]
    %v2511 = vld [vmem:[%s874 + $0x10] sm:$0xff]
    %v2512 = vld [vmem:[%s874 + $0x18] sm:$0xff]
    %v2513 = vld [vmem:[%s874 + $0x20] sm:$0xff]
    %v2514 = vld [vmem:[%s874 + $0x28] sm:$0xff]
    %v2515 = vld [vmem:[%s874 + $0x30] sm:$0xff]
    %v2516 = vld [vmem:[%s874 + $0x38] sm:$0xff]
    %v2525 = vunpack.c.l.b16 %v2509
    %v2526 = vunpack.c.h.b16 %v2509
    %v2527 = vunpack.c.l.b16 %v2510
    %v2528 = vunpack.c.h.b16 %v2510
    %v2529 = vunpack.c.l.b16 %v2511
    %v2530 = vunpack.c.h.b16 %v2511
    %v2531 = vunpack.c.l.b16 %v2512
    %v2532 = vunpack.c.h.b16 %v2512
    %v2533 = vunpack.c.l.b16 %v2513
    %v2534 = vunpack.c.h.b16 %v2513
    %v2535 = vunpack.c.l.b16 %v2514
    %v2536 = vunpack.c.h.b16 %v2514
    %v2537 = vunpack.c.l.b16 %v2515
    %v2538 = vunpack.c.h.b16 %v2515
    %v2539 = vunpack.c.l.b16 %v2516
    %v2540 = vunpack.c.h.b16 %v2516
    %v2541 = vpack.c.b16 %v2527, %v2525
    %v2542 = vpack.c.b16 %v2528, %v2526
    %v2543 = vpack.c.b16 %v2531, %v2529
    %v2544 = vpack.c.b16 %v2532, %v2530
    %v2545 = vpack.c.b16 %v2535, %v2533
    %v2546 = vpack.c.b16 %v2536, %v2534
    %v2547 = vpack.c.b16 %v2539, %v2537
    %v2548 = vpack.c.b16 %v2540, %v2538
    %v2558 = vsel %vm214, %v2508, 0
    %2560 = vmatprep.subr.bf16.mxu0 0
    %2561 = vmatpush1.bf16.msra.mxu0 0
    %2562 = vmatprep.subr.bf16.mxu0 0
    %2563 = vmatpush1.bf16.msra.mxu0 0
    %2564 = vmatprep.subr.bf16.mxu0 0
    %2565 = vmatpush1.bf16.msra.mxu0 0
    %2566 = vmatprep.subr.bf16.mxu0 0
    %2567 = vmatpush1.bf16.msra.mxu0 0
    %2568 = vmatprep.subr.bf16.mxu0 %v2548
    %2569 = vmatpush1.bf16.msra.mxu0 %v2547
    %2570 = vmatprep.subr.bf16.mxu0 %v2546
    %2571 = vmatpush1.bf16.msra.mxu0 %v2545
    %2572 = vmatprep.subr.bf16.mxu0 %v2544
    %2573 = vmatpush1.bf16.msra.mxu0 %v2543
    %2574 = vmatprep.subr.bf16.mxu0 %v2542
    %2575 = vmatpush1.bf16.msra.mxu0 %v2541
    %2576 = vmatprep.subr.bf16.mxu0 0
    %2577 = vmatpush2.bf16.msra.mxu0 0
    %2578 = vmatprep.subr.bf16.mxu0 0
    %2579 = vmatpush2.bf16.msra.mxu0 0
    %2580 = vmatprep.subr.bf16.mxu0 0
    %2581 = vmatpush2.bf16.msra.mxu0 0
    %2582 = vmatprep.subr.bf16.mxu0 0
    %2583 = vmatpush2.bf16.msra.mxu0 0
    %2584 = vmatprep.subr.bf16.mxu0 0
    %2585 = vmatpush2.bf16.msra.mxu0 0
    %2586 = vmatprep.subr.bf16.mxu0 0
    %2587 = vmatpush2.bf16.msra.mxu0 0
    %2588 = vmatprep.subr.bf16.mxu0 0
    %2589 = vmatpush2.bf16.msra.mxu0 0
    %2590 = vmatprep.subr.bf16.mxu0 0
    %2591 = vmatpush2.bf16.msra.mxu0 0
    %2592 = vmatprep.mubr.bf16.mxu0 0
    %2593 = vmatmul.mubr.bf16.gmra.mxu0 %v2558
    %v2594 = vpop.f32.mrf.mxu0
    %v2595 = vadd.f32 0.0, %v2594
    %v2596 = vpop.f32.mrf.mxu0
    %v2597 = vadd.f32 0.0, %v2596
    %v2598 = vpop.f32.mrf.mxu0
    %v2599 = vpop.f32.mrf.mxu0
    %2600 = vdwg.mxu0
    %v2601 = vadd.f32 %v2505, %v2595
    %v2602 = vadd.f32 %v2506, %v2597
    %v2603 = vld [vmem:[%s0 + $0x18] sm:$0x3]
    %v2604 = vpack.c.bf16 %v2603, %v2603
    %v2605 = vld [vmem:[%s154] sm:$0xff]
    %v2606 = vld [vmem:[%s154 + $0x8] sm:$0xff]
    %v2607 = vld [vmem:[%s154 + $0x10] sm:$0xff]
    %v2608 = vld [vmem:[%s154 + $0x18] sm:$0xff]
    %v2609 = vld [vmem:[%s154 + $0x20] sm:$0xff]
    %v2610 = vld [vmem:[%s154 + $0x28] sm:$0xff]
    %v2611 = vld [vmem:[%s154 + $0x30] sm:$0xff]
    %v2612 = vld [vmem:[%s154 + $0x38] sm:$0xff]
    %v2621 = vunpack.c.l.b16 %v2605
    %v2622 = vunpack.c.h.b16 %v2605
    %v2623 = vunpack.c.l.b16 %v2606
    %v2624 = vunpack.c.h.b16 %v2606
    %v2625 = vunpack.c.l.b16 %v2607
    %v2626 = vunpack.c.h.b16 %v2607
    %v2627 = vunpack.c.l.b16 %v2608
    %v2628 = vunpack.c.h.b16 %v2608
    %v2629 = vunpack.c.l.b16 %v2609
    %v2630 = vunpack.c.h.b16 %v2609
    %v2631 = vunpack.c.l.b16 %v2610
    %v2632 = vunpack.c.h.b16 %v2610
    %v2633 = vunpack.c.l.b16 %v2611
    %v2634 = vunpack.c.h.b16 %v2611
    %v2635 = vunpack.c.l.b16 %v2612
    %v2636 = vunpack.c.h.b16 %v2612
    %v2637 = vpack.c.b16 %v2623, %v2621
    %v2638 = vpack.c.b16 %v2624, %v2622
    %v2639 = vpack.c.b16 %v2627, %v2625
    %v2640 = vpack.c.b16 %v2628, %v2626
    %v2641 = vpack.c.b16 %v2631, %v2629
    %v2642 = vpack.c.b16 %v2632, %v2630
    %v2643 = vpack.c.b16 %v2635, %v2633
    %v2644 = vpack.c.b16 %v2636, %v2634
    %v2654 = vsel %vm214, %v2604, 0
    %2656 = vmatprep.subr.bf16.mxu0 0
    %2657 = vmatpush1.bf16.msra.mxu0 0
    %2658 = vmatprep.subr.bf16.mxu0 0
    %2659 = vmatpush1.bf16.msra.mxu0 0
    %2660 = vmatprep.subr.bf16.mxu0 0
    %2661 = vmatpush1.bf16.msra.mxu0 0
    %2662 = vmatprep.subr.bf16.mxu0 0
    %2663 = vmatpush1.bf16.msra.mxu0 0
    %2664 = vmatprep.subr.bf16.mxu0 %v2644
    %2665 = vmatpush1.bf16.msra.mxu0 %v2643
    %2666 = vmatprep.subr.bf16.mxu0 %v2642
    %2667 = vmatpush1.bf16.msra.mxu0 %v2641
    %2668 = vmatprep.subr.bf16.mxu0 %v2640
    %2669 = vmatpush1.bf16.msra.mxu0 %v2639
    %2670 = vmatprep.subr.bf16.mxu0 %v2638
    %2671 = vmatpush1.bf16.msra.mxu0 %v2637
    %2672 = vmatprep.subr.bf16.mxu0 0
    %2673 = vmatpush2.bf16.msra.mxu0 0
    %2674 = vmatprep.subr.bf16.mxu0 0
    %2675 = vmatpush2.bf16.msra.mxu0 0
    %2676 = vmatprep.subr.bf16.mxu0 0
    %2677 = vmatpush2.bf16.msra.mxu0 0
    %2678 = vmatprep.subr.bf16.mxu0 0
    %2679 = vmatpush2.bf16.msra.mxu0 0
    %2680 = vmatprep.subr.bf16.mxu0 0
    %2681 = vmatpush2.bf16.msra.mxu0 0
    %2682 = vmatprep.subr.bf16.mxu0 0
    %2683 = vmatpush2.bf16.msra.mxu0 0
    %2684 = vmatprep.subr.bf16.mxu0 0
    %2685 = vmatpush2.bf16.msra.mxu0 0
    %2686 = vmatprep.subr.bf16.mxu0 0
    %2687 = vmatpush2.bf16.msra.mxu0 0
    %2688 = vmatprep.mubr.bf16.mxu0 0
    %2689 = vmatmul.mubr.bf16.gmra.mxu0 %v2654
    %v2690 = vpop.f32.mrf.mxu0
    %v2691 = vadd.f32 0.0, %v2690
    %v2692 = vpop.f32.mrf.mxu0
    %v2693 = vadd.f32 0.0, %v2692
    %v2694 = vpop.f32.mrf.mxu0
    %v2695 = vpop.f32.mrf.mxu0
    %2696 = vdwg.mxu0
    %v2697 = vadd.f32 %v2601, %v2691
    %v2698 = vadd.f32 %v2602, %v2693
    %v2699 = vld [vmem:[%s0 + $0x1a] sm:$0x3]
    %v2700 = vpack.c.bf16 %v2699, %v2699
    %v2701 = vld [vmem:[%s165] sm:$0xff]
    %v2702 = vld [vmem:[%s165 + $0x8] sm:$0xff]
    %v2703 = vld [vmem:[%s165 + $0x10] sm:$0xff]
    %v2704 = vld [vmem:[%s165 + $0x18] sm:$0xff]
    %v2705 = vld [vmem:[%s165 + $0x20] sm:$0xff]
    %v2706 = vld [vmem:[%s165 + $0x28] sm:$0xff]
    %v2707 = vld [vmem:[%s165 + $0x30] sm:$0xff]
    %v2708 = vld [vmem:[%s165 + $0x38] sm:$0xff]
    %v2717 = vunpack.c.l.b16 %v2701
    %v2718 = vunpack.c.h.b16 %v2701
    %v2719 = vunpack.c.l.b16 %v2702
    %v2720 = vunpack.c.h.b16 %v2702
    %v2721 = vunpack.c.l.b16 %v2703
    %v2722 = vunpack.c.h.b16 %v2703
    %v2723 = vunpack.c.l.b16 %v2704
    %v2724 = vunpack.c.h.b16 %v2704
    %v2725 = vunpack.c.l.b16 %v2705
    %v2726 = vunpack.c.h.b16 %v2705
    %v2727 = vunpack.c.l.b16 %v2706
    %v2728 = vunpack.c.h.b16 %v2706
    %v2729 = vunpack.c.l.b16 %v2707
    %v2730 = vunpack.c.h.b16 %v2707
    %v2731 = vunpack.c.l.b16 %v2708
    %v2732 = vunpack.c.h.b16 %v2708
    %v2733 = vpack.c.b16 %v2719, %v2717
    %v2734 = vpack.c.b16 %v2720, %v2718
    %v2735 = vpack.c.b16 %v2723, %v2721
    %v2736 = vpack.c.b16 %v2724, %v2722
    %v2737 = vpack.c.b16 %v2727, %v2725
    %v2738 = vpack.c.b16 %v2728, %v2726
    %v2739 = vpack.c.b16 %v2731, %v2729
    %v2740 = vpack.c.b16 %v2732, %v2730
    %v2750 = vsel %vm214, %v2700, 0
    %2752 = vmatprep.subr.bf16.mxu0 0
    %2753 = vmatpush1.bf16.msra.mxu0 0
    %2754 = vmatprep.subr.bf16.mxu0 0
    %2755 = vmatpush1.bf16.msra.mxu0 0
    %2756 = vmatprep.subr.bf16.mxu0 0
    %2757 = vmatpush1.bf16.msra.mxu0 0
    %2758 = vmatprep.subr.bf16.mxu0 0
    %2759 = vmatpush1.bf16.msra.mxu0 0
    %2760 = vmatprep.subr.bf16.mxu0 %v2740
    %2761 = vmatpush1.bf16.msra.mxu0 %v2739
    %2762 = vmatprep.subr.bf16.mxu0 %v2738
    %2763 = vmatpush1.bf16.msra.mxu0 %v2737
    %2764 = vmatprep.subr.bf16.mxu0 %v2736
    %2765 = vmatpush1.bf16.msra.mxu0 %v2735
    %2766 = vmatprep.subr.bf16.mxu0 %v2734
    %2767 = vmatpush1.bf16.msra.mxu0 %v2733
    %2768 = vmatprep.subr.bf16.mxu0 0
    %2769 = vmatpush2.bf16.msra.mxu0 0
    %2770 = vmatprep.subr.bf16.mxu0 0
    %2771 = vmatpush2.bf16.msra.mxu0 0
    %2772 = vmatprep.subr.bf16.mxu0 0
    %2773 = vmatpush2.bf16.msra.mxu0 0
    %2774 = vmatprep.subr.bf16.mxu0 0
    %2775 = vmatpush2.bf16.msra.mxu0 0
    %2776 = vmatprep.subr.bf16.mxu0 0
    %2777 = vmatpush2.bf16.msra.mxu0 0
    %2778 = vmatprep.subr.bf16.mxu0 0
    %2779 = vmatpush2.bf16.msra.mxu0 0
    %2780 = vmatprep.subr.bf16.mxu0 0
    %2781 = vmatpush2.bf16.msra.mxu0 0
    %2782 = vmatprep.subr.bf16.mxu0 0
    %2783 = vmatpush2.bf16.msra.mxu0 0
    %2784 = vmatprep.mubr.bf16.mxu0 0
    %2785 = vmatmul.mubr.bf16.gmra.mxu0 %v2750
    %v2786 = vpop.f32.mrf.mxu0
    %v2787 = vadd.f32 0.0, %v2786
    %v2788 = vpop.f32.mrf.mxu0
    %v2789 = vadd.f32 0.0, %v2788
    %v2790 = vpop.f32.mrf.mxu0
    %v2791 = vpop.f32.mrf.mxu0
    %2792 = vdwg.mxu0
    %v2793 = vadd.f32 %v2697, %v2787
    %v2794 = vadd.f32 %v2698, %v2789
    %v2795 = vld [vmem:[%s0 + $0x1c] sm:$0x3]
    %v2796 = vpack.c.bf16 %v2795, %v2795
    %v2797 = vld [vmem:[%s345] sm:$0xff]
    %v2798 = vld [vmem:[%s345 + $0x8] sm:$0xff]
    %v2799 = vld [vmem:[%s345 + $0x10] sm:$0xff]
    %v2800 = vld [vmem:[%s345 + $0x18] sm:$0xff]
    %v2801 = vld [vmem:[%s345 + $0x20] sm:$0xff]
    %v2802 = vld [vmem:[%s345 + $0x28] sm:$0xff]
    %v2803 = vld [vmem:[%s345 + $0x30] sm:$0xff]
    %v2804 = vld [vmem:[%s345 + $0x38] sm:$0xff]
    %v2813 = vunpack.c.l.b16 %v2797
    %v2814 = vunpack.c.h.b16 %v2797
    %v2815 = vunpack.c.l.b16 %v2798
    %v2816 = vunpack.c.h.b16 %v2798
    %v2817 = vunpack.c.l.b16 %v2799
    %v2818 = vunpack.c.h.b16 %v2799
    %v2819 = vunpack.c.l.b16 %v2800
    %v2820 = vunpack.c.h.b16 %v2800
    %v2821 = vunpack.c.l.b16 %v2801
    %v2822 = vunpack.c.h.b16 %v2801
    %v2823 = vunpack.c.l.b16 %v2802
    %v2824 = vunpack.c.h.b16 %v2802
    %v2825 = vunpack.c.l.b16 %v2803
    %v2826 = vunpack.c.h.b16 %v2803
    %v2827 = vunpack.c.l.b16 %v2804
    %v2828 = vunpack.c.h.b16 %v2804
    %v2829 = vpack.c.b16 %v2815, %v2813
    %v2830 = vpack.c.b16 %v2816, %v2814
    %v2831 = vpack.c.b16 %v2819, %v2817
    %v2832 = vpack.c.b16 %v2820, %v2818
    %v2833 = vpack.c.b16 %v2823, %v2821
    %v2834 = vpack.c.b16 %v2824, %v2822
    %v2835 = vpack.c.b16 %v2827, %v2825
    %v2836 = vpack.c.b16 %v2828, %v2826
    %v2846 = vsel %vm214, %v2796, 0
    %2848 = vmatprep.subr.bf16.mxu0 0
    %2849 = vmatpush1.bf16.msra.mxu0 0
    %2850 = vmatprep.subr.bf16.mxu0 0
    %2851 = vmatpush1.bf16.msra.mxu0 0
    %2852 = vmatprep.subr.bf16.mxu0 0
    %2853 = vmatpush1.bf16.msra.mxu0 0
    %2854 = vmatprep.subr.bf16.mxu0 0
    %2855 = vmatpush1.bf16.msra.mxu0 0
    %2856 = vmatprep.subr.bf16.mxu0 %v2836
    %2857 = vmatpush1.bf16.msra.mxu0 %v2835
    %2858 = vmatprep.subr.bf16.mxu0 %v2834
    %2859 = vmatpush1.bf16.msra.mxu0 %v2833
    %2860 = vmatprep.subr.bf16.mxu0 %v2832
    %2861 = vmatpush1.bf16.msra.mxu0 %v2831
    %2862 = vmatprep.subr.bf16.mxu0 %v2830
    %2863 = vmatpush1.bf16.msra.mxu0 %v2829
    %2864 = vmatprep.subr.bf16.mxu0 0
    %2865 = vmatpush2.bf16.msra.mxu0 0
    %2866 = vmatprep.subr.bf16.mxu0 0
    %2867 = vmatpush2.bf16.msra.mxu0 0
    %2868 = vmatprep.subr.bf16.mxu0 0
    %2869 = vmatpush2.bf16.msra.mxu0 0
    %2870 = vmatprep.subr.bf16.mxu0 0
    %2871 = vmatpush2.bf16.msra.mxu0 0
    %2872 = vmatprep.subr.bf16.mxu0 0
    %2873 = vmatpush2.bf16.msra.mxu0 0
    %2874 = vmatprep.subr.bf16.mxu0 0
    %2875 = vmatpush2.bf16.msra.mxu0 0
    %2876 = vmatprep.subr.bf16.mxu0 0
    %2877 = vmatpush2.bf16.msra.mxu0 0
    %2878 = vmatprep.subr.bf16.mxu0 0
    %2879 = vmatpush2.bf16.msra.mxu0 0
    %2880 = vmatprep.mubr.bf16.mxu0 0
    %2881 = vmatmul.mubr.bf16.gmra.mxu0 %v2846
    %v2882 = vpop.f32.mrf.mxu0
    %v2883 = vadd.f32 0.0, %v2882
    %v2884 = vpop.f32.mrf.mxu0
    %v2885 = vadd.f32 0.0, %v2884
    %v2886 = vpop.f32.mrf.mxu0
    %v2887 = vpop.f32.mrf.mxu0
    %2888 = vdwg.mxu0
    %v2889 = vadd.f32 %v2793, %v2883
    %v2890 = vadd.f32 %v2794, %v2885
    %v2891 = vld [vmem:[%s0 + $0x1e] sm:$0x3]
    %v2892 = vpack.c.bf16 %v2891, %v2891
    %v2893 = vld [vmem:[%s442] sm:$0xff]
    %v2894 = vld [vmem:[%s442 + $0x8] sm:$0xff]
    %v2895 = vld [vmem:[%s442 + $0x10] sm:$0xff]
    %v2896 = vld [vmem:[%s442 + $0x18] sm:$0xff]
    %v2897 = vld [vmem:[%s442 + $0x20] sm:$0xff]
    %v2898 = vld [vmem:[%s442 + $0x28] sm:$0xff]
    %v2899 = vld [vmem:[%s442 + $0x30] sm:$0xff]
    %v2900 = vld [vmem:[%s442 + $0x38] sm:$0xff]
    %v2909 = vunpack.c.l.b16 %v2893
    %v2910 = vunpack.c.h.b16 %v2893
    %v2911 = vunpack.c.l.b16 %v2894
    %v2912 = vunpack.c.h.b16 %v2894
    %v2913 = vunpack.c.l.b16 %v2895
    %v2914 = vunpack.c.h.b16 %v2895
    %v2915 = vunpack.c.l.b16 %v2896
    %v2916 = vunpack.c.h.b16 %v2896
    %v2917 = vunpack.c.l.b16 %v2897
    %v2918 = vunpack.c.h.b16 %v2897
    %v2919 = vunpack.c.l.b16 %v2898
    %v2920 = vunpack.c.h.b16 %v2898
    %v2921 = vunpack.c.l.b16 %v2899
    %v2922 = vunpack.c.h.b16 %v2899
    %v2923 = vunpack.c.l.b16 %v2900
    %v2924 = vunpack.c.h.b16 %v2900
    %v2925 = vpack.c.b16 %v2911, %v2909
    %v2926 = vpack.c.b16 %v2912, %v2910
    %v2927 = vpack.c.b16 %v2915, %v2913
    %v2928 = vpack.c.b16 %v2916, %v2914
    %v2929 = vpack.c.b16 %v2919, %v2917
    %v2930 = vpack.c.b16 %v2920, %v2918
    %v2931 = vpack.c.b16 %v2923, %v2921
    %v2932 = vpack.c.b16 %v2924, %v2922
    %v2942 = vsel %vm214, %v2892, 0
    %2944 = vmatprep.subr.bf16.mxu0 0
    %2945 = vmatpush1.bf16.msra.mxu0 0
    %2946 = vmatprep.subr.bf16.mxu0 0
    %2947 = vmatpush1.bf16.msra.mxu0 0
    %2948 = vmatprep.subr.bf16.mxu0 0
    %2949 = vmatpush1.bf16.msra.mxu0 0
    %2950 = vmatprep.subr.bf16.mxu0 0
    %2951 = vmatpush1.bf16.msra.mxu0 0
    %2952 = vmatprep.subr.bf16.mxu0 %v2932
    %2953 = vmatpush1.bf16.msra.mxu0 %v2931
    %2954 = vmatprep.subr.bf16.mxu0 %v2930
    %2955 = vmatpush1.bf16.msra.mxu0 %v2929
    %2956 = vmatprep.subr.bf16.mxu0 %v2928
    %2957 = vmatpush1.bf16.msra.mxu0 %v2927
    %2958 = vmatprep.subr.bf16.mxu0 %v2926
    %2959 = vmatpush1.bf16.msra.mxu0 %v2925
    %2960 = vmatprep.subr.bf16.mxu0 0
    %2961 = vmatpush2.bf16.msra.mxu0 0
    %2962 = vmatprep.subr.bf16.mxu0 0
    %2963 = vmatpush2.bf16.msra.mxu0 0
    %2964 = vmatprep.subr.bf16.mxu0 0
    %2965 = vmatpush2.bf16.msra.mxu0 0
    %2966 = vmatprep.subr.bf16.mxu0 0
    %2967 = vmatpush2.bf16.msra.mxu0 0
    %2968 = vmatprep.subr.bf16.mxu0 0
    %2969 = vmatpush2.bf16.msra.mxu0 0
    %2970 = vmatprep.subr.bf16.mxu0 0
    %2971 = vmatpush2.bf16.msra.mxu0 0
    %2972 = vmatprep.subr.bf16.mxu0 0
    %2973 = vmatpush2.bf16.msra.mxu0 0
    %2974 = vmatprep.subr.bf16.mxu0 0
    %2975 = vmatpush2.bf16.msra.mxu0 0
    %2976 = vmatprep.mubr.bf16.mxu0 0
    %2977 = vmatmul.mubr.bf16.gmra.mxu0 %v2942
    %v2978 = vpop.f32.mrf.mxu0
    %v2979 = vadd.f32 0.0, %v2978
    %v2980 = vpop.f32.mrf.mxu0
    %v2981 = vadd.f32 0.0, %v2980
    %v2982 = vpop.f32.mrf.mxu0
    %v2983 = vpop.f32.mrf.mxu0
    %2984 = vdwg.mxu0
    %v2985 = vadd.f32 %v2889, %v2979
    %v2986 = vadd.f32 %v2890, %v2981
    %v2987 = vld [vmem:[#allocation7] ss:$4 sm:$0x3]
    %v2989 = vlaneseq
    %v2990 = vshrl.u32 %v2989, 7
    %v2991 = vsub.s32 0, %v2990
    %v2992 = vrot.slane %v2987, %v2991
    %v2993 = vlaneseq
    %v2994 = vshrl.u32 %v2993, 7
    %v2995 = vsub.s32 1, %v2994
    %v2996 = vrot.slane %v2987, %v2995
    %v2999 = vadd.f32 %v2985, %v2992
    %v3000 = vadd.f32 %v2986, %v2996
    %v3001 = vmax.f32 %v2999, 0.0
    %v3002 = vmax.f32 %v3000, 0.0
    %v3003 = vld [vmem:[%s553] ss:$4 sm:$0x3]
    %v3005 = vlaneseq
    %v3006 = vshrl.u32 %v3005, 7
    %v3007 = vsub.s32 0, %v3006
    %v3008 = vrot.slane %v3003, %v3007
    %v3009 = vlaneseq
    %v3010 = vshrl.u32 %v3009, 7
    %v3011 = vsub.s32 1, %v3010
    %v3012 = vrot.slane %v3003, %v3011
    %v3015 = vmul.f32 %v3001, %v3008
    %v3016 = vmul.f32 %v3002, %v3012
    %v3017 = vld [vmem:[%s568] ss:$4 sm:$0x3]
    %v3019 = vlaneseq
    %v3020 = vshrl.u32 %v3019, 7
    %v3021 = vsub.s32 0, %v3020
    %v3022 = vrot.slane %v3017, %v3021
    %v3023 = vlaneseq
    %v3024 = vshrl.u32 %v3023, 7
    %v3025 = vsub.s32 1, %v3024
    %v3026 = vrot.slane %v3017, %v3025
    %v3029 = vadd.f32 %v3015, %v3022
    %v3030 = vadd.f32 %v3016, %v3026
    %v3033 = vrot.slane %v3029, 2
    %v3034 = vrot.slane %v3030, 2
    %3037 = vst [vmem:[#allocation2] sm:$0xc0] %v3033
    %vm3038 = vcmask 261126
    %3039 = vst.msk [vmem:[#allocation2 + $0x8] sm:$0xc0] %vm3038, %v3034
    %v3040 = vld [vmem:[%s0 + $0x18] sm:$0x3]
    %v3041 = vpack.c.bf16 %v3040, %v3040
    %v3042 = vld [vmem:[#allocation4] sm:$0xff]
    %v3043 = vld [vmem:[#allocation4 + $0x8] sm:$0xff]
    %v3044 = vld [vmem:[#allocation4 + $0x10] sm:$0xff]
    %v3045 = vld [vmem:[#allocation4 + $0x18] sm:$0xff]
    %v3046 = vld [vmem:[#allocation4 + $0x20] sm:$0xff]
    %v3047 = vld [vmem:[#allocation4 + $0x28] sm:$0xff]
    %v3048 = vld [vmem:[#allocation4 + $0x30] sm:$0xff]
    %v3049 = vld [vmem:[#allocation4 + $0x38] sm:$0xff]
    %v3050 = vld [vmem:[%s0 + $0x1a] sm:$0x3]
    %v3051 = vpack.c.bf16 %v3050, %v3050
    %v3052 = vld [vmem:[%s598] sm:$0xff]
    %v3053 = vld [vmem:[%s598 + $0x8] sm:$0xff]
    %v3054 = vld [vmem:[%s598 + $0x10] sm:$0xff]
    %v3055 = vld [vmem:[%s598 + $0x18] sm:$0xff]
    %v3056 = vld [vmem:[%s598 + $0x20] sm:$0xff]
    %v3057 = vld [vmem:[%s598 + $0x28] sm:$0xff]
    %v3058 = vld [vmem:[%s598 + $0x30] sm:$0xff]
    %v3059 = vld [vmem:[%s598 + $0x38] sm:$0xff]
    %v3068 = vunpack.c.l.b16 %v3052
    %v3069 = vunpack.c.h.b16 %v3052
    %v3070 = vunpack.c.l.b16 %v3053
    %v3071 = vunpack.c.h.b16 %v3053
    %v3072 = vunpack.c.l.b16 %v3054
    %v3073 = vunpack.c.h.b16 %v3054
    %v3074 = vunpack.c.l.b16 %v3055
    %v3075 = vunpack.c.h.b16 %v3055
    %v3076 = vunpack.c.l.b16 %v3056
    %v3077 = vunpack.c.h.b16 %v3056
    %v3078 = vunpack.c.l.b16 %v3057
    %v3079 = vunpack.c.h.b16 %v3057
    %v3080 = vunpack.c.l.b16 %v3058
    %v3081 = vunpack.c.h.b16 %v3058
    %v3082 = vunpack.c.l.b16 %v3059
    %v3083 = vunpack.c.h.b16 %v3059
    %v3084 = vpack.c.b16 %v3070, %v3068
    %v3085 = vpack.c.b16 %v3071, %v3069
    %v3086 = vpack.c.b16 %v3074, %v3072
    %v3087 = vpack.c.b16 %v3075, %v3073
    %v3088 = vpack.c.b16 %v3078, %v3076
    %v3089 = vpack.c.b16 %v3079, %v3077
    %v3090 = vpack.c.b16 %v3082, %v3080
    %v3091 = vpack.c.b16 %v3083, %v3081
    %v3101 = vsel %vm214, %v3051, 0
    %3103 = vmatprep.subr.bf16.mxu0 0
    %3104 = vmatpush1.bf16.msra.mxu0 0
    %3105 = vmatprep.subr.bf16.mxu0 0
    %3106 = vmatpush1.bf16.msra.mxu0 0
    %3107 = vmatprep.subr.bf16.mxu0 0
    %3108 = vmatpush1.bf16.msra.mxu0 0
    %3109 = vmatprep.subr.bf16.mxu0 0
    %3110 = vmatpush1.bf16.msra.mxu0 0
    %3111 = vmatprep.subr.bf16.mxu0 %v3091
    %3112 = vmatpush1.bf16.msra.mxu0 %v3090
    %3113 = vmatprep.subr.bf16.mxu0 %v3089
    %3114 = vmatpush1.bf16.msra.mxu0 %v3088
    %3115 = vmatprep.subr.bf16.mxu0 %v3087
    %3116 = vmatpush1.bf16.msra.mxu0 %v3086
    %3117 = vmatprep.subr.bf16.mxu0 %v3085
    %3118 = vmatpush1.bf16.msra.mxu0 %v3084
    %3119 = vmatprep.subr.bf16.mxu0 0
    %3120 = vmatpush2.bf16.msra.mxu0 0
    %3121 = vmatprep.subr.bf16.mxu0 0
    %3122 = vmatpush2.bf16.msra.mxu0 0
    %3123 = vmatprep.subr.bf16.mxu0 0
    %3124 = vmatpush2.bf16.msra.mxu0 0
    %3125 = vmatprep.subr.bf16.mxu0 0
    %3126 = vmatpush2.bf16.msra.mxu0 0
    %3127 = vmatprep.subr.bf16.mxu0 0
    %3128 = vmatpush2.bf16.msra.mxu0 0
    %3129 = vmatprep.subr.bf16.mxu0 0
    %3130 = vmatpush2.bf16.msra.mxu0 0
    %3131 = vmatprep.subr.bf16.mxu0 0
    %3132 = vmatpush2.bf16.msra.mxu0 0
    %3133 = vmatprep.subr.bf16.mxu0 0
    %3134 = vmatpush2.bf16.msra.mxu0 0
    %3135 = vmatprep.mubr.bf16.mxu0 0
    %3136 = vmatmul.mubr.bf16.gmra.mxu0 %v3101
    %v3137 = vpop.f32.mrf.mxu0
    %v3138 = vadd.f32 0.0, %v3137
    %v3139 = vpop.f32.mrf.mxu0
    %v3140 = vadd.f32 0.0, %v3139
    %v3141 = vpop.f32.mrf.mxu0
    %v3142 = vpop.f32.mrf.mxu0
    %3143 = vdwg.mxu0
    %v3152 = vunpack.c.l.b16 %v3042
    %v3153 = vunpack.c.h.b16 %v3042
    %v3154 = vunpack.c.l.b16 %v3043
    %v3155 = vunpack.c.h.b16 %v3043
    %v3156 = vunpack.c.l.b16 %v3044
    %v3157 = vunpack.c.h.b16 %v3044
    %v3158 = vunpack.c.l.b16 %v3045
    %v3159 = vunpack.c.h.b16 %v3045
    %v3160 = vunpack.c.l.b16 %v3046
    %v3161 = vunpack.c.h.b16 %v3046
    %v3162 = vunpack.c.l.b16 %v3047
    %v3163 = vunpack.c.h.b16 %v3047
    %v3164 = vunpack.c.l.b16 %v3048
    %v3165 = vunpack.c.h.b16 %v3048
    %v3166 = vunpack.c.l.b16 %v3049
    %v3167 = vunpack.c.h.b16 %v3049
    %v3168 = vpack.c.b16 %v3154, %v3152
    %v3169 = vpack.c.b16 %v3155, %v3153
    %v3170 = vpack.c.b16 %v3158, %v3156
    %v3171 = vpack.c.b16 %v3159, %v3157
    %v3172 = vpack.c.b16 %v3162, %v3160
    %v3173 = vpack.c.b16 %v3163, %v3161
    %v3174 = vpack.c.b16 %v3166, %v3164
    %v3175 = vpack.c.b16 %v3167, %v3165
    %v3185 = vsel %vm214, %v3041, 0
    %3187 = vmatprep.subr.bf16.mxu0 0
    %3188 = vmatpush1.bf16.msra.mxu0 0
    %3189 = vmatprep.subr.bf16.mxu0 0
    %3190 = vmatpush1.bf16.msra.mxu0 0
    %3191 = vmatprep.subr.bf16.mxu0 0
    %3192 = vmatpush1.bf16.msra.mxu0 0
    %3193 = vmatprep.subr.bf16.mxu0 0
    %3194 = vmatpush1.bf16.msra.mxu0 0
    %3195 = vmatprep.subr.bf16.mxu0 %v3175
    %3196 = vmatpush1.bf16.msra.mxu0 %v3174
    %3197 = vmatprep.subr.bf16.mxu0 %v3173
    %3198 = vmatpush1.bf16.msra.mxu0 %v3172
    %3199 = vmatprep.subr.bf16.mxu0 %v3171
    %3200 = vmatpush1.bf16.msra.mxu0 %v3170
    %3201 = vmatprep.subr.bf16.mxu0 %v3169
    %3202 = vmatpush1.bf16.msra.mxu0 %v3168
    %3203 = vmatprep.subr.bf16.mxu0 0
    %3204 = vmatpush2.bf16.msra.mxu0 0
    %3205 = vmatprep.subr.bf16.mxu0 0
    %3206 = vmatpush2.bf16.msra.mxu0 0
    %3207 = vmatprep.subr.bf16.mxu0 0
    %3208 = vmatpush2.bf16.msra.mxu0 0
    %3209 = vmatprep.subr.bf16.mxu0 0
    %3210 = vmatpush2.bf16.msra.mxu0 0
    %3211 = vmatprep.subr.bf16.mxu0 0
    %3212 = vmatpush2.bf16.msra.mxu0 0
    %3213 = vmatprep.subr.bf16.mxu0 0
    %3214 = vmatpush2.bf16.msra.mxu0 0
    %3215 = vmatprep.subr.bf16.mxu0 0
    %3216 = vmatpush2.bf16.msra.mxu0 0
    %3217 = vmatprep.subr.bf16.mxu0 0
    %3218 = vmatpush2.bf16.msra.mxu0 0
    %3219 = vmatprep.mubr.bf16.mxu0 0
    %3220 = vmatmul.mubr.bf16.gmra.mxu0 %v3185
    %v3221 = vpop.f32.mrf.mxu0
    %v3222 = vadd.f32 %v3138, %v3221
    %v3223 = vpop.f32.mrf.mxu0
    %v3224 = vadd.f32 %v3140, %v3223
    %v3225 = vpop.f32.mrf.mxu0
    %v3226 = vpop.f32.mrf.mxu0
    %3227 = vdwg.mxu0
    %v3228 = vld [vmem:[%s0 + $0x1c] sm:$0x3]
    %v3229 = vpack.c.bf16 %v3228, %v3228
    %v3230 = vld [vmem:[%s777] sm:$0xff]
    %v3231 = vld [vmem:[%s777 + $0x8] sm:$0xff]
    %v3232 = vld [vmem:[%s777 + $0x10] sm:$0xff]
    %v3233 = vld [vmem:[%s777 + $0x18] sm:$0xff]
    %v3234 = vld [vmem:[%s777 + $0x20] sm:$0xff]
    %v3235 = vld [vmem:[%s777 + $0x28] sm:$0xff]
    %v3236 = vld [vmem:[%s777 + $0x30] sm:$0xff]
    %v3237 = vld [vmem:[%s777 + $0x38] sm:$0xff]
    %v3246 = vunpack.c.l.b16 %v3230
    %v3247 = vunpack.c.h.b16 %v3230
    %v3248 = vunpack.c.l.b16 %v3231
    %v3249 = vunpack.c.h.b16 %v3231
    %v3250 = vunpack.c.l.b16 %v3232
    %v3251 = vunpack.c.h.b16 %v3232
    %v3252 = vunpack.c.l.b16 %v3233
    %v3253 = vunpack.c.h.b16 %v3233
    %v3254 = vunpack.c.l.b16 %v3234
    %v3255 = vunpack.c.h.b16 %v3234
    %v3256 = vunpack.c.l.b16 %v3235
    %v3257 = vunpack.c.h.b16 %v3235
    %v3258 = vunpack.c.l.b16 %v3236
    %v3259 = vunpack.c.h.b16 %v3236
    %v3260 = vunpack.c.l.b16 %v3237
    %v3261 = vunpack.c.h.b16 %v3237
    %v3262 = vpack.c.b16 %v3248, %v3246
    %v3263 = vpack.c.b16 %v3249, %v3247
    %v3264 = vpack.c.b16 %v3252, %v3250
    %v3265 = vpack.c.b16 %v3253, %v3251
    %v3266 = vpack.c.b16 %v3256, %v3254
    %v3267 = vpack.c.b16 %v3257, %v3255
    %v3268 = vpack.c.b16 %v3260, %v3258
    %v3269 = vpack.c.b16 %v3261, %v3259
    %v3279 = vsel %vm214, %v3229, 0
    %3281 = vmatprep.subr.bf16.mxu0 0
    %3282 = vmatpush1.bf16.msra.mxu0 0
    %3283 = vmatprep.subr.bf16.mxu0 0
    %3284 = vmatpush1.bf16.msra.mxu0 0
    %3285 = vmatprep.subr.bf16.mxu0 0
    %3286 = vmatpush1.bf16.msra.mxu0 0
    %3287 = vmatprep.subr.bf16.mxu0 0
    %3288 = vmatpush1.bf16.msra.mxu0 0
    %3289 = vmatprep.subr.bf16.mxu0 %v3269
    %3290 = vmatpush1.bf16.msra.mxu0 %v3268
    %3291 = vmatprep.subr.bf16.mxu0 %v3267
    %3292 = vmatpush1.bf16.msra.mxu0 %v3266
    %3293 = vmatprep.subr.bf16.mxu0 %v3265
    %3294 = vmatpush1.bf16.msra.mxu0 %v3264
    %3295 = vmatprep.subr.bf16.mxu0 %v3263
    %3296 = vmatpush1.bf16.msra.mxu0 %v3262
    %3297 = vmatprep.subr.bf16.mxu0 0
    %3298 = vmatpush2.bf16.msra.mxu0 0
    %3299 = vmatprep.subr.bf16.mxu0 0
    %3300 = vmatpush2.bf16.msra.mxu0 0
    %3301 = vmatprep.subr.bf16.mxu0 0
    %3302 = vmatpush2.bf16.msra.mxu0 0
    %3303 = vmatprep.subr.bf16.mxu0 0
    %3304 = vmatpush2.bf16.msra.mxu0 0
    %3305 = vmatprep.subr.bf16.mxu0 0
    %3306 = vmatpush2.bf16.msra.mxu0 0
    %3307 = vmatprep.subr.bf16.mxu0 0
    %3308 = vmatpush2.bf16.msra.mxu0 0
    %3309 = vmatprep.subr.bf16.mxu0 0
    %3310 = vmatpush2.bf16.msra.mxu0 0
    %3311 = vmatprep.subr.bf16.mxu0 0
    %3312 = vmatpush2.bf16.msra.mxu0 0
    %3313 = vmatprep.mubr.bf16.mxu0 0
    %3314 = vmatmul.mubr.bf16.gmra.mxu0 %v3279
    %v3315 = vpop.f32.mrf.mxu0
    %v3316 = vadd.f32 0.0, %v3315
    %v3317 = vpop.f32.mrf.mxu0
    %v3318 = vadd.f32 0.0, %v3317
    %v3319 = vpop.f32.mrf.mxu0
    %v3320 = vpop.f32.mrf.mxu0
    %3321 = vdwg.mxu0
    %v3322 = vadd.f32 %v3222, %v3316
    %v3323 = vadd.f32 %v3224, %v3318
    %v3324 = vld [vmem:[%s0 + $0x1e] sm:$0x3]
    %v3325 = vpack.c.bf16 %v3324, %v3324
    %v3326 = vld [vmem:[%s874] sm:$0xff]
    %v3327 = vld [vmem:[%s874 + $0x8] sm:$0xff]
    %v3328 = vld [vmem:[%s874 + $0x10] sm:$0xff]
    %v3329 = vld [vmem:[%s874 + $0x18] sm:$0xff]
    %v3330 = vld [vmem:[%s874 + $0x20] sm:$0xff]
    %v3331 = vld [vmem:[%s874 + $0x28] sm:$0xff]
    %v3332 = vld [vmem:[%s874 + $0x30] sm:$0xff]
    %v3333 = vld [vmem:[%s874 + $0x38] sm:$0xff]
    %v3342 = vunpack.c.l.b16 %v3326
    %v3343 = vunpack.c.h.b16 %v3326
    %v3344 = vunpack.c.l.b16 %v3327
    %v3345 = vunpack.c.h.b16 %v3327
    %v3346 = vunpack.c.l.b16 %v3328
    %v3347 = vunpack.c.h.b16 %v3328
    %v3348 = vunpack.c.l.b16 %v3329
    %v3349 = vunpack.c.h.b16 %v3329
    %v3350 = vunpack.c.l.b16 %v3330
    %v3351 = vunpack.c.h.b16 %v3330
    %v3352 = vunpack.c.l.b16 %v3331
    %v3353 = vunpack.c.h.b16 %v3331
    %v3354 = vunpack.c.l.b16 %v3332
    %v3355 = vunpack.c.h.b16 %v3332
    %v3356 = vunpack.c.l.b16 %v3333
    %v3357 = vunpack.c.h.b16 %v3333
    %v3358 = vpack.c.b16 %v3344, %v3342
    %v3359 = vpack.c.b16 %v3345, %v3343
    %v3360 = vpack.c.b16 %v3348, %v3346
    %v3361 = vpack.c.b16 %v3349, %v3347
    %v3362 = vpack.c.b16 %v3352, %v3350
    %v3363 = vpack.c.b16 %v3353, %v3351
    %v3364 = vpack.c.b16 %v3356, %v3354
    %v3365 = vpack.c.b16 %v3357, %v3355
    %v3375 = vsel %vm214, %v3325, 0
    %3377 = vmatprep.subr.bf16.mxu0 0
    %3378 = vmatpush1.bf16.msra.mxu0 0
    %3379 = vmatprep.subr.bf16.mxu0 0
    %3380 = vmatpush1.bf16.msra.mxu0 0
    %3381 = vmatprep.subr.bf16.mxu0 0
    %3382 = vmatpush1.bf16.msra.mxu0 0
    %3383 = vmatprep.subr.bf16.mxu0 0
    %3384 = vmatpush1.bf16.msra.mxu0 0
    %3385 = vmatprep.subr.bf16.mxu0 %v3365
    %3386 = vmatpush1.bf16.msra.mxu0 %v3364
    %3387 = vmatprep.subr.bf16.mxu0 %v3363
    %3388 = vmatpush1.bf16.msra.mxu0 %v3362
    %3389 = vmatprep.subr.bf16.mxu0 %v3361
    %3390 = vmatpush1.bf16.msra.mxu0 %v3360
    %3391 = vmatprep.subr.bf16.mxu0 %v3359
    %3392 = vmatpush1.bf16.msra.mxu0 %v3358
    %3393 = vmatprep.subr.bf16.mxu0 0
    %3394 = vmatpush2.bf16.msra.mxu0 0
    %3395 = vmatprep.subr.bf16.mxu0 0
    %3396 = vmatpush2.bf16.msra.mxu0 0
    %3397 = vmatprep.subr.bf16.mxu0 0
    %3398 = vmatpush2.bf16.msra.mxu0 0
    %3399 = vmatprep.subr.bf16.mxu0 0
    %3400 = vmatpush2.bf16.msra.mxu0 0
    %3401 = vmatprep.subr.bf16.mxu0 0
    %3402 = vmatpush2.bf16.msra.mxu0 0
    %3403 = vmatprep.subr.bf16.mxu0 0
    %3404 = vmatpush2.bf16.msra.mxu0 0
    %3405 = vmatprep.subr.bf16.mxu0 0
    %3406 = vmatpush2.bf16.msra.mxu0 0
    %3407 = vmatprep.subr.bf16.mxu0 0
    %3408 = vmatpush2.bf16.msra.mxu0 0
    %3409 = vmatprep.mubr.bf16.mxu0 0
    %3410 = vmatmul.mubr.bf16.gmra.mxu0 %v3375
    %v3411 = vpop.f32.mrf.mxu0
    %v3412 = vadd.f32 0.0, %v3411
    %v3413 = vpop.f32.mrf.mxu0
    %v3414 = vadd.f32 0.0, %v3413
    %v3415 = vpop.f32.mrf.mxu0
    %v3416 = vpop.f32.mrf.mxu0
    %3417 = vdwg.mxu0
    %v3418 = vadd.f32 %v3322, %v3412
    %v3419 = vadd.f32 %v3323, %v3414
    %v3420 = vld [vmem:[#allocation7] ss:$4 sm:$0x3]
    %v3422 = vlaneseq
    %v3423 = vshrl.u32 %v3422, 7
    %v3424 = vsub.s32 0, %v3423
    %v3425 = vrot.slane %v3420, %v3424
    %v3426 = vlaneseq
    %v3427 = vshrl.u32 %v3426, 7
    %v3428 = vsub.s32 1, %v3427
    %v3429 = vrot.slane %v3420, %v3428
    %v3432 = vadd.f32 %v3418, %v3425
    %v3433 = vadd.f32 %v3419, %v3429
    %v3434 = vmax.f32 %v3432, 0.0
    %v3435 = vmax.f32 %v3433, 0.0
    %v3436 = vld [vmem:[%s553] ss:$4 sm:$0x3]
    %v3438 = vlaneseq
    %v3439 = vshrl.u32 %v3438, 7
    %v3440 = vsub.s32 0, %v3439
    %v3441 = vrot.slane %v3436, %v3440
    %v3442 = vlaneseq
    %v3443 = vshrl.u32 %v3442, 7
    %v3444 = vsub.s32 1, %v3443
    %v3445 = vrot.slane %v3436, %v3444
    %v3448 = vmul.f32 %v3434, %v3441
    %v3449 = vmul.f32 %v3435, %v3445
    %v3450 = vld [vmem:[%s568] ss:$4 sm:$0x3]
    %v3452 = vlaneseq
    %v3453 = vshrl.u32 %v3452, 7
    %v3454 = vsub.s32 0, %v3453
    %v3455 = vrot.slane %v3450, %v3454
    %v3456 = vlaneseq
    %v3457 = vshrl.u32 %v3456, 7
    %v3458 = vsub.s32 1, %v3457
    %v3459 = vrot.slane %v3450, %v3458
    %v3462 = vadd.f32 %v3448, %v3455
    %v3463 = vadd.f32 %v3449, %v3459
    %3464 = vst [vmem:[#allocation2 + $0x10] sm:$0x3] %v3462
    %3465 = vst.msk [vmem:[#allocation2 + $0x18] sm:$0x3] %vm584, %v3463
    %v3466 = vld [vmem:[#allocation2] sm:$0x3]
    %v3467 = vld [vmem:[#allocation2 + $0x8] sm:$0x3]
    %v3468 = vpack.c.bf16 %v3466, %v3466
    %v3469 = vpack.c.bf16 %v3467, %v3467
    %s3470 = scalar_lea.vmem [#allocation9], 320
    %v3471 = vld [vmem:[%s3470] sm:$0xff]
    %v3472 = vld [vmem:[%s3470 + $0x8] sm:$0xff]
    %v3473 = vld [vmem:[%s3470 + $0x10] sm:$0xff]
    %v3474 = vld [vmem:[%s3470 + $0x18] sm:$0xff]
    %v3475 = vld [vmem:[%s3470 + $0x20] sm:$0xff]
    %v3476 = vld [vmem:[%s3470 + $0x28] sm:$0xff]
    %v3477 = vld [vmem:[%s3470 + $0x30] sm:$0xff]
    %v3478 = vld [vmem:[%s3470 + $0x38] sm:$0xff]
    %v3479 = vld [vmem:[%s3470 + $0x40] sm:$0xff]
    %v3480 = vld [vmem:[%s3470 + $0x48] sm:$0xff]
    %v3481 = vld [vmem:[%s3470 + $0x50] sm:$0xff]
    %v3482 = vld [vmem:[%s3470 + $0x58] sm:$0xff]
    %v3483 = vld [vmem:[%s3470 + $0x60] sm:$0xff]
    %v3484 = vld [vmem:[%s3470 + $0x68] sm:$0xff]
    %v3485 = vld [vmem:[%s3470 + $0x70] sm:$0xff]
    %v3486 = vld [vmem:[%s3470 + $0x78] sm:$0xff]
    %v3487 = vld [vmem:[%s3470 + $0x80] sm:$0xff]
    %v3488 = vld [vmem:[%s3470 + $0x88] sm:$0xff]
    %v3489 = vld [vmem:[%s3470 + $0x90] sm:$0xff]
    %v3490 = vld [vmem:[%s3470 + $0x98] sm:$0xff]
    %v3491 = vld [vmem:[#allocation2] sm:$0xc]
    %v3492 = vld [vmem:[#allocation2 + $0x8] sm:$0xc]
    %v3493 = vpack.c.bf16 %v3491, %v3491
    %v3494 = vpack.c.bf16 %v3492, %v3492
    %s3495 = scalar_lea.vmem [#allocation9], 480
    %v3496 = vld [vmem:[%s3495] sm:$0xff]
    %v3497 = vld [vmem:[%s3495 + $0x8] sm:$0xff]
    %v3498 = vld [vmem:[%s3495 + $0x10] sm:$0xff]
    %v3499 = vld [vmem:[%s3495 + $0x18] sm:$0xff]
    %v3500 = vld [vmem:[%s3495 + $0x20] sm:$0xff]
    %v3501 = vld [vmem:[%s3495 + $0x28] sm:$0xff]
    %v3502 = vld [vmem:[%s3495 + $0x30] sm:$0xff]
    %v3503 = vld [vmem:[%s3495 + $0x38] sm:$0xff]
    %v3504 = vld [vmem:[%s3495 + $0x40] sm:$0xff]
    %v3505 = vld [vmem:[%s3495 + $0x48] sm:$0xff]
    %v3506 = vld [vmem:[%s3495 + $0x50] sm:$0xff]
    %v3507 = vld [vmem:[%s3495 + $0x58] sm:$0xff]
    %v3508 = vld [vmem:[%s3495 + $0x60] sm:$0xff]
    %v3509 = vld [vmem:[%s3495 + $0x68] sm:$0xff]
    %v3510 = vld [vmem:[%s3495 + $0x70] sm:$0xff]
    %v3511 = vld [vmem:[%s3495 + $0x78] sm:$0xff]
    %v3512 = vld [vmem:[%s3495 + $0x80] sm:$0xff]
    %v3513 = vld [vmem:[%s3495 + $0x88] sm:$0xff]
    %v3514 = vld [vmem:[%s3495 + $0x90] sm:$0xff]
    %v3515 = vld [vmem:[%s3495 + $0x98] sm:$0xff]
    %v3518 = vrot.slane %v3493, 1
    %v3519 = vrot.slane %v3494, 1
    %v3541 = vunpack.c.l.b16 %v3496
    %v3542 = vunpack.c.h.b16 %v3496
    %v3543 = vunpack.c.l.b16 %v3497
    %v3544 = vunpack.c.h.b16 %v3497
    %v3545 = vunpack.c.l.b16 %v3498
    %v3546 = vunpack.c.h.b16 %v3498
    %v3547 = vunpack.c.l.b16 %v3499
    %v3548 = vunpack.c.h.b16 %v3499
    %v3549 = vunpack.c.l.b16 %v3500
    %v3550 = vunpack.c.h.b16 %v3500
    %v3551 = vunpack.c.l.b16 %v3501
    %v3552 = vunpack.c.h.b16 %v3501
    %v3553 = vunpack.c.l.b16 %v3502
    %v3554 = vunpack.c.h.b16 %v3502
    %v3555 = vunpack.c.l.b16 %v3503
    %v3556 = vunpack.c.h.b16 %v3503
    %v3557 = vunpack.c.l.b16 %v3504
    %v3558 = vunpack.c.h.b16 %v3504
    %v3559 = vunpack.c.l.b16 %v3505
    %v3560 = vunpack.c.h.b16 %v3505
    %v3561 = vunpack.c.l.b16 %v3506
    %v3562 = vunpack.c.h.b16 %v3506
    %v3563 = vunpack.c.l.b16 %v3507
    %v3564 = vunpack.c.h.b16 %v3507
    %v3565 = vunpack.c.l.b16 %v3508
    %v3566 = vunpack.c.h.b16 %v3508
    %v3567 = vunpack.c.l.b16 %v3509
    %v3568 = vunpack.c.h.b16 %v3509
    %v3569 = vunpack.c.l.b16 %v3510
    %v3570 = vunpack.c.h.b16 %v3510
    %v3571 = vunpack.c.l.b16 %v3511
    %v3572 = vunpack.c.h.b16 %v3511
    %v3573 = vunpack.c.l.b16 %v3512
    %v3574 = vunpack.c.h.b16 %v3512
    %v3575 = vunpack.c.l.b16 %v3513
    %v3576 = vunpack.c.h.b16 %v3513
    %v3577 = vunpack.c.l.b16 %v3514
    %v3578 = vunpack.c.h.b16 %v3514
    %v3579 = vunpack.c.l.b16 %v3515
    %v3580 = vunpack.c.h.b16 %v3515
    %v3581 = vpack.c.b16 %v3543, %v3541
    %v3582 = vpack.c.b16 %v3544, %v3542
    %v3583 = vpack.c.b16 %v3547, %v3545
    %v3584 = vpack.c.b16 %v3548, %v3546
    %v3585 = vpack.c.b16 %v3551, %v3549
    %v3586 = vpack.c.b16 %v3552, %v3550
    %v3587 = vpack.c.b16 %v3555, %v3553
    %v3588 = vpack.c.b16 %v3556, %v3554
    %v3589 = vpack.c.b16 %v3559, %v3557
    %v3590 = vpack.c.b16 %v3560, %v3558
    %v3591 = vpack.c.b16 %v3563, %v3561
    %v3592 = vpack.c.b16 %v3564, %v3562
    %v3593 = vpack.c.b16 %v3567, %v3565
    %v3594 = vpack.c.b16 %v3568, %v3566
    %v3595 = vpack.c.b16 %v3571, %v3569
    %v3596 = vpack.c.b16 %v3572, %v3570
    %v3597 = vpack.c.b16 %v3575, %v3573
    %v3598 = vpack.c.b16 %v3576, %v3574
    %v3599 = vpack.c.b16 %v3579, %v3577
    %v3600 = vpack.c.b16 %v3580, %v3578
    %vm3621 = vcmask 261120
    %v3623 = vsel %vm3621, %v3519, 0
    %3625 = vmatprep.subr.bf16.mxu0 %v3596
    %3626 = vmatpush1.bf16.msra.mxu0 %v3595
    %3627 = vmatprep.subr.bf16.mxu0 %v3594
    %3628 = vmatpush1.bf16.msra.mxu0 %v3593
    %3629 = vmatprep.subr.bf16.mxu0 %v3592
    %3630 = vmatpush1.bf16.msra.mxu0 %v3591
    %3631 = vmatprep.subr.bf16.mxu0 %v3590
    %3632 = vmatpush1.bf16.msra.mxu0 %v3589
    %3633 = vmatprep.subr.bf16.mxu0 %v3588
    %3634 = vmatpush1.bf16.msra.mxu0 %v3587
    %3635 = vmatprep.subr.bf16.mxu0 %v3586
    %3636 = vmatpush1.bf16.msra.mxu0 %v3585
    %3637 = vmatprep.subr.bf16.mxu0 %v3584
    %3638 = vmatpush1.bf16.msra.mxu0 %v3583
    %3639 = vmatprep.subr.bf16.mxu0 %v3582
    %3640 = vmatpush1.bf16.msra.mxu0 %v3581
    %3641 = vmatprep.subr.bf16.mxu0 0
    %3642 = vmatpush2.bf16.msra.mxu0 0
    %3643 = vmatprep.subr.bf16.mxu0 0
    %3644 = vmatpush2.bf16.msra.mxu0 0
    %3645 = vmatprep.subr.bf16.mxu0 0
    %3646 = vmatpush2.bf16.msra.mxu0 0
    %3647 = vmatprep.subr.bf16.mxu0 0
    %3648 = vmatpush2.bf16.msra.mxu0 0
    %3649 = vmatprep.subr.bf16.mxu0 0
    %3650 = vmatpush2.bf16.msra.mxu0 0
    %3651 = vmatprep.subr.bf16.mxu0 0
    %3652 = vmatpush2.bf16.msra.mxu0 0
    %3653 = vmatprep.subr.bf16.mxu0 %v3600
    %3654 = vmatpush2.bf16.msra.mxu0 %v3599
    %3655 = vmatprep.subr.bf16.mxu0 %v3598
    %3656 = vmatpush2.bf16.msra.mxu0 %v3597
    %3657 = vmatprep.mubr.bf16.mxu0 %v3623
    %3658 = vmatmul.mubr.bf16.gmra.mxu0 %v3518
    %v3659 = vpop.f32.mrf.mxu0
    %v3660 = vadd.f32 0.0, %v3659
    %v3661 = vpop.f32.mrf.mxu0
    %v3662 = vadd.f32 0.0, %v3661
    %v3663 = vpop.f32.mrf.mxu0
    %v3664 = vpop.f32.mrf.mxu0
    %3665 = vdwg.mxu0
    %v3686 = vunpack.c.l.b16 %v3471
    %v3687 = vunpack.c.h.b16 %v3471
    %v3688 = vunpack.c.l.b16 %v3472
    %v3689 = vunpack.c.h.b16 %v3472
    %v3690 = vunpack.c.l.b16 %v3473
    %v3691 = vunpack.c.h.b16 %v3473
    %v3692 = vunpack.c.l.b16 %v3474
    %v3693 = vunpack.c.h.b16 %v3474
    %v3694 = vunpack.c.l.b16 %v3475
    %v3695 = vunpack.c.h.b16 %v3475
    %v3696 = vunpack.c.l.b16 %v3476
    %v3697 = vunpack.c.h.b16 %v3476
    %v3698 = vunpack.c.l.b16 %v3477
    %v3699 = vunpack.c.h.b16 %v3477
    %v3700 = vunpack.c.l.b16 %v3478
    %v3701 = vunpack.c.h.b16 %v3478
    %v3702 = vunpack.c.l.b16 %v3479
    %v3703 = vunpack.c.h.b16 %v3479
    %v3704 = vunpack.c.l.b16 %v3480
    %v3705 = vunpack.c.h.b16 %v3480
    %v3706 = vunpack.c.l.b16 %v3481
    %v3707 = vunpack.c.h.b16 %v3481
    %v3708 = vunpack.c.l.b16 %v3482
    %v3709 = vunpack.c.h.b16 %v3482
    %v3710 = vunpack.c.l.b16 %v3483
    %v3711 = vunpack.c.h.b16 %v3483
    %v3712 = vunpack.c.l.b16 %v3484
    %v3713 = vunpack.c.h.b16 %v3484
    %v3714 = vunpack.c.l.b16 %v3485
    %v3715 = vunpack.c.h.b16 %v3485
    %v3716 = vunpack.c.l.b16 %v3486
    %v3717 = vunpack.c.h.b16 %v3486
    %v3718 = vunpack.c.l.b16 %v3487
    %v3719 = vunpack.c.h.b16 %v3487
    %v3720 = vunpack.c.l.b16 %v3488
    %v3721 = vunpack.c.h.b16 %v3488
    %v3722 = vunpack.c.l.b16 %v3489
    %v3723 = vunpack.c.h.b16 %v3489
    %v3724 = vunpack.c.l.b16 %v3490
    %v3725 = vunpack.c.h.b16 %v3490
    %v3726 = vpack.c.b16 %v3688, %v3686
    %v3727 = vpack.c.b16 %v3689, %v3687
    %v3728 = vpack.c.b16 %v3692, %v3690
    %v3729 = vpack.c.b16 %v3693, %v3691
    %v3730 = vpack.c.b16 %v3696, %v3694
    %v3731 = vpack.c.b16 %v3697, %v3695
    %v3732 = vpack.c.b16 %v3700, %v3698
    %v3733 = vpack.c.b16 %v3701, %v3699
    %v3734 = vpack.c.b16 %v3704, %v3702
    %v3735 = vpack.c.b16 %v3705, %v3703
    %v3736 = vpack.c.b16 %v3708, %v3706
    %v3737 = vpack.c.b16 %v3709, %v3707
    %v3738 = vpack.c.b16 %v3712, %v3710
    %v3739 = vpack.c.b16 %v3713, %v3711
    %v3740 = vpack.c.b16 %v3716, %v3714
    %v3741 = vpack.c.b16 %v3717, %v3715
    %v3742 = vpack.c.b16 %v3720, %v3718
    %v3743 = vpack.c.b16 %v3721, %v3719
    %v3744 = vpack.c.b16 %v3724, %v3722
    %v3745 = vpack.c.b16 %v3725, %v3723
    %v3767 = vsel %vm3621, %v3469, 0
    %3769 = vmatprep.subr.bf16.mxu0 %v3741
    %3770 = vmatpush1.bf16.msra.mxu0 %v3740
    %3771 = vmatprep.subr.bf16.mxu0 %v3739
    %3772 = vmatpush1.bf16.msra.mxu0 %v3738
    %3773 = vmatprep.subr.bf16.mxu0 %v3737
    %3774 = vmatpush1.bf16.msra.mxu0 %v3736
    %3775 = vmatprep.subr.bf16.mxu0 %v3735
    %3776 = vmatpush1.bf16.msra.mxu0 %v3734
    %3777 = vmatprep.subr.bf16.mxu0 %v3733
    %3778 = vmatpush1.bf16.msra.mxu0 %v3732
    %3779 = vmatprep.subr.bf16.mxu0 %v3731
    %3780 = vmatpush1.bf16.msra.mxu0 %v3730
    %3781 = vmatprep.subr.bf16.mxu0 %v3729
    %3782 = vmatpush1.bf16.msra.mxu0 %v3728
    %3783 = vmatprep.subr.bf16.mxu0 %v3727
    %3784 = vmatpush1.bf16.msra.mxu0 %v3726
    %3785 = vmatprep.subr.bf16.mxu0 0
    %3786 = vmatpush2.bf16.msra.mxu0 0
    %3787 = vmatprep.subr.bf16.mxu0 0
    %3788 = vmatpush2.bf16.msra.mxu0 0
    %3789 = vmatprep.subr.bf16.mxu0 0
    %3790 = vmatpush2.bf16.msra.mxu0 0
    %3791 = vmatprep.subr.bf16.mxu0 0
    %3792 = vmatpush2.bf16.msra.mxu0 0
    %3793 = vmatprep.subr.bf16.mxu0 0
    %3794 = vmatpush2.bf16.msra.mxu0 0
    %3795 = vmatprep.subr.bf16.mxu0 0
    %3796 = vmatpush2.bf16.msra.mxu0 0
    %3797 = vmatprep.subr.bf16.mxu0 %v3745
    %3798 = vmatpush2.bf16.msra.mxu0 %v3744
    %3799 = vmatprep.subr.bf16.mxu0 %v3743
    %3800 = vmatpush2.bf16.msra.mxu0 %v3742
    %3801 = vmatprep.mubr.bf16.mxu0 %v3767
    %3802 = vmatmul.mubr.bf16.gmra.mxu0 %v3468
    %v3803 = vpop.f32.mrf.mxu0
    %v3804 = vadd.f32 %v3660, %v3803
    %v3805 = vpop.f32.mrf.mxu0
    %v3806 = vadd.f32 %v3662, %v3805
    %v3807 = vpop.f32.mrf.mxu0
    %v3808 = vpop.f32.mrf.mxu0
    %3809 = vdwg.mxu0
    %v3810 = vld [vmem:[#allocation10] ss:$4 sm:$0x3]
    %v3812 = vlaneseq
    %v3813 = vshrl.u32 %v3812, 7
    %v3814 = vsub.s32 0, %v3813
    %v3815 = vrot.slane %v3810, %v3814
    %v3816 = vlaneseq
    %v3817 = vshrl.u32 %v3816, 7
    %v3818 = vsub.s32 1, %v3817
    %v3819 = vrot.slane %v3810, %v3818
    %v3822 = vadd.f32 %v3804, %v3815
    %v3823 = vadd.f32 %v3806, %v3819
    %v3824 = vmax.f32 %v3822, 0.0
    %v3825 = vmax.f32 %v3823, 0.0
    %s3826 = scalar_lea.vmem [#allocation10], 1
    %v3827 = vld [vmem:[%s3826] ss:$4 sm:$0x3]
    %v3829 = vlaneseq
    %v3830 = vshrl.u32 %v3829, 7
    %v3831 = vsub.s32 0, %v3830
    %v3832 = vrot.slane %v3827, %v3831
    %v3833 = vlaneseq
    %v3834 = vshrl.u32 %v3833, 7
    %v3835 = vsub.s32 1, %v3834
    %v3836 = vrot.slane %v3827, %v3835
    %v3839 = vmul.f32 %v3824, %v3832
    %v3840 = vmul.f32 %v3825, %v3836
    %s3841 = scalar_lea.vmem [#allocation10], 2
    %v3842 = vld [vmem:[%s3841] ss:$4 sm:$0x3]
    %v3844 = vlaneseq
    %v3845 = vshrl.u32 %v3844, 7
    %v3846 = vsub.s32 0, %v3845
    %v3847 = vrot.slane %v3842, %v3846
    %v3848 = vlaneseq
    %v3849 = vshrl.u32 %v3848, 7
    %v3850 = vsub.s32 1, %v3849
    %v3851 = vrot.slane %v3842, %v3850
    %v3854 = vadd.f32 %v3839, %v3847
    %v3855 = vadd.f32 %v3840, %v3851
    %3856 = vst [vmem:[#allocation3] sm:$0x3] %v3854
    %vm3857 = vcmask 517120
    %3858 = vst.msk [vmem:[#allocation3 + $0x8] sm:$0x3] %vm3857, %v3855
    %v3859 = vld [vmem:[#allocation2] sm:$0x3]
    %v3860 = vld [vmem:[#allocation2 + $0x8] sm:$0x3]
    %v3861 = vpack.c.bf16 %v3859, %v3859
    %v3862 = vpack.c.bf16 %v3860, %v3860
    %v3863 = vld [vmem:[#allocation9] sm:$0xff]
    %v3864 = vld [vmem:[#allocation9 + $0x8] sm:$0xff]
    %v3865 = vld [vmem:[#allocation9 + $0x10] sm:$0xff]
    %v3866 = vld [vmem:[#allocation9 + $0x18] sm:$0xff]
    %v3867 = vld [vmem:[#allocation9 + $0x20] sm:$0xff]
    %v3868 = vld [vmem:[#allocation9 + $0x28] sm:$0xff]
    %v3869 = vld [vmem:[#allocation9 + $0x30] sm:$0xff]
    %v3870 = vld [vmem:[#allocation9 + $0x38] sm:$0xff]
    %v3871 = vld [vmem:[#allocation9 + $0x40] sm:$0xff]
    %v3872 = vld [vmem:[#allocation9 + $0x48] sm:$0xff]
    %v3873 = vld [vmem:[#allocation9 + $0x50] sm:$0xff]
    %v3874 = vld [vmem:[#allocation9 + $0x58] sm:$0xff]
    %v3875 = vld [vmem:[#allocation9 + $0x60] sm:$0xff]
    %v3876 = vld [vmem:[#allocation9 + $0x68] sm:$0xff]
    %v3877 = vld [vmem:[#allocation9 + $0x70] sm:$0xff]
    %v3878 = vld [vmem:[#allocation9 + $0x78] sm:$0xff]
    %v3879 = vld [vmem:[#allocation9 + $0x80] sm:$0xff]
    %v3880 = vld [vmem:[#allocation9 + $0x88] sm:$0xff]
    %v3881 = vld [vmem:[#allocation9 + $0x90] sm:$0xff]
    %v3882 = vld [vmem:[#allocation9 + $0x98] sm:$0xff]
    %v3883 = vld [vmem:[#allocation2] sm:$0xc]
    %v3884 = vld [vmem:[#allocation2 + $0x8] sm:$0xc]
    %v3885 = vpack.c.bf16 %v3883, %v3883
    %v3886 = vpack.c.bf16 %v3884, %v3884
    %s3887 = scalar_lea.vmem [#allocation9], 160
    %v3888 = vld [vmem:[%s3887] sm:$0xff]
    %v3889 = vld [vmem:[%s3887 + $0x8] sm:$0xff]
    %v3890 = vld [vmem:[%s3887 + $0x10] sm:$0xff]
    %v3891 = vld [vmem:[%s3887 + $0x18] sm:$0xff]
    %v3892 = vld [vmem:[%s3887 + $0x20] sm:$0xff]
    %v3893 = vld [vmem:[%s3887 + $0x28] sm:$0xff]
    %v3894 = vld [vmem:[%s3887 + $0x30] sm:$0xff]
    %v3895 = vld [vmem:[%s3887 + $0x38] sm:$0xff]
    %v3896 = vld [vmem:[%s3887 + $0x40] sm:$0xff]
    %v3897 = vld [vmem:[%s3887 + $0x48] sm:$0xff]
    %v3898 = vld [vmem:[%s3887 + $0x50] sm:$0xff]
    %v3899 = vld [vmem:[%s3887 + $0x58] sm:$0xff]
    %v3900 = vld [vmem:[%s3887 + $0x60] sm:$0xff]
    %v3901 = vld [vmem:[%s3887 + $0x68] sm:$0xff]
    %v3902 = vld [vmem:[%s3887 + $0x70] sm:$0xff]
    %v3903 = vld [vmem:[%s3887 + $0x78] sm:$0xff]
    %v3904 = vld [vmem:[%s3887 + $0x80] sm:$0xff]
    %v3905 = vld [vmem:[%s3887 + $0x88] sm:$0xff]
    %v3906 = vld [vmem:[%s3887 + $0x90] sm:$0xff]
    %v3907 = vld [vmem:[%s3887 + $0x98] sm:$0xff]
    %v3910 = vrot.slane %v3885, 1
    %v3911 = vrot.slane %v3886, 1
    %v3933 = vunpack.c.l.b16 %v3888
    %v3934 = vunpack.c.h.b16 %v3888
    %v3935 = vunpack.c.l.b16 %v3889
    %v3936 = vunpack.c.h.b16 %v3889
    %v3937 = vunpack.c.l.b16 %v3890
    %v3938 = vunpack.c.h.b16 %v3890
    %v3939 = vunpack.c.l.b16 %v3891
    %v3940 = vunpack.c.h.b16 %v3891
    %v3941 = vunpack.c.l.b16 %v3892
    %v3942 = vunpack.c.h.b16 %v3892
    %v3943 = vunpack.c.l.b16 %v3893
    %v3944 = vunpack.c.h.b16 %v3893
    %v3945 = vunpack.c.l.b16 %v3894
    %v3946 = vunpack.c.h.b16 %v3894
    %v3947 = vunpack.c.l.b16 %v3895
    %v3948 = vunpack.c.h.b16 %v3895
    %v3949 = vunpack.c.l.b16 %v3896
    %v3950 = vunpack.c.h.b16 %v3896
    %v3951 = vunpack.c.l.b16 %v3897
    %v3952 = vunpack.c.h.b16 %v3897
    %v3953 = vunpack.c.l.b16 %v3898
    %v3954 = vunpack.c.h.b16 %v3898
    %v3955 = vunpack.c.l.b16 %v3899
    %v3956 = vunpack.c.h.b16 %v3899
    %v3957 = vunpack.c.l.b16 %v3900
    %v3958 = vunpack.c.h.b16 %v3900
    %v3959 = vunpack.c.l.b16 %v3901
    %v3960 = vunpack.c.h.b16 %v3901
    %v3961 = vunpack.c.l.b16 %v3902
    %v3962 = vunpack.c.h.b16 %v3902
    %v3963 = vunpack.c.l.b16 %v3903
    %v3964 = vunpack.c.h.b16 %v3903
    %v3965 = vunpack.c.l.b16 %v3904
    %v3966 = vunpack.c.h.b16 %v3904
    %v3967 = vunpack.c.l.b16 %v3905
    %v3968 = vunpack.c.h.b16 %v3905
    %v3969 = vunpack.c.l.b16 %v3906
    %v3970 = vunpack.c.h.b16 %v3906
    %v3971 = vunpack.c.l.b16 %v3907
    %v3972 = vunpack.c.h.b16 %v3907
    %v3973 = vpack.c.b16 %v3935, %v3933
    %v3974 = vpack.c.b16 %v3936, %v3934
    %v3975 = vpack.c.b16 %v3939, %v3937
    %v3976 = vpack.c.b16 %v3940, %v3938
    %v3977 = vpack.c.b16 %v3943, %v3941
    %v3978 = vpack.c.b16 %v3944, %v3942
    %v3979 = vpack.c.b16 %v3947, %v3945
    %v3980 = vpack.c.b16 %v3948, %v3946
    %v3981 = vpack.c.b16 %v3951, %v3949
    %v3982 = vpack.c.b16 %v3952, %v3950
    %v3983 = vpack.c.b16 %v3955, %v3953
    %v3984 = vpack.c.b16 %v3956, %v3954
    %v3985 = vpack.c.b16 %v3959, %v3957
    %v3986 = vpack.c.b16 %v3960, %v3958
    %v3987 = vpack.c.b16 %v3963, %v3961
    %v3988 = vpack.c.b16 %v3964, %v3962
    %v3989 = vpack.c.b16 %v3967, %v3965
    %v3990 = vpack.c.b16 %v3968, %v3966
    %v3991 = vpack.c.b16 %v3971, %v3969
    %v3992 = vpack.c.b16 %v3972, %v3970
    %v4014 = vsel %vm3621, %v3911, 0
    %4016 = vmatprep.subr.bf16.mxu0 %v3988
    %4017 = vmatpush1.bf16.msra.mxu0 %v3987
    %4018 = vmatprep.subr.bf16.mxu0 %v3986
    %4019 = vmatpush1.bf16.msra.mxu0 %v3985
    %4020 = vmatprep.subr.bf16.mxu0 %v3984
    %4021 = vmatpush1.bf16.msra.mxu0 %v3983
    %4022 = vmatprep.subr.bf16.mxu0 %v3982
    %4023 = vmatpush1.bf16.msra.mxu0 %v3981
    %4024 = vmatprep.subr.bf16.mxu0 %v3980
    %4025 = vmatpush1.bf16.msra.mxu0 %v3979
    %4026 = vmatprep.subr.bf16.mxu0 %v3978
    %4027 = vmatpush1.bf16.msra.mxu0 %v3977
    %4028 = vmatprep.subr.bf16.mxu0 %v3976
    %4029 = vmatpush1.bf16.msra.mxu0 %v3975
    %4030 = vmatprep.subr.bf16.mxu0 %v3974
    %4031 = vmatpush1.bf16.msra.mxu0 %v3973
    %4032 = vmatprep.subr.bf16.mxu0 0
    %4033 = vmatpush2.bf16.msra.mxu0 0
    %4034 = vmatprep.subr.bf16.mxu0 0
    %4035 = vmatpush2.bf16.msra.mxu0 0
    %4036 = vmatprep.subr.bf16.mxu0 0
    %4037 = vmatpush2.bf16.msra.mxu0 0
    %4038 = vmatprep.subr.bf16.mxu0 0
    %4039 = vmatpush2.bf16.msra.mxu0 0
    %4040 = vmatprep.subr.bf16.mxu0 0
    %4041 = vmatpush2.bf16.msra.mxu0 0
    %4042 = vmatprep.subr.bf16.mxu0 0
    %4043 = vmatpush2.bf16.msra.mxu0 0
    %4044 = vmatprep.subr.bf16.mxu0 %v3992
    %4045 = vmatpush2.bf16.msra.mxu0 %v3991
    %4046 = vmatprep.subr.bf16.mxu0 %v3990
    %4047 = vmatpush2.bf16.msra.mxu0 %v3989
    %4048 = vmatprep.mubr.bf16.mxu0 %v4014
    %4049 = vmatmul.mubr.bf16.gmra.mxu0 %v3910
    %v4050 = vpop.f32.mrf.mxu0
    %v4051 = vadd.f32 0.0, %v4050
    %v4052 = vpop.f32.mrf.mxu0
    %v4053 = vadd.f32 0.0, %v4052
    %v4054 = vpop.f32.mrf.mxu0
    %v4055 = vpop.f32.mrf.mxu0
    %4056 = vdwg.mxu0
    %v4077 = vunpack.c.l.b16 %v3863
    %v4078 = vunpack.c.h.b16 %v3863
    %v4079 = vunpack.c.l.b16 %v3864
    %v4080 = vunpack.c.h.b16 %v3864
    %v4081 = vunpack.c.l.b16 %v3865
    %v4082 = vunpack.c.h.b16 %v3865
    %v4083 = vunpack.c.l.b16 %v3866
    %v4084 = vunpack.c.h.b16 %v3866
    %v4085 = vunpack.c.l.b16 %v3867
    %v4086 = vunpack.c.h.b16 %v3867
    %v4087 = vunpack.c.l.b16 %v3868
    %v4088 = vunpack.c.h.b16 %v3868
    %v4089 = vunpack.c.l.b16 %v3869
    %v4090 = vunpack.c.h.b16 %v3869
    %v4091 = vunpack.c.l.b16 %v3870
    %v4092 = vunpack.c.h.b16 %v3870
    %v4093 = vunpack.c.l.b16 %v3871
    %v4094 = vunpack.c.h.b16 %v3871
    %v4095 = vunpack.c.l.b16 %v3872
    %v4096 = vunpack.c.h.b16 %v3872
    %v4097 = vunpack.c.l.b16 %v3873
    %v4098 = vunpack.c.h.b16 %v3873
    %v4099 = vunpack.c.l.b16 %v3874
    %v4100 = vunpack.c.h.b16 %v3874
    %v4101 = vunpack.c.l.b16 %v3875
    %v4102 = vunpack.c.h.b16 %v3875
    %v4103 = vunpack.c.l.b16 %v3876
    %v4104 = vunpack.c.h.b16 %v3876
    %v4105 = vunpack.c.l.b16 %v3877
    %v4106 = vunpack.c.h.b16 %v3877
    %v4107 = vunpack.c.l.b16 %v3878
    %v4108 = vunpack.c.h.b16 %v3878
    %v4109 = vunpack.c.l.b16 %v3879
    %v4110 = vunpack.c.h.b16 %v3879
    %v4111 = vunpack.c.l.b16 %v3880
    %v4112 = vunpack.c.h.b16 %v3880
    %v4113 = vunpack.c.l.b16 %v3881
    %v4114 = vunpack.c.h.b16 %v3881
    %v4115 = vunpack.c.l.b16 %v3882
    %v4116 = vunpack.c.h.b16 %v3882
    %v4117 = vpack.c.b16 %v4079, %v4077
    %v4118 = vpack.c.b16 %v4080, %v4078
    %v4119 = vpack.c.b16 %v4083, %v4081
    %v4120 = vpack.c.b16 %v4084, %v4082
    %v4121 = vpack.c.b16 %v4087, %v4085
    %v4122 = vpack.c.b16 %v4088, %v4086
    %v4123 = vpack.c.b16 %v4091, %v4089
    %v4124 = vpack.c.b16 %v4092, %v4090
    %v4125 = vpack.c.b16 %v4095, %v4093
    %v4126 = vpack.c.b16 %v4096, %v4094
    %v4127 = vpack.c.b16 %v4099, %v4097
    %v4128 = vpack.c.b16 %v4100, %v4098
    %v4129 = vpack.c.b16 %v4103, %v4101
    %v4130 = vpack.c.b16 %v4104, %v4102
    %v4131 = vpack.c.b16 %v4107, %v4105
    %v4132 = vpack.c.b16 %v4108, %v4106
    %v4133 = vpack.c.b16 %v4111, %v4109
    %v4134 = vpack.c.b16 %v4112, %v4110
    %v4135 = vpack.c.b16 %v4115, %v4113
    %v4136 = vpack.c.b16 %v4116, %v4114
    %v4158 = vsel %vm3621, %v3862, 0
    %4160 = vmatprep.subr.bf16.mxu0 %v4132
    %4161 = vmatpush1.bf16.msra.mxu0 %v4131
    %4162 = vmatprep.subr.bf16.mxu0 %v4130
    %4163 = vmatpush1.bf16.msra.mxu0 %v4129
    %4164 = vmatprep.subr.bf16.mxu0 %v4128
    %4165 = vmatpush1.bf16.msra.mxu0 %v4127
    %4166 = vmatprep.subr.bf16.mxu0 %v4126
    %4167 = vmatpush1.bf16.msra.mxu0 %v4125
    %4168 = vmatprep.subr.bf16.mxu0 %v4124
    %4169 = vmatpush1.bf16.msra.mxu0 %v4123
    %4170 = vmatprep.subr.bf16.mxu0 %v4122
    %4171 = vmatpush1.bf16.msra.mxu0 %v4121
    %4172 = vmatprep.subr.bf16.mxu0 %v4120
    %4173 = vmatpush1.bf16.msra.mxu0 %v4119
    %4174 = vmatprep.subr.bf16.mxu0 %v4118
    %4175 = vmatpush1.bf16.msra.mxu0 %v4117
    %4176 = vmatprep.subr.bf16.mxu0 0
    %4177 = vmatpush2.bf16.msra.mxu0 0
    %4178 = vmatprep.subr.bf16.mxu0 0
    %4179 = vmatpush2.bf16.msra.mxu0 0
    %4180 = vmatprep.subr.bf16.mxu0 0
    %4181 = vmatpush2.bf16.msra.mxu0 0
    %4182 = vmatprep.subr.bf16.mxu0 0
    %4183 = vmatpush2.bf16.msra.mxu0 0
    %4184 = vmatprep.subr.bf16.mxu0 0
    %4185 = vmatpush2.bf16.msra.mxu0 0
    %4186 = vmatprep.subr.bf16.mxu0 0
    %4187 = vmatpush2.bf16.msra.mxu0 0
    %4188 = vmatprep.subr.bf16.mxu0 %v4136
    %4189 = vmatpush2.bf16.msra.mxu0 %v4135
    %4190 = vmatprep.subr.bf16.mxu0 %v4134
    %4191 = vmatpush2.bf16.msra.mxu0 %v4133
    %4192 = vmatprep.mubr.bf16.mxu0 %v4158
    %4193 = vmatmul.mubr.bf16.gmra.mxu0 %v3861
    %v4194 = vpop.f32.mrf.mxu0
    %v4195 = vadd.f32 %v4051, %v4194
    %v4196 = vpop.f32.mrf.mxu0
    %v4197 = vadd.f32 %v4053, %v4196
    %v4198 = vpop.f32.mrf.mxu0
    %v4199 = vpop.f32.mrf.mxu0
    %4200 = vdwg.mxu0
    %v4201 = vld [vmem:[#allocation2] sm:$0x30]
    %v4202 = vld [vmem:[#allocation2 + $0x8] sm:$0x30]
    %v4203 = vpack.c.bf16 %v4201, %v4201
    %v4204 = vpack.c.bf16 %v4202, %v4202
    %v4205 = vld [vmem:[%s3470] sm:$0xff]
    %v4206 = vld [vmem:[%s3470 + $0x8] sm:$0xff]
    %v4207 = vld [vmem:[%s3470 + $0x10] sm:$0xff]
    %v4208 = vld [vmem:[%s3470 + $0x18] sm:$0xff]
    %v4209 = vld [vmem:[%s3470 + $0x20] sm:$0xff]
    %v4210 = vld [vmem:[%s3470 + $0x28] sm:$0xff]
    %v4211 = vld [vmem:[%s3470 + $0x30] sm:$0xff]
    %v4212 = vld [vmem:[%s3470 + $0x38] sm:$0xff]
    %v4213 = vld [vmem:[%s3470 + $0x40] sm:$0xff]
    %v4214 = vld [vmem:[%s3470 + $0x48] sm:$0xff]
    %v4215 = vld [vmem:[%s3470 + $0x50] sm:$0xff]
    %v4216 = vld [vmem:[%s3470 + $0x58] sm:$0xff]
    %v4217 = vld [vmem:[%s3470 + $0x60] sm:$0xff]
    %v4218 = vld [vmem:[%s3470 + $0x68] sm:$0xff]
    %v4219 = vld [vmem:[%s3470 + $0x70] sm:$0xff]
    %v4220 = vld [vmem:[%s3470 + $0x78] sm:$0xff]
    %v4221 = vld [vmem:[%s3470 + $0x80] sm:$0xff]
    %v4222 = vld [vmem:[%s3470 + $0x88] sm:$0xff]
    %v4223 = vld [vmem:[%s3470 + $0x90] sm:$0xff]
    %v4224 = vld [vmem:[%s3470 + $0x98] sm:$0xff]
    %v4227 = vrot.slane %v4203, 2
    %v4228 = vrot.slane %v4204, 2
    %v4250 = vunpack.c.l.b16 %v4205
    %v4251 = vunpack.c.h.b16 %v4205
    %v4252 = vunpack.c.l.b16 %v4206
    %v4253 = vunpack.c.h.b16 %v4206
    %v4254 = vunpack.c.l.b16 %v4207
    %v4255 = vunpack.c.h.b16 %v4207
    %v4256 = vunpack.c.l.b16 %v4208
    %v4257 = vunpack.c.h.b16 %v4208
    %v4258 = vunpack.c.l.b16 %v4209
    %v4259 = vunpack.c.h.b16 %v4209
    %v4260 = vunpack.c.l.b16 %v4210
    %v4261 = vunpack.c.h.b16 %v4210
    %v4262 = vunpack.c.l.b16 %v4211
    %v4263 = vunpack.c.h.b16 %v4211
    %v4264 = vunpack.c.l.b16 %v4212
    %v4265 = vunpack.c.h.b16 %v4212
    %v4266 = vunpack.c.l.b16 %v4213
    %v4267 = vunpack.c.h.b16 %v4213
    %v4268 = vunpack.c.l.b16 %v4214
    %v4269 = vunpack.c.h.b16 %v4214
    %v4270 = vunpack.c.l.b16 %v4215
    %v4271 = vunpack.c.h.b16 %v4215
    %v4272 = vunpack.c.l.b16 %v4216
    %v4273 = vunpack.c.h.b16 %v4216
    %v4274 = vunpack.c.l.b16 %v4217
    %v4275 = vunpack.c.h.b16 %v4217
    %v4276 = vunpack.c.l.b16 %v4218
    %v4277 = vunpack.c.h.b16 %v4218
    %v4278 = vunpack.c.l.b16 %v4219
    %v4279 = vunpack.c.h.b16 %v4219
    %v4280 = vunpack.c.l.b16 %v4220
    %v4281 = vunpack.c.h.b16 %v4220
    %v4282 = vunpack.c.l.b16 %v4221
    %v4283 = vunpack.c.h.b16 %v4221
    %v4284 = vunpack.c.l.b16 %v4222
    %v4285 = vunpack.c.h.b16 %v4222
    %v4286 = vunpack.c.l.b16 %v4223
    %v4287 = vunpack.c.h.b16 %v4223
    %v4288 = vunpack.c.l.b16 %v4224
    %v4289 = vunpack.c.h.b16 %v4224
    %v4290 = vpack.c.b16 %v4252, %v4250
    %v4291 = vpack.c.b16 %v4253, %v4251
    %v4292 = vpack.c.b16 %v4256, %v4254
    %v4293 = vpack.c.b16 %v4257, %v4255
    %v4294 = vpack.c.b16 %v4260, %v4258
    %v4295 = vpack.c.b16 %v4261, %v4259
    %v4296 = vpack.c.b16 %v4264, %v4262
    %v4297 = vpack.c.b16 %v4265, %v4263
    %v4298 = vpack.c.b16 %v4268, %v4266
    %v4299 = vpack.c.b16 %v4269, %v4267
    %v4300 = vpack.c.b16 %v4272, %v4270
    %v4301 = vpack.c.b16 %v4273, %v4271
    %v4302 = vpack.c.b16 %v4276, %v4274
    %v4303 = vpack.c.b16 %v4277, %v4275
    %v4304 = vpack.c.b16 %v4280, %v4278
    %v4305 = vpack.c.b16 %v4281, %v4279
    %v4306 = vpack.c.b16 %v4284, %v4282
    %v4307 = vpack.c.b16 %v4285, %v4283
    %v4308 = vpack.c.b16 %v4288, %v4286
    %v4309 = vpack.c.b16 %v4289, %v4287
    %v4331 = vsel %vm3621, %v4228, 0
    %4333 = vmatprep.subr.bf16.mxu0 %v4305
    %4334 = vmatpush1.bf16.msra.mxu0 %v4304
    %4335 = vmatprep.subr.bf16.mxu0 %v4303
    %4336 = vmatpush1.bf16.msra.mxu0 %v4302
    %4337 = vmatprep.subr.bf16.mxu0 %v4301
    %4338 = vmatpush1.bf16.msra.mxu0 %v4300
    %4339 = vmatprep.subr.bf16.mxu0 %v4299
    %4340 = vmatpush1.bf16.msra.mxu0 %v4298
    %4341 = vmatprep.subr.bf16.mxu0 %v4297
    %4342 = vmatpush1.bf16.msra.mxu0 %v4296
    %4343 = vmatprep.subr.bf16.mxu0 %v4295
    %4344 = vmatpush1.bf16.msra.mxu0 %v4294
    %4345 = vmatprep.subr.bf16.mxu0 %v4293
    %4346 = vmatpush1.bf16.msra.mxu0 %v4292
    %4347 = vmatprep.subr.bf16.mxu0 %v4291
    %4348 = vmatpush1.bf16.msra.mxu0 %v4290
    %4349 = vmatprep.subr.bf16.mxu0 0
    %4350 = vmatpush2.bf16.msra.mxu0 0
    %4351 = vmatprep.subr.bf16.mxu0 0
    %4352 = vmatpush2.bf16.msra.mxu0 0
    %4353 = vmatprep.subr.bf16.mxu0 0
    %4354 = vmatpush2.bf16.msra.mxu0 0
    %4355 = vmatprep.subr.bf16.mxu0 0
    %4356 = vmatpush2.bf16.msra.mxu0 0
    %4357 = vmatprep.subr.bf16.mxu0 0
    %4358 = vmatpush2.bf16.msra.mxu0 0
    %4359 = vmatprep.subr.bf16.mxu0 0
    %4360 = vmatpush2.bf16.msra.mxu0 0
    %4361 = vmatprep.subr.bf16.mxu0 %v4309
    %4362 = vmatpush2.bf16.msra.mxu0 %v4308
    %4363 = vmatprep.subr.bf16.mxu0 %v4307
    %4364 = vmatpush2.bf16.msra.mxu0 %v4306
    %4365 = vmatprep.mubr.bf16.mxu0 %v4331
    %4366 = vmatmul.mubr.bf16.gmra.mxu0 %v4227
    %v4367 = vpop.f32.mrf.mxu0
    %v4368 = vadd.f32 0.0, %v4367
    %v4369 = vpop.f32.mrf.mxu0
    %v4370 = vadd.f32 0.0, %v4369
    %v4371 = vpop.f32.mrf.mxu0
    %v4372 = vpop.f32.mrf.mxu0
    %4373 = vdwg.mxu0
    %v4374 = vadd.f32 %v4195, %v4368
    %v4375 = vadd.f32 %v4197, %v4370
    %v4376 = vld [vmem:[#allocation2] sm:$0xc0]
    %v4377 = vld [vmem:[#allocation2 + $0x8] sm:$0xc0]
    %v4378 = vpack.c.bf16 %v4376, %v4376
    %v4379 = vpack.c.bf16 %v4377, %v4377
    %v4380 = vld [vmem:[%s3495] sm:$0xff]
    %v4381 = vld [vmem:[%s3495 + $0x8] sm:$0xff]
    %v4382 = vld [vmem:[%s3495 + $0x10] sm:$0xff]
    %v4383 = vld [vmem:[%s3495 + $0x18] sm:$0xff]
    %v4384 = vld [vmem:[%s3495 + $0x20] sm:$0xff]
    %v4385 = vld [vmem:[%s3495 + $0x28] sm:$0xff]
    %v4386 = vld [vmem:[%s3495 + $0x30] sm:$0xff]
    %v4387 = vld [vmem:[%s3495 + $0x38] sm:$0xff]
    %v4388 = vld [vmem:[%s3495 + $0x40] sm:$0xff]
    %v4389 = vld [vmem:[%s3495 + $0x48] sm:$0xff]
    %v4390 = vld [vmem:[%s3495 + $0x50] sm:$0xff]
    %v4391 = vld [vmem:[%s3495 + $0x58] sm:$0xff]
    %v4392 = vld [vmem:[%s3495 + $0x60] sm:$0xff]
    %v4393 = vld [vmem:[%s3495 + $0x68] sm:$0xff]
    %v4394 = vld [vmem:[%s3495 + $0x70] sm:$0xff]
    %v4395 = vld [vmem:[%s3495 + $0x78] sm:$0xff]
    %v4396 = vld [vmem:[%s3495 + $0x80] sm:$0xff]
    %v4397 = vld [vmem:[%s3495 + $0x88] sm:$0xff]
    %v4398 = vld [vmem:[%s3495 + $0x90] sm:$0xff]
    %v4399 = vld [vmem:[%s3495 + $0x98] sm:$0xff]
    %v4402 = vrot.slane %v4378, 3
    %v4403 = vrot.slane %v4379, 3
    %v4425 = vunpack.c.l.b16 %v4380
    %v4426 = vunpack.c.h.b16 %v4380
    %v4427 = vunpack.c.l.b16 %v4381
    %v4428 = vunpack.c.h.b16 %v4381
    %v4429 = vunpack.c.l.b16 %v4382
    %v4430 = vunpack.c.h.b16 %v4382
    %v4431 = vunpack.c.l.b16 %v4383
    %v4432 = vunpack.c.h.b16 %v4383
    %v4433 = vunpack.c.l.b16 %v4384
    %v4434 = vunpack.c.h.b16 %v4384
    %v4435 = vunpack.c.l.b16 %v4385
    %v4436 = vunpack.c.h.b16 %v4385
    %v4437 = vunpack.c.l.b16 %v4386
    %v4438 = vunpack.c.h.b16 %v4386
    %v4439 = vunpack.c.l.b16 %v4387
    %v4440 = vunpack.c.h.b16 %v4387
    %v4441 = vunpack.c.l.b16 %v4388
    %v4442 = vunpack.c.h.b16 %v4388
    %v4443 = vunpack.c.l.b16 %v4389
    %v4444 = vunpack.c.h.b16 %v4389
    %v4445 = vunpack.c.l.b16 %v4390
    %v4446 = vunpack.c.h.b16 %v4390
    %v4447 = vunpack.c.l.b16 %v4391
    %v4448 = vunpack.c.h.b16 %v4391
    %v4449 = vunpack.c.l.b16 %v4392
    %v4450 = vunpack.c.h.b16 %v4392
    %v4451 = vunpack.c.l.b16 %v4393
    %v4452 = vunpack.c.h.b16 %v4393
    %v4453 = vunpack.c.l.b16 %v4394
    %v4454 = vunpack.c.h.b16 %v4394
    %v4455 = vunpack.c.l.b16 %v4395
    %v4456 = vunpack.c.h.b16 %v4395
    %v4457 = vunpack.c.l.b16 %v4396
    %v4458 = vunpack.c.h.b16 %v4396
    %v4459 = vunpack.c.l.b16 %v4397
    %v4460 = vunpack.c.h.b16 %v4397
    %v4461 = vunpack.c.l.b16 %v4398
    %v4462 = vunpack.c.h.b16 %v4398
    %v4463 = vunpack.c.l.b16 %v4399
    %v4464 = vunpack.c.h.b16 %v4399
    %v4465 = vpack.c.b16 %v4427, %v4425
    %v4466 = vpack.c.b16 %v4428, %v4426
    %v4467 = vpack.c.b16 %v4431, %v4429
    %v4468 = vpack.c.b16 %v4432, %v4430
    %v4469 = vpack.c.b16 %v4435, %v4433
    %v4470 = vpack.c.b16 %v4436, %v4434
    %v4471 = vpack.c.b16 %v4439, %v4437
    %v4472 = vpack.c.b16 %v4440, %v4438
    %v4473 = vpack.c.b16 %v4443, %v4441
    %v4474 = vpack.c.b16 %v4444, %v4442
    %v4475 = vpack.c.b16 %v4447, %v4445
    %v4476 = vpack.c.b16 %v4448, %v4446
    %v4477 = vpack.c.b16 %v4451, %v4449
    %v4478 = vpack.c.b16 %v4452, %v4450
    %v4479 = vpack.c.b16 %v4455, %v4453
    %v4480 = vpack.c.b16 %v4456, %v4454
    %v4481 = vpack.c.b16 %v4459, %v4457
    %v4482 = vpack.c.b16 %v4460, %v4458
    %v4483 = vpack.c.b16 %v4463, %v4461
    %v4484 = vpack.c.b16 %v4464, %v4462
    %v4506 = vsel %vm3621, %v4403, 0
    %4508 = vmatprep.subr.bf16.mxu0 %v4480
    %4509 = vmatpush1.bf16.msra.mxu0 %v4479
    %4510 = vmatprep.subr.bf16.mxu0 %v4478
    %4511 = vmatpush1.bf16.msra.mxu0 %v4477
    %4512 = vmatprep.subr.bf16.mxu0 %v4476
    %4513 = vmatpush1.bf16.msra.mxu0 %v4475
    %4514 = vmatprep.subr.bf16.mxu0 %v4474
    %4515 = vmatpush1.bf16.msra.mxu0 %v4473
    %4516 = vmatprep.subr.bf16.mxu0 %v4472
    %4517 = vmatpush1.bf16.msra.mxu0 %v4471
    %4518 = vmatprep.subr.bf16.mxu0 %v4470
    %4519 = vmatpush1.bf16.msra.mxu0 %v4469
    %4520 = vmatprep.subr.bf16.mxu0 %v4468
    %4521 = vmatpush1.bf16.msra.mxu0 %v4467
    %4522 = vmatprep.subr.bf16.mxu0 %v4466
    %4523 = vmatpush1.bf16.msra.mxu0 %v4465
    %4524 = vmatprep.subr.bf16.mxu0 0
    %4525 = vmatpush2.bf16.msra.mxu0 0
    %4526 = vmatprep.subr.bf16.mxu0 0
    %4527 = vmatpush2.bf16.msra.mxu0 0
    %4528 = vmatprep.subr.bf16.mxu0 0
    %4529 = vmatpush2.bf16.msra.mxu0 0
    %4530 = vmatprep.subr.bf16.mxu0 0
    %4531 = vmatpush2.bf16.msra.mxu0 0
    %4532 = vmatprep.subr.bf16.mxu0 0
    %4533 = vmatpush2.bf16.msra.mxu0 0
    %4534 = vmatprep.subr.bf16.mxu0 0
    %4535 = vmatpush2.bf16.msra.mxu0 0
    %4536 = vmatprep.subr.bf16.mxu0 %v4484
    %4537 = vmatpush2.bf16.msra.mxu0 %v4483
    %4538 = vmatprep.subr.bf16.mxu0 %v4482
    %4539 = vmatpush2.bf16.msra.mxu0 %v4481
    %4540 = vmatprep.mubr.bf16.mxu0 %v4506
    %4541 = vmatmul.mubr.bf16.gmra.mxu0 %v4402
    %v4542 = vpop.f32.mrf.mxu0
    %v4543 = vadd.f32 0.0, %v4542
    %v4544 = vpop.f32.mrf.mxu0
    %v4545 = vadd.f32 0.0, %v4544
    %v4546 = vpop.f32.mrf.mxu0
    %v4547 = vpop.f32.mrf.mxu0
    %4548 = vdwg.mxu0
    %v4549 = vadd.f32 %v4374, %v4543
    %v4550 = vadd.f32 %v4375, %v4545
    %v4551 = vld [vmem:[#allocation10] ss:$4 sm:$0x3]
    %v4553 = vlaneseq
    %v4554 = vshrl.u32 %v4553, 7
    %v4555 = vsub.s32 0, %v4554
    %v4556 = vrot.slane %v4551, %v4555
    %v4557 = vlaneseq
    %v4558 = vshrl.u32 %v4557, 7
    %v4559 = vsub.s32 1, %v4558
    %v4560 = vrot.slane %v4551, %v4559
    %v4563 = vadd.f32 %v4549, %v4556
    %v4564 = vadd.f32 %v4550, %v4560
    %v4565 = vmax.f32 %v4563, 0.0
    %v4566 = vmax.f32 %v4564, 0.0
    %v4567 = vld [vmem:[%s3826] ss:$4 sm:$0x3]
    %v4569 = vlaneseq
    %v4570 = vshrl.u32 %v4569, 7
    %v4571 = vsub.s32 0, %v4570
    %v4572 = vrot.slane %v4567, %v4571
    %v4573 = vlaneseq
    %v4574 = vshrl.u32 %v4573, 7
    %v4575 = vsub.s32 1, %v4574
    %v4576 = vrot.slane %v4567, %v4575
    %v4579 = vmul.f32 %v4565, %v4572
    %v4580 = vmul.f32 %v4566, %v4576
    %v4581 = vld [vmem:[%s3841] ss:$4 sm:$0x3]
    %v4583 = vlaneseq
    %v4584 = vshrl.u32 %v4583, 7
    %v4585 = vsub.s32 0, %v4584
    %v4586 = vrot.slane %v4581, %v4585
    %v4587 = vlaneseq
    %v4588 = vshrl.u32 %v4587, 7
    %v4589 = vsub.s32 1, %v4588
    %v4590 = vrot.slane %v4581, %v4589
    %v4593 = vadd.f32 %v4579, %v4586
    %v4594 = vadd.f32 %v4580, %v4590
    %v4597 = vrot.slane %v4593, 6
    %v4598 = vrot.slane %v4594, 6
    %4601 = vst [vmem:[#allocation3] sm:$0xc] %v4597
    %vm4602 = vcmask 519170
    %4603 = vst.msk [vmem:[#allocation3 + $0x8] sm:$0xc] %vm4602, %v4598
    %v4604 = vld [vmem:[#allocation2] sm:$0x30]
    %v4605 = vld [vmem:[#allocation2 + $0x8] sm:$0x30]
    %v4606 = vpack.c.bf16 %v4604, %v4604
    %v4607 = vpack.c.bf16 %v4605, %v4605
    %v4608 = vld [vmem:[#allocation9] sm:$0xff]
    %v4609 = vld [vmem:[#allocation9 + $0x8] sm:$0xff]
    %v4610 = vld [vmem:[#allocation9 + $0x10] sm:$0xff]
    %v4611 = vld [vmem:[#allocation9 + $0x18] sm:$0xff]
    %v4612 = vld [vmem:[#allocation9 + $0x20] sm:$0xff]
    %v4613 = vld [vmem:[#allocation9 + $0x28] sm:$0xff]
    %v4614 = vld [vmem:[#allocation9 + $0x30] sm:$0xff]
    %v4615 = vld [vmem:[#allocation9 + $0x38] sm:$0xff]
    %v4616 = vld [vmem:[#allocation9 + $0x40] sm:$0xff]
    %v4617 = vld [vmem:[#allocation9 + $0x48] sm:$0xff]
    %v4618 = vld [vmem:[#allocation9 + $0x50] sm:$0xff]
    %v4619 = vld [vmem:[#allocation9 + $0x58] sm:$0xff]
    %v4620 = vld [vmem:[#allocation9 + $0x60] sm:$0xff]
    %v4621 = vld [vmem:[#allocation9 + $0x68] sm:$0xff]
    %v4622 = vld [vmem:[#allocation9 + $0x70] sm:$0xff]
    %v4623 = vld [vmem:[#allocation9 + $0x78] sm:$0xff]
    %v4624 = vld [vmem:[#allocation9 + $0x80] sm:$0xff]
    %v4625 = vld [vmem:[#allocation9 + $0x88] sm:$0xff]
    %v4626 = vld [vmem:[#allocation9 + $0x90] sm:$0xff]
    %v4627 = vld [vmem:[#allocation9 + $0x98] sm:$0xff]
    %v4628 = vld [vmem:[#allocation2] sm:$0xc0]
    %v4629 = vld [vmem:[#allocation2 + $0x8] sm:$0xc0]
    %v4630 = vpack.c.bf16 %v4628, %v4628
    %v4631 = vpack.c.bf16 %v4629, %v4629
    %v4632 = vld [vmem:[%s3887] sm:$0xff]
    %v4633 = vld [vmem:[%s3887 + $0x8] sm:$0xff]
    %v4634 = vld [vmem:[%s3887 + $0x10] sm:$0xff]
    %v4635 = vld [vmem:[%s3887 + $0x18] sm:$0xff]
    %v4636 = vld [vmem:[%s3887 + $0x20] sm:$0xff]
    %v4637 = vld [vmem:[%s3887 + $0x28] sm:$0xff]
    %v4638 = vld [vmem:[%s3887 + $0x30] sm:$0xff]
    %v4639 = vld [vmem:[%s3887 + $0x38] sm:$0xff]
    %v4640 = vld [vmem:[%s3887 + $0x40] sm:$0xff]
    %v4641 = vld [vmem:[%s3887 + $0x48] sm:$0xff]
    %v4642 = vld [vmem:[%s3887 + $0x50] sm:$0xff]
    %v4643 = vld [vmem:[%s3887 + $0x58] sm:$0xff]
    %v4644 = vld [vmem:[%s3887 + $0x60] sm:$0xff]
    %v4645 = vld [vmem:[%s3887 + $0x68] sm:$0xff]
    %v4646 = vld [vmem:[%s3887 + $0x70] sm:$0xff]
    %v4647 = vld [vmem:[%s3887 + $0x78] sm:$0xff]
    %v4648 = vld [vmem:[%s3887 + $0x80] sm:$0xff]
    %v4649 = vld [vmem:[%s3887 + $0x88] sm:$0xff]
    %v4650 = vld [vmem:[%s3887 + $0x90] sm:$0xff]
    %v4651 = vld [vmem:[%s3887 + $0x98] sm:$0xff]
    %v4654 = vrot.slane %v4630, 3
    %v4655 = vrot.slane %v4631, 3
    %v4677 = vunpack.c.l.b16 %v4632
    %v4678 = vunpack.c.h.b16 %v4632
    %v4679 = vunpack.c.l.b16 %v4633
    %v4680 = vunpack.c.h.b16 %v4633
    %v4681 = vunpack.c.l.b16 %v4634
    %v4682 = vunpack.c.h.b16 %v4634
    %v4683 = vunpack.c.l.b16 %v4635
    %v4684 = vunpack.c.h.b16 %v4635
    %v4685 = vunpack.c.l.b16 %v4636
    %v4686 = vunpack.c.h.b16 %v4636
    %v4687 = vunpack.c.l.b16 %v4637
    %v4688 = vunpack.c.h.b16 %v4637
    %v4689 = vunpack.c.l.b16 %v4638
    %v4690 = vunpack.c.h.b16 %v4638
    %v4691 = vunpack.c.l.b16 %v4639
    %v4692 = vunpack.c.h.b16 %v4639
    %v4693 = vunpack.c.l.b16 %v4640
    %v4694 = vunpack.c.h.b16 %v4640
    %v4695 = vunpack.c.l.b16 %v4641
    %v4696 = vunpack.c.h.b16 %v4641
    %v4697 = vunpack.c.l.b16 %v4642
    %v4698 = vunpack.c.h.b16 %v4642
    %v4699 = vunpack.c.l.b16 %v4643
    %v4700 = vunpack.c.h.b16 %v4643
    %v4701 = vunpack.c.l.b16 %v4644
    %v4702 = vunpack.c.h.b16 %v4644
    %v4703 = vunpack.c.l.b16 %v4645
    %v4704 = vunpack.c.h.b16 %v4645
    %v4705 = vunpack.c.l.b16 %v4646
    %v4706 = vunpack.c.h.b16 %v4646
    %v4707 = vunpack.c.l.b16 %v4647
    %v4708 = vunpack.c.h.b16 %v4647
    %v4709 = vunpack.c.l.b16 %v4648
    %v4710 = vunpack.c.h.b16 %v4648
    %v4711 = vunpack.c.l.b16 %v4649
    %v4712 = vunpack.c.h.b16 %v4649
    %v4713 = vunpack.c.l.b16 %v4650
    %v4714 = vunpack.c.h.b16 %v4650
    %v4715 = vunpack.c.l.b16 %v4651
    %v4716 = vunpack.c.h.b16 %v4651
    %v4717 = vpack.c.b16 %v4679, %v4677
    %v4718 = vpack.c.b16 %v4680, %v4678
    %v4719 = vpack.c.b16 %v4683, %v4681
    %v4720 = vpack.c.b16 %v4684, %v4682
    %v4721 = vpack.c.b16 %v4687, %v4685
    %v4722 = vpack.c.b16 %v4688, %v4686
    %v4723 = vpack.c.b16 %v4691, %v4689
    %v4724 = vpack.c.b16 %v4692, %v4690
    %v4725 = vpack.c.b16 %v4695, %v4693
    %v4726 = vpack.c.b16 %v4696, %v4694
    %v4727 = vpack.c.b16 %v4699, %v4697
    %v4728 = vpack.c.b16 %v4700, %v4698
    %v4729 = vpack.c.b16 %v4703, %v4701
    %v4730 = vpack.c.b16 %v4704, %v4702
    %v4731 = vpack.c.b16 %v4707, %v4705
    %v4732 = vpack.c.b16 %v4708, %v4706
    %v4733 = vpack.c.b16 %v4711, %v4709
    %v4734 = vpack.c.b16 %v4712, %v4710
    %v4735 = vpack.c.b16 %v4715, %v4713
    %v4736 = vpack.c.b16 %v4716, %v4714
    %v4758 = vsel %vm3621, %v4655, 0
    %4760 = vmatprep.subr.bf16.mxu0 %v4732
    %4761 = vmatpush1.bf16.msra.mxu0 %v4731
    %4762 = vmatprep.subr.bf16.mxu0 %v4730
    %4763 = vmatpush1.bf16.msra.mxu0 %v4729
    %4764 = vmatprep.subr.bf16.mxu0 %v4728
    %4765 = vmatpush1.bf16.msra.mxu0 %v4727
    %4766 = vmatprep.subr.bf16.mxu0 %v4726
    %4767 = vmatpush1.bf16.msra.mxu0 %v4725
    %4768 = vmatprep.subr.bf16.mxu0 %v4724
    %4769 = vmatpush1.bf16.msra.mxu0 %v4723
    %4770 = vmatprep.subr.bf16.mxu0 %v4722
    %4771 = vmatpush1.bf16.msra.mxu0 %v4721
    %4772 = vmatprep.subr.bf16.mxu0 %v4720
    %4773 = vmatpush1.bf16.msra.mxu0 %v4719
    %4774 = vmatprep.subr.bf16.mxu0 %v4718
    %4775 = vmatpush1.bf16.msra.mxu0 %v4717
    %4776 = vmatprep.subr.bf16.mxu0 0
    %4777 = vmatpush2.bf16.msra.mxu0 0
    %4778 = vmatprep.subr.bf16.mxu0 0
    %4779 = vmatpush2.bf16.msra.mxu0 0
    %4780 = vmatprep.subr.bf16.mxu0 0
    %4781 = vmatpush2.bf16.msra.mxu0 0
    %4782 = vmatprep.subr.bf16.mxu0 0
    %4783 = vmatpush2.bf16.msra.mxu0 0
    %4784 = vmatprep.subr.bf16.mxu0 0
    %4785 = vmatpush2.bf16.msra.mxu0 0
    %4786 = vmatprep.subr.bf16.mxu0 0
    %4787 = vmatpush2.bf16.msra.mxu0 0
    %4788 = vmatprep.subr.bf16.mxu0 %v4736
    %4789 = vmatpush2.bf16.msra.mxu0 %v4735
    %4790 = vmatprep.subr.bf16.mxu0 %v4734
    %4791 = vmatpush2.bf16.msra.mxu0 %v4733
    %4792 = vmatprep.mubr.bf16.mxu0 %v4758
    %4793 = vmatmul.mubr.bf16.gmra.mxu0 %v4654
    %v4794 = vpop.f32.mrf.mxu0
    %v4795 = vadd.f32 0.0, %v4794
    %v4796 = vpop.f32.mrf.mxu0
    %v4797 = vadd.f32 0.0, %v4796
    %v4798 = vpop.f32.mrf.mxu0
    %v4799 = vpop.f32.mrf.mxu0
    %4800 = vdwg.mxu0
    %v4803 = vrot.slane %v4606, 2
    %v4804 = vrot.slane %v4607, 2
    %v4826 = vunpack.c.l.b16 %v4608
    %v4827 = vunpack.c.h.b16 %v4608
    %v4828 = vunpack.c.l.b16 %v4609
    %v4829 = vunpack.c.h.b16 %v4609
    %v4830 = vunpack.c.l.b16 %v4610
    %v4831 = vunpack.c.h.b16 %v4610
    %v4832 = vunpack.c.l.b16 %v4611
    %v4833 = vunpack.c.h.b16 %v4611
    %v4834 = vunpack.c.l.b16 %v4612
    %v4835 = vunpack.c.h.b16 %v4612
    %v4836 = vunpack.c.l.b16 %v4613
    %v4837 = vunpack.c.h.b16 %v4613
    %v4838 = vunpack.c.l.b16 %v4614
    %v4839 = vunpack.c.h.b16 %v4614
    %v4840 = vunpack.c.l.b16 %v4615
    %v4841 = vunpack.c.h.b16 %v4615
    %v4842 = vunpack.c.l.b16 %v4616
    %v4843 = vunpack.c.h.b16 %v4616
    %v4844 = vunpack.c.l.b16 %v4617
    %v4845 = vunpack.c.h.b16 %v4617
    %v4846 = vunpack.c.l.b16 %v4618
    %v4847 = vunpack.c.h.b16 %v4618
    %v4848 = vunpack.c.l.b16 %v4619
    %v4849 = vunpack.c.h.b16 %v4619
    %v4850 = vunpack.c.l.b16 %v4620
    %v4851 = vunpack.c.h.b16 %v4620
    %v4852 = vunpack.c.l.b16 %v4621
    %v4853 = vunpack.c.h.b16 %v4621
    %v4854 = vunpack.c.l.b16 %v4622
    %v4855 = vunpack.c.h.b16 %v4622
    %v4856 = vunpack.c.l.b16 %v4623
    %v4857 = vunpack.c.h.b16 %v4623
    %v4858 = vunpack.c.l.b16 %v4624
    %v4859 = vunpack.c.h.b16 %v4624
    %v4860 = vunpack.c.l.b16 %v4625
    %v4861 = vunpack.c.h.b16 %v4625
    %v4862 = vunpack.c.l.b16 %v4626
    %v4863 = vunpack.c.h.b16 %v4626
    %v4864 = vunpack.c.l.b16 %v4627
    %v4865 = vunpack.c.h.b16 %v4627
    %v4866 = vpack.c.b16 %v4828, %v4826
    %v4867 = vpack.c.b16 %v4829, %v4827
    %v4868 = vpack.c.b16 %v4832, %v4830
    %v4869 = vpack.c.b16 %v4833, %v4831
    %v4870 = vpack.c.b16 %v4836, %v4834
    %v4871 = vpack.c.b16 %v4837, %v4835
    %v4872 = vpack.c.b16 %v4840, %v4838
    %v4873 = vpack.c.b16 %v4841, %v4839
    %v4874 = vpack.c.b16 %v4844, %v4842
    %v4875 = vpack.c.b16 %v4845, %v4843
    %v4876 = vpack.c.b16 %v4848, %v4846
    %v4877 = vpack.c.b16 %v4849, %v4847
    %v4878 = vpack.c.b16 %v4852, %v4850
    %v4879 = vpack.c.b16 %v4853, %v4851
    %v4880 = vpack.c.b16 %v4856, %v4854
    %v4881 = vpack.c.b16 %v4857, %v4855
    %v4882 = vpack.c.b16 %v4860, %v4858
    %v4883 = vpack.c.b16 %v4861, %v4859
    %v4884 = vpack.c.b16 %v4864, %v4862
    %v4885 = vpack.c.b16 %v4865, %v4863
    %v4907 = vsel %vm3621, %v4804, 0
    %4909 = vmatprep.subr.bf16.mxu0 %v4881
    %4910 = vmatpush1.bf16.msra.mxu0 %v4880
    %4911 = vmatprep.subr.bf16.mxu0 %v4879
    %4912 = vmatpush1.bf16.msra.mxu0 %v4878
    %4913 = vmatprep.subr.bf16.mxu0 %v4877
    %4914 = vmatpush1.bf16.msra.mxu0 %v4876
    %4915 = vmatprep.subr.bf16.mxu0 %v4875
    %4916 = vmatpush1.bf16.msra.mxu0 %v4874
    %4917 = vmatprep.subr.bf16.mxu0 %v4873
    %4918 = vmatpush1.bf16.msra.mxu0 %v4872
    %4919 = vmatprep.subr.bf16.mxu0 %v4871
    %4920 = vmatpush1.bf16.msra.mxu0 %v4870
    %4921 = vmatprep.subr.bf16.mxu0 %v4869
    %4922 = vmatpush1.bf16.msra.mxu0 %v4868
    %4923 = vmatprep.subr.bf16.mxu0 %v4867
    %4924 = vmatpush1.bf16.msra.mxu0 %v4866
    %4925 = vmatprep.subr.bf16.mxu0 0
    %4926 = vmatpush2.bf16.msra.mxu0 0
    %4927 = vmatprep.subr.bf16.mxu0 0
    %4928 = vmatpush2.bf16.msra.mxu0 0
    %4929 = vmatprep.subr.bf16.mxu0 0
    %4930 = vmatpush2.bf16.msra.mxu0 0
    %4931 = vmatprep.subr.bf16.mxu0 0
    %4932 = vmatpush2.bf16.msra.mxu0 0
    %4933 = vmatprep.subr.bf16.mxu0 0
    %4934 = vmatpush2.bf16.msra.mxu0 0
    %4935 = vmatprep.subr.bf16.mxu0 0
    %4936 = vmatpush2.bf16.msra.mxu0 0
    %4937 = vmatprep.subr.bf16.mxu0 %v4885
    %4938 = vmatpush2.bf16.msra.mxu0 %v4884
    %4939 = vmatprep.subr.bf16.mxu0 %v4883
    %4940 = vmatpush2.bf16.msra.mxu0 %v4882
    %4941 = vmatprep.mubr.bf16.mxu0 %v4907
    %4942 = vmatmul.mubr.bf16.gmra.mxu0 %v4803
    %v4943 = vpop.f32.mrf.mxu0
    %v4944 = vadd.f32 %v4795, %v4943
    %v4945 = vpop.f32.mrf.mxu0
    %v4946 = vadd.f32 %v4797, %v4945
    %v4947 = vpop.f32.mrf.mxu0
    %v4948 = vpop.f32.mrf.mxu0
    %4949 = vdwg.mxu0
    %v4950 = vld [vmem:[#allocation2 + $0x10] sm:$0x3]
    %v4951 = vld [vmem:[#allocation2 + $0x18] sm:$0x3]
    %v4952 = vpack.c.bf16 %v4950, %v4950
    %v4953 = vpack.c.bf16 %v4951, %v4951
    %v4954 = vld [vmem:[%s3470] sm:$0xff]
    %v4955 = vld [vmem:[%s3470 + $0x8] sm:$0xff]
    %v4956 = vld [vmem:[%s3470 + $0x10] sm:$0xff]
    %v4957 = vld [vmem:[%s3470 + $0x18] sm:$0xff]
    %v4958 = vld [vmem:[%s3470 + $0x20] sm:$0xff]
    %v4959 = vld [vmem:[%s3470 + $0x28] sm:$0xff]
    %v4960 = vld [vmem:[%s3470 + $0x30] sm:$0xff]
    %v4961 = vld [vmem:[%s3470 + $0x38] sm:$0xff]
    %v4962 = vld [vmem:[%s3470 + $0x40] sm:$0xff]
    %v4963 = vld [vmem:[%s3470 + $0x48] sm:$0xff]
    %v4964 = vld [vmem:[%s3470 + $0x50] sm:$0xff]
    %v4965 = vld [vmem:[%s3470 + $0x58] sm:$0xff]
    %v4966 = vld [vmem:[%s3470 + $0x60] sm:$0xff]
    %v4967 = vld [vmem:[%s3470 + $0x68] sm:$0xff]
    %v4968 = vld [vmem:[%s3470 + $0x70] sm:$0xff]
    %v4969 = vld [vmem:[%s3470 + $0x78] sm:$0xff]
    %v4970 = vld [vmem:[%s3470 + $0x80] sm:$0xff]
    %v4971 = vld [vmem:[%s3470 + $0x88] sm:$0xff]
    %v4972 = vld [vmem:[%s3470 + $0x90] sm:$0xff]
    %v4973 = vld [vmem:[%s3470 + $0x98] sm:$0xff]
    %v4994 = vunpack.c.l.b16 %v4954
    %v4995 = vunpack.c.h.b16 %v4954
    %v4996 = vunpack.c.l.b16 %v4955
    %v4997 = vunpack.c.h.b16 %v4955
    %v4998 = vunpack.c.l.b16 %v4956
    %v4999 = vunpack.c.h.b16 %v4956
    %v5000 = vunpack.c.l.b16 %v4957
    %v5001 = vunpack.c.h.b16 %v4957
    %v5002 = vunpack.c.l.b16 %v4958
    %v5003 = vunpack.c.h.b16 %v4958
    %v5004 = vunpack.c.l.b16 %v4959
    %v5005 = vunpack.c.h.b16 %v4959
    %v5006 = vunpack.c.l.b16 %v4960
    %v5007 = vunpack.c.h.b16 %v4960
    %v5008 = vunpack.c.l.b16 %v4961
    %v5009 = vunpack.c.h.b16 %v4961
    %v5010 = vunpack.c.l.b16 %v4962
    %v5011 = vunpack.c.h.b16 %v4962
    %v5012 = vunpack.c.l.b16 %v4963
    %v5013 = vunpack.c.h.b16 %v4963
    %v5014 = vunpack.c.l.b16 %v4964
    %v5015 = vunpack.c.h.b16 %v4964
    %v5016 = vunpack.c.l.b16 %v4965
    %v5017 = vunpack.c.h.b16 %v4965
    %v5018 = vunpack.c.l.b16 %v4966
    %v5019 = vunpack.c.h.b16 %v4966
    %v5020 = vunpack.c.l.b16 %v4967
    %v5021 = vunpack.c.h.b16 %v4967
    %v5022 = vunpack.c.l.b16 %v4968
    %v5023 = vunpack.c.h.b16 %v4968
    %v5024 = vunpack.c.l.b16 %v4969
    %v5025 = vunpack.c.h.b16 %v4969
    %v5026 = vunpack.c.l.b16 %v4970
    %v5027 = vunpack.c.h.b16 %v4970
    %v5028 = vunpack.c.l.b16 %v4971
    %v5029 = vunpack.c.h.b16 %v4971
    %v5030 = vunpack.c.l.b16 %v4972
    %v5031 = vunpack.c.h.b16 %v4972
    %v5032 = vunpack.c.l.b16 %v4973
    %v5033 = vunpack.c.h.b16 %v4973
    %v5034 = vpack.c.b16 %v4996, %v4994
    %v5035 = vpack.c.b16 %v4997, %v4995
    %v5036 = vpack.c.b16 %v5000, %v4998
    %v5037 = vpack.c.b16 %v5001, %v4999
    %v5038 = vpack.c.b16 %v5004, %v5002
    %v5039 = vpack.c.b16 %v5005, %v5003
    %v5040 = vpack.c.b16 %v5008, %v5006
    %v5041 = vpack.c.b16 %v5009, %v5007
    %v5042 = vpack.c.b16 %v5012, %v5010
    %v5043 = vpack.c.b16 %v5013, %v5011
    %v5044 = vpack.c.b16 %v5016, %v5014
    %v5045 = vpack.c.b16 %v5017, %v5015
    %v5046 = vpack.c.b16 %v5020, %v5018
    %v5047 = vpack.c.b16 %v5021, %v5019
    %v5048 = vpack.c.b16 %v5024, %v5022
    %v5049 = vpack.c.b16 %v5025, %v5023
    %v5050 = vpack.c.b16 %v5028, %v5026
    %v5051 = vpack.c.b16 %v5029, %v5027
    %v5052 = vpack.c.b16 %v5032, %v5030
    %v5053 = vpack.c.b16 %v5033, %v5031
    %v5075 = vsel %vm3621, %v4953, 0
    %5077 = vmatprep.subr.bf16.mxu0 %v5049
    %5078 = vmatpush1.bf16.msra.mxu0 %v5048
    %5079 = vmatprep.subr.bf16.mxu0 %v5047
    %5080 = vmatpush1.bf16.msra.mxu0 %v5046
    %5081 = vmatprep.subr.bf16.mxu0 %v5045
    %5082 = vmatpush1.bf16.msra.mxu0 %v5044
    %5083 = vmatprep.subr.bf16.mxu0 %v5043
    %5084 = vmatpush1.bf16.msra.mxu0 %v5042
    %5085 = vmatprep.subr.bf16.mxu0 %v5041
    %5086 = vmatpush1.bf16.msra.mxu0 %v5040
    %5087 = vmatprep.subr.bf16.mxu0 %v5039
    %5088 = vmatpush1.bf16.msra.mxu0 %v5038
    %5089 = vmatprep.subr.bf16.mxu0 %v5037
    %5090 = vmatpush1.bf16.msra.mxu0 %v5036
    %5091 = vmatprep.subr.bf16.mxu0 %v5035
    %5092 = vmatpush1.bf16.msra.mxu0 %v5034
    %5093 = vmatprep.subr.bf16.mxu0 0
    %5094 = vmatpush2.bf16.msra.mxu0 0
    %5095 = vmatprep.subr.bf16.mxu0 0
    %5096 = vmatpush2.bf16.msra.mxu0 0
    %5097 = vmatprep.subr.bf16.mxu0 0
    %5098 = vmatpush2.bf16.msra.mxu0 0
    %5099 = vmatprep.subr.bf16.mxu0 0
    %5100 = vmatpush2.bf16.msra.mxu0 0
    %5101 = vmatprep.subr.bf16.mxu0 0
    %5102 = vmatpush2.bf16.msra.mxu0 0
    %5103 = vmatprep.subr.bf16.mxu0 0
    %5104 = vmatpush2.bf16.msra.mxu0 0
    %5105 = vmatprep.subr.bf16.mxu0 %v5053
    %5106 = vmatpush2.bf16.msra.mxu0 %v5052
    %5107 = vmatprep.subr.bf16.mxu0 %v5051
    %5108 = vmatpush2.bf16.msra.mxu0 %v5050
    %5109 = vmatprep.mubr.bf16.mxu0 %v5075
    %5110 = vmatmul.mubr.bf16.gmra.mxu0 %v4952
    %v5111 = vpop.f32.mrf.mxu0
    %v5112 = vadd.f32 0.0, %v5111
    %v5113 = vpop.f32.mrf.mxu0
    %v5114 = vadd.f32 0.0, %v5113
    %v5115 = vpop.f32.mrf.mxu0
    %v5116 = vpop.f32.mrf.mxu0
    %5117 = vdwg.mxu0
    %v5118 = vadd.f32 %v4944, %v5112
    %v5119 = vadd.f32 %v4946, %v5114
    %v5120 = vld [vmem:[#allocation10] ss:$4 sm:$0x3]
    %v5122 = vlaneseq
    %v5123 = vshrl.u32 %v5122, 7
    %v5124 = vsub.s32 0, %v5123
    %v5125 = vrot.slane %v5120, %v5124
    %v5126 = vlaneseq
    %v5127 = vshrl.u32 %v5126, 7
    %v5128 = vsub.s32 1, %v5127
    %v5129 = vrot.slane %v5120, %v5128
    %v5132 = vadd.f32 %v5118, %v5125
    %v5133 = vadd.f32 %v5119, %v5129
    %v5134 = vmax.f32 %v5132, 0.0
    %v5135 = vmax.f32 %v5133, 0.0
    %v5136 = vld [vmem:[%s3826] ss:$4 sm:$0x3]
    %v5138 = vlaneseq
    %v5139 = vshrl.u32 %v5138, 7
    %v5140 = vsub.s32 0, %v5139
    %v5141 = vrot.slane %v5136, %v5140
    %v5142 = vlaneseq
    %v5143 = vshrl.u32 %v5142, 7
    %v5144 = vsub.s32 1, %v5143
    %v5145 = vrot.slane %v5136, %v5144
    %v5148 = vmul.f32 %v5134, %v5141
    %v5149 = vmul.f32 %v5135, %v5145
    %v5150 = vld [vmem:[%s3841] ss:$4 sm:$0x3]
    %v5152 = vlaneseq
    %v5153 = vshrl.u32 %v5152, 7
    %v5154 = vsub.s32 0, %v5153
    %v5155 = vrot.slane %v5150, %v5154
    %v5156 = vlaneseq
    %v5157 = vshrl.u32 %v5156, 7
    %v5158 = vsub.s32 1, %v5157
    %v5159 = vrot.slane %v5150, %v5158
    %v5162 = vadd.f32 %v5148, %v5155
    %v5163 = vadd.f32 %v5149, %v5159
    %v5166 = vrot.slane %v5162, 4
    %v5167 = vrot.slane %v5163, 4
    %5170 = vst [vmem:[#allocation3] sm:$0x30] %v5166
    %vm5171 = vcmask 521220
    %5172 = vst.msk [vmem:[#allocation3 + $0x8] sm:$0x30] %vm5171, %v5167
    %v5173 = vld [vmem:[#allocation3] sm:$0x3]
    %v5174 = vld [vmem:[#allocation3 + $0x8] sm:$0x3]
    %v5175 = vpack.c.bf16 %v5173, %v5173
    %v5176 = vpack.c.bf16 %v5174, %v5174
    %s5177 = scalar_lea.vmem [#allocation12], 288
    %v5178 = vld [vmem:[%s5177] sm:$0xff]
    %v5179 = vld [vmem:[%s5177 + $0x8] sm:$0xf]
    %v5180 = vld [vmem:[%s5177 + $0xc] sm:$0xff]
    %v5181 = vld [vmem:[%s5177 + $0x14] sm:$0xf]
    %v5182 = vld [vmem:[%s5177 + $0x18] sm:$0xff]
    %v5183 = vld [vmem:[%s5177 + $0x20] sm:$0xf]
    %v5184 = vld [vmem:[%s5177 + $0x24] sm:$0xff]
    %v5185 = vld [vmem:[%s5177 + $0x2c] sm:$0xf]
    %v5186 = vld [vmem:[%s5177 + $0x30] sm:$0xff]
    %v5187 = vld [vmem:[%s5177 + $0x38] sm:$0xf]
    %v5188 = vld [vmem:[%s5177 + $0x3c] sm:$0xff]
    %v5189 = vld [vmem:[%s5177 + $0x44] sm:$0xf]
    %v5190 = vld [vmem:[%s5177 + $0x48] sm:$0xff]
    %v5191 = vld [vmem:[%s5177 + $0x50] sm:$0xf]
    %v5192 = vld [vmem:[%s5177 + $0x54] sm:$0xff]
    %v5193 = vld [vmem:[%s5177 + $0x5c] sm:$0xf]
    %v5194 = vld [vmem:[%s5177 + $0x60] sm:$0xff]
    %v5195 = vld [vmem:[%s5177 + $0x68] sm:$0xf]
    %v5196 = vld [vmem:[%s5177 + $0x6c] sm:$0xff]
    %v5197 = vld [vmem:[%s5177 + $0x74] sm:$0xf]
    %v5198 = vld [vmem:[%s5177 + $0x78] sm:$0xff]
    %v5199 = vld [vmem:[%s5177 + $0x80] sm:$0xf]
    %v5200 = vld [vmem:[%s5177 + $0x84] sm:$0xff]
    %v5201 = vld [vmem:[%s5177 + $0x8c] sm:$0xf]
    %v5202 = vld [vmem:[%s5177 + $0x90] sm:$0xff]
    %v5203 = vld [vmem:[%s5177 + $0x98] sm:$0xf]
    %v5204 = vld [vmem:[%s5177 + $0x9c] sm:$0xff]
    %v5205 = vld [vmem:[%s5177 + $0xa4] sm:$0xf]
    %v5206 = vld [vmem:[%s5177 + $0xa8] sm:$0xff]
    %v5207 = vld [vmem:[%s5177 + $0xb0] sm:$0xf]
    %v5208 = vld [vmem:[%s5177 + $0xb4] sm:$0xff]
    %v5209 = vld [vmem:[%s5177 + $0xbc] sm:$0xf]
    %v5210 = vld [vmem:[%s5177 + $0xc0] sm:$0xff]
    %v5211 = vld [vmem:[%s5177 + $0xc8] sm:$0xf]
    %v5212 = vld [vmem:[%s5177 + $0xcc] sm:$0xff]
    %v5213 = vld [vmem:[%s5177 + $0xd4] sm:$0xf]
    %v5214 = vld [vmem:[%s5177 + $0xd8] sm:$0xff]
    %v5215 = vld [vmem:[%s5177 + $0xe0] sm:$0xf]
    %v5216 = vld [vmem:[%s5177 + $0xe4] sm:$0xff]
    %v5217 = vld [vmem:[%s5177 + $0xec] sm:$0xf]
    %v5218 = vld [vmem:[%s5177 + $0xf0] sm:$0xff]
    %v5219 = vld [vmem:[%s5177 + $0xf8] sm:$0xf]
    %v5220 = vld [vmem:[%s5177 + $0xfc] sm:$0xff]
    %v5221 = vld [vmem:[%s5177 + $0x104] sm:$0xf]
    %v5222 = vld [vmem:[%s5177 + $0x108] sm:$0xff]
    %v5223 = vld [vmem:[%s5177 + $0x110] sm:$0xf]
    %v5224 = vld [vmem:[%s5177 + $0x114] sm:$0xff]
    %v5225 = vld [vmem:[%s5177 + $0x11c] sm:$0xf]
    %v5226 = vld [vmem:[#allocation3] sm:$0xc]
    %v5227 = vld [vmem:[#allocation3 + $0x8] sm:$0xc]
    %v5228 = vpack.c.bf16 %v5226, %v5226
    %v5229 = vpack.c.bf16 %v5227, %v5227
    %s5230 = scalar_lea.vmem [#allocation12], 576
    %v5231 = vld [vmem:[%s5230] sm:$0xff]
    %v5232 = vld [vmem:[%s5230 + $0x8] sm:$0xf]
    %v5233 = vld [vmem:[%s5230 + $0xc] sm:$0xff]
    %v5234 = vld [vmem:[%s5230 + $0x14] sm:$0xf]
    %v5235 = vld [vmem:[%s5230 + $0x18] sm:$0xff]
    %v5236 = vld [vmem:[%s5230 + $0x20] sm:$0xf]
    %v5237 = vld [vmem:[%s5230 + $0x24] sm:$0xff]
    %v5238 = vld [vmem:[%s5230 + $0x2c] sm:$0xf]
    %v5239 = vld [vmem:[%s5230 + $0x30] sm:$0xff]
    %v5240 = vld [vmem:[%s5230 + $0x38] sm:$0xf]
    %v5241 = vld [vmem:[%s5230 + $0x3c] sm:$0xff]
    %v5242 = vld [vmem:[%s5230 + $0x44] sm:$0xf]
    %v5243 = vld [vmem:[%s5230 + $0x48] sm:$0xff]
    %v5244 = vld [vmem:[%s5230 + $0x50] sm:$0xf]
    %v5245 = vld [vmem:[%s5230 + $0x54] sm:$0xff]
    %v5246 = vld [vmem:[%s5230 + $0x5c] sm:$0xf]
    %v5247 = vld [vmem:[%s5230 + $0x60] sm:$0xff]
    %v5248 = vld [vmem:[%s5230 + $0x68] sm:$0xf]
    %v5249 = vld [vmem:[%s5230 + $0x6c] sm:$0xff]
    %v5250 = vld [vmem:[%s5230 + $0x74] sm:$0xf]
    %v5251 = vld [vmem:[%s5230 + $0x78] sm:$0xff]
    %v5252 = vld [vmem:[%s5230 + $0x80] sm:$0xf]
    %v5253 = vld [vmem:[%s5230 + $0x84] sm:$0xff]
    %v5254 = vld [vmem:[%s5230 + $0x8c] sm:$0xf]
    %v5255 = vld [vmem:[%s5230 + $0x90] sm:$0xff]
    %v5256 = vld [vmem:[%s5230 + $0x98] sm:$0xf]
    %v5257 = vld [vmem:[%s5230 + $0x9c] sm:$0xff]
    %v5258 = vld [vmem:[%s5230 + $0xa4] sm:$0xf]
    %v5259 = vld [vmem:[%s5230 + $0xa8] sm:$0xff]
    %v5260 = vld [vmem:[%s5230 + $0xb0] sm:$0xf]
    %v5261 = vld [vmem:[%s5230 + $0xb4] sm:$0xff]
    %v5262 = vld [vmem:[%s5230 + $0xbc] sm:$0xf]
    %v5263 = vld [vmem:[%s5230 + $0xc0] sm:$0xff]
    %v5264 = vld [vmem:[%s5230 + $0xc8] sm:$0xf]
    %v5265 = vld [vmem:[%s5230 + $0xcc] sm:$0xff]
    %v5266 = vld [vmem:[%s5230 + $0xd4] sm:$0xf]
    %v5267 = vld [vmem:[%s5230 + $0xd8] sm:$0xff]
    %v5268 = vld [vmem:[%s5230 + $0xe0] sm:$0xf]
    %v5269 = vld [vmem:[%s5230 + $0xe4] sm:$0xff]
    %v5270 = vld [vmem:[%s5230 + $0xec] sm:$0xf]
    %v5271 = vld [vmem:[%s5230 + $0xf0] sm:$0xff]
    %v5272 = vld [vmem:[%s5230 + $0xf8] sm:$0xf]
    %v5273 = vld [vmem:[%s5230 + $0xfc] sm:$0xff]
    %v5274 = vld [vmem:[%s5230 + $0x104] sm:$0xf]
    %v5275 = vld [vmem:[%s5230 + $0x108] sm:$0xff]
    %v5276 = vld [vmem:[%s5230 + $0x110] sm:$0xf]
    %v5277 = vld [vmem:[%s5230 + $0x114] sm:$0xff]
    %v5278 = vld [vmem:[%s5230 + $0x11c] sm:$0xf]
    %v5281 = vrot.slane %v5228, 1
    %v5282 = vrot.slane %v5229, 1
    %v5332 = vunpack.c.l.b16 %v5231
    %v5333 = vunpack.c.h.b16 %v5231
    %v5334 = vunpack.c.l.b16 %v5232
    %v5335 = vunpack.c.l.b16 %v5233
    %v5336 = vunpack.c.h.b16 %v5233
    %v5337 = vunpack.c.l.b16 %v5234
    %v5338 = vunpack.c.l.b16 %v5235
    %v5339 = vunpack.c.h.b16 %v5235
    %v5340 = vunpack.c.l.b16 %v5236
    %v5341 = vunpack.c.l.b16 %v5237
    %v5342 = vunpack.c.h.b16 %v5237
    %v5343 = vunpack.c.l.b16 %v5238
    %v5344 = vunpack.c.l.b16 %v5239
    %v5345 = vunpack.c.h.b16 %v5239
    %v5346 = vunpack.c.l.b16 %v5240
    %v5347 = vunpack.c.l.b16 %v5241
    %v5348 = vunpack.c.h.b16 %v5241
    %v5349 = vunpack.c.l.b16 %v5242
    %v5350 = vunpack.c.l.b16 %v5243
    %v5351 = vunpack.c.h.b16 %v5243
    %v5352 = vunpack.c.l.b16 %v5244
    %v5353 = vunpack.c.l.b16 %v5245
    %v5354 = vunpack.c.h.b16 %v5245
    %v5355 = vunpack.c.l.b16 %v5246
    %v5356 = vunpack.c.l.b16 %v5247
    %v5357 = vunpack.c.h.b16 %v5247
    %v5358 = vunpack.c.l.b16 %v5248
    %v5359 = vunpack.c.l.b16 %v5249
    %v5360 = vunpack.c.h.b16 %v5249
    %v5361 = vunpack.c.l.b16 %v5250
    %v5362 = vunpack.c.l.b16 %v5251
    %v5363 = vunpack.c.h.b16 %v5251
    %v5364 = vunpack.c.l.b16 %v5252
    %v5365 = vunpack.c.l.b16 %v5253
    %v5366 = vunpack.c.h.b16 %v5253
    %v5367 = vunpack.c.l.b16 %v5254
    %v5368 = vunpack.c.l.b16 %v5255
    %v5369 = vunpack.c.h.b16 %v5255
    %v5370 = vunpack.c.l.b16 %v5256
    %v5371 = vunpack.c.l.b16 %v5257
    %v5372 = vunpack.c.h.b16 %v5257
    %v5373 = vunpack.c.l.b16 %v5258
    %v5374 = vunpack.c.l.b16 %v5259
    %v5375 = vunpack.c.h.b16 %v5259
    %v5376 = vunpack.c.l.b16 %v5260
    %v5377 = vunpack.c.l.b16 %v5261
    %v5378 = vunpack.c.h.b16 %v5261
    %v5379 = vunpack.c.l.b16 %v5262
    %v5380 = vunpack.c.l.b16 %v5263
    %v5381 = vunpack.c.h.b16 %v5263
    %v5382 = vunpack.c.l.b16 %v5264
    %v5383 = vunpack.c.l.b16 %v5265
    %v5384 = vunpack.c.h.b16 %v5265
    %v5385 = vunpack.c.l.b16 %v5266
    %v5386 = vunpack.c.l.b16 %v5267
    %v5387 = vunpack.c.h.b16 %v5267
    %v5388 = vunpack.c.l.b16 %v5268
    %v5389 = vunpack.c.l.b16 %v5269
    %v5390 = vunpack.c.h.b16 %v5269
    %v5391 = vunpack.c.l.b16 %v5270
    %v5392 = vunpack.c.l.b16 %v5271
    %v5393 = vunpack.c.h.b16 %v5271
    %v5394 = vunpack.c.l.b16 %v5272
    %v5395 = vunpack.c.l.b16 %v5273
    %v5396 = vunpack.c.h.b16 %v5273
    %v5397 = vunpack.c.l.b16 %v5274
    %v5398 = vunpack.c.l.b16 %v5275
    %v5399 = vunpack.c.h.b16 %v5275
    %v5400 = vunpack.c.l.b16 %v5276
    %v5401 = vunpack.c.l.b16 %v5277
    %v5402 = vunpack.c.h.b16 %v5277
    %v5403 = vunpack.c.l.b16 %v5278
    %v5404 = vpack.c.b16 %v5335, %v5332
    %v5405 = vpack.c.b16 %v5336, %v5333
    %v5406 = vpack.c.b16 %v5337, %v5334
    %v5407 = vpack.c.b16 %v5341, %v5338
    %v5408 = vpack.c.b16 %v5342, %v5339
    %v5409 = vpack.c.b16 %v5343, %v5340
    %v5410 = vpack.c.b16 %v5347, %v5344
    %v5411 = vpack.c.b16 %v5348, %v5345
    %v5412 = vpack.c.b16 %v5349, %v5346
    %v5413 = vpack.c.b16 %v5353, %v5350
    %v5414 = vpack.c.b16 %v5354, %v5351
    %v5415 = vpack.c.b16 %v5355, %v5352
    %v5416 = vpack.c.b16 %v5359, %v5356
    %v5417 = vpack.c.b16 %v5360, %v5357
    %v5418 = vpack.c.b16 %v5361, %v5358
    %v5419 = vpack.c.b16 %v5365, %v5362
    %v5420 = vpack.c.b16 %v5366, %v5363
    %v5421 = vpack.c.b16 %v5367, %v5364
    %v5422 = vpack.c.b16 %v5371, %v5368
    %v5423 = vpack.c.b16 %v5372, %v5369
    %v5424 = vpack.c.b16 %v5373, %v5370
    %v5425 = vpack.c.b16 %v5377, %v5374
    %v5426 = vpack.c.b16 %v5378, %v5375
    %v5427 = vpack.c.b16 %v5379, %v5376
    %v5428 = vpack.c.b16 %v5383, %v5380
    %v5429 = vpack.c.b16 %v5384, %v5381
    %v5430 = vpack.c.b16 %v5385, %v5382
    %v5431 = vpack.c.b16 %v5389, %v5386
    %v5432 = vpack.c.b16 %v5390, %v5387
    %v5433 = vpack.c.b16 %v5391, %v5388
    %v5434 = vpack.c.b16 %v5395, %v5392
    %v5435 = vpack.c.b16 %v5396, %v5393
    %v5436 = vpack.c.b16 %v5397, %v5394
    %v5437 = vpack.c.b16 %v5401, %v5398
    %v5438 = vpack.c.b16 %v5402, %v5399
    %v5439 = vpack.c.b16 %v5403, %v5400
    %v5477 = vsel %vm214, %v5282, 0
    %5479 = vmatprep.subr.bf16.mxu0 %v5426
    %5480 = vmatpush1.bf16.msra.mxu0 %v5425
    %5481 = vmatprep.subr.bf16.mxu0 %v5423
    %5482 = vmatpush1.bf16.msra.mxu0 %v5422
    %5483 = vmatprep.subr.bf16.mxu0 %v5420
    %5484 = vmatpush1.bf16.msra.mxu0 %v5419
    %5485 = vmatprep.subr.bf16.mxu0 %v5417
    %5486 = vmatpush1.bf16.msra.mxu0 %v5416
    %5487 = vmatprep.subr.bf16.mxu0 %v5414
    %5488 = vmatpush1.bf16.msra.mxu0 %v5413
    %5489 = vmatprep.subr.bf16.mxu0 %v5411
    %5490 = vmatpush1.bf16.msra.mxu0 %v5410
    %5491 = vmatprep.subr.bf16.mxu0 %v5408
    %5492 = vmatpush1.bf16.msra.mxu0 %v5407
    %5493 = vmatprep.subr.bf16.mxu0 %v5405
    %5494 = vmatpush1.bf16.msra.mxu0 %v5404
    %5495 = vmatprep.subr.bf16.mxu0 0
    %5496 = vmatpush2.bf16.msra.mxu0 0
    %5497 = vmatprep.subr.bf16.mxu0 0
    %5498 = vmatpush2.bf16.msra.mxu0 0
    %5499 = vmatprep.subr.bf16.mxu0 0
    %5500 = vmatpush2.bf16.msra.mxu0 0
    %5501 = vmatprep.subr.bf16.mxu0 0
    %5502 = vmatpush2.bf16.msra.mxu0 0
    %5503 = vmatprep.subr.bf16.mxu0 %v5438
    %5504 = vmatpush2.bf16.msra.mxu0 %v5437
    %5505 = vmatprep.subr.bf16.mxu0 %v5435
    %5506 = vmatpush2.bf16.msra.mxu0 %v5434
    %5507 = vmatprep.subr.bf16.mxu0 %v5432
    %5508 = vmatpush2.bf16.msra.mxu0 %v5431
    %5509 = vmatprep.subr.bf16.mxu0 %v5429
    %5510 = vmatpush2.bf16.msra.mxu0 %v5428
    %5511 = vmatprep.mubr.bf16.mxu0 %v5477
    %5512 = vmatmul.mubr.bf16.gmra.mxu0 %v5281
    %v5513 = vpop.f32.mrf.mxu0
    %v5514 = vadd.f32 0.0, %v5513
    %v5515 = vpop.f32.mrf.mxu0
    %v5516 = vadd.f32 0.0, %v5515
    %v5517 = vpop.f32.mrf.mxu0
    %v5518 = vpop.f32.mrf.mxu0
    %5519 = vdwg.mxu0
    %5520 = vmatprep.subr.bf16.mxu0 0
    %5521 = vmatpush1.bf16.msra.mxu0 %v5427
    %5522 = vmatprep.subr.bf16.mxu0 0
    %5523 = vmatpush1.bf16.msra.mxu0 %v5424
    %5524 = vmatprep.subr.bf16.mxu0 0
    %5525 = vmatpush1.bf16.msra.mxu0 %v5421
    %5526 = vmatprep.subr.bf16.mxu0 0
    %5527 = vmatpush1.bf16.msra.mxu0 %v5418
    %5528 = vmatprep.subr.bf16.mxu0 0
    %5529 = vmatpush1.bf16.msra.mxu0 %v5415
    %5530 = vmatprep.subr.bf16.mxu0 0
    %5531 = vmatpush1.bf16.msra.mxu0 %v5412
    %5532 = vmatprep.subr.bf16.mxu0 0
    %5533 = vmatpush1.bf16.msra.mxu0 %v5409
    %5534 = vmatprep.subr.bf16.mxu0 0
    %5535 = vmatpush1.bf16.msra.mxu0 %v5406
    %5536 = vmatprep.subr.bf16.mxu0 0
    %5537 = vmatpush2.bf16.msra.mxu0 0
    %5538 = vmatprep.subr.bf16.mxu0 0
    %5539 = vmatpush2.bf16.msra.mxu0 0
    %5540 = vmatprep.subr.bf16.mxu0 0
    %5541 = vmatpush2.bf16.msra.mxu0 0
    %5542 = vmatprep.subr.bf16.mxu0 0
    %5543 = vmatpush2.bf16.msra.mxu0 0
    %5544 = vmatprep.subr.bf16.mxu0 0
    %5545 = vmatpush2.bf16.msra.mxu0 %v5439
    %5546 = vmatprep.subr.bf16.mxu0 0
    %5547 = vmatpush2.bf16.msra.mxu0 %v5436
    %5548 = vmatprep.subr.bf16.mxu0 0
    %5549 = vmatpush2.bf16.msra.mxu0 %v5433
    %5550 = vmatprep.subr.bf16.mxu0 0
    %5551 = vmatpush2.bf16.msra.mxu0 %v5430
    %5552 = vmatprep.mubr.bf16.mxu0 %v5477
    %5553 = vmatmul.mubr.bf16.gmra.mxu0 %v5281
    %v5554 = vpop.f32.mrf.mxu0
    %v5555 = vadd.f32 0.0, %v5554
    %v5556 = vpop.f32.mrf.mxu0
    %v5557 = vpop.f32.mrf.mxu0
    %v5558 = vpop.f32.mrf.mxu0
    %5559 = vdwg.mxu0
    %v5608 = vunpack.c.l.b16 %v5178
    %v5609 = vunpack.c.h.b16 %v5178
    %v5610 = vunpack.c.l.b16 %v5179
    %v5611 = vunpack.c.l.b16 %v5180
    %v5612 = vunpack.c.h.b16 %v5180
    %v5613 = vunpack.c.l.b16 %v5181
    %v5614 = vunpack.c.l.b16 %v5182
    %v5615 = vunpack.c.h.b16 %v5182
    %v5616 = vunpack.c.l.b16 %v5183
    %v5617 = vunpack.c.l.b16 %v5184
    %v5618 = vunpack.c.h.b16 %v5184
    %v5619 = vunpack.c.l.b16 %v5185
    %v5620 = vunpack.c.l.b16 %v5186
    %v5621 = vunpack.c.h.b16 %v5186
    %v5622 = vunpack.c.l.b16 %v5187
    %v5623 = vunpack.c.l.b16 %v5188
    %v5624 = vunpack.c.h.b16 %v5188
    %v5625 = vunpack.c.l.b16 %v5189
    %v5626 = vunpack.c.l.b16 %v5190
    %v5627 = vunpack.c.h.b16 %v5190
    %v5628 = vunpack.c.l.b16 %v5191
    %v5629 = vunpack.c.l.b16 %v5192
    %v5630 = vunpack.c.h.b16 %v5192
    %v5631 = vunpack.c.l.b16 %v5193
    %v5632 = vunpack.c.l.b16 %v5194
    %v5633 = vunpack.c.h.b16 %v5194
    %v5634 = vunpack.c.l.b16 %v5195
    %v5635 = vunpack.c.l.b16 %v5196
    %v5636 = vunpack.c.h.b16 %v5196
    %v5637 = vunpack.c.l.b16 %v5197
    %v5638 = vunpack.c.l.b16 %v5198
    %v5639 = vunpack.c.h.b16 %v5198
    %v5640 = vunpack.c.l.b16 %v5199
    %v5641 = vunpack.c.l.b16 %v5200
    %v5642 = vunpack.c.h.b16 %v5200
    %v5643 = vunpack.c.l.b16 %v5201
    %v5644 = vunpack.c.l.b16 %v5202
    %v5645 = vunpack.c.h.b16 %v5202
    %v5646 = vunpack.c.l.b16 %v5203
    %v5647 = vunpack.c.l.b16 %v5204
    %v5648 = vunpack.c.h.b16 %v5204
    %v5649 = vunpack.c.l.b16 %v5205
    %v5650 = vunpack.c.l.b16 %v5206
    %v5651 = vunpack.c.h.b16 %v5206
    %v5652 = vunpack.c.l.b16 %v5207
    %v5653 = vunpack.c.l.b16 %v5208
    %v5654 = vunpack.c.h.b16 %v5208
    %v5655 = vunpack.c.l.b16 %v5209
    %v5656 = vunpack.c.l.b16 %v5210
    %v5657 = vunpack.c.h.b16 %v5210
    %v5658 = vunpack.c.l.b16 %v5211
    %v5659 = vunpack.c.l.b16 %v5212
    %v5660 = vunpack.c.h.b16 %v5212
    %v5661 = vunpack.c.l.b16 %v5213
    %v5662 = vunpack.c.l.b16 %v5214
    %v5663 = vunpack.c.h.b16 %v5214
    %v5664 = vunpack.c.l.b16 %v5215
    %v5665 = vunpack.c.l.b16 %v5216
    %v5666 = vunpack.c.h.b16 %v5216
    %v5667 = vunpack.c.l.b16 %v5217
    %v5668 = vunpack.c.l.b16 %v5218
    %v5669 = vunpack.c.h.b16 %v5218
    %v5670 = vunpack.c.l.b16 %v5219
    %v5671 = vunpack.c.l.b16 %v5220
    %v5672 = vunpack.c.h.b16 %v5220
    %v5673 = vunpack.c.l.b16 %v5221
    %v5674 = vunpack.c.l.b16 %v5222
    %v5675 = vunpack.c.h.b16 %v5222
    %v5676 = vunpack.c.l.b16 %v5223
    %v5677 = vunpack.c.l.b16 %v5224
    %v5678 = vunpack.c.h.b16 %v5224
    %v5679 = vunpack.c.l.b16 %v5225
    %v5680 = vpack.c.b16 %v5611, %v5608
    %v5681 = vpack.c.b16 %v5612, %v5609
    %v5682 = vpack.c.b16 %v5613, %v5610
    %v5683 = vpack.c.b16 %v5617, %v5614
    %v5684 = vpack.c.b16 %v5618, %v5615
    %v5685 = vpack.c.b16 %v5619, %v5616
    %v5686 = vpack.c.b16 %v5623, %v5620
    %v5687 = vpack.c.b16 %v5624, %v5621
    %v5688 = vpack.c.b16 %v5625, %v5622
    %v5689 = vpack.c.b16 %v5629, %v5626
    %v5690 = vpack.c.b16 %v5630, %v5627
    %v5691 = vpack.c.b16 %v5631, %v5628
    %v5692 = vpack.c.b16 %v5635, %v5632
    %v5693 = vpack.c.b16 %v5636, %v5633
    %v5694 = vpack.c.b16 %v5637, %v5634
    %v5695 = vpack.c.b16 %v5641, %v5638
    %v5696 = vpack.c.b16 %v5642, %v5639
    %v5697 = vpack.c.b16 %v5643, %v5640
    %v5698 = vpack.c.b16 %v5647, %v5644
    %v5699 = vpack.c.b16 %v5648, %v5645
    %v5700 = vpack.c.b16 %v5649, %v5646
    %v5701 = vpack.c.b16 %v5653, %v5650
    %v5702 = vpack.c.b16 %v5654, %v5651
    %v5703 = vpack.c.b16 %v5655, %v5652
    %v5704 = vpack.c.b16 %v5659, %v5656
    %v5705 = vpack.c.b16 %v5660, %v5657
    %v5706 = vpack.c.b16 %v5661, %v5658
    %v5707 = vpack.c.b16 %v5665, %v5662
    %v5708 = vpack.c.b16 %v5666, %v5663
    %v5709 = vpack.c.b16 %v5667, %v5664
    %v5710 = vpack.c.b16 %v5671, %v5668
    %v5711 = vpack.c.b16 %v5672, %v5669
    %v5712 = vpack.c.b16 %v5673, %v5670
    %v5713 = vpack.c.b16 %v5677, %v5674
    %v5714 = vpack.c.b16 %v5678, %v5675
    %v5715 = vpack.c.b16 %v5679, %v5676
    %v5753 = vsel %vm214, %v5176, 0
    %5755 = vmatprep.subr.bf16.mxu0 %v5702
    %5756 = vmatpush1.bf16.msra.mxu0 %v5701
    %5757 = vmatprep.subr.bf16.mxu0 %v5699
    %5758 = vmatpush1.bf16.msra.mxu0 %v5698
    %5759 = vmatprep.subr.bf16.mxu0 %v5696
    %5760 = vmatpush1.bf16.msra.mxu0 %v5695
    %5761 = vmatprep.subr.bf16.mxu0 %v5693
    %5762 = vmatpush1.bf16.msra.mxu0 %v5692
    %5763 = vmatprep.subr.bf16.mxu0 %v5690
    %5764 = vmatpush1.bf16.msra.mxu0 %v5689
    %5765 = vmatprep.subr.bf16.mxu0 %v5687
    %5766 = vmatpush1.bf16.msra.mxu0 %v5686
    %5767 = vmatprep.subr.bf16.mxu0 %v5684
    %5768 = vmatpush1.bf16.msra.mxu0 %v5683
    %5769 = vmatprep.subr.bf16.mxu0 %v5681
    %5770 = vmatpush1.bf16.msra.mxu0 %v5680
    %5771 = vmatprep.subr.bf16.mxu0 0
    %5772 = vmatpush2.bf16.msra.mxu0 0
    %5773 = vmatprep.subr.bf16.mxu0 0
    %5774 = vmatpush2.bf16.msra.mxu0 0
    %5775 = vmatprep.subr.bf16.mxu0 0
    %5776 = vmatpush2.bf16.msra.mxu0 0
    %5777 = vmatprep.subr.bf16.mxu0 0
    %5778 = vmatpush2.bf16.msra.mxu0 0
    %5779 = vmatprep.subr.bf16.mxu0 %v5714
    %5780 = vmatpush2.bf16.msra.mxu0 %v5713
    %5781 = vmatprep.subr.bf16.mxu0 %v5711
    %5782 = vmatpush2.bf16.msra.mxu0 %v5710
    %5783 = vmatprep.subr.bf16.mxu0 %v5708
    %5784 = vmatpush2.bf16.msra.mxu0 %v5707
    %5785 = vmatprep.subr.bf16.mxu0 %v5705
    %5786 = vmatpush2.bf16.msra.mxu0 %v5704
    %5787 = vmatprep.mubr.bf16.mxu0 %v5753
    %5788 = vmatmul.mubr.bf16.gmra.mxu0 %v5175
    %v5789 = vpop.f32.mrf.mxu0
    %v5790 = vadd.f32 %v5514, %v5789
    %v5791 = vpop.f32.mrf.mxu0
    %v5792 = vadd.f32 %v5516, %v5791
    %v5793 = vpop.f32.mrf.mxu0
    %v5794 = vpop.f32.mrf.mxu0
    %5795 = vdwg.mxu0
    %5796 = vmatprep.subr.bf16.mxu0 0
    %5797 = vmatpush1.bf16.msra.mxu0 %v5703
    %5798 = vmatprep.subr.bf16.mxu0 0
    %5799 = vmatpush1.bf16.msra.mxu0 %v5700
    %5800 = vmatprep.subr.bf16.mxu0 0
    %5801 = vmatpush1.bf16.msra.mxu0 %v5697
    %5802 = vmatprep.subr.bf16.mxu0 0
    %5803 = vmatpush1.bf16.msra.mxu0 %v5694
    %5804 = vmatprep.subr.bf16.mxu0 0
    %5805 = vmatpush1.bf16.msra.mxu0 %v5691
    %5806 = vmatprep.subr.bf16.mxu0 0
    %5807 = vmatpush1.bf16.msra.mxu0 %v5688
    %5808 = vmatprep.subr.bf16.mxu0 0
    %5809 = vmatpush1.bf16.msra.mxu0 %v5685
    %5810 = vmatprep.subr.bf16.mxu0 0
    %5811 = vmatpush1.bf16.msra.mxu0 %v5682
    %5812 = vmatprep.subr.bf16.mxu0 0
    %5813 = vmatpush2.bf16.msra.mxu0 0
    %5814 = vmatprep.subr.bf16.mxu0 0
    %5815 = vmatpush2.bf16.msra.mxu0 0
    %5816 = vmatprep.subr.bf16.mxu0 0
    %5817 = vmatpush2.bf16.msra.mxu0 0
    %5818 = vmatprep.subr.bf16.mxu0 0
    %5819 = vmatpush2.bf16.msra.mxu0 0
    %5820 = vmatprep.subr.bf16.mxu0 0
    %5821 = vmatpush2.bf16.msra.mxu0 %v5715
    %5822 = vmatprep.subr.bf16.mxu0 0
    %5823 = vmatpush2.bf16.msra.mxu0 %v5712
    %5824 = vmatprep.subr.bf16.mxu0 0
    %5825 = vmatpush2.bf16.msra.mxu0 %v5709
    %5826 = vmatprep.subr.bf16.mxu0 0
    %5827 = vmatpush2.bf16.msra.mxu0 %v5706
    %5828 = vmatprep.mubr.bf16.mxu0 %v5753
    %5829 = vmatmul.mubr.bf16.gmra.mxu0 %v5175
    %v5830 = vpop.f32.mrf.mxu0
    %v5831 = vadd.f32 %v5555, %v5830
    %v5832 = vpop.f32.mrf.mxu0
    %v5833 = vpop.f32.mrf.mxu0
    %v5834 = vpop.f32.mrf.mxu0
    %5835 = vdwg.mxu0
    %v5836 = vld [vmem:[#allocation13] ss:$4 sm:$0x7]
    %v5838 = vlaneseq
    %v5839 = vshrl.u32 %v5838, 7
    %v5840 = vsub.s32 0, %v5839
    %v5841 = vrot.slane %v5836, %v5840
    %v5842 = vlaneseq
    %v5843 = vshrl.u32 %v5842, 7
    %v5844 = vsub.s32 1, %v5843
    %v5845 = vrot.slane %v5836, %v5844
    %v5846 = vlaneseq
    %v5847 = vshrl.u32 %v5846, 7
    %v5848 = vsub.s32 2, %v5847
    %v5849 = vrot.slane %v5836, %v5848
    %v5853 = vadd.f32 %v5790, %v5841
    %v5854 = vadd.f32 %v5792, %v5845
    %v5855 = vadd.f32 %v5831, %v5849
    %v5856 = vmax.f32 %v5853, 0.0
    %v5857 = vmax.f32 %v5854, 0.0
    %v5858 = vmax.f32 %v5855, 0.0
    %s5859 = scalar_lea.vmem [#allocation13], 1
    %v5860 = vld [vmem:[%s5859] ss:$4 sm:$0x7]
    %v5862 = vlaneseq
    %v5863 = vshrl.u32 %v5862, 7
    %v5864 = vsub.s32 0, %v5863
    %v5865 = vrot.slane %v5860, %v5864
    %v5866 = vlaneseq
    %v5867 = vshrl.u32 %v5866, 7
    %v5868 = vsub.s32 1, %v5867
    %v5869 = vrot.slane %v5860, %v5868
    %v5870 = vlaneseq
    %v5871 = vshrl.u32 %v5870, 7
    %v5872 = vsub.s32 2, %v5871
    %v5873 = vrot.slane %v5860, %v5872
    %v5877 = vmul.f32 %v5856, %v5865
    %v5878 = vmul.f32 %v5857, %v5869
    %v5879 = vmul.f32 %v5858, %v5873
    %s5880 = scalar_lea.vmem [#allocation13], 2
    %v5881 = vld [vmem:[%s5880] ss:$4 sm:$0x7]
    %v5883 = vlaneseq
    %v5884 = vshrl.u32 %v5883, 7
    %v5885 = vsub.s32 0, %v5884
    %v5886 = vrot.slane %v5881, %v5885
    %v5887 = vlaneseq
    %v5888 = vshrl.u32 %v5887, 7
    %v5889 = vsub.s32 1, %v5888
    %v5890 = vrot.slane %v5881, %v5889
    %v5891 = vlaneseq
    %v5892 = vshrl.u32 %v5891, 7
    %v5893 = vsub.s32 2, %v5892
    %v5894 = vrot.slane %v5881, %v5893
    %v5898 = vadd.f32 %v5877, %v5886
    %v5899 = vadd.f32 %v5878, %v5890
    %v5900 = vadd.f32 %v5879, %v5894
    %v5901 = vpack.c.bf16 %v5898, %v5898
    %v5902 = vpack.c.bf16 %v5899, %v5899
    %v5903 = vpack.c.bf16 %v5900, %v5900
    %v5904 = vld [vmem:[#allocation15] sm:$0xff]
    %v5905 = vld [vmem:[#allocation15 + $0x8] sm:$0xff]
    %v5906 = vld [vmem:[#allocation15 + $0x10] sm:$0xff]
    %v5907 = vld [vmem:[#allocation15 + $0x18] sm:$0xff]
    %v5908 = vld [vmem:[#allocation15 + $0x20] sm:$0xff]
    %v5909 = vld [vmem:[#allocation15 + $0x28] sm:$0xff]
    %v5910 = vld [vmem:[#allocation15 + $0x30] sm:$0xff]
    %v5911 = vld [vmem:[#allocation15 + $0x38] sm:$0xff]
    %v5912 = vld [vmem:[#allocation15 + $0x40] sm:$0xff]
    %v5913 = vld [vmem:[#allocation15 + $0x48] sm:$0xff]
    %v5914 = vld [vmem:[#allocation15 + $0x50] sm:$0xff]
    %v5915 = vld [vmem:[#allocation15 + $0x58] sm:$0xff]
    %v5916 = vld [vmem:[#allocation15 + $0x60] sm:$0xff]
    %v5917 = vld [vmem:[#allocation15 + $0x68] sm:$0xff]
    %v5918 = vld [vmem:[#allocation15 + $0x70] sm:$0xff]
    %v5919 = vld [vmem:[#allocation15 + $0x78] sm:$0xff]
    %v5920 = vld [vmem:[#allocation15 + $0x80] sm:$0xff]
    %v5921 = vld [vmem:[#allocation15 + $0x88] sm:$0xff]
    %v5922 = vld [vmem:[#allocation15 + $0x90] sm:$0xff]
    %v5923 = vld [vmem:[#allocation15 + $0x98] sm:$0xff]
    %v5924 = vld [vmem:[#allocation15 + $0xa0] sm:$0xff]
    %v5925 = vld [vmem:[#allocation15 + $0xa8] sm:$0xff]
    %v5926 = vld [vmem:[#allocation15 + $0xb0] sm:$0xff]
    %v5927 = vld [vmem:[#allocation15 + $0xb8] sm:$0xff]
    %v5928 = vld [vmem:[#allocation15 + $0xc0] sm:$0xff]
    %v5929 = vld [vmem:[#allocation15 + $0xc8] sm:$0xff]
    %v5930 = vld [vmem:[#allocation15 + $0xd0] sm:$0xff]
    %v5931 = vld [vmem:[#allocation15 + $0xd8] sm:$0xff]
    %v5932 = vld [vmem:[#allocation15 + $0xe0] sm:$0xff]
    %v5933 = vld [vmem:[#allocation15 + $0xe8] sm:$0xff]
    %v5934 = vld [vmem:[#allocation15 + $0xf0] sm:$0xff]
    %v5935 = vld [vmem:[#allocation15 + $0xf8] sm:$0xff]
    %v5936 = vld [vmem:[#allocation15 + $0x100] sm:$0xff]
    %v5937 = vld [vmem:[#allocation15 + $0x108] sm:$0xff]
    %v5938 = vld [vmem:[#allocation15 + $0x110] sm:$0xff]
    %v5939 = vld [vmem:[#allocation15 + $0x118] sm:$0xff]
    %v5940 = vld [vmem:[#allocation15 + $0x120] sm:$0xff]
    %v5941 = vld [vmem:[#allocation15 + $0x128] sm:$0xff]
    %v5942 = vld [vmem:[#allocation15 + $0x130] sm:$0xff]
    %v5943 = vld [vmem:[#allocation15 + $0x138] sm:$0xff]
    %v5944 = vld [vmem:[#allocation15 + $0x140] sm:$0xff]
    %v5945 = vld [vmem:[#allocation15 + $0x148] sm:$0xff]
    %v5946 = vld [vmem:[#allocation15 + $0x150] sm:$0xff]
    %v5947 = vld [vmem:[#allocation15 + $0x158] sm:$0xff]
    %v5948 = vld [vmem:[#allocation15 + $0x160] sm:$0xff]
    %v5949 = vld [vmem:[#allocation15 + $0x168] sm:$0xff]
    %v5950 = vld [vmem:[#allocation15 + $0x170] sm:$0xff]
    %v5951 = vld [vmem:[#allocation15 + $0x178] sm:$0xff]
    %v5952 = vld [vmem:[#allocation15 + $0x180] sm:$0xff]
    %v5953 = vld [vmem:[#allocation15 + $0x188] sm:$0xff]
    %v5954 = vld [vmem:[#allocation15 + $0x190] sm:$0xff]
    %v5955 = vld [vmem:[#allocation15 + $0x198] sm:$0xff]
    %v5956 = vld [vmem:[#allocation15 + $0x1a0] sm:$0xff]
    %v5957 = vld [vmem:[#allocation15 + $0x1a8] sm:$0xff]
    %v5958 = vld [vmem:[#allocation15 + $0x1b0] sm:$0xff]
    %v5959 = vld [vmem:[#allocation15 + $0x1b8] sm:$0xff]
    %v5960 = vld [vmem:[#allocation15 + $0x1c0] sm:$0xff]
    %v5961 = vld [vmem:[#allocation15 + $0x1c8] sm:$0xff]
    %v5962 = vld [vmem:[#allocation15 + $0x1d0] sm:$0xff]
    %v5963 = vld [vmem:[#allocation15 + $0x1d8] sm:$0xff]
    %v5964 = vld [vmem:[#allocation15 + $0x1e0] sm:$0xff]
    %v5965 = vld [vmem:[#allocation15 + $0x1e8] sm:$0xff]
    %v5966 = vld [vmem:[#allocation15 + $0x1f0] sm:$0xff]
    %v5967 = vld [vmem:[#allocation15 + $0x1f8] sm:$0xff]
    %v5968 = vld [vmem:[#allocation15 + $0x200] sm:$0xff]
    %v5969 = vld [vmem:[#allocation15 + $0x208] sm:$0xff]
    %v5970 = vld [vmem:[#allocation15 + $0x210] sm:$0xff]
    %v5971 = vld [vmem:[#allocation15 + $0x218] sm:$0xff]
    %v5972 = vld [vmem:[#allocation15 + $0x220] sm:$0xff]
    %v5973 = vld [vmem:[#allocation15 + $0x228] sm:$0xff]
    %v5974 = vld [vmem:[#allocation15 + $0x230] sm:$0xff]
    %v5975 = vld [vmem:[#allocation15 + $0x238] sm:$0xff]
    %v5976 = vld [vmem:[#allocation15 + $0x240] sm:$0xff]
    %v5977 = vld [vmem:[#allocation15 + $0x248] sm:$0xff]
    %v5978 = vld [vmem:[#allocation15 + $0x250] sm:$0xff]
    %v5979 = vld [vmem:[#allocation15 + $0x258] sm:$0xff]
    %v5980 = vld [vmem:[#allocation15 + $0x260] sm:$0xff]
    %v5981 = vld [vmem:[#allocation15 + $0x268] sm:$0xff]
    %v5982 = vld [vmem:[#allocation15 + $0x270] sm:$0xff]
    %v5983 = vld [vmem:[#allocation15 + $0x278] sm:$0xff]
    %v5984 = vld [vmem:[#allocation15 + $0x280] sm:$0xff]
    %v5985 = vld [vmem:[#allocation15 + $0x288] sm:$0xff]
    %v5986 = vld [vmem:[#allocation15 + $0x290] sm:$0xff]
    %v5987 = vld [vmem:[#allocation15 + $0x298] sm:$0xff]
    %v5988 = vld [vmem:[#allocation15 + $0x2a0] sm:$0xff]
    %v5989 = vld [vmem:[#allocation15 + $0x2a8] sm:$0xff]
    %v5990 = vld [vmem:[#allocation15 + $0x2b0] sm:$0xff]
    %v5991 = vld [vmem:[#allocation15 + $0x2b8] sm:$0xff]
    %v5992 = vld [vmem:[#allocation15 + $0x2c0] sm:$0xff]
    %v5993 = vld [vmem:[#allocation15 + $0x2c8] sm:$0xff]
    %v5994 = vld [vmem:[#allocation15 + $0x2d0] sm:$0xff]
    %v5995 = vld [vmem:[#allocation15 + $0x2d8] sm:$0xff]
    %v5996 = vld [vmem:[#allocation15 + $0x2e0] sm:$0xff]
    %v5997 = vld [vmem:[#allocation15 + $0x2e8] sm:$0xff]
    %v5998 = vld [vmem:[#allocation15 + $0x2f0] sm:$0xff]
    %v5999 = vld [vmem:[#allocation15 + $0x2f8] sm:$0xff]
    %v6000 = vld [vmem:[#allocation12] sm:$0xff]
    %v6001 = vld [vmem:[#allocation12 + $0x8] sm:$0xf]
    %v6002 = vld [vmem:[#allocation12 + $0xc] sm:$0xff]
    %v6003 = vld [vmem:[#allocation12 + $0x14] sm:$0xf]
    %v6004 = vld [vmem:[#allocation12 + $0x18] sm:$0xff]
    %v6005 = vld [vmem:[#allocation12 + $0x20] sm:$0xf]
    %v6006 = vld [vmem:[#allocation12 + $0x24] sm:$0xff]
    %v6007 = vld [vmem:[#allocation12 + $0x2c] sm:$0xf]
    %v6008 = vld [vmem:[#allocation12 + $0x30] sm:$0xff]
    %v6009 = vld [vmem:[#allocation12 + $0x38] sm:$0xf]
    %v6010 = vld [vmem:[#allocation12 + $0x3c] sm:$0xff]
    %v6011 = vld [vmem:[#allocation12 + $0x44] sm:$0xf]
    %v6012 = vld [vmem:[#allocation12 + $0x48] sm:$0xff]
    %v6013 = vld [vmem:[#allocation12 + $0x50] sm:$0xf]
    %v6014 = vld [vmem:[#allocation12 + $0x54] sm:$0xff]
    %v6015 = vld [vmem:[#allocation12 + $0x5c] sm:$0xf]
    %v6016 = vld [vmem:[#allocation12 + $0x60] sm:$0xff]
    %v6017 = vld [vmem:[#allocation12 + $0x68] sm:$0xf]
    %v6018 = vld [vmem:[#allocation12 + $0x6c] sm:$0xff]
    %v6019 = vld [vmem:[#allocation12 + $0x74] sm:$0xf]
    %v6020 = vld [vmem:[#allocation12 + $0x78] sm:$0xff]
    %v6021 = vld [vmem:[#allocation12 + $0x80] sm:$0xf]
    %v6022 = vld [vmem:[#allocation12 + $0x84] sm:$0xff]
    %v6023 = vld [vmem:[#allocation12 + $0x8c] sm:$0xf]
    %v6024 = vld [vmem:[#allocation12 + $0x90] sm:$0xff]
    %v6025 = vld [vmem:[#allocation12 + $0x98] sm:$0xf]
    %v6026 = vld [vmem:[#allocation12 + $0x9c] sm:$0xff]
    %v6027 = vld [vmem:[#allocation12 + $0xa4] sm:$0xf]
    %v6028 = vld [vmem:[#allocation12 + $0xa8] sm:$0xff]
    %v6029 = vld [vmem:[#allocation12 + $0xb0] sm:$0xf]
    %v6030 = vld [vmem:[#allocation12 + $0xb4] sm:$0xff]
    %v6031 = vld [vmem:[#allocation12 + $0xbc] sm:$0xf]
    %v6032 = vld [vmem:[#allocation12 + $0xc0] sm:$0xff]
    %v6033 = vld [vmem:[#allocation12 + $0xc8] sm:$0xf]
    %v6034 = vld [vmem:[#allocation12 + $0xcc] sm:$0xff]
    %v6035 = vld [vmem:[#allocation12 + $0xd4] sm:$0xf]
    %v6036 = vld [vmem:[#allocation12 + $0xd8] sm:$0xff]
    %v6037 = vld [vmem:[#allocation12 + $0xe0] sm:$0xf]
    %v6038 = vld [vmem:[#allocation12 + $0xe4] sm:$0xff]
    %v6039 = vld [vmem:[#allocation12 + $0xec] sm:$0xf]
    %v6040 = vld [vmem:[#allocation12 + $0xf0] sm:$0xff]
    %v6041 = vld [vmem:[#allocation12 + $0xf8] sm:$0xf]
    %v6042 = vld [vmem:[#allocation12 + $0xfc] sm:$0xff]
    %v6043 = vld [vmem:[#allocation12 + $0x104] sm:$0xf]
    %v6044 = vld [vmem:[#allocation12 + $0x108] sm:$0xff]
    %v6045 = vld [vmem:[#allocation12 + $0x110] sm:$0xf]
    %v6046 = vld [vmem:[#allocation12 + $0x114] sm:$0xff]
    %v6047 = vld [vmem:[#allocation12 + $0x11c] sm:$0xf]
    %6048 = vmatprep.subr.bf16.mxu0 %v5702
    %6049 = vmatpush1.bf16.msra.mxu0 %v5701
    %6050 = vmatprep.subr.bf16.mxu0 %v5699
    %6051 = vmatpush1.bf16.msra.mxu0 %v5698
    %6052 = vmatprep.subr.bf16.mxu0 %v5696
    %6053 = vmatpush1.bf16.msra.mxu0 %v5695
    %6054 = vmatprep.subr.bf16.mxu0 %v5693
    %6055 = vmatpush1.bf16.msra.mxu0 %v5692
    %6056 = vmatprep.subr.bf16.mxu0 %v5690
    %6057 = vmatpush1.bf16.msra.mxu0 %v5689
    %6058 = vmatprep.subr.bf16.mxu0 %v5687
    %6059 = vmatpush1.bf16.msra.mxu0 %v5686
    %6060 = vmatprep.subr.bf16.mxu0 %v5684
    %6061 = vmatpush1.bf16.msra.mxu0 %v5683
    %6062 = vmatprep.subr.bf16.mxu0 %v5681
    %6063 = vmatpush1.bf16.msra.mxu0 %v5680
    %6064 = vmatprep.subr.bf16.mxu0 0
    %6065 = vmatpush2.bf16.msra.mxu0 0
    %6066 = vmatprep.subr.bf16.mxu0 0
    %6067 = vmatpush2.bf16.msra.mxu0 0
    %6068 = vmatprep.subr.bf16.mxu0 0
    %6069 = vmatpush2.bf16.msra.mxu0 0
    %6070 = vmatprep.subr.bf16.mxu0 0
    %6071 = vmatpush2.bf16.msra.mxu0 0
    %6072 = vmatprep.subr.bf16.mxu0 %v5714
    %6073 = vmatpush2.bf16.msra.mxu0 %v5713
    %6074 = vmatprep.subr.bf16.mxu0 %v5711
    %6075 = vmatpush2.bf16.msra.mxu0 %v5710
    %6076 = vmatprep.subr.bf16.mxu0 %v5708
    %6077 = vmatpush2.bf16.msra.mxu0 %v5707
    %6078 = vmatprep.subr.bf16.mxu0 %v5705
    %6079 = vmatpush2.bf16.msra.mxu0 %v5704
    %6080 = vmatprep.mubr.bf16.mxu0 %v5477
    %6081 = vmatmul.mubr.bf16.gmra.mxu0 %v5281
    %v6082 = vpop.f32.mrf.mxu0
    %v6083 = vadd.f32 0.0, %v6082
    %v6084 = vpop.f32.mrf.mxu0
    %v6085 = vadd.f32 0.0, %v6084
    %v6086 = vpop.f32.mrf.mxu0
    %v6087 = vpop.f32.mrf.mxu0
    %6088 = vdwg.mxu0
    %6089 = vmatprep.subr.bf16.mxu0 0
    %6090 = vmatpush1.bf16.msra.mxu0 %v5703
    %6091 = vmatprep.subr.bf16.mxu0 0
    %6092 = vmatpush1.bf16.msra.mxu0 %v5700
    %6093 = vmatprep.subr.bf16.mxu0 0
    %6094 = vmatpush1.bf16.msra.mxu0 %v5697
    %6095 = vmatprep.subr.bf16.mxu0 0
    %6096 = vmatpush1.bf16.msra.mxu0 %v5694
    %6097 = vmatprep.subr.bf16.mxu0 0
    %6098 = vmatpush1.bf16.msra.mxu0 %v5691
    %6099 = vmatprep.subr.bf16.mxu0 0
    %6100 = vmatpush1.bf16.msra.mxu0 %v5688
    %6101 = vmatprep.subr.bf16.mxu0 0
    %6102 = vmatpush1.bf16.msra.mxu0 %v5685
    %6103 = vmatprep.subr.bf16.mxu0 0
    %6104 = vmatpush1.bf16.msra.mxu0 %v5682
    %6105 = vmatprep.subr.bf16.mxu0 0
    %6106 = vmatpush2.bf16.msra.mxu0 0
    %6107 = vmatprep.subr.bf16.mxu0 0
    %6108 = vmatpush2.bf16.msra.mxu0 0
    %6109 = vmatprep.subr.bf16.mxu0 0
    %6110 = vmatpush2.bf16.msra.mxu0 0
    %6111 = vmatprep.subr.bf16.mxu0 0
    %6112 = vmatpush2.bf16.msra.mxu0 0
    %6113 = vmatprep.subr.bf16.mxu0 0
    %6114 = vmatpush2.bf16.msra.mxu0 %v5715
    %6115 = vmatprep.subr.bf16.mxu0 0
    %6116 = vmatpush2.bf16.msra.mxu0 %v5712
    %6117 = vmatprep.subr.bf16.mxu0 0
    %6118 = vmatpush2.bf16.msra.mxu0 %v5709
    %6119 = vmatprep.subr.bf16.mxu0 0
    %6120 = vmatpush2.bf16.msra.mxu0 %v5706
    %6121 = vmatprep.mubr.bf16.mxu0 %v5477
    %6122 = vmatmul.mubr.bf16.gmra.mxu0 %v5281
    %v6123 = vpop.f32.mrf.mxu0
    %v6124 = vadd.f32 0.0, %v6123
    %v6125 = vpop.f32.mrf.mxu0
    %v6126 = vpop.f32.mrf.mxu0
    %v6127 = vpop.f32.mrf.mxu0
    %6128 = vdwg.mxu0
    %v6177 = vunpack.c.l.b16 %v6000
    %v6178 = vunpack.c.h.b16 %v6000
    %v6179 = vunpack.c.l.b16 %v6001
    %v6180 = vunpack.c.l.b16 %v6002
    %v6181 = vunpack.c.h.b16 %v6002
    %v6182 = vunpack.c.l.b16 %v6003
    %v6183 = vunpack.c.l.b16 %v6004
    %v6184 = vunpack.c.h.b16 %v6004
    %v6185 = vunpack.c.l.b16 %v6005
    %v6186 = vunpack.c.l.b16 %v6006
    %v6187 = vunpack.c.h.b16 %v6006
    %v6188 = vunpack.c.l.b16 %v6007
    %v6189 = vunpack.c.l.b16 %v6008
    %v6190 = vunpack.c.h.b16 %v6008
    %v6191 = vunpack.c.l.b16 %v6009
    %v6192 = vunpack.c.l.b16 %v6010
    %v6193 = vunpack.c.h.b16 %v6010
    %v6194 = vunpack.c.l.b16 %v6011
    %v6195 = vunpack.c.l.b16 %v6012
    %v6196 = vunpack.c.h.b16 %v6012
    %v6197 = vunpack.c.l.b16 %v6013
    %v6198 = vunpack.c.l.b16 %v6014
    %v6199 = vunpack.c.h.b16 %v6014
    %v6200 = vunpack.c.l.b16 %v6015
    %v6201 = vunpack.c.l.b16 %v6016
    %v6202 = vunpack.c.h.b16 %v6016
    %v6203 = vunpack.c.l.b16 %v6017
    %v6204 = vunpack.c.l.b16 %v6018
    %v6205 = vunpack.c.h.b16 %v6018
    %v6206 = vunpack.c.l.b16 %v6019
    %v6207 = vunpack.c.l.b16 %v6020
    %v6208 = vunpack.c.h.b16 %v6020
    %v6209 = vunpack.c.l.b16 %v6021
    %v6210 = vunpack.c.l.b16 %v6022
    %v6211 = vunpack.c.h.b16 %v6022
    %v6212 = vunpack.c.l.b16 %v6023
    %v6213 = vunpack.c.l.b16 %v6024
    %v6214 = vunpack.c.h.b16 %v6024
    %v6215 = vunpack.c.l.b16 %v6025
    %v6216 = vunpack.c.l.b16 %v6026
    %v6217 = vunpack.c.h.b16 %v6026
    %v6218 = vunpack.c.l.b16 %v6027
    %v6219 = vunpack.c.l.b16 %v6028
    %v6220 = vunpack.c.h.b16 %v6028
    %v6221 = vunpack.c.l.b16 %v6029
    %v6222 = vunpack.c.l.b16 %v6030
    %v6223 = vunpack.c.h.b16 %v6030
    %v6224 = vunpack.c.l.b16 %v6031
    %v6225 = vunpack.c.l.b16 %v6032
    %v6226 = vunpack.c.h.b16 %v6032
    %v6227 = vunpack.c.l.b16 %v6033
    %v6228 = vunpack.c.l.b16 %v6034
    %v6229 = vunpack.c.h.b16 %v6034
    %v6230 = vunpack.c.l.b16 %v6035
    %v6231 = vunpack.c.l.b16 %v6036
    %v6232 = vunpack.c.h.b16 %v6036
    %v6233 = vunpack.c.l.b16 %v6037
    %v6234 = vunpack.c.l.b16 %v6038
    %v6235 = vunpack.c.h.b16 %v6038
    %v6236 = vunpack.c.l.b16 %v6039
    %v6237 = vunpack.c.l.b16 %v6040
    %v6238 = vunpack.c.h.b16 %v6040
    %v6239 = vunpack.c.l.b16 %v6041
    %v6240 = vunpack.c.l.b16 %v6042
    %v6241 = vunpack.c.h.b16 %v6042
    %v6242 = vunpack.c.l.b16 %v6043
    %v6243 = vunpack.c.l.b16 %v6044
    %v6244 = vunpack.c.h.b16 %v6044
    %v6245 = vunpack.c.l.b16 %v6045
    %v6246 = vunpack.c.l.b16 %v6046
    %v6247 = vunpack.c.h.b16 %v6046
    %v6248 = vunpack.c.l.b16 %v6047
    %v6249 = vpack.c.b16 %v6180, %v6177
    %v6250 = vpack.c.b16 %v6181, %v6178
    %v6251 = vpack.c.b16 %v6182, %v6179
    %v6252 = vpack.c.b16 %v6186, %v6183
    %v6253 = vpack.c.b16 %v6187, %v6184
    %v6254 = vpack.c.b16 %v6188, %v6185
    %v6255 = vpack.c.b16 %v6192, %v6189
    %v6256 = vpack.c.b16 %v6193, %v6190
    %v6257 = vpack.c.b16 %v6194, %v6191
    %v6258 = vpack.c.b16 %v6198, %v6195
    %v6259 = vpack.c.b16 %v6199, %v6196
    %v6260 = vpack.c.b16 %v6200, %v6197
    %v6261 = vpack.c.b16 %v6204, %v6201
    %v6262 = vpack.c.b16 %v6205, %v6202
    %v6263 = vpack.c.b16 %v6206, %v6203
    %v6264 = vpack.c.b16 %v6210, %v6207
    %v6265 = vpack.c.b16 %v6211, %v6208
    %v6266 = vpack.c.b16 %v6212, %v6209
    %v6267 = vpack.c.b16 %v6216, %v6213
    %v6268 = vpack.c.b16 %v6217, %v6214
    %v6269 = vpack.c.b16 %v6218, %v6215
    %v6270 = vpack.c.b16 %v6222, %v6219
    %v6271 = vpack.c.b16 %v6223, %v6220
    %v6272 = vpack.c.b16 %v6224, %v6221
    %v6273 = vpack.c.b16 %v6228, %v6225
    %v6274 = vpack.c.b16 %v6229, %v6226
    %v6275 = vpack.c.b16 %v6230, %v6227
    %v6276 = vpack.c.b16 %v6234, %v6231
    %v6277 = vpack.c.b16 %v6235, %v6232
    %v6278 = vpack.c.b16 %v6236, %v6233
    %v6279 = vpack.c.b16 %v6240, %v6237
    %v6280 = vpack.c.b16 %v6241, %v6238
    %v6281 = vpack.c.b16 %v6242, %v6239
    %v6282 = vpack.c.b16 %v6246, %v6243
    %v6283 = vpack.c.b16 %v6247, %v6244
    %v6284 = vpack.c.b16 %v6248, %v6245
    %6321 = vmatprep.subr.bf16.mxu0 %v6271
    %6322 = vmatpush1.bf16.msra.mxu0 %v6270
    %6323 = vmatprep.subr.bf16.mxu0 %v6268
    %6324 = vmatpush1.bf16.msra.mxu0 %v6267
    %6325 = vmatprep.subr.bf16.mxu0 %v6265
    %6326 = vmatpush1.bf16.msra.mxu0 %v6264
    %6327 = vmatprep.subr.bf16.mxu0 %v6262
    %6328 = vmatpush1.bf16.msra.mxu0 %v6261
    %6329 = vmatprep.subr.bf16.mxu0 %v6259
    %6330 = vmatpush1.bf16.msra.mxu0 %v6258
    %6331 = vmatprep.subr.bf16.mxu0 %v6256
    %6332 = vmatpush1.bf16.msra.mxu0 %v6255
    %6333 = vmatprep.subr.bf16.mxu0 %v6253
    %6334 = vmatpush1.bf16.msra.mxu0 %v6252
    %6335 = vmatprep.subr.bf16.mxu0 %v6250
    %6336 = vmatpush1.bf16.msra.mxu0 %v6249
    %6337 = vmatprep.subr.bf16.mxu0 0
    %6338 = vmatpush2.bf16.msra.mxu0 0
    %6339 = vmatprep.subr.bf16.mxu0 0
    %6340 = vmatpush2.bf16.msra.mxu0 0
    %6341 = vmatprep.subr.bf16.mxu0 0
    %6342 = vmatpush2.bf16.msra.mxu0 0
    %6343 = vmatprep.subr.bf16.mxu0 0
    %6344 = vmatpush2.bf16.msra.mxu0 0
    %6345 = vmatprep.subr.bf16.mxu0 %v6283
    %6346 = vmatpush2.bf16.msra.mxu0 %v6282
    %6347 = vmatprep.subr.bf16.mxu0 %v6280
    %6348 = vmatpush2.bf16.msra.mxu0 %v6279
    %6349 = vmatprep.subr.bf16.mxu0 %v6277
    %6350 = vmatpush2.bf16.msra.mxu0 %v6276
    %6351 = vmatprep.subr.bf16.mxu0 %v6274
    %6352 = vmatpush2.bf16.msra.mxu0 %v6273
    %6353 = vmatprep.mubr.bf16.mxu0 %v5753
    %6354 = vmatmul.mubr.bf16.gmra.mxu0 %v5175
    %v6355 = vpop.f32.mrf.mxu0
    %v6356 = vadd.f32 %v6083, %v6355
    %v6357 = vpop.f32.mrf.mxu0
    %v6358 = vadd.f32 %v6085, %v6357
    %v6359 = vpop.f32.mrf.mxu0
    %v6360 = vpop.f32.mrf.mxu0
    %6361 = vdwg.mxu0
    %6362 = vmatprep.subr.bf16.mxu0 0
    %6363 = vmatpush1.bf16.msra.mxu0 %v6272
    %6364 = vmatprep.subr.bf16.mxu0 0
    %6365 = vmatpush1.bf16.msra.mxu0 %v6269
    %6366 = vmatprep.subr.bf16.mxu0 0
    %6367 = vmatpush1.bf16.msra.mxu0 %v6266
    %6368 = vmatprep.subr.bf16.mxu0 0
    %6369 = vmatpush1.bf16.msra.mxu0 %v6263
    %6370 = vmatprep.subr.bf16.mxu0 0
    %6371 = vmatpush1.bf16.msra.mxu0 %v6260
    %6372 = vmatprep.subr.bf16.mxu0 0
    %6373 = vmatpush1.bf16.msra.mxu0 %v6257
    %6374 = vmatprep.subr.bf16.mxu0 0
    %6375 = vmatpush1.bf16.msra.mxu0 %v6254
    %6376 = vmatprep.subr.bf16.mxu0 0
    %6377 = vmatpush1.bf16.msra.mxu0 %v6251
    %6378 = vmatprep.subr.bf16.mxu0 0
    %6379 = vmatpush2.bf16.msra.mxu0 0
    %6380 = vmatprep.subr.bf16.mxu0 0
    %6381 = vmatpush2.bf16.msra.mxu0 0
    %6382 = vmatprep.subr.bf16.mxu0 0
    %6383 = vmatpush2.bf16.msra.mxu0 0
    %6384 = vmatprep.subr.bf16.mxu0 0
    %6385 = vmatpush2.bf16.msra.mxu0 0
    %6386 = vmatprep.subr.bf16.mxu0 0
    %6387 = vmatpush2.bf16.msra.mxu0 %v6284
    %6388 = vmatprep.subr.bf16.mxu0 0
    %6389 = vmatpush2.bf16.msra.mxu0 %v6281
    %6390 = vmatprep.subr.bf16.mxu0 0
    %6391 = vmatpush2.bf16.msra.mxu0 %v6278
    %6392 = vmatprep.subr.bf16.mxu0 0
    %6393 = vmatpush2.bf16.msra.mxu0 %v6275
    %6394 = vmatprep.mubr.bf16.mxu0 %v5753
    %6395 = vmatmul.mubr.bf16.gmra.mxu0 %v5175
    %v6396 = vpop.f32.mrf.mxu0
    %v6397 = vadd.f32 %v6124, %v6396
    %v6398 = vpop.f32.mrf.mxu0
    %v6399 = vpop.f32.mrf.mxu0
    %v6400 = vpop.f32.mrf.mxu0
    %6401 = vdwg.mxu0
    %v6402 = vld [vmem:[#allocation3] sm:$0x30]
    %v6403 = vld [vmem:[#allocation3 + $0x8] sm:$0x30]
    %v6404 = vpack.c.bf16 %v6402, %v6402
    %v6405 = vpack.c.bf16 %v6403, %v6403
    %v6408 = vrot.slane %v6404, 2
    %v6409 = vrot.slane %v6405, 2
    %v6412 = vsel %vm214, %v6409, 0
    %6414 = vmatprep.subr.bf16.mxu0 %v5426
    %6415 = vmatpush1.bf16.msra.mxu0 %v5425
    %6416 = vmatprep.subr.bf16.mxu0 %v5423
    %6417 = vmatpush1.bf16.msra.mxu0 %v5422
    %6418 = vmatprep.subr.bf16.mxu0 %v5420
    %6419 = vmatpush1.bf16.msra.mxu0 %v5419
    %6420 = vmatprep.subr.bf16.mxu0 %v5417
    %6421 = vmatpush1.bf16.msra.mxu0 %v5416
    %6422 = vmatprep.subr.bf16.mxu0 %v5414
    %6423 = vmatpush1.bf16.msra.mxu0 %v5413
    %6424 = vmatprep.subr.bf16.mxu0 %v5411
    %6425 = vmatpush1.bf16.msra.mxu0 %v5410
    %6426 = vmatprep.subr.bf16.mxu0 %v5408
    %6427 = vmatpush1.bf16.msra.mxu0 %v5407
    %6428 = vmatprep.subr.bf16.mxu0 %v5405
    %6429 = vmatpush1.bf16.msra.mxu0 %v5404
    %6430 = vmatprep.subr.bf16.mxu0 0
    %6431 = vmatpush2.bf16.msra.mxu0 0
    %6432 = vmatprep.subr.bf16.mxu0 0
    %6433 = vmatpush2.bf16.msra.mxu0 0
    %6434 = vmatprep.subr.bf16.mxu0 0
    %6435 = vmatpush2.bf16.msra.mxu0 0
    %6436 = vmatprep.subr.bf16.mxu0 0
    %6437 = vmatpush2.bf16.msra.mxu0 0
    %6438 = vmatprep.subr.bf16.mxu0 %v5438
    %6439 = vmatpush2.bf16.msra.mxu0 %v5437
    %6440 = vmatprep.subr.bf16.mxu0 %v5435
    %6441 = vmatpush2.bf16.msra.mxu0 %v5434
    %6442 = vmatprep.subr.bf16.mxu0 %v5432
    %6443 = vmatpush2.bf16.msra.mxu0 %v5431
    %6444 = vmatprep.subr.bf16.mxu0 %v5429
    %6445 = vmatpush2.bf16.msra.mxu0 %v5428
    %6446 = vmatprep.mubr.bf16.mxu0 %v6412
    %6447 = vmatmul.mubr.bf16.gmra.mxu0 %v6408
    %v6448 = vpop.f32.mrf.mxu0
    %v6449 = vadd.f32 0.0, %v6448
    %v6450 = vpop.f32.mrf.mxu0
    %v6451 = vadd.f32 0.0, %v6450
    %v6452 = vpop.f32.mrf.mxu0
    %v6453 = vpop.f32.mrf.mxu0
    %6454 = vdwg.mxu0
    %6455 = vmatprep.subr.bf16.mxu0 0
    %6456 = vmatpush1.bf16.msra.mxu0 %v5427
    %6457 = vmatprep.subr.bf16.mxu0 0
    %6458 = vmatpush1.bf16.msra.mxu0 %v5424
    %6459 = vmatprep.subr.bf16.mxu0 0
    %6460 = vmatpush1.bf16.msra.mxu0 %v5421
    %6461 = vmatprep.subr.bf16.mxu0 0
    %6462 = vmatpush1.bf16.msra.mxu0 %v5418
    %6463 = vmatprep.subr.bf16.mxu0 0
    %6464 = vmatpush1.bf16.msra.mxu0 %v5415
    %6465 = vmatprep.subr.bf16.mxu0 0
    %6466 = vmatpush1.bf16.msra.mxu0 %v5412
    %6467 = vmatprep.subr.bf16.mxu0 0
    %6468 = vmatpush1.bf16.msra.mxu0 %v5409
    %6469 = vmatprep.subr.bf16.mxu0 0
    %6470 = vmatpush1.bf16.msra.mxu0 %v5406
    %6471 = vmatprep.subr.bf16.mxu0 0
    %6472 = vmatpush2.bf16.msra.mxu0 0
    %6473 = vmatprep.subr.bf16.mxu0 0
    %6474 = vmatpush2.bf16.msra.mxu0 0
    %6475 = vmatprep.subr.bf16.mxu0 0
    %6476 = vmatpush2.bf16.msra.mxu0 0
    %6477 = vmatprep.subr.bf16.mxu0 0
    %6478 = vmatpush2.bf16.msra.mxu0 0
    %6479 = vmatprep.subr.bf16.mxu0 0
    %6480 = vmatpush2.bf16.msra.mxu0 %v5439
    %6481 = vmatprep.subr.bf16.mxu0 0
    %6482 = vmatpush2.bf16.msra.mxu0 %v5436
    %6483 = vmatprep.subr.bf16.mxu0 0
    %6484 = vmatpush2.bf16.msra.mxu0 %v5433
    %6485 = vmatprep.subr.bf16.mxu0 0
    %6486 = vmatpush2.bf16.msra.mxu0 %v5430
    %6487 = vmatprep.mubr.bf16.mxu0 %v6412
    %6488 = vmatmul.mubr.bf16.gmra.mxu0 %v6408
    %v6489 = vpop.f32.mrf.mxu0
    %v6490 = vadd.f32 0.0, %v6489
    %v6491 = vpop.f32.mrf.mxu0
    %v6492 = vpop.f32.mrf.mxu0
    %v6493 = vpop.f32.mrf.mxu0
    %6494 = vdwg.mxu0
    %v6495 = vadd.f32 %v6356, %v6449
    %v6496 = vadd.f32 %v6358, %v6451
    %v6497 = vadd.f32 %v6397, %v6490
    %v6498 = vadd.f32 %v6495, %v5841
    %v6499 = vadd.f32 %v6496, %v5845
    %v6500 = vadd.f32 %v6497, %v5849
    %v6501 = vmax.f32 %v6498, 0.0
    %v6502 = vmax.f32 %v6499, 0.0
    %v6503 = vmax.f32 %v6500, 0.0
    %v6504 = vmul.f32 %v6501, %v5865
    %v6505 = vmul.f32 %v6502, %v5869
    %v6506 = vmul.f32 %v6503, %v5873
    %v6507 = vadd.f32 %v6504, %v5886
    %v6508 = vadd.f32 %v6505, %v5890
    %v6509 = vadd.f32 %v6506, %v5894
    %v6510 = vpack.c.bf16 %v6507, %v6507
    %v6511 = vpack.c.bf16 %v6508, %v6508
    %v6512 = vpack.c.bf16 %v6509, %v6509
    %v6513 = vld [vmem:[#allocation15 + $0x300] sm:$0xff]
    %v6514 = vld [vmem:[#allocation15 + $0x308] sm:$0xff]
    %v6515 = vld [vmem:[#allocation15 + $0x310] sm:$0xff]
    %v6516 = vld [vmem:[#allocation15 + $0x318] sm:$0xff]
    %v6517 = vld [vmem:[#allocation15 + $0x320] sm:$0xff]
    %v6518 = vld [vmem:[#allocation15 + $0x328] sm:$0xff]
    %v6519 = vld [vmem:[#allocation15 + $0x330] sm:$0xff]
    %v6520 = vld [vmem:[#allocation15 + $0x338] sm:$0xff]
    %v6521 = vld [vmem:[#allocation15 + $0x340] sm:$0xff]
    %v6522 = vld [vmem:[#allocation15 + $0x348] sm:$0xff]
    %v6523 = vld [vmem:[#allocation15 + $0x350] sm:$0xff]
    %v6524 = vld [vmem:[#allocation15 + $0x358] sm:$0xff]
    %v6525 = vld [vmem:[#allocation15 + $0x360] sm:$0xff]
    %v6526 = vld [vmem:[#allocation15 + $0x368] sm:$0xff]
    %v6527 = vld [vmem:[#allocation15 + $0x370] sm:$0xff]
    %v6528 = vld [vmem:[#allocation15 + $0x378] sm:$0xff]
    %v6529 = vld [vmem:[#allocation15 + $0x380] sm:$0xff]
    %v6530 = vld [vmem:[#allocation15 + $0x388] sm:$0xff]
    %v6531 = vld [vmem:[#allocation15 + $0x390] sm:$0xff]
    %v6532 = vld [vmem:[#allocation15 + $0x398] sm:$0xff]
    %v6533 = vld [vmem:[#allocation15 + $0x3a0] sm:$0xff]
    %v6534 = vld [vmem:[#allocation15 + $0x3a8] sm:$0xff]
    %v6535 = vld [vmem:[#allocation15 + $0x3b0] sm:$0xff]
    %v6536 = vld [vmem:[#allocation15 + $0x3b8] sm:$0xff]
    %v6537 = vld [vmem:[#allocation15 + $0x3c0] sm:$0xff]
    %v6538 = vld [vmem:[#allocation15 + $0x3c8] sm:$0xff]
    %v6539 = vld [vmem:[#allocation15 + $0x3d0] sm:$0xff]
    %v6540 = vld [vmem:[#allocation15 + $0x3d8] sm:$0xff]
    %v6541 = vld [vmem:[#allocation15 + $0x3e0] sm:$0xff]
    %v6542 = vld [vmem:[#allocation15 + $0x3e8] sm:$0xff]
    %v6543 = vld [vmem:[#allocation15 + $0x3f0] sm:$0xff]
    %v6544 = vld [vmem:[#allocation15 + $0x3f8] sm:$0xff]
    %v6545 = vld [vmem:[#allocation15 + $0x400] sm:$0xff]
    %v6546 = vld [vmem:[#allocation15 + $0x408] sm:$0xff]
    %v6547 = vld [vmem:[#allocation15 + $0x410] sm:$0xff]
    %v6548 = vld [vmem:[#allocation15 + $0x418] sm:$0xff]
    %v6549 = vld [vmem:[#allocation15 + $0x420] sm:$0xff]
    %v6550 = vld [vmem:[#allocation15 + $0x428] sm:$0xff]
    %v6551 = vld [vmem:[#allocation15 + $0x430] sm:$0xff]
    %v6552 = vld [vmem:[#allocation15 + $0x438] sm:$0xff]
    %v6553 = vld [vmem:[#allocation15 + $0x440] sm:$0xff]
    %v6554 = vld [vmem:[#allocation15 + $0x448] sm:$0xff]
    %v6555 = vld [vmem:[#allocation15 + $0x450] sm:$0xff]
    %v6556 = vld [vmem:[#allocation15 + $0x458] sm:$0xff]
    %v6557 = vld [vmem:[#allocation15 + $0x460] sm:$0xff]
    %v6558 = vld [vmem:[#allocation15 + $0x468] sm:$0xff]
    %v6559 = vld [vmem:[#allocation15 + $0x470] sm:$0xff]
    %v6560 = vld [vmem:[#allocation15 + $0x478] sm:$0xff]
    %v6561 = vld [vmem:[#allocation15 + $0x480] sm:$0xff]
    %v6562 = vld [vmem:[#allocation15 + $0x488] sm:$0xff]
    %v6563 = vld [vmem:[#allocation15 + $0x490] sm:$0xff]
    %v6564 = vld [vmem:[#allocation15 + $0x498] sm:$0xff]
    %v6565 = vld [vmem:[#allocation15 + $0x4a0] sm:$0xff]
    %v6566 = vld [vmem:[#allocation15 + $0x4a8] sm:$0xff]
    %v6567 = vld [vmem:[#allocation15 + $0x4b0] sm:$0xff]
    %v6568 = vld [vmem:[#allocation15 + $0x4b8] sm:$0xff]
    %v6569 = vld [vmem:[#allocation15 + $0x4c0] sm:$0xff]
    %v6570 = vld [vmem:[#allocation15 + $0x4c8] sm:$0xff]
    %v6571 = vld [vmem:[#allocation15 + $0x4d0] sm:$0xff]
    %v6572 = vld [vmem:[#allocation15 + $0x4d8] sm:$0xff]
    %v6573 = vld [vmem:[#allocation15 + $0x4e0] sm:$0xff]
    %v6574 = vld [vmem:[#allocation15 + $0x4e8] sm:$0xff]
    %v6575 = vld [vmem:[#allocation15 + $0x4f0] sm:$0xff]
    %v6576 = vld [vmem:[#allocation15 + $0x4f8] sm:$0xff]
    %v6577 = vld [vmem:[#allocation15 + $0x500] sm:$0xff]
    %v6578 = vld [vmem:[#allocation15 + $0x508] sm:$0xff]
    %v6579 = vld [vmem:[#allocation15 + $0x510] sm:$0xff]
    %v6580 = vld [vmem:[#allocation15 + $0x518] sm:$0xff]
    %v6581 = vld [vmem:[#allocation15 + $0x520] sm:$0xff]
    %v6582 = vld [vmem:[#allocation15 + $0x528] sm:$0xff]
    %v6583 = vld [vmem:[#allocation15 + $0x530] sm:$0xff]
    %v6584 = vld [vmem:[#allocation15 + $0x538] sm:$0xff]
    %v6585 = vld [vmem:[#allocation15 + $0x540] sm:$0xff]
    %v6586 = vld [vmem:[#allocation15 + $0x548] sm:$0xff]
    %v6587 = vld [vmem:[#allocation15 + $0x550] sm:$0xff]
    %v6588 = vld [vmem:[#allocation15 + $0x558] sm:$0xff]
    %v6589 = vld [vmem:[#allocation15 + $0x560] sm:$0xff]
    %v6590 = vld [vmem:[#allocation15 + $0x568] sm:$0xff]
    %v6591 = vld [vmem:[#allocation15 + $0x570] sm:$0xff]
    %v6592 = vld [vmem:[#allocation15 + $0x578] sm:$0xff]
    %v6593 = vld [vmem:[#allocation15 + $0x580] sm:$0xff]
    %v6594 = vld [vmem:[#allocation15 + $0x588] sm:$0xff]
    %v6595 = vld [vmem:[#allocation15 + $0x590] sm:$0xff]
    %v6596 = vld [vmem:[#allocation15 + $0x598] sm:$0xff]
    %v6597 = vld [vmem:[#allocation15 + $0x5a0] sm:$0xff]
    %v6598 = vld [vmem:[#allocation15 + $0x5a8] sm:$0xff]
    %v6599 = vld [vmem:[#allocation15 + $0x5b0] sm:$0xff]
    %v6600 = vld [vmem:[#allocation15 + $0x5b8] sm:$0xff]
    %v6601 = vld [vmem:[#allocation15 + $0x5c0] sm:$0xff]
    %v6602 = vld [vmem:[#allocation15 + $0x5c8] sm:$0xff]
    %v6603 = vld [vmem:[#allocation15 + $0x5d0] sm:$0xff]
    %v6604 = vld [vmem:[#allocation15 + $0x5d8] sm:$0xff]
    %v6605 = vld [vmem:[#allocation15 + $0x5e0] sm:$0xff]
    %v6606 = vld [vmem:[#allocation15 + $0x5e8] sm:$0xff]
    %v6607 = vld [vmem:[#allocation15 + $0x5f0] sm:$0xff]
    %v6608 = vld [vmem:[#allocation15 + $0x5f8] sm:$0xff]
    %v6705 = vunpack.c.l.b16 %v6513
    %v6706 = vunpack.c.h.b16 %v6513
    %v6707 = vunpack.c.l.b16 %v6514
    %v6708 = vunpack.c.h.b16 %v6514
    %v6709 = vunpack.c.l.b16 %v6515
    %v6710 = vunpack.c.h.b16 %v6515
    %v6711 = vunpack.c.l.b16 %v6516
    %v6712 = vunpack.c.h.b16 %v6516
    %v6713 = vunpack.c.l.b16 %v6517
    %v6714 = vunpack.c.h.b16 %v6517
    %v6715 = vunpack.c.l.b16 %v6518
    %v6716 = vunpack.c.h.b16 %v6518
    %v6717 = vunpack.c.l.b16 %v6519
    %v6718 = vunpack.c.h.b16 %v6519
    %v6719 = vunpack.c.l.b16 %v6520
    %v6720 = vunpack.c.h.b16 %v6520
    %v6721 = vunpack.c.l.b16 %v6521
    %v6722 = vunpack.c.h.b16 %v6521
    %v6723 = vunpack.c.l.b16 %v6522
    %v6724 = vunpack.c.h.b16 %v6522
    %v6725 = vunpack.c.l.b16 %v6523
    %v6726 = vunpack.c.h.b16 %v6523
    %v6727 = vunpack.c.l.b16 %v6524
    %v6728 = vunpack.c.h.b16 %v6524
    %v6729 = vunpack.c.l.b16 %v6525
    %v6730 = vunpack.c.h.b16 %v6525
    %v6731 = vunpack.c.l.b16 %v6526
    %v6732 = vunpack.c.h.b16 %v6526
    %v6733 = vunpack.c.l.b16 %v6527
    %v6734 = vunpack.c.h.b16 %v6527
    %v6735 = vunpack.c.l.b16 %v6528
    %v6736 = vunpack.c.h.b16 %v6528
    %v6737 = vunpack.c.l.b16 %v6529
    %v6738 = vunpack.c.h.b16 %v6529
    %v6739 = vunpack.c.l.b16 %v6530
    %v6740 = vunpack.c.h.b16 %v6530
    %v6741 = vunpack.c.l.b16 %v6531
    %v6742 = vunpack.c.h.b16 %v6531
    %v6743 = vunpack.c.l.b16 %v6532
    %v6744 = vunpack.c.h.b16 %v6532
    %v6745 = vunpack.c.l.b16 %v6533
    %v6746 = vunpack.c.h.b16 %v6533
    %v6747 = vunpack.c.l.b16 %v6534
    %v6748 = vunpack.c.h.b16 %v6534
    %v6749 = vunpack.c.l.b16 %v6535
    %v6750 = vunpack.c.h.b16 %v6535
    %v6751 = vunpack.c.l.b16 %v6536
    %v6752 = vunpack.c.h.b16 %v6536
    %v6753 = vunpack.c.l.b16 %v6537
    %v6754 = vunpack.c.h.b16 %v6537
    %v6755 = vunpack.c.l.b16 %v6538
    %v6756 = vunpack.c.h.b16 %v6538
    %v6757 = vunpack.c.l.b16 %v6539
    %v6758 = vunpack.c.h.b16 %v6539
    %v6759 = vunpack.c.l.b16 %v6540
    %v6760 = vunpack.c.h.b16 %v6540
    %v6761 = vunpack.c.l.b16 %v6541
    %v6762 = vunpack.c.h.b16 %v6541
    %v6763 = vunpack.c.l.b16 %v6542
    %v6764 = vunpack.c.h.b16 %v6542
    %v6765 = vunpack.c.l.b16 %v6543
    %v6766 = vunpack.c.h.b16 %v6543
    %v6767 = vunpack.c.l.b16 %v6544
    %v6768 = vunpack.c.h.b16 %v6544
    %v6769 = vunpack.c.l.b16 %v6545
    %v6770 = vunpack.c.h.b16 %v6545
    %v6771 = vunpack.c.l.b16 %v6546
    %v6772 = vunpack.c.h.b16 %v6546
    %v6773 = vunpack.c.l.b16 %v6547
    %v6774 = vunpack.c.h.b16 %v6547
    %v6775 = vunpack.c.l.b16 %v6548
    %v6776 = vunpack.c.h.b16 %v6548
    %v6777 = vunpack.c.l.b16 %v6549
    %v6778 = vunpack.c.h.b16 %v6549
    %v6779 = vunpack.c.l.b16 %v6550
    %v6780 = vunpack.c.h.b16 %v6550
    %v6781 = vunpack.c.l.b16 %v6551
    %v6782 = vunpack.c.h.b16 %v6551
    %v6783 = vunpack.c.l.b16 %v6552
    %v6784 = vunpack.c.h.b16 %v6552
    %v6785 = vunpack.c.l.b16 %v6553
    %v6786 = vunpack.c.h.b16 %v6553
    %v6787 = vunpack.c.l.b16 %v6554
    %v6788 = vunpack.c.h.b16 %v6554
    %v6789 = vunpack.c.l.b16 %v6555
    %v6790 = vunpack.c.h.b16 %v6555
    %v6791 = vunpack.c.l.b16 %v6556
    %v6792 = vunpack.c.h.b16 %v6556
    %v6793 = vunpack.c.l.b16 %v6557
    %v6794 = vunpack.c.h.b16 %v6557
    %v6795 = vunpack.c.l.b16 %v6558
    %v6796 = vunpack.c.h.b16 %v6558
    %v6797 = vunpack.c.l.b16 %v6559
    %v6798 = vunpack.c.h.b16 %v6559
    %v6799 = vunpack.c.l.b16 %v6560
    %v6800 = vunpack.c.h.b16 %v6560
    %v6801 = vunpack.c.l.b16 %v6561
    %v6802 = vunpack.c.h.b16 %v6561
    %v6803 = vunpack.c.l.b16 %v6562
    %v6804 = vunpack.c.h.b16 %v6562
    %v6805 = vunpack.c.l.b16 %v6563
    %v6806 = vunpack.c.h.b16 %v6563
    %v6807 = vunpack.c.l.b16 %v6564
    %v6808 = vunpack.c.h.b16 %v6564
    %v6809 = vunpack.c.l.b16 %v6565
    %v6810 = vunpack.c.h.b16 %v6565
    %v6811 = vunpack.c.l.b16 %v6566
    %v6812 = vunpack.c.h.b16 %v6566
    %v6813 = vunpack.c.l.b16 %v6567
    %v6814 = vunpack.c.h.b16 %v6567
    %v6815 = vunpack.c.l.b16 %v6568
    %v6816 = vunpack.c.h.b16 %v6568
    %v6817 = vunpack.c.l.b16 %v6569
    %v6818 = vunpack.c.h.b16 %v6569
    %v6819 = vunpack.c.l.b16 %v6570
    %v6820 = vunpack.c.h.b16 %v6570
    %v6821 = vunpack.c.l.b16 %v6571
    %v6822 = vunpack.c.h.b16 %v6571
    %v6823 = vunpack.c.l.b16 %v6572
    %v6824 = vunpack.c.h.b16 %v6572
    %v6825 = vunpack.c.l.b16 %v6573
    %v6826 = vunpack.c.h.b16 %v6573
    %v6827 = vunpack.c.l.b16 %v6574
    %v6828 = vunpack.c.h.b16 %v6574
    %v6829 = vunpack.c.l.b16 %v6575
    %v6830 = vunpack.c.h.b16 %v6575
    %v6831 = vunpack.c.l.b16 %v6576
    %v6832 = vunpack.c.h.b16 %v6576
    %v6833 = vunpack.c.l.b16 %v6577
    %v6834 = vunpack.c.h.b16 %v6577
    %v6835 = vunpack.c.l.b16 %v6578
    %v6836 = vunpack.c.h.b16 %v6578
    %v6837 = vunpack.c.l.b16 %v6579
    %v6838 = vunpack.c.h.b16 %v6579
    %v6839 = vunpack.c.l.b16 %v6580
    %v6840 = vunpack.c.h.b16 %v6580
    %v6841 = vunpack.c.l.b16 %v6581
    %v6842 = vunpack.c.h.b16 %v6581
    %v6843 = vunpack.c.l.b16 %v6582
    %v6844 = vunpack.c.h.b16 %v6582
    %v6845 = vunpack.c.l.b16 %v6583
    %v6846 = vunpack.c.h.b16 %v6583
    %v6847 = vunpack.c.l.b16 %v6584
    %v6848 = vunpack.c.h.b16 %v6584
    %v6849 = vunpack.c.l.b16 %v6585
    %v6850 = vunpack.c.h.b16 %v6585
    %v6851 = vunpack.c.l.b16 %v6586
    %v6852 = vunpack.c.h.b16 %v6586
    %v6853 = vunpack.c.l.b16 %v6587
    %v6854 = vunpack.c.h.b16 %v6587
    %v6855 = vunpack.c.l.b16 %v6588
    %v6856 = vunpack.c.h.b16 %v6588
    %v6857 = vunpack.c.l.b16 %v6589
    %v6858 = vunpack.c.h.b16 %v6589
    %v6859 = vunpack.c.l.b16 %v6590
    %v6860 = vunpack.c.h.b16 %v6590
    %v6861 = vunpack.c.l.b16 %v6591
    %v6862 = vunpack.c.h.b16 %v6591
    %v6863 = vunpack.c.l.b16 %v6592
    %v6864 = vunpack.c.h.b16 %v6592
    %v6865 = vunpack.c.l.b16 %v6593
    %v6866 = vunpack.c.h.b16 %v6593
    %v6867 = vunpack.c.l.b16 %v6594
    %v6868 = vunpack.c.h.b16 %v6594
    %v6869 = vunpack.c.l.b16 %v6595
    %v6870 = vunpack.c.h.b16 %v6595
    %v6871 = vunpack.c.l.b16 %v6596
    %v6872 = vunpack.c.h.b16 %v6596
    %v6873 = vunpack.c.l.b16 %v6597
    %v6874 = vunpack.c.h.b16 %v6597
    %v6875 = vunpack.c.l.b16 %v6598
    %v6876 = vunpack.c.h.b16 %v6598
    %v6877 = vunpack.c.l.b16 %v6599
    %v6878 = vunpack.c.h.b16 %v6599
    %v6879 = vunpack.c.l.b16 %v6600
    %v6880 = vunpack.c.h.b16 %v6600
    %v6881 = vunpack.c.l.b16 %v6601
    %v6882 = vunpack.c.h.b16 %v6601
    %v6883 = vunpack.c.l.b16 %v6602
    %v6884 = vunpack.c.h.b16 %v6602
    %v6885 = vunpack.c.l.b16 %v6603
    %v6886 = vunpack.c.h.b16 %v6603
    %v6887 = vunpack.c.l.b16 %v6604
    %v6888 = vunpack.c.h.b16 %v6604
    %v6889 = vunpack.c.l.b16 %v6605
    %v6890 = vunpack.c.h.b16 %v6605
    %v6891 = vunpack.c.l.b16 %v6606
    %v6892 = vunpack.c.h.b16 %v6606
    %v6893 = vunpack.c.l.b16 %v6607
    %v6894 = vunpack.c.h.b16 %v6607
    %v6895 = vunpack.c.l.b16 %v6608
    %v6896 = vunpack.c.h.b16 %v6608
    %v6897 = vpack.c.b16 %v6709, %v6705
    %v6898 = vpack.c.b16 %v6710, %v6706
    %v6899 = vpack.c.b16 %v6711, %v6707
    %v6900 = vpack.c.b16 %v6712, %v6708
    %v6901 = vpack.c.b16 %v6717, %v6713
    %v6902 = vpack.c.b16 %v6718, %v6714
    %v6903 = vpack.c.b16 %v6719, %v6715
    %v6904 = vpack.c.b16 %v6720, %v6716
    %v6905 = vpack.c.b16 %v6725, %v6721
    %v6906 = vpack.c.b16 %v6726, %v6722
    %v6907 = vpack.c.b16 %v6727, %v6723
    %v6908 = vpack.c.b16 %v6728, %v6724
    %v6909 = vpack.c.b16 %v6733, %v6729
    %v6910 = vpack.c.b16 %v6734, %v6730
    %v6911 = vpack.c.b16 %v6735, %v6731
    %v6912 = vpack.c.b16 %v6736, %v6732
    %v6913 = vpack.c.b16 %v6741, %v6737
    %v6914 = vpack.c.b16 %v6742, %v6738
    %v6915 = vpack.c.b16 %v6743, %v6739
    %v6916 = vpack.c.b16 %v6744, %v6740
    %v6917 = vpack.c.b16 %v6749, %v6745
    %v6918 = vpack.c.b16 %v6750, %v6746
    %v6919 = vpack.c.b16 %v6751, %v6747
    %v6920 = vpack.c.b16 %v6752, %v6748
    %v6921 = vpack.c.b16 %v6757, %v6753
    %v6922 = vpack.c.b16 %v6758, %v6754
    %v6923 = vpack.c.b16 %v6759, %v6755
    %v6924 = vpack.c.b16 %v6760, %v6756
    %v6925 = vpack.c.b16 %v6765, %v6761
    %v6926 = vpack.c.b16 %v6766, %v6762
    %v6927 = vpack.c.b16 %v6767, %v6763
    %v6928 = vpack.c.b16 %v6768, %v6764
    %v6929 = vpack.c.b16 %v6773, %v6769
    %v6930 = vpack.c.b16 %v6774, %v6770
    %v6931 = vpack.c.b16 %v6775, %v6771
    %v6932 = vpack.c.b16 %v6776, %v6772
    %v6933 = vpack.c.b16 %v6781, %v6777
    %v6934 = vpack.c.b16 %v6782, %v6778
    %v6935 = vpack.c.b16 %v6783, %v6779
    %v6936 = vpack.c.b16 %v6784, %v6780
    %v6937 = vpack.c.b16 %v6789, %v6785
    %v6938 = vpack.c.b16 %v6790, %v6786
    %v6939 = vpack.c.b16 %v6791, %v6787
    %v6940 = vpack.c.b16 %v6792, %v6788
    %v6941 = vpack.c.b16 %v6797, %v6793
    %v6942 = vpack.c.b16 %v6798, %v6794
    %v6943 = vpack.c.b16 %v6799, %v6795
    %v6944 = vpack.c.b16 %v6800, %v6796
    %v6945 = vpack.c.b16 %v6805, %v6801
    %v6946 = vpack.c.b16 %v6806, %v6802
    %v6947 = vpack.c.b16 %v6807, %v6803
    %v6948 = vpack.c.b16 %v6808, %v6804
    %v6949 = vpack.c.b16 %v6813, %v6809
    %v6950 = vpack.c.b16 %v6814, %v6810
    %v6951 = vpack.c.b16 %v6815, %v6811
    %v6952 = vpack.c.b16 %v6816, %v6812
    %v6953 = vpack.c.b16 %v6821, %v6817
    %v6954 = vpack.c.b16 %v6822, %v6818
    %v6955 = vpack.c.b16 %v6823, %v6819
    %v6956 = vpack.c.b16 %v6824, %v6820
    %v6957 = vpack.c.b16 %v6829, %v6825
    %v6958 = vpack.c.b16 %v6830, %v6826
    %v6959 = vpack.c.b16 %v6831, %v6827
    %v6960 = vpack.c.b16 %v6832, %v6828
    %v6961 = vpack.c.b16 %v6837, %v6833
    %v6962 = vpack.c.b16 %v6838, %v6834
    %v6963 = vpack.c.b16 %v6839, %v6835
    %v6964 = vpack.c.b16 %v6840, %v6836
    %v6965 = vpack.c.b16 %v6845, %v6841
    %v6966 = vpack.c.b16 %v6846, %v6842
    %v6967 = vpack.c.b16 %v6847, %v6843
    %v6968 = vpack.c.b16 %v6848, %v6844
    %v6969 = vpack.c.b16 %v6853, %v6849
    %v6970 = vpack.c.b16 %v6854, %v6850
    %v6971 = vpack.c.b16 %v6855, %v6851
    %v6972 = vpack.c.b16 %v6856, %v6852
    %v6973 = vpack.c.b16 %v6861, %v6857
    %v6974 = vpack.c.b16 %v6862, %v6858
    %v6975 = vpack.c.b16 %v6863, %v6859
    %v6976 = vpack.c.b16 %v6864, %v6860
    %v6977 = vpack.c.b16 %v6869, %v6865
    %v6978 = vpack.c.b16 %v6870, %v6866
    %v6979 = vpack.c.b16 %v6871, %v6867
    %v6980 = vpack.c.b16 %v6872, %v6868
    %v6981 = vpack.c.b16 %v6877, %v6873
    %v6982 = vpack.c.b16 %v6878, %v6874
    %v6983 = vpack.c.b16 %v6879, %v6875
    %v6984 = vpack.c.b16 %v6880, %v6876
    %v6985 = vpack.c.b16 %v6885, %v6881
    %v6986 = vpack.c.b16 %v6886, %v6882
    %v6987 = vpack.c.b16 %v6887, %v6883
    %v6988 = vpack.c.b16 %v6888, %v6884
    %v6989 = vpack.c.b16 %v6893, %v6889
    %v6990 = vpack.c.b16 %v6894, %v6890
    %v6991 = vpack.c.b16 %v6895, %v6891
    %v6992 = vpack.c.b16 %v6896, %v6892
    %7089 = vmatprep.subr.bf16.mxu0 %v6926
    %7090 = vmatpush1.bf16.msra.mxu0 %v6925
    %7091 = vmatprep.subr.bf16.mxu0 %v6922
    %7092 = vmatpush1.bf16.msra.mxu0 %v6921
    %7093 = vmatprep.subr.bf16.mxu0 %v6918
    %7094 = vmatpush1.bf16.msra.mxu0 %v6917
    %7095 = vmatprep.subr.bf16.mxu0 %v6914
    %7096 = vmatpush1.bf16.msra.mxu0 %v6913
    %7097 = vmatprep.subr.bf16.mxu0 %v6910
    %7098 = vmatpush1.bf16.msra.mxu0 %v6909
    %7099 = vmatprep.subr.bf16.mxu0 %v6906
    %7100 = vmatpush1.bf16.msra.mxu0 %v6905
    %7101 = vmatprep.subr.bf16.mxu0 %v6902
    %7102 = vmatpush1.bf16.msra.mxu0 %v6901
    %7103 = vmatprep.subr.bf16.mxu0 %v6898
    %7104 = vmatpush1.bf16.msra.mxu0 %v6897
    %7105 = vmatprep.subr.bf16.mxu0 %v6958
    %7106 = vmatpush2.bf16.msra.mxu0 %v6957
    %7107 = vmatprep.subr.bf16.mxu0 %v6954
    %7108 = vmatpush2.bf16.msra.mxu0 %v6953
    %7109 = vmatprep.subr.bf16.mxu0 %v6950
    %7110 = vmatpush2.bf16.msra.mxu0 %v6949
    %7111 = vmatprep.subr.bf16.mxu0 %v6946
    %7112 = vmatpush2.bf16.msra.mxu0 %v6945
    %7113 = vmatprep.subr.bf16.mxu0 %v6942
    %7114 = vmatpush2.bf16.msra.mxu0 %v6941
    %7115 = vmatprep.subr.bf16.mxu0 %v6938
    %7116 = vmatpush2.bf16.msra.mxu0 %v6937
    %7117 = vmatprep.subr.bf16.mxu0 %v6934
    %7118 = vmatpush2.bf16.msra.mxu0 %v6933
    %7119 = vmatprep.subr.bf16.mxu0 %v6930
    %7120 = vmatpush2.bf16.msra.mxu0 %v6929
    %7121 = vmatprep.mubr.bf16.mxu0 %v6511
    %7122 = vmatmul.mubr.bf16.gmra.mxu0 %v6510
    %v7123 = vpop.f32.mrf.mxu0
    %v7124 = vadd.f32 0.0, %v7123
    %v7125 = vpop.f32.mrf.mxu0
    %v7126 = vadd.f32 0.0, %v7125
    %v7127 = vpop.f32.mrf.mxu0
    %v7128 = vpop.f32.mrf.mxu0
    %7129 = vdwg.mxu0
    %7130 = vmatprep.subr.bf16.mxu0 %v6990
    %7131 = vmatpush1.bf16.msra.mxu0 %v6989
    %7132 = vmatprep.subr.bf16.mxu0 %v6986
    %7133 = vmatpush1.bf16.msra.mxu0 %v6985
    %7134 = vmatprep.subr.bf16.mxu0 %v6982
    %7135 = vmatpush1.bf16.msra.mxu0 %v6981
    %7136 = vmatprep.subr.bf16.mxu0 %v6978
    %7137 = vmatpush1.bf16.msra.mxu0 %v6977
    %7138 = vmatprep.subr.bf16.mxu0 %v6974
    %7139 = vmatpush1.bf16.msra.mxu0 %v6973
    %7140 = vmatprep.subr.bf16.mxu0 %v6970
    %7141 = vmatpush1.bf16.msra.mxu0 %v6969
    %7142 = vmatprep.subr.bf16.mxu0 %v6966
    %7143 = vmatpush1.bf16.msra.mxu0 %v6965
    %7144 = vmatprep.subr.bf16.mxu0 %v6962
    %7145 = vmatpush1.bf16.msra.mxu0 %v6961
    %7146 = vmatprep.subr.bf16.mxu0 0
    %7147 = vmatpush2.bf16.msra.mxu0 0
    %7148 = vmatprep.subr.bf16.mxu0 0
    %7149 = vmatpush2.bf16.msra.mxu0 0
    %7150 = vmatprep.subr.bf16.mxu0 0
    %7151 = vmatpush2.bf16.msra.mxu0 0
    %7152 = vmatprep.subr.bf16.mxu0 0
    %7153 = vmatpush2.bf16.msra.mxu0 0
    %7154 = vmatprep.subr.bf16.mxu0 0
    %7155 = vmatpush2.bf16.msra.mxu0 0
    %7156 = vmatprep.subr.bf16.mxu0 0
    %7157 = vmatpush2.bf16.msra.mxu0 0
    %7158 = vmatprep.subr.bf16.mxu0 0
    %7159 = vmatpush2.bf16.msra.mxu0 0
    %7160 = vmatprep.subr.bf16.mxu0 0
    %7161 = vmatpush2.bf16.msra.mxu0 0
    %7162 = vmatprep.mubr.bf16.mxu0 0
    %7163 = vmatmul.mubr.bf16.gmra.mxu0 %v6512
    %v7164 = vpop.f32.mrf.mxu0
    %v7165 = vadd.f32 %v7124, %v7164
    %v7166 = vpop.f32.mrf.mxu0
    %v7167 = vadd.f32 %v7126, %v7166
    %v7168 = vpop.f32.mrf.mxu0
    %v7169 = vpop.f32.mrf.mxu0
    %7170 = vdwg.mxu0
    %7171 = vmatprep.subr.bf16.mxu0 %v6928
    %7172 = vmatpush1.bf16.msra.mxu0 %v6927
    %7173 = vmatprep.subr.bf16.mxu0 %v6924
    %7174 = vmatpush1.bf16.msra.mxu0 %v6923
    %7175 = vmatprep.subr.bf16.mxu0 %v6920
    %7176 = vmatpush1.bf16.msra.mxu0 %v6919
    %7177 = vmatprep.subr.bf16.mxu0 %v6916
    %7178 = vmatpush1.bf16.msra.mxu0 %v6915
    %7179 = vmatprep.subr.bf16.mxu0 %v6912
    %7180 = vmatpush1.bf16.msra.mxu0 %v6911
    %7181 = vmatprep.subr.bf16.mxu0 %v6908
    %7182 = vmatpush1.bf16.msra.mxu0 %v6907
    %7183 = vmatprep.subr.bf16.mxu0 %v6904
    %7184 = vmatpush1.bf16.msra.mxu0 %v6903
    %7185 = vmatprep.subr.bf16.mxu0 %v6900
    %7186 = vmatpush1.bf16.msra.mxu0 %v6899
    %7187 = vmatprep.subr.bf16.mxu0 %v6960
    %7188 = vmatpush2.bf16.msra.mxu0 %v6959
    %7189 = vmatprep.subr.bf16.mxu0 %v6956
    %7190 = vmatpush2.bf16.msra.mxu0 %v6955
    %7191 = vmatprep.subr.bf16.mxu0 %v6952
    %7192 = vmatpush2.bf16.msra.mxu0 %v6951
    %7193 = vmatprep.subr.bf16.mxu0 %v6948
    %7194 = vmatpush2.bf16.msra.mxu0 %v6947
    %7195 = vmatprep.subr.bf16.mxu0 %v6944
    %7196 = vmatpush2.bf16.msra.mxu0 %v6943
    %7197 = vmatprep.subr.bf16.mxu0 %v6940
    %7198 = vmatpush2.bf16.msra.mxu0 %v6939
    %7199 = vmatprep.subr.bf16.mxu0 %v6936
    %7200 = vmatpush2.bf16.msra.mxu0 %v6935
    %7201 = vmatprep.subr.bf16.mxu0 %v6932
    %7202 = vmatpush2.bf16.msra.mxu0 %v6931
    %7203 = vmatprep.mubr.bf16.mxu0 %v6511
    %7204 = vmatmul.mubr.bf16.gmra.mxu0 %v6510
    %v7205 = vpop.f32.mrf.mxu0
    %v7206 = vadd.f32 0.0, %v7205
    %v7207 = vpop.f32.mrf.mxu0
    %v7208 = vadd.f32 0.0, %v7207
    %v7209 = vpop.f32.mrf.mxu0
    %v7210 = vpop.f32.mrf.mxu0
    %7211 = vdwg.mxu0
    %7212 = vmatprep.subr.bf16.mxu0 %v6992
    %7213 = vmatpush1.bf16.msra.mxu0 %v6991
    %7214 = vmatprep.subr.bf16.mxu0 %v6988
    %7215 = vmatpush1.bf16.msra.mxu0 %v6987
    %7216 = vmatprep.subr.bf16.mxu0 %v6984
    %7217 = vmatpush1.bf16.msra.mxu0 %v6983
    %7218 = vmatprep.subr.bf16.mxu0 %v6980
    %7219 = vmatpush1.bf16.msra.mxu0 %v6979
    %7220 = vmatprep.subr.bf16.mxu0 %v6976
    %7221 = vmatpush1.bf16.msra.mxu0 %v6975
    %7222 = vmatprep.subr.bf16.mxu0 %v6972
    %7223 = vmatpush1.bf16.msra.mxu0 %v6971
    %7224 = vmatprep.subr.bf16.mxu0 %v6968
    %7225 = vmatpush1.bf16.msra.mxu0 %v6967
    %7226 = vmatprep.subr.bf16.mxu0 %v6964
    %7227 = vmatpush1.bf16.msra.mxu0 %v6963
    %7228 = vmatprep.subr.bf16.mxu0 0
    %7229 = vmatpush2.bf16.msra.mxu0 0
    %7230 = vmatprep.subr.bf16.mxu0 0
    %7231 = vmatpush2.bf16.msra.mxu0 0
    %7232 = vmatprep.subr.bf16.mxu0 0
    %7233 = vmatpush2.bf16.msra.mxu0 0
    %7234 = vmatprep.subr.bf16.mxu0 0
    %7235 = vmatpush2.bf16.msra.mxu0 0
    %7236 = vmatprep.subr.bf16.mxu0 0
    %7237 = vmatpush2.bf16.msra.mxu0 0
    %7238 = vmatprep.subr.bf16.mxu0 0
    %7239 = vmatpush2.bf16.msra.mxu0 0
    %7240 = vmatprep.subr.bf16.mxu0 0
    %7241 = vmatpush2.bf16.msra.mxu0 0
    %7242 = vmatprep.subr.bf16.mxu0 0
    %7243 = vmatpush2.bf16.msra.mxu0 0
    %7244 = vmatprep.mubr.bf16.mxu0 0
    %7245 = vmatmul.mubr.bf16.gmra.mxu0 %v6512
    %v7246 = vpop.f32.mrf.mxu0
    %v7247 = vadd.f32 %v7206, %v7246
    %v7248 = vpop.f32.mrf.mxu0
    %v7249 = vadd.f32 %v7208, %v7248
    %v7250 = vpop.f32.mrf.mxu0
    %v7251 = vpop.f32.mrf.mxu0
    %7252 = vdwg.mxu0
    %v7349 = vunpack.c.l.b16 %v5904
    %v7350 = vunpack.c.h.b16 %v5904
    %v7351 = vunpack.c.l.b16 %v5905
    %v7352 = vunpack.c.h.b16 %v5905
    %v7353 = vunpack.c.l.b16 %v5906
    %v7354 = vunpack.c.h.b16 %v5906
    %v7355 = vunpack.c.l.b16 %v5907
    %v7356 = vunpack.c.h.b16 %v5907
    %v7357 = vunpack.c.l.b16 %v5908
    %v7358 = vunpack.c.h.b16 %v5908
    %v7359 = vunpack.c.l.b16 %v5909
    %v7360 = vunpack.c.h.b16 %v5909
    %v7361 = vunpack.c.l.b16 %v5910
    %v7362 = vunpack.c.h.b16 %v5910
    %v7363 = vunpack.c.l.b16 %v5911
    %v7364 = vunpack.c.h.b16 %v5911
    %v7365 = vunpack.c.l.b16 %v5912
    %v7366 = vunpack.c.h.b16 %v5912
    %v7367 = vunpack.c.l.b16 %v5913
    %v7368 = vunpack.c.h.b16 %v5913
    %v7369 = vunpack.c.l.b16 %v5914
    %v7370 = vunpack.c.h.b16 %v5914
    %v7371 = vunpack.c.l.b16 %v5915
    %v7372 = vunpack.c.h.b16 %v5915
    %v7373 = vunpack.c.l.b16 %v5916
    %v7374 = vunpack.c.h.b16 %v5916
    %v7375 = vunpack.c.l.b16 %v5917
    %v7376 = vunpack.c.h.b16 %v5917
    %v7377 = vunpack.c.l.b16 %v5918
    %v7378 = vunpack.c.h.b16 %v5918
    %v7379 = vunpack.c.l.b16 %v5919
    %v7380 = vunpack.c.h.b16 %v5919
    %v7381 = vunpack.c.l.b16 %v5920
    %v7382 = vunpack.c.h.b16 %v5920
    %v7383 = vunpack.c.l.b16 %v5921
    %v7384 = vunpack.c.h.b16 %v5921
    %v7385 = vunpack.c.l.b16 %v5922
    %v7386 = vunpack.c.h.b16 %v5922
    %v7387 = vunpack.c.l.b16 %v5923
    %v7388 = vunpack.c.h.b16 %v5923
    %v7389 = vunpack.c.l.b16 %v5924
    %v7390 = vunpack.c.h.b16 %v5924
    %v7391 = vunpack.c.l.b16 %v5925
    %v7392 = vunpack.c.h.b16 %v5925
    %v7393 = vunpack.c.l.b16 %v5926
    %v7394 = vunpack.c.h.b16 %v5926
    %v7395 = vunpack.c.l.b16 %v5927
    %v7396 = vunpack.c.h.b16 %v5927
    %v7397 = vunpack.c.l.b16 %v5928
    %v7398 = vunpack.c.h.b16 %v5928
    %v7399 = vunpack.c.l.b16 %v5929
    %v7400 = vunpack.c.h.b16 %v5929
    %v7401 = vunpack.c.l.b16 %v5930
    %v7402 = vunpack.c.h.b16 %v5930
    %v7403 = vunpack.c.l.b16 %v5931
    %v7404 = vunpack.c.h.b16 %v5931
    %v7405 = vunpack.c.l.b16 %v5932
    %v7406 = vunpack.c.h.b16 %v5932
    %v7407 = vunpack.c.l.b16 %v5933
    %v7408 = vunpack.c.h.b16 %v5933
    %v7409 = vunpack.c.l.b16 %v5934
    %v7410 = vunpack.c.h.b16 %v5934
    %v7411 = vunpack.c.l.b16 %v5935
    %v7412 = vunpack.c.h.b16 %v5935
    %v7413 = vunpack.c.l.b16 %v5936
    %v7414 = vunpack.c.h.b16 %v5936
    %v7415 = vunpack.c.l.b16 %v5937
    %v7416 = vunpack.c.h.b16 %v5937
    %v7417 = vunpack.c.l.b16 %v5938
    %v7418 = vunpack.c.h.b16 %v5938
    %v7419 = vunpack.c.l.b16 %v5939
    %v7420 = vunpack.c.h.b16 %v5939
    %v7421 = vunpack.c.l.b16 %v5940
    %v7422 = vunpack.c.h.b16 %v5940
    %v7423 = vunpack.c.l.b16 %v5941
    %v7424 = vunpack.c.h.b16 %v5941
    %v7425 = vunpack.c.l.b16 %v5942
    %v7426 = vunpack.c.h.b16 %v5942
    %v7427 = vunpack.c.l.b16 %v5943
    %v7428 = vunpack.c.h.b16 %v5943
    %v7429 = vunpack.c.l.b16 %v5944
    %v7430 = vunpack.c.h.b16 %v5944
    %v7431 = vunpack.c.l.b16 %v5945
    %v7432 = vunpack.c.h.b16 %v5945
    %v7433 = vunpack.c.l.b16 %v5946
    %v7434 = vunpack.c.h.b16 %v5946
    %v7435 = vunpack.c.l.b16 %v5947
    %v7436 = vunpack.c.h.b16 %v5947
    %v7437 = vunpack.c.l.b16 %v5948
    %v7438 = vunpack.c.h.b16 %v5948
    %v7439 = vunpack.c.l.b16 %v5949
    %v7440 = vunpack.c.h.b16 %v5949
    %v7441 = vunpack.c.l.b16 %v5950
    %v7442 = vunpack.c.h.b16 %v5950
    %v7443 = vunpack.c.l.b16 %v5951
    %v7444 = vunpack.c.h.b16 %v5951
    %v7445 = vunpack.c.l.b16 %v5952
    %v7446 = vunpack.c.h.b16 %v5952
    %v7447 = vunpack.c.l.b16 %v5953
    %v7448 = vunpack.c.h.b16 %v5953
    %v7449 = vunpack.c.l.b16 %v5954
    %v7450 = vunpack.c.h.b16 %v5954
    %v7451 = vunpack.c.l.b16 %v5955
    %v7452 = vunpack.c.h.b16 %v5955
    %v7453 = vunpack.c.l.b16 %v5956
    %v7454 = vunpack.c.h.b16 %v5956
    %v7455 = vunpack.c.l.b16 %v5957
    %v7456 = vunpack.c.h.b16 %v5957
    %v7457 = vunpack.c.l.b16 %v5958
    %v7458 = vunpack.c.h.b16 %v5958
    %v7459 = vunpack.c.l.b16 %v5959
    %v7460 = vunpack.c.h.b16 %v5959
    %v7461 = vunpack.c.l.b16 %v5960
    %v7462 = vunpack.c.h.b16 %v5960
    %v7463 = vunpack.c.l.b16 %v5961
    %v7464 = vunpack.c.h.b16 %v5961
    %v7465 = vunpack.c.l.b16 %v5962
    %v7466 = vunpack.c.h.b16 %v5962
    %v7467 = vunpack.c.l.b16 %v5963
    %v7468 = vunpack.c.h.b16 %v5963
    %v7469 = vunpack.c.l.b16 %v5964
    %v7470 = vunpack.c.h.b16 %v5964
    %v7471 = vunpack.c.l.b16 %v5965
    %v7472 = vunpack.c.h.b16 %v5965
    %v7473 = vunpack.c.l.b16 %v5966
    %v7474 = vunpack.c.h.b16 %v5966
    %v7475 = vunpack.c.l.b16 %v5967
    %v7476 = vunpack.c.h.b16 %v5967
    %v7477 = vunpack.c.l.b16 %v5968
    %v7478 = vunpack.c.h.b16 %v5968
    %v7479 = vunpack.c.l.b16 %v5969
    %v7480 = vunpack.c.h.b16 %v5969
    %v7481 = vunpack.c.l.b16 %v5970
    %v7482 = vunpack.c.h.b16 %v5970
    %v7483 = vunpack.c.l.b16 %v5971
    %v7484 = vunpack.c.h.b16 %v5971
    %v7485 = vunpack.c.l.b16 %v5972
    %v7486 = vunpack.c.h.b16 %v5972
    %v7487 = vunpack.c.l.b16 %v5973
    %v7488 = vunpack.c.h.b16 %v5973
    %v7489 = vunpack.c.l.b16 %v5974
    %v7490 = vunpack.c.h.b16 %v5974
    %v7491 = vunpack.c.l.b16 %v5975
    %v7492 = vunpack.c.h.b16 %v5975
    %v7493 = vunpack.c.l.b16 %v5976
    %v7494 = vunpack.c.h.b16 %v5976
    %v7495 = vunpack.c.l.b16 %v5977
    %v7496 = vunpack.c.h.b16 %v5977
    %v7497 = vunpack.c.l.b16 %v5978
    %v7498 = vunpack.c.h.b16 %v5978
    %v7499 = vunpack.c.l.b16 %v5979
    %v7500 = vunpack.c.h.b16 %v5979
    %v7501 = vunpack.c.l.b16 %v5980
    %v7502 = vunpack.c.h.b16 %v5980
    %v7503 = vunpack.c.l.b16 %v5981
    %v7504 = vunpack.c.h.b16 %v5981
    %v7505 = vunpack.c.l.b16 %v5982
    %v7506 = vunpack.c.h.b16 %v5982
    %v7507 = vunpack.c.l.b16 %v5983
    %v7508 = vunpack.c.h.b16 %v5983
    %v7509 = vunpack.c.l.b16 %v5984
    %v7510 = vunpack.c.h.b16 %v5984
    %v7511 = vunpack.c.l.b16 %v5985
    %v7512 = vunpack.c.h.b16 %v5985
    %v7513 = vunpack.c.l.b16 %v5986
    %v7514 = vunpack.c.h.b16 %v5986
    %v7515 = vunpack.c.l.b16 %v5987
    %v7516 = vunpack.c.h.b16 %v5987
    %v7517 = vunpack.c.l.b16 %v5988
    %v7518 = vunpack.c.h.b16 %v5988
    %v7519 = vunpack.c.l.b16 %v5989
    %v7520 = vunpack.c.h.b16 %v5989
    %v7521 = vunpack.c.l.b16 %v5990
    %v7522 = vunpack.c.h.b16 %v5990
    %v7523 = vunpack.c.l.b16 %v5991
    %v7524 = vunpack.c.h.b16 %v5991
    %v7525 = vunpack.c.l.b16 %v5992
    %v7526 = vunpack.c.h.b16 %v5992
    %v7527 = vunpack.c.l.b16 %v5993
    %v7528 = vunpack.c.h.b16 %v5993
    %v7529 = vunpack.c.l.b16 %v5994
    %v7530 = vunpack.c.h.b16 %v5994
    %v7531 = vunpack.c.l.b16 %v5995
    %v7532 = vunpack.c.h.b16 %v5995
    %v7533 = vunpack.c.l.b16 %v5996
    %v7534 = vunpack.c.h.b16 %v5996
    %v7535 = vunpack.c.l.b16 %v5997
    %v7536 = vunpack.c.h.b16 %v5997
    %v7537 = vunpack.c.l.b16 %v5998
    %v7538 = vunpack.c.h.b16 %v5998
    %v7539 = vunpack.c.l.b16 %v5999
    %v7540 = vunpack.c.h.b16 %v5999
    %v7541 = vpack.c.b16 %v7353, %v7349
    %v7542 = vpack.c.b16 %v7354, %v7350
    %v7543 = vpack.c.b16 %v7355, %v7351
    %v7544 = vpack.c.b16 %v7356, %v7352
    %v7545 = vpack.c.b16 %v7361, %v7357
    %v7546 = vpack.c.b16 %v7362, %v7358
    %v7547 = vpack.c.b16 %v7363, %v7359
    %v7548 = vpack.c.b16 %v7364, %v7360
    %v7549 = vpack.c.b16 %v7369, %v7365
    %v7550 = vpack.c.b16 %v7370, %v7366
    %v7551 = vpack.c.b16 %v7371, %v7367
    %v7552 = vpack.c.b16 %v7372, %v7368
    %v7553 = vpack.c.b16 %v7377, %v7373
    %v7554 = vpack.c.b16 %v7378, %v7374
    %v7555 = vpack.c.b16 %v7379, %v7375
    %v7556 = vpack.c.b16 %v7380, %v7376
    %v7557 = vpack.c.b16 %v7385, %v7381
    %v7558 = vpack.c.b16 %v7386, %v7382
    %v7559 = vpack.c.b16 %v7387, %v7383
    %v7560 = vpack.c.b16 %v7388, %v7384
    %v7561 = vpack.c.b16 %v7393, %v7389
    %v7562 = vpack.c.b16 %v7394, %v7390
    %v7563 = vpack.c.b16 %v7395, %v7391
    %v7564 = vpack.c.b16 %v7396, %v7392
    %v7565 = vpack.c.b16 %v7401, %v7397
    %v7566 = vpack.c.b16 %v7402, %v7398
    %v7567 = vpack.c.b16 %v7403, %v7399
    %v7568 = vpack.c.b16 %v7404, %v7400
    %v7569 = vpack.c.b16 %v7409, %v7405
    %v7570 = vpack.c.b16 %v7410, %v7406
    %v7571 = vpack.c.b16 %v7411, %v7407
    %v7572 = vpack.c.b16 %v7412, %v7408
    %v7573 = vpack.c.b16 %v7417, %v7413
    %v7574 = vpack.c.b16 %v7418, %v7414
    %v7575 = vpack.c.b16 %v7419, %v7415
    %v7576 = vpack.c.b16 %v7420, %v7416
    %v7577 = vpack.c.b16 %v7425, %v7421
    %v7578 = vpack.c.b16 %v7426, %v7422
    %v7579 = vpack.c.b16 %v7427, %v7423
    %v7580 = vpack.c.b16 %v7428, %v7424
    %v7581 = vpack.c.b16 %v7433, %v7429
    %v7582 = vpack.c.b16 %v7434, %v7430
    %v7583 = vpack.c.b16 %v7435, %v7431
    %v7584 = vpack.c.b16 %v7436, %v7432
    %v7585 = vpack.c.b16 %v7441, %v7437
    %v7586 = vpack.c.b16 %v7442, %v7438
    %v7587 = vpack.c.b16 %v7443, %v7439
    %v7588 = vpack.c.b16 %v7444, %v7440
    %v7589 = vpack.c.b16 %v7449, %v7445
    %v7590 = vpack.c.b16 %v7450, %v7446
    %v7591 = vpack.c.b16 %v7451, %v7447
    %v7592 = vpack.c.b16 %v7452, %v7448
    %v7593 = vpack.c.b16 %v7457, %v7453
    %v7594 = vpack.c.b16 %v7458, %v7454
    %v7595 = vpack.c.b16 %v7459, %v7455
    %v7596 = vpack.c.b16 %v7460, %v7456
    %v7597 = vpack.c.b16 %v7465, %v7461
    %v7598 = vpack.c.b16 %v7466, %v7462
    %v7599 = vpack.c.b16 %v7467, %v7463
    %v7600 = vpack.c.b16 %v7468, %v7464
    %v7601 = vpack.c.b16 %v7473, %v7469
    %v7602 = vpack.c.b16 %v7474, %v7470
    %v7603 = vpack.c.b16 %v7475, %v7471
    %v7604 = vpack.c.b16 %v7476, %v7472
    %v7605 = vpack.c.b16 %v7481, %v7477
    %v7606 = vpack.c.b16 %v7482, %v7478
    %v7607 = vpack.c.b16 %v7483, %v7479
    %v7608 = vpack.c.b16 %v7484, %v7480
    %v7609 = vpack.c.b16 %v7489, %v7485
    %v7610 = vpack.c.b16 %v7490, %v7486
    %v7611 = vpack.c.b16 %v7491, %v7487
    %v7612 = vpack.c.b16 %v7492, %v7488
    %v7613 = vpack.c.b16 %v7497, %v7493
    %v7614 = vpack.c.b16 %v7498, %v7494
    %v7615 = vpack.c.b16 %v7499, %v7495
    %v7616 = vpack.c.b16 %v7500, %v7496
    %v7617 = vpack.c.b16 %v7505, %v7501
    %v7618 = vpack.c.b16 %v7506, %v7502
    %v7619 = vpack.c.b16 %v7507, %v7503
    %v7620 = vpack.c.b16 %v7508, %v7504
    %v7621 = vpack.c.b16 %v7513, %v7509
    %v7622 = vpack.c.b16 %v7514, %v7510
    %v7623 = vpack.c.b16 %v7515, %v7511
    %v7624 = vpack.c.b16 %v7516, %v7512
    %v7625 = vpack.c.b16 %v7521, %v7517
    %v7626 = vpack.c.b16 %v7522, %v7518
    %v7627 = vpack.c.b16 %v7523, %v7519
    %v7628 = vpack.c.b16 %v7524, %v7520
    %v7629 = vpack.c.b16 %v7529, %v7525
    %v7630 = vpack.c.b16 %v7530, %v7526
    %v7631 = vpack.c.b16 %v7531, %v7527
    %v7632 = vpack.c.b16 %v7532, %v7528
    %v7633 = vpack.c.b16 %v7537, %v7533
    %v7634 = vpack.c.b16 %v7538, %v7534
    %v7635 = vpack.c.b16 %v7539, %v7535
    %v7636 = vpack.c.b16 %v7540, %v7536
    %7733 = vmatprep.subr.bf16.mxu0 %v7570
    %7734 = vmatpush1.bf16.msra.mxu0 %v7569
    %7735 = vmatprep.subr.bf16.mxu0 %v7566
    %7736 = vmatpush1.bf16.msra.mxu0 %v7565
    %7737 = vmatprep.subr.bf16.mxu0 %v7562
    %7738 = vmatpush1.bf16.msra.mxu0 %v7561
    %7739 = vmatprep.subr.bf16.mxu0 %v7558
    %7740 = vmatpush1.bf16.msra.mxu0 %v7557
    %7741 = vmatprep.subr.bf16.mxu0 %v7554
    %7742 = vmatpush1.bf16.msra.mxu0 %v7553
    %7743 = vmatprep.subr.bf16.mxu0 %v7550
    %7744 = vmatpush1.bf16.msra.mxu0 %v7549
    %7745 = vmatprep.subr.bf16.mxu0 %v7546
    %7746 = vmatpush1.bf16.msra.mxu0 %v7545
    %7747 = vmatprep.subr.bf16.mxu0 %v7542
    %7748 = vmatpush1.bf16.msra.mxu0 %v7541
    %7749 = vmatprep.subr.bf16.mxu0 %v7602
    %7750 = vmatpush2.bf16.msra.mxu0 %v7601
    %7751 = vmatprep.subr.bf16.mxu0 %v7598
    %7752 = vmatpush2.bf16.msra.mxu0 %v7597
    %7753 = vmatprep.subr.bf16.mxu0 %v7594
    %7754 = vmatpush2.bf16.msra.mxu0 %v7593
    %7755 = vmatprep.subr.bf16.mxu0 %v7590
    %7756 = vmatpush2.bf16.msra.mxu0 %v7589
    %7757 = vmatprep.subr.bf16.mxu0 %v7586
    %7758 = vmatpush2.bf16.msra.mxu0 %v7585
    %7759 = vmatprep.subr.bf16.mxu0 %v7582
    %7760 = vmatpush2.bf16.msra.mxu0 %v7581
    %7761 = vmatprep.subr.bf16.mxu0 %v7578
    %7762 = vmatpush2.bf16.msra.mxu0 %v7577
    %7763 = vmatprep.subr.bf16.mxu0 %v7574
    %7764 = vmatpush2.bf16.msra.mxu0 %v7573
    %7765 = vmatprep.mubr.bf16.mxu0 %v5902
    %7766 = vmatmul.mubr.bf16.gmra.mxu0 %v5901
    %v7767 = vpop.f32.mrf.mxu0
    %v7768 = vadd.f32 %v7165, %v7767
    %v7769 = vpop.f32.mrf.mxu0
    %v7770 = vadd.f32 %v7167, %v7769
    %v7771 = vpop.f32.mrf.mxu0
    %v7772 = vpop.f32.mrf.mxu0
    %7773 = vdwg.mxu0
    %7774 = vmatprep.subr.bf16.mxu0 %v7634
    %7775 = vmatpush1.bf16.msra.mxu0 %v7633
    %7776 = vmatprep.subr.bf16.mxu0 %v7630
    %7777 = vmatpush1.bf16.msra.mxu0 %v7629
    %7778 = vmatprep.subr.bf16.mxu0 %v7626
    %7779 = vmatpush1.bf16.msra.mxu0 %v7625
    %7780 = vmatprep.subr.bf16.mxu0 %v7622
    %7781 = vmatpush1.bf16.msra.mxu0 %v7621
    %7782 = vmatprep.subr.bf16.mxu0 %v7618
    %7783 = vmatpush1.bf16.msra.mxu0 %v7617
    %7784 = vmatprep.subr.bf16.mxu0 %v7614
    %7785 = vmatpush1.bf16.msra.mxu0 %v7613
    %7786 = vmatprep.subr.bf16.mxu0 %v7610
    %7787 = vmatpush1.bf16.msra.mxu0 %v7609
    %7788 = vmatprep.subr.bf16.mxu0 %v7606
    %7789 = vmatpush1.bf16.msra.mxu0 %v7605
    %7790 = vmatprep.subr.bf16.mxu0 0
    %7791 = vmatpush2.bf16.msra.mxu0 0
    %7792 = vmatprep.subr.bf16.mxu0 0
    %7793 = vmatpush2.bf16.msra.mxu0 0
    %7794 = vmatprep.subr.bf16.mxu0 0
    %7795 = vmatpush2.bf16.msra.mxu0 0
    %7796 = vmatprep.subr.bf16.mxu0 0
    %7797 = vmatpush2.bf16.msra.mxu0 0
    %7798 = vmatprep.subr.bf16.mxu0 0
    %7799 = vmatpush2.bf16.msra.mxu0 0
    %7800 = vmatprep.subr.bf16.mxu0 0
    %7801 = vmatpush2.bf16.msra.mxu0 0
    %7802 = vmatprep.subr.bf16.mxu0 0
    %7803 = vmatpush2.bf16.msra.mxu0 0
    %7804 = vmatprep.subr.bf16.mxu0 0
    %7805 = vmatpush2.bf16.msra.mxu0 0
    %7806 = vmatprep.mubr.bf16.mxu0 0
    %7807 = vmatmul.mubr.bf16.gmra.mxu0 %v5903
    %v7808 = vpop.f32.mrf.mxu0
    %v7809 = vadd.f32 %v7768, %v7808
    %v7810 = vpop.f32.mrf.mxu0
    %v7811 = vadd.f32 %v7770, %v7810
    %v7812 = vpop.f32.mrf.mxu0
    %v7813 = vpop.f32.mrf.mxu0
    %7814 = vdwg.mxu0
    %7815 = vmatprep.subr.bf16.mxu0 %v7572
    %7816 = vmatpush1.bf16.msra.mxu0 %v7571
    %7817 = vmatprep.subr.bf16.mxu0 %v7568
    %7818 = vmatpush1.bf16.msra.mxu0 %v7567
    %7819 = vmatprep.subr.bf16.mxu0 %v7564
    %7820 = vmatpush1.bf16.msra.mxu0 %v7563
    %7821 = vmatprep.subr.bf16.mxu0 %v7560
    %7822 = vmatpush1.bf16.msra.mxu0 %v7559
    %7823 = vmatprep.subr.bf16.mxu0 %v7556
    %7824 = vmatpush1.bf16.msra.mxu0 %v7555
    %7825 = vmatprep.subr.bf16.mxu0 %v7552
    %7826 = vmatpush1.bf16.msra.mxu0 %v7551
    %7827 = vmatprep.subr.bf16.mxu0 %v7548
    %7828 = vmatpush1.bf16.msra.mxu0 %v7547
    %7829 = vmatprep.subr.bf16.mxu0 %v7544
    %7830 = vmatpush1.bf16.msra.mxu0 %v7543
    %7831 = vmatprep.subr.bf16.mxu0 %v7604
    %7832 = vmatpush2.bf16.msra.mxu0 %v7603
    %7833 = vmatprep.subr.bf16.mxu0 %v7600
    %7834 = vmatpush2.bf16.msra.mxu0 %v7599
    %7835 = vmatprep.subr.bf16.mxu0 %v7596
    %7836 = vmatpush2.bf16.msra.mxu0 %v7595
    %7837 = vmatprep.subr.bf16.mxu0 %v7592
    %7838 = vmatpush2.bf16.msra.mxu0 %v7591
    %7839 = vmatprep.subr.bf16.mxu0 %v7588
    %7840 = vmatpush2.bf16.msra.mxu0 %v7587
    %7841 = vmatprep.subr.bf16.mxu0 %v7584
    %7842 = vmatpush2.bf16.msra.mxu0 %v7583
    %7843 = vmatprep.subr.bf16.mxu0 %v7580
    %7844 = vmatpush2.bf16.msra.mxu0 %v7579
    %7845 = vmatprep.subr.bf16.mxu0 %v7576
    %7846 = vmatpush2.bf16.msra.mxu0 %v7575
    %7847 = vmatprep.mubr.bf16.mxu0 %v5902
    %7848 = vmatmul.mubr.bf16.gmra.mxu0 %v5901
    %v7849 = vpop.f32.mrf.mxu0
    %v7850 = vadd.f32 %v7247, %v7849
    %v7851 = vpop.f32.mrf.mxu0
    %v7852 = vadd.f32 %v7249, %v7851
    %v7853 = vpop.f32.mrf.mxu0
    %v7854 = vpop.f32.mrf.mxu0
    %7855 = vdwg.mxu0
    %7856 = vmatprep.subr.bf16.mxu0 %v7636
    %7857 = vmatpush1.bf16.msra.mxu0 %v7635
    %7858 = vmatprep.subr.bf16.mxu0 %v7632
    %7859 = vmatpush1.bf16.msra.mxu0 %v7631
    %7860 = vmatprep.subr.bf16.mxu0 %v7628
    %7861 = vmatpush1.bf16.msra.mxu0 %v7627
    %7862 = vmatprep.subr.bf16.mxu0 %v7624
    %7863 = vmatpush1.bf16.msra.mxu0 %v7623
    %7864 = vmatprep.subr.bf16.mxu0 %v7620
    %7865 = vmatpush1.bf16.msra.mxu0 %v7619
    %7866 = vmatprep.subr.bf16.mxu0 %v7616
    %7867 = vmatpush1.bf16.msra.mxu0 %v7615
    %7868 = vmatprep.subr.bf16.mxu0 %v7612
    %7869 = vmatpush1.bf16.msra.mxu0 %v7611
    %7870 = vmatprep.subr.bf16.mxu0 %v7608
    %7871 = vmatpush1.bf16.msra.mxu0 %v7607
    %7872 = vmatprep.subr.bf16.mxu0 0
    %7873 = vmatpush2.bf16.msra.mxu0 0
    %7874 = vmatprep.subr.bf16.mxu0 0
    %7875 = vmatpush2.bf16.msra.mxu0 0
    %7876 = vmatprep.subr.bf16.mxu0 0
    %7877 = vmatpush2.bf16.msra.mxu0 0
    %7878 = vmatprep.subr.bf16.mxu0 0
    %7879 = vmatpush2.bf16.msra.mxu0 0
    %7880 = vmatprep.subr.bf16.mxu0 0
    %7881 = vmatpush2.bf16.msra.mxu0 0
    %7882 = vmatprep.subr.bf16.mxu0 0
    %7883 = vmatpush2.bf16.msra.mxu0 0
    %7884 = vmatprep.subr.bf16.mxu0 0
    %7885 = vmatpush2.bf16.msra.mxu0 0
    %7886 = vmatprep.subr.bf16.mxu0 0
    %7887 = vmatpush2.bf16.msra.mxu0 0
    %7888 = vmatprep.mubr.bf16.mxu0 0
    %7889 = vmatmul.mubr.bf16.gmra.mxu0 %v5903
    %v7890 = vpop.f32.mrf.mxu0
    %v7891 = vadd.f32 %v7850, %v7890
    %v7892 = vpop.f32.mrf.mxu0
    %v7893 = vadd.f32 %v7852, %v7892
    %v7894 = vpop.f32.mrf.mxu0
    %v7895 = vpop.f32.mrf.mxu0
    %7896 = vdwg.mxu0
    %7897 = vmatprep.subr.bf16.mxu0 %v5702
    %7898 = vmatpush1.bf16.msra.mxu0 %v5701
    %7899 = vmatprep.subr.bf16.mxu0 %v5699
    %7900 = vmatpush1.bf16.msra.mxu0 %v5698
    %7901 = vmatprep.subr.bf16.mxu0 %v5696
    %7902 = vmatpush1.bf16.msra.mxu0 %v5695
    %7903 = vmatprep.subr.bf16.mxu0 %v5693
    %7904 = vmatpush1.bf16.msra.mxu0 %v5692
    %7905 = vmatprep.subr.bf16.mxu0 %v5690
    %7906 = vmatpush1.bf16.msra.mxu0 %v5689
    %7907 = vmatprep.subr.bf16.mxu0 %v5687
    %7908 = vmatpush1.bf16.msra.mxu0 %v5686
    %7909 = vmatprep.subr.bf16.mxu0 %v5684
    %7910 = vmatpush1.bf16.msra.mxu0 %v5683
    %7911 = vmatprep.subr.bf16.mxu0 %v5681
    %7912 = vmatpush1.bf16.msra.mxu0 %v5680
    %7913 = vmatprep.subr.bf16.mxu0 0
    %7914 = vmatpush2.bf16.msra.mxu0 0
    %7915 = vmatprep.subr.bf16.mxu0 0
    %7916 = vmatpush2.bf16.msra.mxu0 0
    %7917 = vmatprep.subr.bf16.mxu0 0
    %7918 = vmatpush2.bf16.msra.mxu0 0
    %7919 = vmatprep.subr.bf16.mxu0 0
    %7920 = vmatpush2.bf16.msra.mxu0 0
    %7921 = vmatprep.subr.bf16.mxu0 %v5714
    %7922 = vmatpush2.bf16.msra.mxu0 %v5713
    %7923 = vmatprep.subr.bf16.mxu0 %v5711
    %7924 = vmatpush2.bf16.msra.mxu0 %v5710
    %7925 = vmatprep.subr.bf16.mxu0 %v5708
    %7926 = vmatpush2.bf16.msra.mxu0 %v5707
    %7927 = vmatprep.subr.bf16.mxu0 %v5705
    %7928 = vmatpush2.bf16.msra.mxu0 %v5704
    %7929 = vmatprep.mubr.bf16.mxu0 %v6412
    %7930 = vmatmul.mubr.bf16.gmra.mxu0 %v6408
    %v7931 = vpop.f32.mrf.mxu0
    %v7932 = vadd.f32 0.0, %v7931
    %v7933 = vpop.f32.mrf.mxu0
    %v7934 = vadd.f32 0.0, %v7933
    %v7935 = vpop.f32.mrf.mxu0
    %v7936 = vpop.f32.mrf.mxu0
    %7937 = vdwg.mxu0
    %7938 = vmatprep.subr.bf16.mxu0 0
    %7939 = vmatpush1.bf16.msra.mxu0 %v5703
    %7940 = vmatprep.subr.bf16.mxu0 0
    %7941 = vmatpush1.bf16.msra.mxu0 %v5700
    %7942 = vmatprep.subr.bf16.mxu0 0
    %7943 = vmatpush1.bf16.msra.mxu0 %v5697
    %7944 = vmatprep.subr.bf16.mxu0 0
    %7945 = vmatpush1.bf16.msra.mxu0 %v5694
    %7946 = vmatprep.subr.bf16.mxu0 0
    %7947 = vmatpush1.bf16.msra.mxu0 %v5691
    %7948 = vmatprep.subr.bf16.mxu0 0
    %7949 = vmatpush1.bf16.msra.mxu0 %v5688
    %7950 = vmatprep.subr.bf16.mxu0 0
    %7951 = vmatpush1.bf16.msra.mxu0 %v5685
    %7952 = vmatprep.subr.bf16.mxu0 0
    %7953 = vmatpush1.bf16.msra.mxu0 %v5682
    %7954 = vmatprep.subr.bf16.mxu0 0
    %7955 = vmatpush2.bf16.msra.mxu0 0
    %7956 = vmatprep.subr.bf16.mxu0 0
    %7957 = vmatpush2.bf16.msra.mxu0 0
    %7958 = vmatprep.subr.bf16.mxu0 0
    %7959 = vmatpush2.bf16.msra.mxu0 0
    %7960 = vmatprep.subr.bf16.mxu0 0
    %7961 = vmatpush2.bf16.msra.mxu0 0
    %7962 = vmatprep.subr.bf16.mxu0 0
    %7963 = vmatpush2.bf16.msra.mxu0 %v5715
    %7964 = vmatprep.subr.bf16.mxu0 0
    %7965 = vmatpush2.bf16.msra.mxu0 %v5712
    %7966 = vmatprep.subr.bf16.mxu0 0
    %7967 = vmatpush2.bf16.msra.mxu0 %v5709
    %7968 = vmatprep.subr.bf16.mxu0 0
    %7969 = vmatpush2.bf16.msra.mxu0 %v5706
    %7970 = vmatprep.mubr.bf16.mxu0 %v6412
    %7971 = vmatmul.mubr.bf16.gmra.mxu0 %v6408
    %v7972 = vpop.f32.mrf.mxu0
    %v7973 = vadd.f32 0.0, %v7972
    %v7974 = vpop.f32.mrf.mxu0
    %v7975 = vpop.f32.mrf.mxu0
    %v7976 = vpop.f32.mrf.mxu0
    %7977 = vdwg.mxu0
    %7978 = vmatprep.subr.bf16.mxu0 %v6271
    %7979 = vmatpush1.bf16.msra.mxu0 %v6270
    %7980 = vmatprep.subr.bf16.mxu0 %v6268
    %7981 = vmatpush1.bf16.msra.mxu0 %v6267
    %7982 = vmatprep.subr.bf16.mxu0 %v6265
    %7983 = vmatpush1.bf16.msra.mxu0 %v6264
    %7984 = vmatprep.subr.bf16.mxu0 %v6262
    %7985 = vmatpush1.bf16.msra.mxu0 %v6261
    %7986 = vmatprep.subr.bf16.mxu0 %v6259
    %7987 = vmatpush1.bf16.msra.mxu0 %v6258
    %7988 = vmatprep.subr.bf16.mxu0 %v6256
    %7989 = vmatpush1.bf16.msra.mxu0 %v6255
    %7990 = vmatprep.subr.bf16.mxu0 %v6253
    %7991 = vmatpush1.bf16.msra.mxu0 %v6252
    %7992 = vmatprep.subr.bf16.mxu0 %v6250
    %7993 = vmatpush1.bf16.msra.mxu0 %v6249
    %7994 = vmatprep.subr.bf16.mxu0 0
    %7995 = vmatpush2.bf16.msra.mxu0 0
    %7996 = vmatprep.subr.bf16.mxu0 0
    %7997 = vmatpush2.bf16.msra.mxu0 0
    %7998 = vmatprep.subr.bf16.mxu0 0
    %7999 = vmatpush2.bf16.msra.mxu0 0
    %8000 = vmatprep.subr.bf16.mxu0 0
    %8001 = vmatpush2.bf16.msra.mxu0 0
    %8002 = vmatprep.subr.bf16.mxu0 %v6283
    %8003 = vmatpush2.bf16.msra.mxu0 %v6282
    %8004 = vmatprep.subr.bf16.mxu0 %v6280
    %8005 = vmatpush2.bf16.msra.mxu0 %v6279
    %8006 = vmatprep.subr.bf16.mxu0 %v6277
    %8007 = vmatpush2.bf16.msra.mxu0 %v6276
    %8008 = vmatprep.subr.bf16.mxu0 %v6274
    %8009 = vmatpush2.bf16.msra.mxu0 %v6273
    %8010 = vmatprep.mubr.bf16.mxu0 %v5477
    %8011 = vmatmul.mubr.bf16.gmra.mxu0 %v5281
    %v8012 = vpop.f32.mrf.mxu0
    %v8013 = vadd.f32 %v7932, %v8012
    %v8014 = vpop.f32.mrf.mxu0
    %v8015 = vadd.f32 %v7934, %v8014
    %v8016 = vpop.f32.mrf.mxu0
    %v8017 = vpop.f32.mrf.mxu0
    %8018 = vdwg.mxu0
    %8019 = vmatprep.subr.bf16.mxu0 0
    %8020 = vmatpush1.bf16.msra.mxu0 %v6272
    %8021 = vmatprep.subr.bf16.mxu0 0
    %8022 = vmatpush1.bf16.msra.mxu0 %v6269
    %8023 = vmatprep.subr.bf16.mxu0 0
    %8024 = vmatpush1.bf16.msra.mxu0 %v6266
    %8025 = vmatprep.subr.bf16.mxu0 0
    %8026 = vmatpush1.bf16.msra.mxu0 %v6263
    %8027 = vmatprep.subr.bf16.mxu0 0
    %8028 = vmatpush1.bf16.msra.mxu0 %v6260
    %8029 = vmatprep.subr.bf16.mxu0 0
    %8030 = vmatpush1.bf16.msra.mxu0 %v6257
    %8031 = vmatprep.subr.bf16.mxu0 0
    %8032 = vmatpush1.bf16.msra.mxu0 %v6254
    %8033 = vmatprep.subr.bf16.mxu0 0
    %8034 = vmatpush1.bf16.msra.mxu0 %v6251
    %8035 = vmatprep.subr.bf16.mxu0 0
    %8036 = vmatpush2.bf16.msra.mxu0 0
    %8037 = vmatprep.subr.bf16.mxu0 0
    %8038 = vmatpush2.bf16.msra.mxu0 0
    %8039 = vmatprep.subr.bf16.mxu0 0
    %8040 = vmatpush2.bf16.msra.mxu0 0
    %8041 = vmatprep.subr.bf16.mxu0 0
    %8042 = vmatpush2.bf16.msra.mxu0 0
    %8043 = vmatprep.subr.bf16.mxu0 0
    %8044 = vmatpush2.bf16.msra.mxu0 %v6284
    %8045 = vmatprep.subr.bf16.mxu0 0
    %8046 = vmatpush2.bf16.msra.mxu0 %v6281
    %8047 = vmatprep.subr.bf16.mxu0 0
    %8048 = vmatpush2.bf16.msra.mxu0 %v6278
    %8049 = vmatprep.subr.bf16.mxu0 0
    %8050 = vmatpush2.bf16.msra.mxu0 %v6275
    %8051 = vmatprep.mubr.bf16.mxu0 %v5477
    %8052 = vmatmul.mubr.bf16.gmra.mxu0 %v5281
    %v8053 = vpop.f32.mrf.mxu0
    %v8054 = vadd.f32 %v7973, %v8053
    %v8055 = vpop.f32.mrf.mxu0
    %v8056 = vpop.f32.mrf.mxu0
    %v8057 = vpop.f32.mrf.mxu0
    %8058 = vdwg.mxu0
    %v8059 = vadd.f32 %v8013, %v5841
    %v8060 = vadd.f32 %v8015, %v5845
    %v8061 = vadd.f32 %v8054, %v5849
    %v8062 = vmax.f32 %v8059, 0.0
    %v8063 = vmax.f32 %v8060, 0.0
    %v8064 = vmax.f32 %v8061, 0.0
    %v8065 = vmul.f32 %v8062, %v5865
    %v8066 = vmul.f32 %v8063, %v5869
    %v8067 = vmul.f32 %v8064, %v5873
    %v8068 = vadd.f32 %v8065, %v5886
    %v8069 = vadd.f32 %v8066, %v5890
    %v8070 = vadd.f32 %v8067, %v5894
    %v8071 = vpack.c.bf16 %v8068, %v8068
    %v8072 = vpack.c.bf16 %v8069, %v8069
    %v8073 = vpack.c.bf16 %v8070, %v8070
    %v8074 = vld [vmem:[#allocation15 + $0x600] sm:$0xff]
    %v8075 = vld [vmem:[#allocation15 + $0x608] sm:$0xff]
    %v8076 = vld [vmem:[#allocation15 + $0x610] sm:$0xff]
    %v8077 = vld [vmem:[#allocation15 + $0x618] sm:$0xff]
    %v8078 = vld [vmem:[#allocation15 + $0x620] sm:$0xff]
    %v8079 = vld [vmem:[#allocation15 + $0x628] sm:$0xff]
    %v8080 = vld [vmem:[#allocation15 + $0x630] sm:$0xff]
    %v8081 = vld [vmem:[#allocation15 + $0x638] sm:$0xff]
    %v8082 = vld [vmem:[#allocation15 + $0x640] sm:$0xff]
    %v8083 = vld [vmem:[#allocation15 + $0x648] sm:$0xff]
    %v8084 = vld [vmem:[#allocation15 + $0x650] sm:$0xff]
    %v8085 = vld [vmem:[#allocation15 + $0x658] sm:$0xff]
    %v8086 = vld [vmem:[#allocation15 + $0x660] sm:$0xff]
    %v8087 = vld [vmem:[#allocation15 + $0x668] sm:$0xff]
    %v8088 = vld [vmem:[#allocation15 + $0x670] sm:$0xff]
    %v8089 = vld [vmem:[#allocation15 + $0x678] sm:$0xff]
    %v8090 = vld [vmem:[#allocation15 + $0x680] sm:$0xff]
    %v8091 = vld [vmem:[#allocation15 + $0x688] sm:$0xff]
    %v8092 = vld [vmem:[#allocation15 + $0x690] sm:$0xff]
    %v8093 = vld [vmem:[#allocation15 + $0x698] sm:$0xff]
    %v8094 = vld [vmem:[#allocation15 + $0x6a0] sm:$0xff]
    %v8095 = vld [vmem:[#allocation15 + $0x6a8] sm:$0xff]
    %v8096 = vld [vmem:[#allocation15 + $0x6b0] sm:$0xff]
    %v8097 = vld [vmem:[#allocation15 + $0x6b8] sm:$0xff]
    %v8098 = vld [vmem:[#allocation15 + $0x6c0] sm:$0xff]
    %v8099 = vld [vmem:[#allocation15 + $0x6c8] sm:$0xff]
    %v8100 = vld [vmem:[#allocation15 + $0x6d0] sm:$0xff]
    %v8101 = vld [vmem:[#allocation15 + $0x6d8] sm:$0xff]
    %v8102 = vld [vmem:[#allocation15 + $0x6e0] sm:$0xff]
    %v8103 = vld [vmem:[#allocation15 + $0x6e8] sm:$0xff]
    %v8104 = vld [vmem:[#allocation15 + $0x6f0] sm:$0xff]
    %v8105 = vld [vmem:[#allocation15 + $0x6f8] sm:$0xff]
    %v8106 = vld [vmem:[#allocation15 + $0x700] sm:$0xff]
    %v8107 = vld [vmem:[#allocation15 + $0x708] sm:$0xff]
    %v8108 = vld [vmem:[#allocation15 + $0x710] sm:$0xff]
    %v8109 = vld [vmem:[#allocation15 + $0x718] sm:$0xff]
    %v8110 = vld [vmem:[#allocation15 + $0x720] sm:$0xff]
    %v8111 = vld [vmem:[#allocation15 + $0x728] sm:$0xff]
    %v8112 = vld [vmem:[#allocation15 + $0x730] sm:$0xff]
    %v8113 = vld [vmem:[#allocation15 + $0x738] sm:$0xff]
    %v8114 = vld [vmem:[#allocation15 + $0x740] sm:$0xff]
    %v8115 = vld [vmem:[#allocation15 + $0x748] sm:$0xff]
    %v8116 = vld [vmem:[#allocation15 + $0x750] sm:$0xff]
    %v8117 = vld [vmem:[#allocation15 + $0x758] sm:$0xff]
    %v8118 = vld [vmem:[#allocation15 + $0x760] sm:$0xff]
    %v8119 = vld [vmem:[#allocation15 + $0x768] sm:$0xff]
    %v8120 = vld [vmem:[#allocation15 + $0x770] sm:$0xff]
    %v8121 = vld [vmem:[#allocation15 + $0x778] sm:$0xff]
    %v8122 = vld [vmem:[#allocation15 + $0x780] sm:$0xff]
    %v8123 = vld [vmem:[#allocation15 + $0x788] sm:$0xff]
    %v8124 = vld [vmem:[#allocation15 + $0x790] sm:$0xff]
    %v8125 = vld [vmem:[#allocation15 + $0x798] sm:$0xff]
    %v8126 = vld [vmem:[#allocation15 + $0x7a0] sm:$0xff]
    %v8127 = vld [vmem:[#allocation15 + $0x7a8] sm:$0xff]
    %v8128 = vld [vmem:[#allocation15 + $0x7b0] sm:$0xff]
    %v8129 = vld [vmem:[#allocation15 + $0x7b8] sm:$0xff]
    %v8130 = vld [vmem:[#allocation15 + $0x7c0] sm:$0xff]
    %v8131 = vld [vmem:[#allocation15 + $0x7c8] sm:$0xff]
    %v8132 = vld [vmem:[#allocation15 + $0x7d0] sm:$0xff]
    %v8133 = vld [vmem:[#allocation15 + $0x7d8] sm:$0xff]
    %v8134 = vld [vmem:[#allocation15 + $0x7e0] sm:$0xff]
    %v8135 = vld [vmem:[#allocation15 + $0x7e8] sm:$0xff]
    %v8136 = vld [vmem:[#allocation15 + $0x7f0] sm:$0xff]
    %v8137 = vld [vmem:[#allocation15 + $0x7f8] sm:$0xff]
    %v8138 = vld [vmem:[#allocation15 + $0x800] sm:$0xff]
    %v8139 = vld [vmem:[#allocation15 + $0x808] sm:$0xff]
    %v8140 = vld [vmem:[#allocation15 + $0x810] sm:$0xff]
    %v8141 = vld [vmem:[#allocation15 + $0x818] sm:$0xff]
    %v8142 = vld [vmem:[#allocation15 + $0x820] sm:$0xff]
    %v8143 = vld [vmem:[#allocation15 + $0x828] sm:$0xff]
    %v8144 = vld [vmem:[#allocation15 + $0x830] sm:$0xff]
    %v8145 = vld [vmem:[#allocation15 + $0x838] sm:$0xff]
    %v8146 = vld [vmem:[#allocation15 + $0x840] sm:$0xff]
    %v8147 = vld [vmem:[#allocation15 + $0x848] sm:$0xff]
    %v8148 = vld [vmem:[#allocation15 + $0x850] sm:$0xff]
    %v8149 = vld [vmem:[#allocation15 + $0x858] sm:$0xff]
    %v8150 = vld [vmem:[#allocation15 + $0x860] sm:$0xff]
    %v8151 = vld [vmem:[#allocation15 + $0x868] sm:$0xff]
    %v8152 = vld [vmem:[#allocation15 + $0x870] sm:$0xff]
    %v8153 = vld [vmem:[#allocation15 + $0x878] sm:$0xff]
    %v8154 = vld [vmem:[#allocation15 + $0x880] sm:$0xff]
    %v8155 = vld [vmem:[#allocation15 + $0x888] sm:$0xff]
    %v8156 = vld [vmem:[#allocation15 + $0x890] sm:$0xff]
    %v8157 = vld [vmem:[#allocation15 + $0x898] sm:$0xff]
    %v8158 = vld [vmem:[#allocation15 + $0x8a0] sm:$0xff]
    %v8159 = vld [vmem:[#allocation15 + $0x8a8] sm:$0xff]
    %v8160 = vld [vmem:[#allocation15 + $0x8b0] sm:$0xff]
    %v8161 = vld [vmem:[#allocation15 + $0x8b8] sm:$0xff]
    %v8162 = vld [vmem:[#allocation15 + $0x8c0] sm:$0xff]
    %v8163 = vld [vmem:[#allocation15 + $0x8c8] sm:$0xff]
    %v8164 = vld [vmem:[#allocation15 + $0x8d0] sm:$0xff]
    %v8165 = vld [vmem:[#allocation15 + $0x8d8] sm:$0xff]
    %v8166 = vld [vmem:[#allocation15 + $0x8e0] sm:$0xff]
    %v8167 = vld [vmem:[#allocation15 + $0x8e8] sm:$0xff]
    %v8168 = vld [vmem:[#allocation15 + $0x8f0] sm:$0xff]
    %v8169 = vld [vmem:[#allocation15 + $0x8f8] sm:$0xff]
    %v8266 = vunpack.c.l.b16 %v8074
    %v8267 = vunpack.c.h.b16 %v8074
    %v8268 = vunpack.c.l.b16 %v8075
    %v8269 = vunpack.c.h.b16 %v8075
    %v8270 = vunpack.c.l.b16 %v8076
    %v8271 = vunpack.c.h.b16 %v8076
    %v8272 = vunpack.c.l.b16 %v8077
    %v8273 = vunpack.c.h.b16 %v8077
    %v8274 = vunpack.c.l.b16 %v8078
    %v8275 = vunpack.c.h.b16 %v8078
    %v8276 = vunpack.c.l.b16 %v8079
    %v8277 = vunpack.c.h.b16 %v8079
    %v8278 = vunpack.c.l.b16 %v8080
    %v8279 = vunpack.c.h.b16 %v8080
    %v8280 = vunpack.c.l.b16 %v8081
    %v8281 = vunpack.c.h.b16 %v8081
    %v8282 = vunpack.c.l.b16 %v8082
    %v8283 = vunpack.c.h.b16 %v8082
    %v8284 = vunpack.c.l.b16 %v8083
    %v8285 = vunpack.c.h.b16 %v8083
    %v8286 = vunpack.c.l.b16 %v8084
    %v8287 = vunpack.c.h.b16 %v8084
    %v8288 = vunpack.c.l.b16 %v8085
    %v8289 = vunpack.c.h.b16 %v8085
    %v8290 = vunpack.c.l.b16 %v8086
    %v8291 = vunpack.c.h.b16 %v8086
    %v8292 = vunpack.c.l.b16 %v8087
    %v8293 = vunpack.c.h.b16 %v8087
    %v8294 = vunpack.c.l.b16 %v8088
    %v8295 = vunpack.c.h.b16 %v8088
    %v8296 = vunpack.c.l.b16 %v8089
    %v8297 = vunpack.c.h.b16 %v8089
    %v8298 = vunpack.c.l.b16 %v8090
    %v8299 = vunpack.c.h.b16 %v8090
    %v8300 = vunpack.c.l.b16 %v8091
    %v8301 = vunpack.c.h.b16 %v8091
    %v8302 = vunpack.c.l.b16 %v8092
    %v8303 = vunpack.c.h.b16 %v8092
    %v8304 = vunpack.c.l.b16 %v8093
    %v8305 = vunpack.c.h.b16 %v8093
    %v8306 = vunpack.c.l.b16 %v8094
    %v8307 = vunpack.c.h.b16 %v8094
    %v8308 = vunpack.c.l.b16 %v8095
    %v8309 = vunpack.c.h.b16 %v8095
    %v8310 = vunpack.c.l.b16 %v8096
    %v8311 = vunpack.c.h.b16 %v8096
    %v8312 = vunpack.c.l.b16 %v8097
    %v8313 = vunpack.c.h.b16 %v8097
    %v8314 = vunpack.c.l.b16 %v8098
    %v8315 = vunpack.c.h.b16 %v8098
    %v8316 = vunpack.c.l.b16 %v8099
    %v8317 = vunpack.c.h.b16 %v8099
    %v8318 = vunpack.c.l.b16 %v8100
    %v8319 = vunpack.c.h.b16 %v8100
    %v8320 = vunpack.c.l.b16 %v8101
    %v8321 = vunpack.c.h.b16 %v8101
    %v8322 = vunpack.c.l.b16 %v8102
    %v8323 = vunpack.c.h.b16 %v8102
    %v8324 = vunpack.c.l.b16 %v8103
    %v8325 = vunpack.c.h.b16 %v8103
    %v8326 = vunpack.c.l.b16 %v8104
    %v8327 = vunpack.c.h.b16 %v8104
    %v8328 = vunpack.c.l.b16 %v8105
    %v8329 = vunpack.c.h.b16 %v8105
    %v8330 = vunpack.c.l.b16 %v8106
    %v8331 = vunpack.c.h.b16 %v8106
    %v8332 = vunpack.c.l.b16 %v8107
    %v8333 = vunpack.c.h.b16 %v8107
    %v8334 = vunpack.c.l.b16 %v8108
    %v8335 = vunpack.c.h.b16 %v8108
    %v8336 = vunpack.c.l.b16 %v8109
    %v8337 = vunpack.c.h.b16 %v8109
    %v8338 = vunpack.c.l.b16 %v8110
    %v8339 = vunpack.c.h.b16 %v8110
    %v8340 = vunpack.c.l.b16 %v8111
    %v8341 = vunpack.c.h.b16 %v8111
    %v8342 = vunpack.c.l.b16 %v8112
    %v8343 = vunpack.c.h.b16 %v8112
    %v8344 = vunpack.c.l.b16 %v8113
    %v8345 = vunpack.c.h.b16 %v8113
    %v8346 = vunpack.c.l.b16 %v8114
    %v8347 = vunpack.c.h.b16 %v8114
    %v8348 = vunpack.c.l.b16 %v8115
    %v8349 = vunpack.c.h.b16 %v8115
    %v8350 = vunpack.c.l.b16 %v8116
    %v8351 = vunpack.c.h.b16 %v8116
    %v8352 = vunpack.c.l.b16 %v8117
    %v8353 = vunpack.c.h.b16 %v8117
    %v8354 = vunpack.c.l.b16 %v8118
    %v8355 = vunpack.c.h.b16 %v8118
    %v8356 = vunpack.c.l.b16 %v8119
    %v8357 = vunpack.c.h.b16 %v8119
    %v8358 = vunpack.c.l.b16 %v8120
    %v8359 = vunpack.c.h.b16 %v8120
    %v8360 = vunpack.c.l.b16 %v8121
    %v8361 = vunpack.c.h.b16 %v8121
    %v8362 = vunpack.c.l.b16 %v8122
    %v8363 = vunpack.c.h.b16 %v8122
    %v8364 = vunpack.c.l.b16 %v8123
    %v8365 = vunpack.c.h.b16 %v8123
    %v8366 = vunpack.c.l.b16 %v8124
    %v8367 = vunpack.c.h.b16 %v8124
    %v8368 = vunpack.c.l.b16 %v8125
    %v8369 = vunpack.c.h.b16 %v8125
    %v8370 = vunpack.c.l.b16 %v8126
    %v8371 = vunpack.c.h.b16 %v8126
    %v8372 = vunpack.c.l.b16 %v8127
    %v8373 = vunpack.c.h.b16 %v8127
    %v8374 = vunpack.c.l.b16 %v8128
    %v8375 = vunpack.c.h.b16 %v8128
    %v8376 = vunpack.c.l.b16 %v8129
    %v8377 = vunpack.c.h.b16 %v8129
    %v8378 = vunpack.c.l.b16 %v8130
    %v8379 = vunpack.c.h.b16 %v8130
    %v8380 = vunpack.c.l.b16 %v8131
    %v8381 = vunpack.c.h.b16 %v8131
    %v8382 = vunpack.c.l.b16 %v8132
    %v8383 = vunpack.c.h.b16 %v8132
    %v8384 = vunpack.c.l.b16 %v8133
    %v8385 = vunpack.c.h.b16 %v8133
    %v8386 = vunpack.c.l.b16 %v8134
    %v8387 = vunpack.c.h.b16 %v8134
    %v8388 = vunpack.c.l.b16 %v8135
    %v8389 = vunpack.c.h.b16 %v8135
    %v8390 = vunpack.c.l.b16 %v8136
    %v8391 = vunpack.c.h.b16 %v8136
    %v8392 = vunpack.c.l.b16 %v8137
    %v8393 = vunpack.c.h.b16 %v8137
    %v8394 = vunpack.c.l.b16 %v8138
    %v8395 = vunpack.c.h.b16 %v8138
    %v8396 = vunpack.c.l.b16 %v8139
    %v8397 = vunpack.c.h.b16 %v8139
    %v8398 = vunpack.c.l.b16 %v8140
    %v8399 = vunpack.c.h.b16 %v8140
    %v8400 = vunpack.c.l.b16 %v8141
    %v8401 = vunpack.c.h.b16 %v8141
    %v8402 = vunpack.c.l.b16 %v8142
    %v8403 = vunpack.c.h.b16 %v8142
    %v8404 = vunpack.c.l.b16 %v8143
    %v8405 = vunpack.c.h.b16 %v8143
    %v8406 = vunpack.c.l.b16 %v8144
    %v8407 = vunpack.c.h.b16 %v8144
    %v8408 = vunpack.c.l.b16 %v8145
    %v8409 = vunpack.c.h.b16 %v8145
    %v8410 = vunpack.c.l.b16 %v8146
    %v8411 = vunpack.c.h.b16 %v8146
    %v8412 = vunpack.c.l.b16 %v8147
    %v8413 = vunpack.c.h.b16 %v8147
    %v8414 = vunpack.c.l.b16 %v8148
    %v8415 = vunpack.c.h.b16 %v8148
    %v8416 = vunpack.c.l.b16 %v8149
    %v8417 = vunpack.c.h.b16 %v8149
    %v8418 = vunpack.c.l.b16 %v8150
    %v8419 = vunpack.c.h.b16 %v8150
    %v8420 = vunpack.c.l.b16 %v8151
    %v8421 = vunpack.c.h.b16 %v8151
    %v8422 = vunpack.c.l.b16 %v8152
    %v8423 = vunpack.c.h.b16 %v8152
    %v8424 = vunpack.c.l.b16 %v8153
    %v8425 = vunpack.c.h.b16 %v8153
    %v8426 = vunpack.c.l.b16 %v8154
    %v8427 = vunpack.c.h.b16 %v8154
    %v8428 = vunpack.c.l.b16 %v8155
    %v8429 = vunpack.c.h.b16 %v8155
    %v8430 = vunpack.c.l.b16 %v8156
    %v8431 = vunpack.c.h.b16 %v8156
    %v8432 = vunpack.c.l.b16 %v8157
    %v8433 = vunpack.c.h.b16 %v8157
    %v8434 = vunpack.c.l.b16 %v8158
    %v8435 = vunpack.c.h.b16 %v8158
    %v8436 = vunpack.c.l.b16 %v8159
    %v8437 = vunpack.c.h.b16 %v8159
    %v8438 = vunpack.c.l.b16 %v8160
    %v8439 = vunpack.c.h.b16 %v8160
    %v8440 = vunpack.c.l.b16 %v8161
    %v8441 = vunpack.c.h.b16 %v8161
    %v8442 = vunpack.c.l.b16 %v8162
    %v8443 = vunpack.c.h.b16 %v8162
    %v8444 = vunpack.c.l.b16 %v8163
    %v8445 = vunpack.c.h.b16 %v8163
    %v8446 = vunpack.c.l.b16 %v8164
    %v8447 = vunpack.c.h.b16 %v8164
    %v8448 = vunpack.c.l.b16 %v8165
    %v8449 = vunpack.c.h.b16 %v8165
    %v8450 = vunpack.c.l.b16 %v8166
    %v8451 = vunpack.c.h.b16 %v8166
    %v8452 = vunpack.c.l.b16 %v8167
    %v8453 = vunpack.c.h.b16 %v8167
    %v8454 = vunpack.c.l.b16 %v8168
    %v8455 = vunpack.c.h.b16 %v8168
    %v8456 = vunpack.c.l.b16 %v8169
    %v8457 = vunpack.c.h.b16 %v8169
    %v8458 = vpack.c.b16 %v8270, %v8266
    %v8459 = vpack.c.b16 %v8271, %v8267
    %v8460 = vpack.c.b16 %v8272, %v8268
    %v8461 = vpack.c.b16 %v8273, %v8269
    %v8462 = vpack.c.b16 %v8278, %v8274
    %v8463 = vpack.c.b16 %v8279, %v8275
    %v8464 = vpack.c.b16 %v8280, %v8276
    %v8465 = vpack.c.b16 %v8281, %v8277
    %v8466 = vpack.c.b16 %v8286, %v8282
    %v8467 = vpack.c.b16 %v8287, %v8283
    %v8468 = vpack.c.b16 %v8288, %v8284
    %v8469 = vpack.c.b16 %v8289, %v8285
    %v8470 = vpack.c.b16 %v8294, %v8290
    %v8471 = vpack.c.b16 %v8295, %v8291
    %v8472 = vpack.c.b16 %v8296, %v8292
    %v8473 = vpack.c.b16 %v8297, %v8293
    %v8474 = vpack.c.b16 %v8302, %v8298
    %v8475 = vpack.c.b16 %v8303, %v8299
    %v8476 = vpack.c.b16 %v8304, %v8300
    %v8477 = vpack.c.b16 %v8305, %v8301
    %v8478 = vpack.c.b16 %v8310, %v8306
    %v8479 = vpack.c.b16 %v8311, %v8307
    %v8480 = vpack.c.b16 %v8312, %v8308
    %v8481 = vpack.c.b16 %v8313, %v8309
    %v8482 = vpack.c.b16 %v8318, %v8314
    %v8483 = vpack.c.b16 %v8319, %v8315
    %v8484 = vpack.c.b16 %v8320, %v8316
    %v8485 = vpack.c.b16 %v8321, %v8317
    %v8486 = vpack.c.b16 %v8326, %v8322
    %v8487 = vpack.c.b16 %v8327, %v8323
    %v8488 = vpack.c.b16 %v8328, %v8324
    %v8489 = vpack.c.b16 %v8329, %v8325
    %v8490 = vpack.c.b16 %v8334, %v8330
    %v8491 = vpack.c.b16 %v8335, %v8331
    %v8492 = vpack.c.b16 %v8336, %v8332
    %v8493 = vpack.c.b16 %v8337, %v8333
    %v8494 = vpack.c.b16 %v8342, %v8338
    %v8495 = vpack.c.b16 %v8343, %v8339
    %v8496 = vpack.c.b16 %v8344, %v8340
    %v8497 = vpack.c.b16 %v8345, %v8341
    %v8498 = vpack.c.b16 %v8350, %v8346
    %v8499 = vpack.c.b16 %v8351, %v8347
    %v8500 = vpack.c.b16 %v8352, %v8348
    %v8501 = vpack.c.b16 %v8353, %v8349
    %v8502 = vpack.c.b16 %v8358, %v8354
    %v8503 = vpack.c.b16 %v8359, %v8355
    %v8504 = vpack.c.b16 %v8360, %v8356
    %v8505 = vpack.c.b16 %v8361, %v8357
    %v8506 = vpack.c.b16 %v8366, %v8362
    %v8507 = vpack.c.b16 %v8367, %v8363
    %v8508 = vpack.c.b16 %v8368, %v8364
    %v8509 = vpack.c.b16 %v8369, %v8365
    %v8510 = vpack.c.b16 %v8374, %v8370
    %v8511 = vpack.c.b16 %v8375, %v8371
    %v8512 = vpack.c.b16 %v8376, %v8372
    %v8513 = vpack.c.b16 %v8377, %v8373
    %v8514 = vpack.c.b16 %v8382, %v8378
    %v8515 = vpack.c.b16 %v8383, %v8379
    %v8516 = vpack.c.b16 %v8384, %v8380
    %v8517 = vpack.c.b16 %v8385, %v8381
    %v8518 = vpack.c.b16 %v8390, %v8386
    %v8519 = vpack.c.b16 %v8391, %v8387
    %v8520 = vpack.c.b16 %v8392, %v8388
    %v8521 = vpack.c.b16 %v8393, %v8389
    %v8522 = vpack.c.b16 %v8398, %v8394
    %v8523 = vpack.c.b16 %v8399, %v8395
    %v8524 = vpack.c.b16 %v8400, %v8396
    %v8525 = vpack.c.b16 %v8401, %v8397
    %v8526 = vpack.c.b16 %v8406, %v8402
    %v8527 = vpack.c.b16 %v8407, %v8403
    %v8528 = vpack.c.b16 %v8408, %v8404
    %v8529 = vpack.c.b16 %v8409, %v8405
    %v8530 = vpack.c.b16 %v8414, %v8410
    %v8531 = vpack.c.b16 %v8415, %v8411
    %v8532 = vpack.c.b16 %v8416, %v8412
    %v8533 = vpack.c.b16 %v8417, %v8413
    %v8534 = vpack.c.b16 %v8422, %v8418
    %v8535 = vpack.c.b16 %v8423, %v8419
    %v8536 = vpack.c.b16 %v8424, %v8420
    %v8537 = vpack.c.b16 %v8425, %v8421
    %v8538 = vpack.c.b16 %v8430, %v8426
    %v8539 = vpack.c.b16 %v8431, %v8427
    %v8540 = vpack.c.b16 %v8432, %v8428
    %v8541 = vpack.c.b16 %v8433, %v8429
    %v8542 = vpack.c.b16 %v8438, %v8434
    %v8543 = vpack.c.b16 %v8439, %v8435
    %v8544 = vpack.c.b16 %v8440, %v8436
    %v8545 = vpack.c.b16 %v8441, %v8437
    %v8546 = vpack.c.b16 %v8446, %v8442
    %v8547 = vpack.c.b16 %v8447, %v8443
    %v8548 = vpack.c.b16 %v8448, %v8444
    %v8549 = vpack.c.b16 %v8449, %v8445
    %v8550 = vpack.c.b16 %v8454, %v8450
    %v8551 = vpack.c.b16 %v8455, %v8451
    %v8552 = vpack.c.b16 %v8456, %v8452
    %v8553 = vpack.c.b16 %v8457, %v8453
    %8650 = vmatprep.subr.bf16.mxu0 %v8487
    %8651 = vmatpush1.bf16.msra.mxu0 %v8486
    %8652 = vmatprep.subr.bf16.mxu0 %v8483
    %8653 = vmatpush1.bf16.msra.mxu0 %v8482
    %8654 = vmatprep.subr.bf16.mxu0 %v8479
    %8655 = vmatpush1.bf16.msra.mxu0 %v8478
    %8656 = vmatprep.subr.bf16.mxu0 %v8475
    %8657 = vmatpush1.bf16.msra.mxu0 %v8474
    %8658 = vmatprep.subr.bf16.mxu0 %v8471
    %8659 = vmatpush1.bf16.msra.mxu0 %v8470
    %8660 = vmatprep.subr.bf16.mxu0 %v8467
    %8661 = vmatpush1.bf16.msra.mxu0 %v8466
    %8662 = vmatprep.subr.bf16.mxu0 %v8463
    %8663 = vmatpush1.bf16.msra.mxu0 %v8462
    %8664 = vmatprep.subr.bf16.mxu0 %v8459
    %8665 = vmatpush1.bf16.msra.mxu0 %v8458
    %8666 = vmatprep.subr.bf16.mxu0 %v8519
    %8667 = vmatpush2.bf16.msra.mxu0 %v8518
    %8668 = vmatprep.subr.bf16.mxu0 %v8515
    %8669 = vmatpush2.bf16.msra.mxu0 %v8514
    %8670 = vmatprep.subr.bf16.mxu0 %v8511
    %8671 = vmatpush2.bf16.msra.mxu0 %v8510
    %8672 = vmatprep.subr.bf16.mxu0 %v8507
    %8673 = vmatpush2.bf16.msra.mxu0 %v8506
    %8674 = vmatprep.subr.bf16.mxu0 %v8503
    %8675 = vmatpush2.bf16.msra.mxu0 %v8502
    %8676 = vmatprep.subr.bf16.mxu0 %v8499
    %8677 = vmatpush2.bf16.msra.mxu0 %v8498
    %8678 = vmatprep.subr.bf16.mxu0 %v8495
    %8679 = vmatpush2.bf16.msra.mxu0 %v8494
    %8680 = vmatprep.subr.bf16.mxu0 %v8491
    %8681 = vmatpush2.bf16.msra.mxu0 %v8490
    %8682 = vmatprep.mubr.bf16.mxu0 %v8072
    %8683 = vmatmul.mubr.bf16.gmra.mxu0 %v8071
    %v8684 = vpop.f32.mrf.mxu0
    %v8685 = vadd.f32 0.0, %v8684
    %v8686 = vpop.f32.mrf.mxu0
    %v8687 = vadd.f32 0.0, %v8686
    %v8688 = vpop.f32.mrf.mxu0
    %v8689 = vpop.f32.mrf.mxu0
    %8690 = vdwg.mxu0
    %8691 = vmatprep.subr.bf16.mxu0 %v8551
    %8692 = vmatpush1.bf16.msra.mxu0 %v8550
    %8693 = vmatprep.subr.bf16.mxu0 %v8547
    %8694 = vmatpush1.bf16.msra.mxu0 %v8546
    %8695 = vmatprep.subr.bf16.mxu0 %v8543
    %8696 = vmatpush1.bf16.msra.mxu0 %v8542
    %8697 = vmatprep.subr.bf16.mxu0 %v8539
    %8698 = vmatpush1.bf16.msra.mxu0 %v8538
    %8699 = vmatprep.subr.bf16.mxu0 %v8535
    %8700 = vmatpush1.bf16.msra.mxu0 %v8534
    %8701 = vmatprep.subr.bf16.mxu0 %v8531
    %8702 = vmatpush1.bf16.msra.mxu0 %v8530
    %8703 = vmatprep.subr.bf16.mxu0 %v8527
    %8704 = vmatpush1.bf16.msra.mxu0 %v8526
    %8705 = vmatprep.subr.bf16.mxu0 %v8523
    %8706 = vmatpush1.bf16.msra.mxu0 %v8522
    %8707 = vmatprep.subr.bf16.mxu0 0
    %8708 = vmatpush2.bf16.msra.mxu0 0
    %8709 = vmatprep.subr.bf16.mxu0 0
    %8710 = vmatpush2.bf16.msra.mxu0 0
    %8711 = vmatprep.subr.bf16.mxu0 0
    %8712 = vmatpush2.bf16.msra.mxu0 0
    %8713 = vmatprep.subr.bf16.mxu0 0
    %8714 = vmatpush2.bf16.msra.mxu0 0
    %8715 = vmatprep.subr.bf16.mxu0 0
    %8716 = vmatpush2.bf16.msra.mxu0 0
    %8717 = vmatprep.subr.bf16.mxu0 0
    %8718 = vmatpush2.bf16.msra.mxu0 0
    %8719 = vmatprep.subr.bf16.mxu0 0
    %8720 = vmatpush2.bf16.msra.mxu0 0
    %8721 = vmatprep.subr.bf16.mxu0 0
    %8722 = vmatpush2.bf16.msra.mxu0 0
    %8723 = vmatprep.mubr.bf16.mxu0 0
    %8724 = vmatmul.mubr.bf16.gmra.mxu0 %v8073
    %v8725 = vpop.f32.mrf.mxu0
    %v8726 = vadd.f32 %v8685, %v8725
    %v8727 = vpop.f32.mrf.mxu0
    %v8728 = vadd.f32 %v8687, %v8727
    %v8729 = vpop.f32.mrf.mxu0
    %v8730 = vpop.f32.mrf.mxu0
    %8731 = vdwg.mxu0
    %8732 = vmatprep.subr.bf16.mxu0 %v8489
    %8733 = vmatpush1.bf16.msra.mxu0 %v8488
    %8734 = vmatprep.subr.bf16.mxu0 %v8485
    %8735 = vmatpush1.bf16.msra.mxu0 %v8484
    %8736 = vmatprep.subr.bf16.mxu0 %v8481
    %8737 = vmatpush1.bf16.msra.mxu0 %v8480
    %8738 = vmatprep.subr.bf16.mxu0 %v8477
    %8739 = vmatpush1.bf16.msra.mxu0 %v8476
    %8740 = vmatprep.subr.bf16.mxu0 %v8473
    %8741 = vmatpush1.bf16.msra.mxu0 %v8472
    %8742 = vmatprep.subr.bf16.mxu0 %v8469
    %8743 = vmatpush1.bf16.msra.mxu0 %v8468
    %8744 = vmatprep.subr.bf16.mxu0 %v8465
    %8745 = vmatpush1.bf16.msra.mxu0 %v8464
    %8746 = vmatprep.subr.bf16.mxu0 %v8461
    %8747 = vmatpush1.bf16.msra.mxu0 %v8460
    %8748 = vmatprep.subr.bf16.mxu0 %v8521
    %8749 = vmatpush2.bf16.msra.mxu0 %v8520
    %8750 = vmatprep.subr.bf16.mxu0 %v8517
    %8751 = vmatpush2.bf16.msra.mxu0 %v8516
    %8752 = vmatprep.subr.bf16.mxu0 %v8513
    %8753 = vmatpush2.bf16.msra.mxu0 %v8512
    %8754 = vmatprep.subr.bf16.mxu0 %v8509
    %8755 = vmatpush2.bf16.msra.mxu0 %v8508
    %8756 = vmatprep.subr.bf16.mxu0 %v8505
    %8757 = vmatpush2.bf16.msra.mxu0 %v8504
    %8758 = vmatprep.subr.bf16.mxu0 %v8501
    %8759 = vmatpush2.bf16.msra.mxu0 %v8500
    %8760 = vmatprep.subr.bf16.mxu0 %v8497
    %8761 = vmatpush2.bf16.msra.mxu0 %v8496
    %8762 = vmatprep.subr.bf16.mxu0 %v8493
    %8763 = vmatpush2.bf16.msra.mxu0 %v8492
    %8764 = vmatprep.mubr.bf16.mxu0 %v8072
    %8765 = vmatmul.mubr.bf16.gmra.mxu0 %v8071
    %v8766 = vpop.f32.mrf.mxu0
    %v8767 = vadd.f32 0.0, %v8766
    %v8768 = vpop.f32.mrf.mxu0
    %v8769 = vadd.f32 0.0, %v8768
    %v8770 = vpop.f32.mrf.mxu0
    %v8771 = vpop.f32.mrf.mxu0
    %8772 = vdwg.mxu0
    %8773 = vmatprep.subr.bf16.mxu0 %v8553
    %8774 = vmatpush1.bf16.msra.mxu0 %v8552
    %8775 = vmatprep.subr.bf16.mxu0 %v8549
    %8776 = vmatpush1.bf16.msra.mxu0 %v8548
    %8777 = vmatprep.subr.bf16.mxu0 %v8545
    %8778 = vmatpush1.bf16.msra.mxu0 %v8544
    %8779 = vmatprep.subr.bf16.mxu0 %v8541
    %8780 = vmatpush1.bf16.msra.mxu0 %v8540
    %8781 = vmatprep.subr.bf16.mxu0 %v8537
    %8782 = vmatpush1.bf16.msra.mxu0 %v8536
    %8783 = vmatprep.subr.bf16.mxu0 %v8533
    %8784 = vmatpush1.bf16.msra.mxu0 %v8532
    %8785 = vmatprep.subr.bf16.mxu0 %v8529
    %8786 = vmatpush1.bf16.msra.mxu0 %v8528
    %8787 = vmatprep.subr.bf16.mxu0 %v8525
    %8788 = vmatpush1.bf16.msra.mxu0 %v8524
    %8789 = vmatprep.subr.bf16.mxu0 0
    %8790 = vmatpush2.bf16.msra.mxu0 0
    %8791 = vmatprep.subr.bf16.mxu0 0
    %8792 = vmatpush2.bf16.msra.mxu0 0
    %8793 = vmatprep.subr.bf16.mxu0 0
    %8794 = vmatpush2.bf16.msra.mxu0 0
    %8795 = vmatprep.subr.bf16.mxu0 0
    %8796 = vmatpush2.bf16.msra.mxu0 0
    %8797 = vmatprep.subr.bf16.mxu0 0
    %8798 = vmatpush2.bf16.msra.mxu0 0
    %8799 = vmatprep.subr.bf16.mxu0 0
    %8800 = vmatpush2.bf16.msra.mxu0 0
    %8801 = vmatprep.subr.bf16.mxu0 0
    %8802 = vmatpush2.bf16.msra.mxu0 0
    %8803 = vmatprep.subr.bf16.mxu0 0
    %8804 = vmatpush2.bf16.msra.mxu0 0
    %8805 = vmatprep.mubr.bf16.mxu0 0
    %8806 = vmatmul.mubr.bf16.gmra.mxu0 %v8073
    %v8807 = vpop.f32.mrf.mxu0
    %v8808 = vadd.f32 %v8767, %v8807
    %v8809 = vpop.f32.mrf.mxu0
    %v8810 = vadd.f32 %v8769, %v8809
    %v8811 = vpop.f32.mrf.mxu0
    %v8812 = vpop.f32.mrf.mxu0
    %8813 = vdwg.mxu0
    %v8814 = vadd.f32 %v7809, %v8726
    %v8815 = vadd.f32 %v7811, %v8728
    %v8816 = vadd.f32 %v7891, %v8808
    %v8817 = vadd.f32 %v7893, %v8810
    %v8818 = vld [vmem:[#allocation16] sm:$0xf]
    %v8820 = vlaneseq
    %v8821 = vshrl.u32 %v8820, 7
    %v8822 = vsub.s32 0, %v8821
    %v8823 = vrot.slane %v8818, %v8822
    %v8824 = vlaneseq
    %v8825 = vshrl.u32 %v8824, 7
    %v8826 = vsub.s32 1, %v8825
    %v8827 = vrot.slane %v8818, %v8826
    %v8828 = vlaneseq
    %v8829 = vshrl.u32 %v8828, 7
    %v8830 = vsub.s32 2, %v8829
    %v8831 = vrot.slane %v8818, %v8830
    %v8832 = vlaneseq
    %v8833 = vshrl.u32 %v8832, 7
    %v8834 = vsub.s32 3, %v8833
    %v8835 = vrot.slane %v8818, %v8834
    %v8840 = vadd.f32 %v8814, %v8823
    %v8841 = vadd.f32 %v8815, %v8827
    %v8842 = vadd.f32 %v8816, %v8831
    %v8843 = vadd.f32 %v8817, %v8835
    %v8844 = vmax.f32 %v8840, 0.0
    %v8845 = vmax.f32 %v8841, 0.0
    %v8846 = vmax.f32 %v8842, 0.0
    %v8847 = vmax.f32 %v8843, 0.0
    %v8848 = vpack.c.bf16 %v8844, %v8844
    %v8849 = vpack.c.bf16 %v8845, %v8845
    %v8850 = vpack.c.bf16 %v8846, %v8846
    %v8851 = vpack.c.bf16 %v8847, %v8847
    %v8852 = vld [vmem:[%s9] sm:$0xf]
    %v8853 = vld [vmem:[%s9 + $0x4] sm:$0xf]
    %v8854 = vld [vmem:[%s9 + $0x8] sm:$0xf]
    %v8855 = vld [vmem:[%s9 + $0xc] sm:$0xf]
    %v8856 = vld [vmem:[%s9 + $0x10] sm:$0xf]
    %v8857 = vld [vmem:[%s9 + $0x14] sm:$0xf]
    %v8858 = vld [vmem:[%s9 + $0x18] sm:$0xf]
    %v8859 = vld [vmem:[%s9 + $0x1c] sm:$0xf]
    %v8860 = vld [vmem:[%s9 + $0x20] sm:$0xf]
    %v8861 = vld [vmem:[%s9 + $0x24] sm:$0xf]
    %v8862 = vld [vmem:[%s9 + $0x28] sm:$0xf]
    %v8863 = vld [vmem:[%s9 + $0x2c] sm:$0xf]
    %v8864 = vld [vmem:[%s9 + $0x30] sm:$0xf]
    %v8865 = vld [vmem:[%s9 + $0x34] sm:$0xf]
    %v8866 = vld [vmem:[%s9 + $0x38] sm:$0xf]
    %v8867 = vld [vmem:[%s9 + $0x3c] sm:$0xf]
    %v8868 = vld [vmem:[%s9 + $0x40] sm:$0xf]
    %v8869 = vld [vmem:[%s9 + $0x44] sm:$0xf]
    %v8870 = vld [vmem:[%s9 + $0x48] sm:$0xf]
    %v8871 = vld [vmem:[%s9 + $0x4c] sm:$0xf]
    %v8872 = vld [vmem:[%s9 + $0x50] sm:$0xf]
    %v8873 = vld [vmem:[%s9 + $0x54] sm:$0xf]
    %v8874 = vld [vmem:[%s9 + $0x58] sm:$0xf]
    %v8875 = vld [vmem:[%s9 + $0x5c] sm:$0xf]
    %v8876 = vld [vmem:[%s9 + $0x60] sm:$0xf]
    %v8877 = vld [vmem:[%s9 + $0x64] sm:$0xf]
    %v8878 = vld [vmem:[%s9 + $0x68] sm:$0xf]
    %v8879 = vld [vmem:[%s9 + $0x6c] sm:$0xf]
    %v8880 = vld [vmem:[%s9 + $0x70] sm:$0xf]
    %v8881 = vld [vmem:[%s9 + $0x74] sm:$0xf]
    %v8882 = vld [vmem:[%s9 + $0x78] sm:$0xf]
    %v8883 = vld [vmem:[%s9 + $0x7c] sm:$0xf]
    %v8884 = vld [vmem:[%s9 + $0x80] sm:$0xf]
    %v8885 = vld [vmem:[%s9 + $0x84] sm:$0xf]
    %v8886 = vld [vmem:[%s9 + $0x88] sm:$0xf]
    %v8887 = vld [vmem:[%s9 + $0x8c] sm:$0xf]
    %v8888 = vld [vmem:[%s9 + $0x90] sm:$0xf]
    %v8889 = vld [vmem:[%s9 + $0x94] sm:$0xf]
    %v8890 = vld [vmem:[%s9 + $0x98] sm:$0xf]
    %v8891 = vld [vmem:[%s9 + $0x9c] sm:$0xf]
    %v8892 = vld [vmem:[%s9 + $0xa0] sm:$0xf]
    %v8893 = vld [vmem:[%s9 + $0xa4] sm:$0xf]
    %v8894 = vld [vmem:[%s9 + $0xa8] sm:$0xf]
    %v8895 = vld [vmem:[%s9 + $0xac] sm:$0xf]
    %v8896 = vld [vmem:[%s9 + $0xb0] sm:$0xf]
    %v8897 = vld [vmem:[%s9 + $0xb4] sm:$0xf]
    %v8898 = vld [vmem:[%s9 + $0xb8] sm:$0xf]
    %v8899 = vld [vmem:[%s9 + $0xbc] sm:$0xf]
    %v8900 = vld [vmem:[%s9 + $0xc0] sm:$0xf]
    %v8901 = vld [vmem:[%s9 + $0xc4] sm:$0xf]
    %v8902 = vld [vmem:[%s9 + $0xc8] sm:$0xf]
    %v8903 = vld [vmem:[%s9 + $0xcc] sm:$0xf]
    %v8904 = vld [vmem:[%s9 + $0xd0] sm:$0xf]
    %v8905 = vld [vmem:[%s9 + $0xd4] sm:$0xf]
    %v8906 = vld [vmem:[%s9 + $0xd8] sm:$0xf]
    %v8907 = vld [vmem:[%s9 + $0xdc] sm:$0xf]
    %v8908 = vld [vmem:[%s9 + $0xe0] sm:$0xf]
    %v8909 = vld [vmem:[%s9 + $0xe4] sm:$0xf]
    %v8910 = vld [vmem:[%s9 + $0xe8] sm:$0xf]
    %v8911 = vld [vmem:[%s9 + $0xec] sm:$0xf]
    %v8912 = vld [vmem:[%s9 + $0xf0] sm:$0xf]
    %v8913 = vld [vmem:[%s9 + $0xf4] sm:$0xf]
    %v8914 = vld [vmem:[%s9 + $0xf8] sm:$0xf]
    %v8915 = vld [vmem:[%s9 + $0xfc] sm:$0xf]
    %v8916 = vld [vmem:[#allocation18] sm:$0x1]
    %v8918 = vlaneseq
    %v8919 = vshrl.u32 %v8918, 7
    %v8920 = vsub.s32 0, %v8919
    %v8921 = vrot.slane %v8916, %v8920
    %v8987 = vunpack.c.l.b16 %v8852
    %v8988 = vunpack.c.l.b16 %v8853
    %v8989 = vunpack.c.l.b16 %v8854
    %v8990 = vunpack.c.l.b16 %v8855
    %v8991 = vunpack.c.l.b16 %v8856
    %v8992 = vunpack.c.l.b16 %v8857
    %v8993 = vunpack.c.l.b16 %v8858
    %v8994 = vunpack.c.l.b16 %v8859
    %v8995 = vunpack.c.l.b16 %v8860
    %v8996 = vunpack.c.l.b16 %v8861
    %v8997 = vunpack.c.l.b16 %v8862
    %v8998 = vunpack.c.l.b16 %v8863
    %v8999 = vunpack.c.l.b16 %v8864
    %v9000 = vunpack.c.l.b16 %v8865
    %v9001 = vunpack.c.l.b16 %v8866
    %v9002 = vunpack.c.l.b16 %v8867
    %v9003 = vunpack.c.l.b16 %v8868
    %v9004 = vunpack.c.l.b16 %v8869
    %v9005 = vunpack.c.l.b16 %v8870
    %v9006 = vunpack.c.l.b16 %v8871
    %v9007 = vunpack.c.l.b16 %v8872
    %v9008 = vunpack.c.l.b16 %v8873
    %v9009 = vunpack.c.l.b16 %v8874
    %v9010 = vunpack.c.l.b16 %v8875
    %v9011 = vunpack.c.l.b16 %v8876
    %v9012 = vunpack.c.l.b16 %v8877
    %v9013 = vunpack.c.l.b16 %v8878
    %v9014 = vunpack.c.l.b16 %v8879
    %v9015 = vunpack.c.l.b16 %v8880
    %v9016 = vunpack.c.l.b16 %v8881
    %v9017 = vunpack.c.l.b16 %v8882
    %v9018 = vunpack.c.l.b16 %v8883
    %v9019 = vunpack.c.l.b16 %v8884
    %v9020 = vunpack.c.l.b16 %v8885
    %v9021 = vunpack.c.l.b16 %v8886
    %v9022 = vunpack.c.l.b16 %v8887
    %v9023 = vunpack.c.l.b16 %v8888
    %v9024 = vunpack.c.l.b16 %v8889
    %v9025 = vunpack.c.l.b16 %v8890
    %v9026 = vunpack.c.l.b16 %v8891
    %v9027 = vunpack.c.l.b16 %v8892
    %v9028 = vunpack.c.l.b16 %v8893
    %v9029 = vunpack.c.l.b16 %v8894
    %v9030 = vunpack.c.l.b16 %v8895
    %v9031 = vunpack.c.l.b16 %v8896
    %v9032 = vunpack.c.l.b16 %v8897
    %v9033 = vunpack.c.l.b16 %v8898
    %v9034 = vunpack.c.l.b16 %v8899
    %v9035 = vunpack.c.l.b16 %v8900
    %v9036 = vunpack.c.l.b16 %v8901
    %v9037 = vunpack.c.l.b16 %v8902
    %v9038 = vunpack.c.l.b16 %v8903
    %v9039 = vunpack.c.l.b16 %v8904
    %v9040 = vunpack.c.l.b16 %v8905
    %v9041 = vunpack.c.l.b16 %v8906
    %v9042 = vunpack.c.l.b16 %v8907
    %v9043 = vunpack.c.l.b16 %v8908
    %v9044 = vunpack.c.l.b16 %v8909
    %v9045 = vunpack.c.l.b16 %v8910
    %v9046 = vunpack.c.l.b16 %v8911
    %v9047 = vunpack.c.l.b16 %v8912
    %v9048 = vunpack.c.l.b16 %v8913
    %v9049 = vunpack.c.l.b16 %v8914
    %v9050 = vunpack.c.l.b16 %v8915
    %v9051 = vpack.c.b16 %v8988, %v8987
    %v9052 = vpack.c.b16 %v8990, %v8989
    %v9053 = vpack.c.b16 %v8992, %v8991
    %v9054 = vpack.c.b16 %v8994, %v8993
    %v9055 = vpack.c.b16 %v8996, %v8995
    %v9056 = vpack.c.b16 %v8998, %v8997
    %v9057 = vpack.c.b16 %v9000, %v8999
    %v9058 = vpack.c.b16 %v9002, %v9001
    %v9059 = vpack.c.b16 %v9004, %v9003
    %v9060 = vpack.c.b16 %v9006, %v9005
    %v9061 = vpack.c.b16 %v9008, %v9007
    %v9062 = vpack.c.b16 %v9010, %v9009
    %v9063 = vpack.c.b16 %v9012, %v9011
    %v9064 = vpack.c.b16 %v9014, %v9013
    %v9065 = vpack.c.b16 %v9016, %v9015
    %v9066 = vpack.c.b16 %v9018, %v9017
    %v9067 = vpack.c.b16 %v9020, %v9019
    %v9068 = vpack.c.b16 %v9022, %v9021
    %v9069 = vpack.c.b16 %v9024, %v9023
    %v9070 = vpack.c.b16 %v9026, %v9025
    %v9071 = vpack.c.b16 %v9028, %v9027
    %v9072 = vpack.c.b16 %v9030, %v9029
    %v9073 = vpack.c.b16 %v9032, %v9031
    %v9074 = vpack.c.b16 %v9034, %v9033
    %v9075 = vpack.c.b16 %v9036, %v9035
    %v9076 = vpack.c.b16 %v9038, %v9037
    %v9077 = vpack.c.b16 %v9040, %v9039
    %v9078 = vpack.c.b16 %v9042, %v9041
    %v9079 = vpack.c.b16 %v9044, %v9043
    %v9080 = vpack.c.b16 %v9046, %v9045
    %v9081 = vpack.c.b16 %v9048, %v9047
    %v9082 = vpack.c.b16 %v9050, %v9049
    %9115 = vmatprep.subr.bf16.mxu0 0
    %9116 = vmatpush1.bf16.msra.mxu0 %v9058
    %9117 = vmatprep.subr.bf16.mxu0 0
    %9118 = vmatpush1.bf16.msra.mxu0 %v9057
    %9119 = vmatprep.subr.bf16.mxu0 0
    %9120 = vmatpush1.bf16.msra.mxu0 %v9056
    %9121 = vmatprep.subr.bf16.mxu0 0
    %9122 = vmatpush1.bf16.msra.mxu0 %v9055
    %9123 = vmatprep.subr.bf16.mxu0 0
    %9124 = vmatpush1.bf16.msra.mxu0 %v9054
    %9125 = vmatprep.subr.bf16.mxu0 0
    %9126 = vmatpush1.bf16.msra.mxu0 %v9053
    %9127 = vmatprep.subr.bf16.mxu0 0
    %9128 = vmatpush1.bf16.msra.mxu0 %v9052
    %9129 = vmatprep.subr.bf16.mxu0 0
    %9130 = vmatpush1.bf16.msra.mxu0 %v9051
    %9131 = vmatprep.subr.bf16.mxu0 0
    %9132 = vmatpush2.bf16.msra.mxu0 %v9066
    %9133 = vmatprep.subr.bf16.mxu0 0
    %9134 = vmatpush2.bf16.msra.mxu0 %v9065
    %9135 = vmatprep.subr.bf16.mxu0 0
    %9136 = vmatpush2.bf16.msra.mxu0 %v9064
    %9137 = vmatprep.subr.bf16.mxu0 0
    %9138 = vmatpush2.bf16.msra.mxu0 %v9063
    %9139 = vmatprep.subr.bf16.mxu0 0
    %9140 = vmatpush2.bf16.msra.mxu0 %v9062
    %9141 = vmatprep.subr.bf16.mxu0 0
    %9142 = vmatpush2.bf16.msra.mxu0 %v9061
    %9143 = vmatprep.subr.bf16.mxu0 0
    %9144 = vmatpush2.bf16.msra.mxu0 %v9060
    %9145 = vmatprep.subr.bf16.mxu0 0
    %9146 = vmatpush2.bf16.msra.mxu0 %v9059
    %9147 = vmatprep.mubr.bf16.mxu0 %v8849
    %9148 = vmatmul.mubr.bf16.gmra.mxu0 %v8848
    %v9149 = vpop.f32.mrf.mxu0
    %v9150 = vadd.f32 %v8921, %v9149
    %v9151 = vpop.f32.mrf.mxu0
    %v9152 = vpop.f32.mrf.mxu0
    %v9153 = vpop.f32.mrf.mxu0
    %9154 = vdwg.mxu0
    %9155 = vmatprep.subr.bf16.mxu0 0
    %9156 = vmatpush1.bf16.msra.mxu0 %v9074
    %9157 = vmatprep.subr.bf16.mxu0 0
    %9158 = vmatpush1.bf16.msra.mxu0 %v9073
    %9159 = vmatprep.subr.bf16.mxu0 0
    %9160 = vmatpush1.bf16.msra.mxu0 %v9072
    %9161 = vmatprep.subr.bf16.mxu0 0
    %9162 = vmatpush1.bf16.msra.mxu0 %v9071
    %9163 = vmatprep.subr.bf16.mxu0 0
    %9164 = vmatpush1.bf16.msra.mxu0 %v9070
    %9165 = vmatprep.subr.bf16.mxu0 0
    %9166 = vmatpush1.bf16.msra.mxu0 %v9069
    %9167 = vmatprep.subr.bf16.mxu0 0
    %9168 = vmatpush1.bf16.msra.mxu0 %v9068
    %9169 = vmatprep.subr.bf16.mxu0 0
    %9170 = vmatpush1.bf16.msra.mxu0 %v9067
    %9171 = vmatprep.subr.bf16.mxu0 0
    %9172 = vmatpush2.bf16.msra.mxu0 %v9082
    %9173 = vmatprep.subr.bf16.mxu0 0
    %9174 = vmatpush2.bf16.msra.mxu0 %v9081
    %9175 = vmatprep.subr.bf16.mxu0 0
    %9176 = vmatpush2.bf16.msra.mxu0 %v9080
    %9177 = vmatprep.subr.bf16.mxu0 0
    %9178 = vmatpush2.bf16.msra.mxu0 %v9079
    %9179 = vmatprep.subr.bf16.mxu0 0
    %9180 = vmatpush2.bf16.msra.mxu0 %v9078
    %9181 = vmatprep.subr.bf16.mxu0 0
    %9182 = vmatpush2.bf16.msra.mxu0 %v9077
    %9183 = vmatprep.subr.bf16.mxu0 0
    %9184 = vmatpush2.bf16.msra.mxu0 %v9076
    %9185 = vmatprep.subr.bf16.mxu0 0
    %9186 = vmatpush2.bf16.msra.mxu0 %v9075
    %9187 = vmatprep.mubr.bf16.mxu0 %v8851
    %9188 = vmatmul.mubr.bf16.gmra.mxu0 %v8850
    %v9189 = vpop.f32.mrf.mxu0
    %v9190 = vadd.f32 %v9150, %v9189
    %v9191 = vpop.f32.mrf.mxu0
    %v9192 = vpop.f32.mrf.mxu0
    %v9193 = vpop.f32.mrf.mxu0
    %9194 = vdwg.mxu0
    %vm9195 = vcmask 41984
    %9196 = vst.msk [vmem:[#allocation19] sm:$0x3] %vm9195, %v9190
    // Predicated region
    $region82: #{dqn_forward.1} parent=1 // pred_check
      _
    $region83: #{dqn_forward.1} parent=1 // pred_check_branch
      %9198 = sbr.rel (0) target = $region85
    $region84: #{dqn_forward.1} parent=1 // pred_region
      %s9200 = ssub.s32 32, 32
      %9201 = vsyncadd [#allocation6], %s9200
      %s9203 = sshll.u32 [#allocation19], 4
      %s9204 = int_to_ptr.vmem [resolvable:$true] %s9203
      %9206 = dma.vmem_to_hbm [thread:$0]  %s9204, 32, %s11, [#allocation6]
    $region85: #{dqn_forward.1} parent=1 // pred_fallthru
      _
    // Predicated region
    $region86: #{dqn_forward.1} parent=1 // pred_check
      _
    $region87: #{dqn_forward.1} parent=1 // pred_check_branch
      %9208 = sbr.rel (0) target = $region89
    $region88: #{dqn_forward.1} parent=1 // pred_region
      %9209 = dma.done [#allocation6], 32
    $region89: #{dqn_forward.1} parent=1 // pred_fallthru
      _
    %9210 = vsyncpa [#allocation5], 1
    %9211 = vsyncpa [#allocation8], 1
    %9212 = vsyncpa [#allocation11], 1
    %9213 = vsyncpa [#allocation14], 1
    %9214 = vsyncpa [#allocation17], 1
    %9215 = vsyncpa [#allocation6], 1

</llo_original>
